<compile_context>
chip_gen: v7x
topology: tpu7x:2x2x1
jax: 0.10.0
libtpu: 0.0.40
codegen_flags: <defaults>
</compile_context>

<pallas_src>
import math
from functools import partial

import numpy as np
import jax
import jax.numpy as jnp
from jax.experimental import pallas as pl
from jax.experimental.pallas import tpu as pltpu


# ----------------------------- Pallas kernel ------------------------------- #

def _layernorm(x, gamma, beta, eps=1e-5):
    mu = jnp.mean(x, axis=-1, keepdims=True)
    var = jnp.mean((x - mu) ** 2, axis=-1, keepdims=True)
    return (x - mu) * jax.lax.rsqrt(var + eps) * gamma + beta


def encoder_run_kernel(x_ref, cos_ref, sin_ref, rot_ref,
                       wq_ref, bq_ref, wk_ref, bk_ref, wv_ref, bv_ref,
                       wo_ref, bo_ref, w1_ref, b1_ref, w2_ref, b2_ref,
                       g1_ref, be1_ref, g2_ref, be2_ref,
                       o_ref, *, num_heads, seq_len, num_layers):
    """Fused run of `num_layers` identical-geometry encoder blocks.

    x_ref block is (TN*S, D): TN whole sequences of length S on the sublane
    axis, embed dim D on the lane axis.  Weights are stacked on a leading
    layer axis: (R, D, D) / (R, D, H) bf16; biases / LN params are (R, D) f32.
    cos/sin are (S, D) f32 (per-head tiled along lanes); rot is the (D, D)
    block-diagonal rotate-half matrix in bf16.
    """
    M, D = x_ref.shape
    S = seq_len
    TN = M // S
    nh = num_heads
    dh = D // nh
    scale = 1.0 / math.sqrt(dh)

    x = x_ref[...]                       # (M, D) f32, stays resident across layers
    rot = rot_ref[...]                   # (D, D) bf16 block-diag rotate-half

    # Rotary tables broadcast once per block (hoisted out of the layer loop).
    cos_b = jnp.tile(cos_ref[...], (TN, 1))   # (M, D)
    sin_b = jnp.tile(sin_ref[...], (TN, 1))

    for l in range(num_layers):          # static unroll over fused layers
        x_bf = x.astype(jnp.bfloat16)

        # ---- full-width Q/K/V projections (contraction depth D, lane-dense) --
        q = jnp.dot(x_bf, wq_ref[l], preferred_element_type=jnp.float32) + bq_ref[l:l + 1]
        k = jnp.dot(x_bf, wk_ref[l], preferred_element_type=jnp.float32) + bk_ref[l:l + 1]
        v = jnp.dot(x_bf, wv_ref[l], preferred_element_type=jnp.float32) + bv_ref[l:l + 1]

        # ---- rotary: q*cos + rotate_half(q)*sin, rotate_half as ONE full-D
        #      block-diagonal matmul (instead of 2*nh tiny (dh,dh) matmuls) ----
        q = q * cos_b + jnp.dot(q.astype(jnp.bfloat16), rot,
                                preferred_element_type=jnp.float32) * sin_b
        k = k * cos_b + jnp.dot(k.astype(jnp.bfloat16), rot,
                                preferred_element_type=jnp.float32) * sin_b
        q = q * scale                    # fold 1/sqrt(dh) once into q

        # ---- per-head attention core.  NOTE: at demo geometry (S=8, dh=8)
        #      these (S,dh)x(dh,S) pushes are far below MXU tile granularity —
        #      inherent to the model shape (review item #11).  Head outputs are
        #      produced into contiguous lane ranges so a single full-width
        #      output projection follows. ----
        ctx_parts = []
        for h in range(nh):
            sl = slice(h * dh, (h + 1) * dh)         # static lane slice
            q3 = q[:, sl].reshape(TN, S, dh).astype(jnp.bfloat16)
            k3 = k[:, sl].reshape(TN, S, dh).astype(jnp.bfloat16)
            v3 = v[:, sl].reshape(TN, S, dh).astype(jnp.bfloat16)

            s = jnp.einsum('bqd,bkd->bqk', q3, k3,
                           preferred_element_type=jnp.float32)     # (TN, S, S)
            s = s - jnp.max(s, axis=-1, keepdims=True)
            p = jnp.exp(s)
            p = p / jnp.sum(p, axis=-1, keepdims=True)             # exact softmax
            oh = jnp.einsum('bqk,bkd->bqd', p.astype(jnp.bfloat16), v3,
                            preferred_element_type=jnp.float32)    # (TN, S, dh)
            ctx_parts.append(oh.reshape(M, dh))
        ctx = jnp.concatenate(ctx_parts, axis=-1)                  # (M, D)

        # ---- single full-width output projection ----
        attn = jnp.dot(ctx.astype(jnp.bfloat16), wo_ref[l],
                       preferred_element_type=jnp.float32) + bo_ref[l:l + 1]

        # residual 1 + LayerNorm 1 (drop_skip is identity in eval), f32 math
        h1 = _layernorm(x + attn, g1_ref[l:l + 1], be1_ref[l:l + 1])

        # feed-forward (bf16 matmuls, f32 accumulation / activation)
        ff = jnp.dot(h1.astype(jnp.bfloat16), w1_ref[l],
                     preferred_element_type=jnp.float32) + b1_ref[l:l + 1]
        ff = jnp.maximum(ff, 0.0)
        ff = jnp.dot(ff.astype(jnp.bfloat16), w2_ref[l],
                     preferred_element_type=jnp.float32) + b2_ref[l:l + 1]

        # residual 2 + LayerNorm 2
        x = _layernorm(h1 + ff, g2_ref[l:l + 1], be2_ref[l:l + 1])

    o_ref[...] = x


# ------------------------- wrapper around pallas_call ----------------------- #

def _vmem_limit_bytes():
    """Per-generation VMEM limit: ~75% of physical, capped at 100 MiB."""
    try:
        cap = int(pltpu.get_tpu_info().vmem_capacity_bytes)
    except Exception:
        cap = 64 * 1024 * 1024          # conservative (v7x physical)
    return int(min(int(cap * 0.75), 100 * 1024 * 1024))


def _run_chunk(x2d, weights, cos, sin, rot, *, num_heads, seq_len, num_layers,
               target_rows, vmem_limit):
    """One pallas_call over a chunk of fused layers.  x2d: (N*S, D) f32."""
    NS, D = x2d.shape
    S = seq_len
    N = NS // S
    nh = num_heads
    dh = D // nh

    # Choose TN sequences per block: ~target_rows rows, prefer grid >= 2
    # (v7x has 2 TensorCores; "parallel" axis shards blocks across them),
    # keep TN*S a multiple of 8 (sublane tiling) when splitting.
    TN = max(1, min(N, max(1, target_rows // S)))
    if N > 1 and TN >= N:
        TN = -(-N // 2)
    if TN < N:
        g = 8 // math.gcd(8, S)          # smallest TN step keeping TN*S % 8 == 0
        TN = (TN // g) * g
        if TN == 0:
            TN = N                       # cannot split sublane-aligned: one block
    N_pad = -(-N // TN) * TN

    x_in = x2d
    if N_pad != N:
        # Padded sequences are all-zero; results discarded (benign, eps-guarded).
        x_in = jnp.concatenate(
            [x2d, jnp.zeros(((N_pad - N) * S, D), x2d.dtype)], axis=0)

    block_rows = TN * S
    others = [cos, sin, rot] + list(weights)
    in_specs = [pl.BlockSpec((block_rows, D), lambda i: (i, 0))] + \
               [pl.BlockSpec(a.shape, lambda i, n=a.ndim: (0,) * n) for a in others]
    # TODO(synk): constant-index-map inputs (weights, rotary tables) are still
    # default double-buffered; pipeline_mode=pl.Buffered(1) (or streaming the
    # weights from HBM with manual DMA) would halve their VMEM footprint.

    # Advisory cost estimate for XLA scheduling.
    H = weights[8].shape[2]              # w1: (R, D, H)
    M_tot = N_pad * S
    flops_l = (2 * M_tot * D * D * 4           # q, k, v, out-proj
               + 2 * M_tot * D * D * 2         # block-diag rotary (q, k)
               + 2 * N_pad * nh * S * S * dh * 2   # scores + context
               + 2 * M_tot * D * H * 2)        # feed-forward
    ce = pl.CostEstimate(
        flops=int(flops_l * num_layers),
        transcendentals=int(num_layers * N_pad * nh * S * S),
        bytes_accessed=int(x_in.size * 4 * 2 +
                           sum(int(w.size) * w.dtype.itemsize for w in weights)))

    out = pl.pallas_call(
        partial(encoder_run_kernel, num_heads=num_heads, seq_len=S,
                num_layers=num_layers),
        out_shape=jax.ShapeDtypeStruct((N_pad * S, D), jnp.float32),
        grid=(N_pad // TN,),
        in_specs=in_specs,
        out_specs=pl.BlockSpec((block_rows, D), lambda i: (i, 0)),
        compiler_params=pltpu.CompilerParams(
            dimension_semantics=("parallel",),     # independent sequences
            vmem_limit_bytes=vmem_limit),
        cost_estimate=ce,
    )(x_in, *others)

    if N_pad != N:
        out = out[: N * S]
    return out


def run_encoder_run(x2d, run_weights, cos, sin, rot, *, num_heads, seq_len,
                    num_layers, target_rows=512):
    """Run `num_layers` same-type encoder layers over (N*S, D) rows.

    Fused-layer depth per pallas_call is capped so the (double-buffered)
    stacked weights stay within roughly half the per-generation VMEM budget;
    remaining layers run as additional sequential pallas_calls.
    """
    vmem_limit = _vmem_limit_bytes()
    per_layer_bytes = sum(math.prod(w.shape[1:]) * w.dtype.itemsize
                          for w in run_weights)
    max_fused = max(1, int((vmem_limit // 2) // max(1, 2 * per_layer_bytes)))

    out = x2d
    for lo in range(0, num_layers, max_fused):
        hi = min(num_layers, lo + max_fused)
        out = _run_chunk(out, [w[lo:hi] for w in run_weights], cos, sin, rot,
                         num_heads=num_heads, seq_len=seq_len,
                         num_layers=hi - lo, target_rows=target_rows,
                         vmem_limit=vmem_limit)
    return out


# ----------------------------- plain-JAX glue ------------------------------ #

def sinusoidal_pe(L, D):
    pos = jnp.arange(L, dtype=jnp.float32)[:, None]
    inv = jnp.exp(jnp.arange(0, D, 2, dtype=jnp.float32) * (-math.log(10000.0) / D))
    ang = pos * inv[None, :]
    pe = jnp.zeros((L, D), jnp.float32)
    pe = pe.at[:, 0::2].set(jnp.sin(ang))
    pe = pe.at[:, 1::2].set(jnp.cos(ang))
    return pe


def rope_cos_sin(S, dh, nh):
    """Per-position cos/sin tables tiled across heads: (S, D=nh*dh)."""
    half = dh // 2
    inv = 1.0 / (10000.0 ** (jnp.arange(half, dtype=jnp.float32) / half))
    ang = jnp.arange(S, dtype=jnp.float32)[:, None] * inv[None, :]
    cos = jnp.concatenate([jnp.cos(ang), jnp.cos(ang)], axis=-1)   # (S, dh)
    sin = jnp.concatenate([jnp.sin(ang), jnp.sin(ang)], axis=-1)
    return jnp.tile(cos, (1, nh)), jnp.tile(sin, (1, nh))          # (S, D)


def rotate_half_blockdiag(D, nh):
    """Block-diagonal R (D, D) s.t. per head x @ R == concat([-x2, x1])."""
    dh = D // nh
    half = dh // 2
    r = np.zeros((D, D), np.float32)
    for h in range(nh):
        o = h * dh
        i = np.arange(half)
        r[o + i + half, o + i] = -1.0
        r[o + i, o + i + half] = 1.0
    return jnp.asarray(r, dtype=jnp.bfloat16)


def stack_run_params(params_list):
    """Stack R same-type layers; weights lane-dense bf16, biases/LN f32."""
    bf = jnp.bfloat16

    def stk(name, dtype=None):
        a = jnp.stack([p[name] for p in params_list], axis=0)
        return a.astype(dtype) if dtype is not None else a

    return [stk("wq", bf), stk("bq"), stk("wk", bf), stk("bk"),
            stk("wv", bf), stk("bv"), stk("wo", bf), stk("bo"),
            stk("w1", bf), stk("b1"), stk("w2", bf), stk("b2"),
            stk("g1"), stk("be1"), stk("g2"), stk("be2")]


def init_block_params(key, D, H):
    ks = jax.random.split(key, 6)
    std = 0.02
    z = lambda n: jnp.zeros((n,), jnp.float32)
    return {
        "wq": std * jax.random.normal(ks[0], (D, D), jnp.float32), "bq": z(D),
        "wk": std * jax.random.normal(ks[1], (D, D), jnp.float32), "bk": z(D),
        "wv": std * jax.random.normal(ks[2], (D, D), jnp.float32), "bv": z(D),
        "wo": std * jax.random.normal(ks[3], (D, D), jnp.float32), "bo": z(D),
        "w1": std * jax.random.normal(ks[4], (D, H), jnp.float32), "b1": z(H),
        "w2": std * jax.random.normal(ks[5], (H, D), jnp.float32), "b2": z(D),
        "g1": jnp.ones((D,), jnp.float32), "be1": z(D),
        "g2": jnp.ones((D,), jnp.float32), "be2": z(D),
    }


@partial(jax.jit, static_argnames=("layer_types", "segment_size", "num_heads"))
def hierarchical_encoder_forward(tokens, embedding, layer_params, layer_types,
                                 segment_size, num_heads):
    B, L = tokens.shape
    D = embedding.shape[1]
    assert L % segment_size == 0
    num_segments = L // segment_size
    dh = D // num_heads

    x = embedding[tokens] + sinusoidal_pe(L, D)[None]   # embedding + PE (dropout=id)

    rot = rotate_half_blockdiag(D, num_heads)
    cos_seg, sin_seg = rope_cos_sin(segment_size, dh, num_heads)
    cos_glb, sin_glb = rope_cos_sin(num_segments, dh, num_heads)

    # group consecutive same-type layers into one fused run each
    runs = []
    start = 0
    for i in range(1, len(layer_types) + 1):
        if i == len(layer_types) or layer_types[i] != layer_types[start]:
            runs.append((layer_types[start], list(range(start, i))))
            start = i

    for kind, idxs in runs:
        weights = stack_run_params([layer_params[i] for i in idxs])
        if kind == "segment":
            x2 = x.reshape(B * L, D)
            x2 = run_encoder_run(x2, weights, cos_seg, sin_seg, rot,
                                 num_heads=num_heads, seq_len=segment_size,
                                 num_layers=len(idxs))
            x = x2.reshape(B, L, D)
        else:  # global
            xs = x.reshape(B, num_segments, segment_size, D)
            # TODO(synk): global-token gather/scatter kept as XLA ops inside jit
            # (in-place update); a Pallas gather would need Element-indexed specs.
            g = xs[:, :, 0, :].reshape(B * num_segments, D)
            g = run_encoder_run(g, weights, cos_glb, sin_glb, rot,
                                num_heads=num_heads, seq_len=num_segments,
                                num_layers=len(idxs))
            x = xs.at[:, :, 0, :].set(g.reshape(B, num_segments, D)).reshape(B, L, D)

    xs = x.reshape(B, num_segments, segment_size, D)
    globals_ = xs[:, :, 0, :]                             # (B, num_segments, D)
    normals = xs[:, :, 1:, :].reshape(B, -1, D)           # (B, num_seg*(S-1), D)
    return normals, globals_


# ---------------------------------- main ----------------------------------- #

if __name__ == "__main__":
    vocab_size = 100
    embed_dim = 32
    hidden_size = 64
    num_heads = 4
    segment_size = 8
    B, L = 2, 32            # 4 segments of 8 tokens each
    layers_type = ("segment", "segment", "global", "segment", "segment", "global")

    root = jax.random.PRNGKey(0)
    k_tok, k_emb, k_layers = jax.random.split(root, 3)

    tokens = jax.random.randint(k_tok, (B, L), 0, vocab_size, dtype=jnp.int32)
    embedding = 0.02 * jax.random.normal(k_emb, (vocab_size, embed_dim), jnp.float32)
    layer_keys = jax.random.split(k_layers, len(layers_type))
    layer_params = [init_block_params(k, embed_dim, hidden_size) for k in layer_keys]

    normals, globals_ = hierarchical_encoder_forward(
        tokens, embedding, layer_params, layer_types=layers_type,
        segment_size=segment_size, num_heads=num_heads)

    jax.block_until_ready((normals, globals_))
    num_segments = L // segment_size
    assert normals.shape == (B, num_segments * (segment_size - 1), embed_dim)
    assert globals_.shape == (B, num_segments, embed_dim)
    assert bool(jnp.all(jnp.isfinite(normals))) and bool(jnp.all(jnp.isfinite(globals_)))
    print("KERNEL_OK")
</pallas_src>

<mosaic_0001>
module attributes {stable_mosaic.version = 11 : i64} {
  func.func @encoder_run_kernel(%arg0: i32, %arg1: memref<32x32xf32, #tpu.memory_space<vmem>>, %arg2: memref<8x32xf32, #tpu.memory_space<vmem>>, %arg3: memref<8x32xf32, #tpu.memory_space<vmem>>, %arg4: memref<32x32xbf16, #tpu.memory_space<vmem>>, %arg5: memref<2x32x32xbf16, #tpu.memory_space<vmem>>, %arg6: memref<2x32xf32, #tpu.memory_space<vmem>>, %arg7: memref<2x32x32xbf16, #tpu.memory_space<vmem>>, %arg8: memref<2x32xf32, #tpu.memory_space<vmem>>, %arg9: memref<2x32x32xbf16, #tpu.memory_space<vmem>>, %arg10: memref<2x32xf32, #tpu.memory_space<vmem>>, %arg11: memref<2x32x32xbf16, #tpu.memory_space<vmem>>, %arg12: memref<2x32xf32, #tpu.memory_space<vmem>>, %arg13: memref<2x32x64xbf16, #tpu.memory_space<vmem>>, %arg14: memref<2x64xf32, #tpu.memory_space<vmem>>, %arg15: memref<2x64x32xbf16, #tpu.memory_space<vmem>>, %arg16: memref<2x32xf32, #tpu.memory_space<vmem>>, %arg17: memref<2x32xf32, #tpu.memory_space<vmem>>, %arg18: memref<2x32xf32, #tpu.memory_space<vmem>>, %arg19: memref<2x32xf32, #tpu.memory_space<vmem>>, %arg20: memref<2x32xf32, #tpu.memory_space<vmem>>, %arg21: memref<32x32xf32, #tpu.memory_space<vmem>>) attributes {dimension_semantics = [#tpu.dimension_semantics<parallel>], iteration_bounds = array<i64: 2>, scalar_prefetch = 0 : i64, scratch_operands = 0 : i64, tpu.core_type = #tpu.core_type<tc>, window_params = [{transform_indices = @transform_0, window_bounds = array<i64: 32, 32>}, {pipeline_mode = #tpu.pipeline_mode<synchronous>, transform_indices = @transform_1, window_bounds = array<i64: 8, 32>}, {pipeline_mode = #tpu.pipeline_mode<synchronous>, transform_indices = @transform_2, window_bounds = array<i64: 8, 32>}, {pipeline_mode = #tpu.pipeline_mode<synchronous>, transform_indices = @transform_3, window_bounds = array<i64: 32, 32>}, {pipeline_mode = #tpu.pipeline_mode<synchronous>, transform_indices = @transform_4, window_bounds = array<i64: 2, 32, 32>}, {pipeline_mode = #tpu.pipeline_mode<synchronous>, transform_indices = @transform_5, window_bounds = array<i64: 2, 32>}, {pipeline_mode = #tpu.pipeline_mode<synchronous>, transform_indices = @transform_6, window_bounds = array<i64: 2, 32, 32>}, {pipeline_mode = #tpu.pipeline_mode<synchronous>, transform_indices = @transform_7, window_bounds = array<i64: 2, 32>}, {pipeline_mode = #tpu.pipeline_mode<synchronous>, transform_indices = @transform_8, window_bounds = array<i64: 2, 32, 32>}, {pipeline_mode = #tpu.pipeline_mode<synchronous>, transform_indices = @transform_9, window_bounds = array<i64: 2, 32>}, {pipeline_mode = #tpu.pipeline_mode<synchronous>, transform_indices = @transform_10, window_bounds = array<i64: 2, 32, 32>}, {pipeline_mode = #tpu.pipeline_mode<synchronous>, transform_indices = @transform_11, window_bounds = array<i64: 2, 32>}, {pipeline_mode = #tpu.pipeline_mode<synchronous>, transform_indices = @transform_12, window_bounds = array<i64: 2, 32, 64>}, {pipeline_mode = #tpu.pipeline_mode<synchronous>, transform_indices = @transform_13, window_bounds = array<i64: 2, 64>}, {pipeline_mode = #tpu.pipeline_mode<synchronous>, transform_indices = @transform_14, window_bounds = array<i64: 2, 64, 32>}, {pipeline_mode = #tpu.pipeline_mode<synchronous>, transform_indices = @transform_15, window_bounds = array<i64: 2, 32>}, {pipeline_mode = #tpu.pipeline_mode<synchronous>, transform_indices = @transform_16, window_bounds = array<i64: 2, 32>}, {pipeline_mode = #tpu.pipeline_mode<synchronous>, transform_indices = @transform_17, window_bounds = array<i64: 2, 32>}, {pipeline_mode = #tpu.pipeline_mode<synchronous>, transform_indices = @transform_18, window_bounds = array<i64: 2, 32>}, {pipeline_mode = #tpu.pipeline_mode<synchronous>, transform_indices = @transform_19, window_bounds = array<i64: 2, 32>}, {transform_indices = @transform_20, window_bounds = array<i64: 32, 32>}]} {
    %c0 = arith.constant 0 : index
    %c0_0 = arith.constant 0 : index
    %0 = vector.load %arg1[%c0, %c0_0] : memref<32x32xf32, #tpu.memory_space<vmem>>, vector<32x32xf32>
    %c0_1 = arith.constant 0 : index
    %c0_2 = arith.constant 0 : index
    %1 = vector.load %arg4[%c0_1, %c0_2] : memref<32x32xbf16, #tpu.memory_space<vmem>>, vector<32x32xbf16>
    %c0_3 = arith.constant 0 : index
    %c0_4 = arith.constant 0 : index
    %2 = vector.load %arg2[%c0_3, %c0_4] : memref<8x32xf32, #tpu.memory_space<vmem>>, vector<8x32xf32>
    %3 = tpu.concatenate %2, %2, %2, %2 in 0 : vector<8x32xf32>, vector<8x32xf32>, vector<8x32xf32>, vector<8x32xf32> -> vector<32x32xf32>
    %c0_5 = arith.constant 0 : index
    %c0_6 = arith.constant 0 : index
    %4 = vector.load %arg3[%c0_5, %c0_6] : memref<8x32xf32, #tpu.memory_space<vmem>>, vector<8x32xf32>
    %5 = tpu.concatenate %4, %4, %4, %4 in 0 : vector<8x32xf32>, vector<8x32xf32>, vector<8x32xf32>, vector<8x32xf32> -> vector<32x32xf32>
    %6 = arith.truncf %0 : vector<32x32xf32> to vector<32x32xbf16>
    %c0_7 = arith.constant 0 : index
    %c0_8 = arith.constant 0 : index
    %c0_9 = arith.constant 0 : index
    %7 = vector.load %arg5[%c0_7, %c0_8, %c0_9] : memref<2x32x32xbf16, #tpu.memory_space<vmem>>, vector<1x32x32xbf16>
    %8 = vector.shape_cast %7 : vector<1x32x32xbf16> to vector<32x32xbf16>
    %cst = arith.constant dense<0.000000e+00> : vector<32x32xf32>
    %9 = tpu.matmul %6, %8, %cst {dimension_numbers = #tpu.dot_dimension_numbers<[1], [0], [0], [1], [0, 0, 1, 1], [], []>} : vector<32x32xbf16>, vector<32x32xbf16>, vector<32x32xf32> -> vector<32x32xf32>
    %c0_10 = arith.constant 0 : index
    %c0_11 = arith.constant 0 : index
    %10 = vector.load %arg6[%c0_10, %c0_11] : memref<2x32xf32, #tpu.memory_space<vmem>>, vector<1x32xf32>
    %11 = vector.broadcast %10 : vector<1x32xf32> to vector<32x32xf32>
    %12 = arith.addf %9, %11 : vector<32x32xf32>
    %c0_12 = arith.constant 0 : index
    %c0_13 = arith.constant 0 : index
    %c0_14 = arith.constant 0 : index
    %13 = vector.load %arg7[%c0_12, %c0_13, %c0_14] : memref<2x32x32xbf16, #tpu.memory_space<vmem>>, vector<1x32x32xbf16>
    %14 = vector.shape_cast %13 : vector<1x32x32xbf16> to vector<32x32xbf16>
    %cst_15 = arith.constant dense<0.000000e+00> : vector<32x32xf32>
    %15 = tpu.matmul %6, %14, %cst_15 {dimension_numbers = #tpu.dot_dimension_numbers<[1], [0], [0], [1], [0, 0, 1, 1], [], []>} : vector<32x32xbf16>, vector<32x32xbf16>, vector<32x32xf32> -> vector<32x32xf32>
    %c0_16 = arith.constant 0 : index
    %c0_17 = arith.constant 0 : index
    %16 = vector.load %arg8[%c0_16, %c0_17] : memref<2x32xf32, #tpu.memory_space<vmem>>, vector<1x32xf32>
    %17 = vector.broadcast %16 : vector<1x32xf32> to vector<32x32xf32>
    %18 = arith.addf %15, %17 : vector<32x32xf32>
    %c0_18 = arith.constant 0 : index
    %c0_19 = arith.constant 0 : index
    %c0_20 = arith.constant 0 : index
    %19 = vector.load %arg9[%c0_18, %c0_19, %c0_20] : memref<2x32x32xbf16, #tpu.memory_space<vmem>>, vector<1x32x32xbf16>
    %20 = vector.shape_cast %19 : vector<1x32x32xbf16> to vector<32x32xbf16>
    %cst_21 = arith.constant dense<0.000000e+00> : vector<32x32xf32>
    %21 = tpu.matmul %6, %20, %cst_21 {dimension_numbers = #tpu.dot_dimension_numbers<[1], [0], [0], [1], [0, 0, 1, 1], [], []>} : vector<32x32xbf16>, vector<32x32xbf16>, vector<32x32xf32> -> vector<32x32xf32>
    %c0_22 = arith.constant 0 : index
    %c0_23 = arith.constant 0 : index
    %22 = vector.load %arg10[%c0_22, %c0_23] : memref<2x32xf32, #tpu.memory_space<vmem>>, vector<1x32xf32>
    %23 = vector.broadcast %22 : vector<1x32xf32> to vector<32x32xf32>
    %24 = arith.addf %21, %23 : vector<32x32xf32>
    %25 = arith.mulf %12, %3 : vector<32x32xf32>
    %26 = arith.truncf %12 : vector<32x32xf32> to vector<32x32xbf16>
    %cst_24 = arith.constant dense<0.000000e+00> : vector<32x32xf32>
    %27 = tpu.matmul %26, %1, %cst_24 {dimension_numbers = #tpu.dot_dimension_numbers<[1], [0], [0], [1], [0, 0, 1, 1], [], []>} : vector<32x32xbf16>, vector<32x32xbf16>, vector<32x32xf32> -> vector<32x32xf32>
    %28 = arith.mulf %27, %5 : vector<32x32xf32>
    %29 = arith.addf %25, %28 : vector<32x32xf32>
    %30 = arith.mulf %18, %3 : vector<32x32xf32>
    %31 = arith.truncf %18 : vector<32x32xf32> to vector<32x32xbf16>
    %cst_25 = arith.constant dense<0.000000e+00> : vector<32x32xf32>
    %32 = tpu.matmul %31, %1, %cst_25 {dimension_numbers = #tpu.dot_dimension_numbers<[1], [0], [0], [1], [0, 0, 1, 1], [], []>} : vector<32x32xbf16>, vector<32x32xbf16>, vector<32x32xf32> -> vector<32x32xf32>
    %33 = arith.mulf %32, %5 : vector<32x32xf32>
    %34 = arith.addf %30, %33 : vector<32x32xf32>
    %cst_26 = arith.constant 0.353553385 : f32
    %35 = vector.broadcast %cst_26 : f32 to vector<32x32xf32>
    %36 = arith.mulf %29, %35 : vector<32x32xf32>
    %37 = vector.extract_strided_slice %36 {offsets = [0, 0], sizes = [32, 8], strides = [1, 1]} : vector<32x32xf32> to vector<32x8xf32>
    %38 = vector.shape_cast %37 : vector<32x8xf32> to vector<4x8x8xf32>
    %39 = arith.truncf %38 : vector<4x8x8xf32> to vector<4x8x8xbf16>
    %40 = vector.extract_strided_slice %34 {offsets = [0, 0], sizes = [32, 8], strides = [1, 1]} : vector<32x32xf32> to vector<32x8xf32>
    %41 = vector.shape_cast %40 : vector<32x8xf32> to vector<4x8x8xf32>
    %42 = arith.truncf %41 : vector<4x8x8xf32> to vector<4x8x8xbf16>
    %43 = vector.extract_strided_slice %24 {offsets = [0, 0], sizes = [32, 8], strides = [1, 1]} : vector<32x32xf32> to vector<32x8xf32>
    %44 = vector.shape_cast %43 : vector<32x8xf32> to vector<4x8x8xf32>
    %45 = arith.truncf %44 : vector<4x8x8xf32> to vector<4x8x8xbf16>
    "tpu.trace_start"() <{level = 10 : i32, message = "bqd,bkd->bqk"}> : () -> ()
    %cst_27 = arith.constant dense<0.000000e+00> : vector<4x8x8xf32>
    %46 = tpu.matmul %39, %42, %cst_27 {dimension_numbers = #tpu.dot_dimension_numbers<[2], [2], [1], [1], [0, 0, 0, 1, 1, 1], [0], [0]>} : vector<4x8x8xbf16>, vector<4x8x8xbf16>, vector<4x8x8xf32> -> vector<4x8x8xf32>
    "tpu.trace_stop"() : () -> ()
    %cst_28 = arith.constant dense<0xFF800000> : vector<4x8xf32>
    %47 = vector.multi_reduction <maximumf>, %46, %cst_28 [2] : vector<4x8x8xf32> to vector<4x8xf32>
    %48 = vector.shape_cast %47 : vector<4x8xf32> to vector<4x8x1xf32>
    %49 = vector.broadcast %48 : vector<4x8x1xf32> to vector<4x8x8xf32>
    %50 = arith.subf %46, %49 : vector<4x8x8xf32>
    %51 = math.exp %50 : vector<4x8x8xf32>
    %cst_29 = arith.constant dense<0.000000e+00> : vector<4x8xf32>
    %52 = vector.multi_reduction <add>, %51, %cst_29 [2] : vector<4x8x8xf32> to vector<4x8xf32>
    %53 = vector.shape_cast %52 : vector<4x8xf32> to vector<4x8x1xf32>
    %54 = vector.broadcast %53 : vector<4x8x1xf32> to vector<4x8x8xf32>
    %55 = arith.divf %51, %54 : vector<4x8x8xf32>
    %56 = arith.truncf %55 : vector<4x8x8xf32> to vector<4x8x8xbf16>
    "tpu.trace_start"() <{level = 10 : i32, message = "bqk,bkd->bqd"}> : () -> ()
    %cst_30 = arith.constant dense<0.000000e+00> : vector<4x8x8xf32>
    %57 = tpu.matmul %56, %45, %cst_30 {dimension_numbers = #tpu.dot_dimension_numbers<[2], [1], [1], [2], [0, 0, 0, 1, 1, 2], [0], [0]>} : vector<4x8x8xbf16>, vector<4x8x8xbf16>, vector<4x8x8xf32> -> vector<4x8x8xf32>
    "tpu.trace_stop"() : () -> ()
    %58 = vector.shape_cast %57 : vector<4x8x8xf32> to vector<32x8xf32>
    %59 = vector.extract_strided_slice %36 {offsets = [0, 8], sizes = [32, 8], strides = [1, 1]} : vector<32x32xf32> to vector<32x8xf32>
    %60 = vector.shape_cast %59 : vector<32x8xf32> to vector<4x8x8xf32>
    %61 = arith.truncf %60 : vector<4x8x8xf32> to vector<4x8x8xbf16>
    %62 = vector.extract_strided_slice %34 {offsets = [0, 8], sizes = [32, 8], strides = [1, 1]} : vector<32x32xf32> to vector<32x8xf32>
    %63 = vector.shape_cast %62 : vector<32x8xf32> to vector<4x8x8xf32>
    %64 = arith.truncf %63 : vector<4x8x8xf32> to vector<4x8x8xbf16>
    %65 = vector.extract_strided_slice %24 {offsets = [0, 8], sizes = [32, 8], strides = [1, 1]} : vector<32x32xf32> to vector<32x8xf32>
    %66 = vector.shape_cast %65 : vector<32x8xf32> to vector<4x8x8xf32>
    %67 = arith.truncf %66 : vector<4x8x8xf32> to vector<4x8x8xbf16>
    "tpu.trace_start"() <{level = 10 : i32, message = "bqd,bkd->bqk"}> : () -> ()
    %cst_31 = arith.constant dense<0.000000e+00> : vector<4x8x8xf32>
    %68 = tpu.matmul %61, %64, %cst_31 {dimension_numbers = #tpu.dot_dimension_numbers<[2], [2], [1], [1], [0, 0, 0, 1, 1, 1], [0], [0]>} : vector<4x8x8xbf16>, vector<4x8x8xbf16>, vector<4x8x8xf32> -> vector<4x8x8xf32>
    "tpu.trace_stop"() : () -> ()
    %cst_32 = arith.constant dense<0xFF800000> : vector<4x8xf32>
    %69 = vector.multi_reduction <maximumf>, %68, %cst_32 [2] : vector<4x8x8xf32> to vector<4x8xf32>
    %70 = vector.shape_cast %69 : vector<4x8xf32> to vector<4x8x1xf32>
    %71 = vector.broadcast %70 : vector<4x8x1xf32> to vector<4x8x8xf32>
    %72 = arith.subf %68, %71 : vector<4x8x8xf32>
    %73 = math.exp %72 : vector<4x8x8xf32>
    %cst_33 = arith.constant dense<0.000000e+00> : vector<4x8xf32>
    %74 = vector.multi_reduction <add>, %73, %cst_33 [2] : vector<4x8x8xf32> to vector<4x8xf32>
    %75 = vector.shape_cast %74 : vector<4x8xf32> to vector<4x8x1xf32>
    %76 = vector.broadcast %75 : vector<4x8x1xf32> to vector<4x8x8xf32>
    %77 = arith.divf %73, %76 : vector<4x8x8xf32>
    %78 = arith.truncf %77 : vector<4x8x8xf32> to vector<4x8x8xbf16>
    "tpu.trace_start"() <{level = 10 : i32, message = "bqk,bkd->bqd"}> : () -> ()
    %cst_34 = arith.constant dense<0.000000e+00> : vector<4x8x8xf32>
    %79 = tpu.matmul %78, %67, %cst_34 {dimension_numbers = #tpu.dot_dimension_numbers<[2], [1], [1], [2], [0, 0, 0, 1, 1, 2], [0], [0]>} : vector<4x8x8xbf16>, vector<4x8x8xbf16>, vector<4x8x8xf32> -> vector<4x8x8xf32>
    "tpu.trace_stop"() : () -> ()
    %80 = vector.shape_cast %79 : vector<4x8x8xf32> to vector<32x8xf32>
    %81 = vector.extract_strided_slice %36 {offsets = [0, 16], sizes = [32, 8], strides = [1, 1]} : vector<32x32xf32> to vector<32x8xf32>
    %82 = vector.shape_cast %81 : vector<32x8xf32> to vector<4x8x8xf32>
    %83 = arith.truncf %82 : vector<4x8x8xf32> to vector<4x8x8xbf16>
    %84 = vector.extract_strided_slice %34 {offsets = [0, 16], sizes = [32, 8], strides = [1, 1]} : vector<32x32xf32> to vector<32x8xf32>
    %85 = vector.shape_cast %84 : vector<32x8xf32> to vector<4x8x8xf32>
    %86 = arith.truncf %85 : vector<4x8x8xf32> to vector<4x8x8xbf16>
    %87 = vector.extract_strided_slice %24 {offsets = [0, 16], sizes = [32, 8], strides = [1, 1]} : vector<32x32xf32> to vector<32x8xf32>
    %88 = vector.shape_cast %87 : vector<32x8xf32> to vector<4x8x8xf32>
    %89 = arith.truncf %88 : vector<4x8x8xf32> to vector<4x8x8xbf16>
    "tpu.trace_start"() <{level = 10 : i32, message = "bqd,bkd->bqk"}> : () -> ()
    %cst_35 = arith.constant dense<0.000000e+00> : vector<4x8x8xf32>
    %90 = tpu.matmul %83, %86, %cst_35 {dimension_numbers = #tpu.dot_dimension_numbers<[2], [2], [1], [1], [0, 0, 0, 1, 1, 1], [0], [0]>} : vector<4x8x8xbf16>, vector<4x8x8xbf16>, vector<4x8x8xf32> -> vector<4x8x8xf32>
    "tpu.trace_stop"() : () -> ()
    %cst_36 = arith.constant dense<0xFF800000> : vector<4x8xf32>
    %91 = vector.multi_reduction <maximumf>, %90, %cst_36 [2] : vector<4x8x8xf32> to vector<4x8xf32>
    %92 = vector.shape_cast %91 : vector<4x8xf32> to vector<4x8x1xf32>
    %93 = vector.broadcast %92 : vector<4x8x1xf32> to vector<4x8x8xf32>
    %94 = arith.subf %90, %93 : vector<4x8x8xf32>
    %95 = math.exp %94 : vector<4x8x8xf32>
    %cst_37 = arith.constant dense<0.000000e+00> : vector<4x8xf32>
    %96 = vector.multi_reduction <add>, %95, %cst_37 [2] : vector<4x8x8xf32> to vector<4x8xf32>
    %97 = vector.shape_cast %96 : vector<4x8xf32> to vector<4x8x1xf32>
    %98 = vector.broadcast %97 : vector<4x8x1xf32> to vector<4x8x8xf32>
    %99 = arith.divf %95, %98 : vector<4x8x8xf32>
    %100 = arith.truncf %99 : vector<4x8x8xf32> to vector<4x8x8xbf16>
    "tpu.trace_start"() <{level = 10 : i32, message = "bqk,bkd->bqd"}> : () -> ()
    %cst_38 = arith.constant dense<0.000000e+00> : vector<4x8x8xf32>
    %101 = tpu.matmul %100, %89, %cst_38 {dimension_numbers = #tpu.dot_dimension_numbers<[2], [1], [1], [2], [0, 0, 0, 1, 1, 2], [0], [0]>} : vector<4x8x8xbf16>, vector<4x8x8xbf16>, vector<4x8x8xf32> -> vector<4x8x8xf32>
    "tpu.trace_stop"() : () -> ()
    %102 = vector.shape_cast %101 : vector<4x8x8xf32> to vector<32x8xf32>
    %103 = vector.extract_strided_slice %36 {offsets = [0, 24], sizes = [32, 8], strides = [1, 1]} : vector<32x32xf32> to vector<32x8xf32>
    %104 = vector.shape_cast %103 : vector<32x8xf32> to vector<4x8x8xf32>
    %105 = arith.truncf %104 : vector<4x8x8xf32> to vector<4x8x8xbf16>
    %106 = vector.extract_strided_slice %34 {offsets = [0, 24], sizes = [32, 8], strides = [1, 1]} : vector<32x32xf32> to vector<32x8xf32>
    %107 = vector.shape_cast %106 : vector<32x8xf32> to vector<4x8x8xf32>
    %108 = arith.truncf %107 : vector<4x8x8xf32> to vector<4x8x8xbf16>
    %109 = vector.extract_strided_slice %24 {offsets = [0, 24], sizes = [32, 8], strides = [1, 1]} : vector<32x32xf32> to vector<32x8xf32>
    %110 = vector.shape_cast %109 : vector<32x8xf32> to vector<4x8x8xf32>
    %111 = arith.truncf %110 : vector<4x8x8xf32> to vector<4x8x8xbf16>
    "tpu.trace_start"() <{level = 10 : i32, message = "bqd,bkd->bqk"}> : () -> ()
    %cst_39 = arith.constant dense<0.000000e+00> : vector<4x8x8xf32>
    %112 = tpu.matmul %105, %108, %cst_39 {dimension_numbers = #tpu.dot_dimension_numbers<[2], [2], [1], [1], [0, 0, 0, 1, 1, 1], [0], [0]>} : vector<4x8x8xbf16>, vector<4x8x8xbf16>, vector<4x8x8xf32> -> vector<4x8x8xf32>
    "tpu.trace_stop"() : () -> ()
    %cst_40 = arith.constant dense<0xFF800000> : vector<4x8xf32>
    %113 = vector.multi_reduction <maximumf>, %112, %cst_40 [2] : vector<4x8x8xf32> to vector<4x8xf32>
    %114 = vector.shape_cast %113 : vector<4x8xf32> to vector<4x8x1xf32>
    %115 = vector.broadcast %114 : vector<4x8x1xf32> to vector<4x8x8xf32>
    %116 = arith.subf %112, %115 : vector<4x8x8xf32>
    %117 = math.exp %116 : vector<4x8x8xf32>
    %cst_41 = arith.constant dense<0.000000e+00> : vector<4x8xf32>
    %118 = vector.multi_reduction <add>, %117, %cst_41 [2] : vector<4x8x8xf32> to vector<4x8xf32>
    %119 = vector.shape_cast %118 : vector<4x8xf32> to vector<4x8x1xf32>
    %120 = vector.broadcast %119 : vector<4x8x1xf32> to vector<4x8x8xf32>
    %121 = arith.divf %117, %120 : vector<4x8x8xf32>
    %122 = arith.truncf %121 : vector<4x8x8xf32> to vector<4x8x8xbf16>
    "tpu.trace_start"() <{level = 10 : i32, message = "bqk,bkd->bqd"}> : () -> ()
    %cst_42 = arith.constant dense<0.000000e+00> : vector<4x8x8xf32>
    %123 = tpu.matmul %122, %111, %cst_42 {dimension_numbers = #tpu.dot_dimension_numbers<[2], [1], [1], [2], [0, 0, 0, 1, 1, 2], [0], [0]>} : vector<4x8x8xbf16>, vector<4x8x8xbf16>, vector<4x8x8xf32> -> vector<4x8x8xf32>
    "tpu.trace_stop"() : () -> ()
    %124 = vector.shape_cast %123 : vector<4x8x8xf32> to vector<32x8xf32>
    %125 = tpu.concatenate %58, %80, %102, %124 in 1 : vector<32x8xf32>, vector<32x8xf32>, vector<32x8xf32>, vector<32x8xf32> -> vector<32x32xf32>
    %126 = arith.truncf %125 : vector<32x32xf32> to vector<32x32xbf16>
    %c0_43 = arith.constant 0 : index
    %c0_44 = arith.constant 0 : index
    %c0_45 = arith.constant 0 : index
    %127 = vector.load %arg11[%c0_43, %c0_44, %c0_45] : memref<2x32x32xbf16, #tpu.memory_space<vmem>>, vector<1x32x32xbf16>
    %128 = vector.shape_cast %127 : vector<1x32x32xbf16> to vector<32x32xbf16>
    %cst_46 = arith.constant dense<0.000000e+00> : vector<32x32xf32>
    %129 = tpu.matmul %126, %128, %cst_46 {dimension_numbers = #tpu.dot_dimension_numbers<[1], [0], [0], [1], [0, 0, 1, 1], [], []>} : vector<32x32xbf16>, vector<32x32xbf16>, vector<32x32xf32> -> vector<32x32xf32>
    %c0_47 = arith.constant 0 : index
    %c0_48 = arith.constant 0 : index
    %130 = vector.load %arg12[%c0_47, %c0_48] : memref<2x32xf32, #tpu.memory_space<vmem>>, vector<1x32xf32>
    %131 = vector.broadcast %130 : vector<1x32xf32> to vector<32x32xf32>
    %132 = arith.addf %129, %131 : vector<32x32xf32>
    %133 = arith.addf %0, %132 : vector<32x32xf32>
    %c0_49 = arith.constant 0 : index
    %c0_50 = arith.constant 0 : index
    %134 = vector.load %arg17[%c0_49, %c0_50] : memref<2x32xf32, #tpu.memory_space<vmem>>, vector<1x32xf32>
    %c0_51 = arith.constant 0 : index
    %c0_52 = arith.constant 0 : index
    %135 = vector.load %arg18[%c0_51, %c0_52] : memref<2x32xf32, #tpu.memory_space<vmem>>, vector<1x32xf32>
    %cst_53 = arith.constant dense<0.000000e+00> : vector<32xf32>
    %136 = vector.multi_reduction <add>, %133, %cst_53 [1] : vector<32x32xf32> to vector<32xf32>
    %137 = vector.shape_cast %136 : vector<32xf32> to vector<32x1xf32>
    %cst_54 = arith.constant 3.200000e+01 : f32
    %138 = vector.broadcast %cst_54 : f32 to vector<32x1xf32>
    %139 = arith.divf %137, %138 : vector<32x1xf32>
    %140 = vector.broadcast %139 : vector<32x1xf32> to vector<32x32xf32>
    %141 = arith.subf %133, %140 : vector<32x32xf32>
    %142 = arith.mulf %141, %141 : vector<32x32xf32>
    %cst_55 = arith.constant dense<0.000000e+00> : vector<32xf32>
    %143 = vector.multi_reduction <add>, %142, %cst_55 [1] : vector<32x32xf32> to vector<32xf32>
    %144 = vector.shape_cast %143 : vector<32xf32> to vector<32x1xf32>
    %cst_56 = arith.constant 3.200000e+01 : f32
    %145 = vector.broadcast %cst_56 : f32 to vector<32x1xf32>
    %146 = arith.divf %144, %145 : vector<32x1xf32>
    %147 = vector.broadcast %139 : vector<32x1xf32> to vector<32x32xf32>
    %148 = arith.subf %133, %147 : vector<32x32xf32>
    %cst_57 = arith.constant 9.99999974E-6 : f32
    %149 = vector.broadcast %cst_57 : f32 to vector<32x1xf32>
    %150 = arith.addf %146, %149 : vector<32x1xf32>
    %151 = math.rsqrt %150 : vector<32x1xf32>
    %152 = vector.broadcast %151 : vector<32x1xf32> to vector<32x32xf32>
    %153 = arith.mulf %148, %152 : vector<32x32xf32>
    %154 = vector.broadcast %134 : vector<1x32xf32> to vector<32x32xf32>
    %155 = arith.mulf %153, %154 : vector<32x32xf32>
    %156 = vector.broadcast %135 : vector<1x32xf32> to vector<32x32xf32>
    %157 = arith.addf %155, %156 : vector<32x32xf32>
    %158 = arith.truncf %157 : vector<32x32xf32> to vector<32x32xbf16>
    %c0_58 = arith.constant 0 : index
    %c0_59 = arith.constant 0 : index
    %c0_60 = arith.constant 0 : index
    %159 = vector.load %arg13[%c0_58, %c0_59, %c0_60] : memref<2x32x64xbf16, #tpu.memory_space<vmem>>, vector<1x32x64xbf16>
    %160 = vector.shape_cast %159 : vector<1x32x64xbf16> to vector<32x64xbf16>
    %cst_61 = arith.constant dense<0.000000e+00> : vector<32x64xf32>
    %161 = tpu.matmul %158, %160, %cst_61 {dimension_numbers = #tpu.dot_dimension_numbers<[1], [0], [0], [1], [0, 0, 1, 1], [], []>} : vector<32x32xbf16>, vector<32x64xbf16>, vector<32x64xf32> -> vector<32x64xf32>
    %c0_62 = arith.constant 0 : index
    %c0_63 = arith.constant 0 : index
    %162 = vector.load %arg14[%c0_62, %c0_63] : memref<2x64xf32, #tpu.memory_space<vmem>>, vector<1x64xf32>
    %163 = vector.broadcast %162 : vector<1x64xf32> to vector<32x64xf32>
    %164 = arith.addf %161, %163 : vector<32x64xf32>
    %cst_64 = arith.constant 0.000000e+00 : f32
    %165 = vector.broadcast %cst_64 : f32 to vector<32x64xf32>
    %166 = arith.maximumf %164, %165 : vector<32x64xf32>
    %167 = arith.truncf %166 : vector<32x64xf32> to vector<32x64xbf16>
    %c0_65 = arith.constant 0 : index
    %c0_66 = arith.constant 0 : index
    %c0_67 = arith.constant 0 : index
    %168 = vector.load %arg15[%c0_65, %c0_66, %c0_67] : memref<2x64x32xbf16, #tpu.memory_space<vmem>>, vector<1x64x32xbf16>
    %169 = vector.shape_cast %168 : vector<1x64x32xbf16> to vector<64x32xbf16>
    %cst_68 = arith.constant dense<0.000000e+00> : vector<32x32xf32>
    %170 = tpu.matmul %167, %169, %cst_68 {dimension_numbers = #tpu.dot_dimension_numbers<[1], [0], [0], [1], [0, 0, 1, 1], [], []>} : vector<32x64xbf16>, vector<64x32xbf16>, vector<32x32xf32> -> vector<32x32xf32>
    %c0_69 = arith.constant 0 : index
    %c0_70 = arith.constant 0 : index
    %171 = vector.load %arg16[%c0_69, %c0_70] : memref<2x32xf32, #tpu.memory_space<vmem>>, vector<1x32xf32>
    %172 = vector.broadcast %171 : vector<1x32xf32> to vector<32x32xf32>
    %173 = arith.addf %170, %172 : vector<32x32xf32>
    %174 = arith.addf %157, %173 : vector<32x32xf32>
    %c0_71 = arith.constant 0 : index
    %c0_72 = arith.constant 0 : index
    %175 = vector.load %arg19[%c0_71, %c0_72] : memref<2x32xf32, #tpu.memory_space<vmem>>, vector<1x32xf32>
    %c0_73 = arith.constant 0 : index
    %c0_74 = arith.constant 0 : index
    %176 = vector.load %arg20[%c0_73, %c0_74] : memref<2x32xf32, #tpu.memory_space<vmem>>, vector<1x32xf32>
    %cst_75 = arith.constant dense<0.000000e+00> : vector<32xf32>
    %177 = vector.multi_reduction <add>, %174, %cst_75 [1] : vector<32x32xf32> to vector<32xf32>
    %178 = vector.shape_cast %177 : vector<32xf32> to vector<32x1xf32>
    %cst_76 = arith.constant 3.200000e+01 : f32
    %179 = vector.broadcast %cst_76 : f32 to vector<32x1xf32>
    %180 = arith.divf %178, %179 : vector<32x1xf32>
    %181 = vector.broadcast %180 : vector<32x1xf32> to vector<32x32xf32>
    %182 = arith.subf %174, %181 : vector<32x32xf32>
    %183 = arith.mulf %182, %182 : vector<32x32xf32>
    %cst_77 = arith.constant dense<0.000000e+00> : vector<32xf32>
    %184 = vector.multi_reduction <add>, %183, %cst_77 [1] : vector<32x32xf32> to vector<32xf32>
    %185 = vector.shape_cast %184 : vector<32xf32> to vector<32x1xf32>
    %cst_78 = arith.constant 3.200000e+01 : f32
    %186 = vector.broadcast %cst_78 : f32 to vector<32x1xf32>
    %187 = arith.divf %185, %186 : vector<32x1xf32>
    %188 = vector.broadcast %180 : vector<32x1xf32> to vector<32x32xf32>
    %189 = arith.subf %174, %188 : vector<32x32xf32>
    %cst_79 = arith.constant 9.99999974E-6 : f32
    %190 = vector.broadcast %cst_79 : f32 to vector<32x1xf32>
    %191 = arith.addf %187, %190 : vector<32x1xf32>
    %192 = math.rsqrt %191 : vector<32x1xf32>
    %193 = vector.broadcast %192 : vector<32x1xf32> to vector<32x32xf32>
    %194 = arith.mulf %189, %193 : vector<32x32xf32>
    %195 = vector.broadcast %175 : vector<1x32xf32> to vector<32x32xf32>
    %196 = arith.mulf %194, %195 : vector<32x32xf32>
    %197 = vector.broadcast %176 : vector<1x32xf32> to vector<32x32xf32>
    %198 = arith.addf %196, %197 : vector<32x32xf32>
    %199 = arith.truncf %198 : vector<32x32xf32> to vector<32x32xbf16>
    %c1 = arith.constant 1 : index
    %c0_80 = arith.constant 0 : index
    %c0_81 = arith.constant 0 : index
    %200 = vector.load %arg5[%c1, %c0_80, %c0_81] : memref<2x32x32xbf16, #tpu.memory_space<vmem>>, vector<1x32x32xbf16>
    %201 = vector.shape_cast %200 : vector<1x32x32xbf16> to vector<32x32xbf16>
    %cst_82 = arith.constant dense<0.000000e+00> : vector<32x32xf32>
    %202 = tpu.matmul %199, %201, %cst_82 {dimension_numbers = #tpu.dot_dimension_numbers<[1], [0], [0], [1], [0, 0, 1, 1], [], []>} : vector<32x32xbf16>, vector<32x32xbf16>, vector<32x32xf32> -> vector<32x32xf32>
    %c1_83 = arith.constant 1 : index
    %c0_84 = arith.constant 0 : index
    %203 = vector.load %arg6[%c1_83, %c0_84] : memref<2x32xf32, #tpu.memory_space<vmem>>, vector<1x32xf32>
    %204 = vector.broadcast %203 : vector<1x32xf32> to vector<32x32xf32>
    %205 = arith.addf %202, %204 : vector<32x32xf32>
    %c1_85 = arith.constant 1 : index
    %c0_86 = arith.constant 0 : index
    %c0_87 = arith.constant 0 : index
    %206 = vector.load %arg7[%c1_85, %c0_86, %c0_87] : memref<2x32x32xbf16, #tpu.memory_space<vmem>>, vector<1x32x32xbf16>
    %207 = vector.shape_cast %206 : vector<1x32x32xbf16> to vector<32x32xbf16>
    %cst_88 = arith.constant dense<0.000000e+00> : vector<32x32xf32>
    %208 = tpu.matmul %199, %207, %cst_88 {dimension_numbers = #tpu.dot_dimension_numbers<[1], [0], [0], [1], [0, 0, 1, 1], [], []>} : vector<32x32xbf16>, vector<32x32xbf16>, vector<32x32xf32> -> vector<32x32xf32>
    %c1_89 = arith.constant 1 : index
    %c0_90 = arith.constant 0 : index
    %209 = vector.load %arg8[%c1_89, %c0_90] : memref<2x32xf32, #tpu.memory_space<vmem>>, vector<1x32xf32>
    %210 = vector.broadcast %209 : vector<1x32xf32> to vector<32x32xf32>
    %211 = arith.addf %208, %210 : vector<32x32xf32>
    %c1_91 = arith.constant 1 : index
    %c0_92 = arith.constant 0 : index
    %c0_93 = arith.constant 0 : index
    %212 = vector.load %arg9[%c1_91, %c0_92, %c0_93] : memref<2x32x32xbf16, #tpu.memory_space<vmem>>, vector<1x32x32xbf16>
    %213 = vector.shape_cast %212 : vector<1x32x32xbf16> to vector<32x32xbf16>
    %cst_94 = arith.constant dense<0.000000e+00> : vector<32x32xf32>
    %214 = tpu.matmul %199, %213, %cst_94 {dimension_numbers = #tpu.dot_dimension_numbers<[1], [0], [0], [1], [0, 0, 1, 1], [], []>} : vector<32x32xbf16>, vector<32x32xbf16>, vector<32x32xf32> -> vector<32x32xf32>
    %c1_95 = arith.constant 1 : index
    %c0_96 = arith.constant 0 : index
    %215 = vector.load %arg10[%c1_95, %c0_96] : memref<2x32xf32, #tpu.memory_space<vmem>>, vector<1x32xf32>
    %216 = vector.broadcast %215 : vector<1x32xf32> to vector<32x32xf32>
    %217 = arith.addf %214, %216 : vector<32x32xf32>
    %218 = arith.mulf %205, %3 : vector<32x32xf32>
    %219 = arith.truncf %205 : vector<32x32xf32> to vector<32x32xbf16>
    %cst_97 = arith.constant dense<0.000000e+00> : vector<32x32xf32>
    %220 = tpu.matmul %219, %1, %cst_97 {dimension_numbers = #tpu.dot_dimension_numbers<[1], [0], [0], [1], [0, 0, 1, 1], [], []>} : vector<32x32xbf16>, vector<32x32xbf16>, vector<32x32xf32> -> vector<32x32xf32>
    %221 = arith.mulf %220, %5 : vector<32x32xf32>
    %222 = arith.addf %218, %221 : vector<32x32xf32>
    %223 = arith.mulf %211, %3 : vector<32x32xf32>
    %224 = arith.truncf %211 : vector<32x32xf32> to vector<32x32xbf16>
    %cst_98 = arith.constant dense<0.000000e+00> : vector<32x32xf32>
    %225 = tpu.matmul %224, %1, %cst_98 {dimension_numbers = #tpu.dot_dimension_numbers<[1], [0], [0], [1], [0, 0, 1, 1], [], []>} : vector<32x32xbf16>, vector<32x32xbf16>, vector<32x32xf32> -> vector<32x32xf32>
    %226 = arith.mulf %225, %5 : vector<32x32xf32>
    %227 = arith.addf %223, %226 : vector<32x32xf32>
    %cst_99 = arith.constant 0.353553385 : f32
    %228 = vector.broadcast %cst_99 : f32 to vector<32x32xf32>
    %229 = arith.mulf %222, %228 : vector<32x32xf32>
    %230 = vector.extract_strided_slice %229 {offsets = [0, 0], sizes = [32, 8], strides = [1, 1]} : vector<32x32xf32> to vector<32x8xf32>
    %231 = vector.shape_cast %230 : vector<32x8xf32> to vector<4x8x8xf32>
    %232 = arith.truncf %231 : vector<4x8x8xf32> to vector<4x8x8xbf16>
    %233 = vector.extract_strided_slice %227 {offsets = [0, 0], sizes = [32, 8], strides = [1, 1]} : vector<32x32xf32> to vector<32x8xf32>
    %234 = vector.shape_cast %233 : vector<32x8xf32> to vector<4x8x8xf32>
    %235 = arith.truncf %234 : vector<4x8x8xf32> to vector<4x8x8xbf16>
    %236 = vector.extract_strided_slice %217 {offsets = [0, 0], sizes = [32, 8], strides = [1, 1]} : vector<32x32xf32> to vector<32x8xf32>
    %237 = vector.shape_cast %236 : vector<32x8xf32> to vector<4x8x8xf32>
    %238 = arith.truncf %237 : vector<4x8x8xf32> to vector<4x8x8xbf16>
    "tpu.trace_start"() <{level = 10 : i32, message = "bqd,bkd->bqk"}> : () -> ()
    %cst_100 = arith.constant dense<0.000000e+00> : vector<4x8x8xf32>
    %239 = tpu.matmul %232, %235, %cst_100 {dimension_numbers = #tpu.dot_dimension_numbers<[2], [2], [1], [1], [0, 0, 0, 1, 1, 1], [0], [0]>} : vector<4x8x8xbf16>, vector<4x8x8xbf16>, vector<4x8x8xf32> -> vector<4x8x8xf32>
    "tpu.trace_stop"() : () -> ()
    %cst_101 = arith.constant dense<0xFF800000> : vector<4x8xf32>
    %240 = vector.multi_reduction <maximumf>, %239, %cst_101 [2] : vector<4x8x8xf32> to vector<4x8xf32>
    %241 = vector.shape_cast %240 : vector<4x8xf32> to vector<4x8x1xf32>
    %242 = vector.broadcast %241 : vector<4x8x1xf32> to vector<4x8x8xf32>
    %243 = arith.subf %239, %242 : vector<4x8x8xf32>
    %244 = math.exp %243 : vector<4x8x8xf32>
    %cst_102 = arith.constant dense<0.000000e+00> : vector<4x8xf32>
    %245 = vector.multi_reduction <add>, %244, %cst_102 [2] : vector<4x8x8xf32> to vector<4x8xf32>
    %246 = vector.shape_cast %245 : vector<4x8xf32> to vector<4x8x1xf32>
    %247 = vector.broadcast %246 : vector<4x8x1xf32> to vector<4x8x8xf32>
    %248 = arith.divf %244, %247 : vector<4x8x8xf32>
    %249 = arith.truncf %248 : vector<4x8x8xf32> to vector<4x8x8xbf16>
    "tpu.trace_start"() <{level = 10 : i32, message = "bqk,bkd->bqd"}> : () -> ()
    %cst_103 = arith.constant dense<0.000000e+00> : vector<4x8x8xf32>
    %250 = tpu.matmul %249, %238, %cst_103 {dimension_numbers = #tpu.dot_dimension_numbers<[2], [1], [1], [2], [0, 0, 0, 1, 1, 2], [0], [0]>} : vector<4x8x8xbf16>, vector<4x8x8xbf16>, vector<4x8x8xf32> -> vector<4x8x8xf32>
    "tpu.trace_stop"() : () -> ()
    %251 = vector.shape_cast %250 : vector<4x8x8xf32> to vector<32x8xf32>
    %252 = vector.extract_strided_slice %229 {offsets = [0, 8], sizes = [32, 8], strides = [1, 1]} : vector<32x32xf32> to vector<32x8xf32>
    %253 = vector.shape_cast %252 : vector<32x8xf32> to vector<4x8x8xf32>
    %254 = arith.truncf %253 : vector<4x8x8xf32> to vector<4x8x8xbf16>
    %255 = vector.extract_strided_slice %227 {offsets = [0, 8], sizes = [32, 8], strides = [1, 1]} : vector<32x32xf32> to vector<32x8xf32>
    %256 = vector.shape_cast %255 : vector<32x8xf32> to vector<4x8x8xf32>
    %257 = arith.truncf %256 : vector<4x8x8xf32> to vector<4x8x8xbf16>
    %258 = vector.extract_strided_slice %217 {offsets = [0, 8], sizes = [32, 8], strides = [1, 1]} : vector<32x32xf32> to vector<32x8xf32>
    %259 = vector.shape_cast %258 : vector<32x8xf32> to vector<4x8x8xf32>
    %260 = arith.truncf %259 : vector<4x8x8xf32> to vector<4x8x8xbf16>
    "tpu.trace_start"() <{level = 10 : i32, message = "bqd,bkd->bqk"}> : () -> ()
    %cst_104 = arith.constant dense<0.000000e+00> : vector<4x8x8xf32>
    %261 = tpu.matmul %254, %257, %cst_104 {dimension_numbers = #tpu.dot_dimension_numbers<[2], [2], [1], [1], [0, 0, 0, 1, 1, 1], [0], [0]>} : vector<4x8x8xbf16>, vector<4x8x8xbf16>, vector<4x8x8xf32> -> vector<4x8x8xf32>
    "tpu.trace_stop"() : () -> ()
    %cst_105 = arith.constant dense<0xFF800000> : vector<4x8xf32>
    %262 = vector.multi_reduction <maximumf>, %261, %cst_105 [2] : vector<4x8x8xf32> to vector<4x8xf32>
    %263 = vector.shape_cast %262 : vector<4x8xf32> to vector<4x8x1xf32>
    %264 = vector.broadcast %263 : vector<4x8x1xf32> to vector<4x8x8xf32>
    %265 = arith.subf %261, %264 : vector<4x8x8xf32>
    %266 = math.exp %265 : vector<4x8x8xf32>
    %cst_106 = arith.constant dense<0.000000e+00> : vector<4x8xf32>
    %267 = vector.multi_reduction <add>, %266, %cst_106 [2] : vector<4x8x8xf32> to vector<4x8xf32>
    %268 = vector.shape_cast %267 : vector<4x8xf32> to vector<4x8x1xf32>
    %269 = vector.broadcast %268 : vector<4x8x1xf32> to vector<4x8x8xf32>
    %270 = arith.divf %266, %269 : vector<4x8x8xf32>
    %271 = arith.truncf %270 : vector<4x8x8xf32> to vector<4x8x8xbf16>
    "tpu.trace_start"() <{level = 10 : i32, message = "bqk,bkd->bqd"}> : () -> ()
    %cst_107 = arith.constant dense<0.000000e+00> : vector<4x8x8xf32>
    %272 = tpu.matmul %271, %260, %cst_107 {dimension_numbers = #tpu.dot_dimension_numbers<[2], [1], [1], [2], [0, 0, 0, 1, 1, 2], [0], [0]>} : vector<4x8x8xbf16>, vector<4x8x8xbf16>, vector<4x8x8xf32> -> vector<4x8x8xf32>
    "tpu.trace_stop"() : () -> ()
    %273 = vector.shape_cast %272 : vector<4x8x8xf32> to vector<32x8xf32>
    %274 = vector.extract_strided_slice %229 {offsets = [0, 16], sizes = [32, 8], strides = [1, 1]} : vector<32x32xf32> to vector<32x8xf32>
    %275 = vector.shape_cast %274 : vector<32x8xf32> to vector<4x8x8xf32>
    %276 = arith.truncf %275 : vector<4x8x8xf32> to vector<4x8x8xbf16>
    %277 = vector.extract_strided_slice %227 {offsets = [0, 16], sizes = [32, 8], strides = [1, 1]} : vector<32x32xf32> to vector<32x8xf32>
    %278 = vector.shape_cast %277 : vector<32x8xf32> to vector<4x8x8xf32>
    %279 = arith.truncf %278 : vector<4x8x8xf32> to vector<4x8x8xbf16>
    %280 = vector.extract_strided_slice %217 {offsets = [0, 16], sizes = [32, 8], strides = [1, 1]} : vector<32x32xf32> to vector<32x8xf32>
    %281 = vector.shape_cast %280 : vector<32x8xf32> to vector<4x8x8xf32>
    %282 = arith.truncf %281 : vector<4x8x8xf32> to vector<4x8x8xbf16>
    "tpu.trace_start"() <{level = 10 : i32, message = "bqd,bkd->bqk"}> : () -> ()
    %cst_108 = arith.constant dense<0.000000e+00> : vector<4x8x8xf32>
    %283 = tpu.matmul %276, %279, %cst_108 {dimension_numbers = #tpu.dot_dimension_numbers<[2], [2], [1], [1], [0, 0, 0, 1, 1, 1], [0], [0]>} : vector<4x8x8xbf16>, vector<4x8x8xbf16>, vector<4x8x8xf32> -> vector<4x8x8xf32>
    "tpu.trace_stop"() : () -> ()
    %cst_109 = arith.constant dense<0xFF800000> : vector<4x8xf32>
    %284 = vector.multi_reduction <maximumf>, %283, %cst_109 [2] : vector<4x8x8xf32> to vector<4x8xf32>
    %285 = vector.shape_cast %284 : vector<4x8xf32> to vector<4x8x1xf32>
    %286 = vector.broadcast %285 : vector<4x8x1xf32> to vector<4x8x8xf32>
    %287 = arith.subf %283, %286 : vector<4x8x8xf32>
    %288 = math.exp %287 : vector<4x8x8xf32>
    %cst_110 = arith.constant dense<0.000000e+00> : vector<4x8xf32>
    %289 = vector.multi_reduction <add>, %288, %cst_110 [2] : vector<4x8x8xf32> to vector<4x8xf32>
    %290 = vector.shape_cast %289 : vector<4x8xf32> to vector<4x8x1xf32>
    %291 = vector.broadcast %290 : vector<4x8x1xf32> to vector<4x8x8xf32>
    %292 = arith.divf %288, %291 : vector<4x8x8xf32>
    %293 = arith.truncf %292 : vector<4x8x8xf32> to vector<4x8x8xbf16>
    "tpu.trace_start"() <{level = 10 : i32, message = "bqk,bkd->bqd"}> : () -> ()
    %cst_111 = arith.constant dense<0.000000e+00> : vector<4x8x8xf32>
    %294 = tpu.matmul %293, %282, %cst_111 {dimension_numbers = #tpu.dot_dimension_numbers<[2], [1], [1], [2], [0, 0, 0, 1, 1, 2], [0], [0]>} : vector<4x8x8xbf16>, vector<4x8x8xbf16>, vector<4x8x8xf32> -> vector<4x8x8xf32>
    "tpu.trace_stop"() : () -> ()
    %295 = vector.shape_cast %294 : vector<4x8x8xf32> to vector<32x8xf32>
    %296 = vector.extract_strided_slice %229 {offsets = [0, 24], sizes = [32, 8], strides = [1, 1]} : vector<32x32xf32> to vector<32x8xf32>
    %297 = vector.shape_cast %296 : vector<32x8xf32> to vector<4x8x8xf32>
    %298 = arith.truncf %297 : vector<4x8x8xf32> to vector<4x8x8xbf16>
    %299 = vector.extract_strided_slice %227 {offsets = [0, 24], sizes = [32, 8], strides = [1, 1]} : vector<32x32xf32> to vector<32x8xf32>
    %300 = vector.shape_cast %299 : vector<32x8xf32> to vector<4x8x8xf32>
    %301 = arith.truncf %300 : vector<4x8x8xf32> to vector<4x8x8xbf16>
    %302 = vector.extract_strided_slice %217 {offsets = [0, 24], sizes = [32, 8], strides = [1, 1]} : vector<32x32xf32> to vector<32x8xf32>
    %303 = vector.shape_cast %302 : vector<32x8xf32> to vector<4x8x8xf32>
    %304 = arith.truncf %303 : vector<4x8x8xf32> to vector<4x8x8xbf16>
    "tpu.trace_start"() <{level = 10 : i32, message = "bqd,bkd->bqk"}> : () -> ()
    %cst_112 = arith.constant dense<0.000000e+00> : vector<4x8x8xf32>
    %305 = tpu.matmul %298, %301, %cst_112 {dimension_numbers = #tpu.dot_dimension_numbers<[2], [2], [1], [1], [0, 0, 0, 1, 1, 1], [0], [0]>} : vector<4x8x8xbf16>, vector<4x8x8xbf16>, vector<4x8x8xf32> -> vector<4x8x8xf32>
    "tpu.trace_stop"() : () -> ()
    %cst_113 = arith.constant dense<0xFF800000> : vector<4x8xf32>
    %306 = vector.multi_reduction <maximumf>, %305, %cst_113 [2] : vector<4x8x8xf32> to vector<4x8xf32>
    %307 = vector.shape_cast %306 : vector<4x8xf32> to vector<4x8x1xf32>
    %308 = vector.broadcast %307 : vector<4x8x1xf32> to vector<4x8x8xf32>
    %309 = arith.subf %305, %308 : vector<4x8x8xf32>
    %310 = math.exp %309 : vector<4x8x8xf32>
    %cst_114 = arith.constant dense<0.000000e+00> : vector<4x8xf32>
    %311 = vector.multi_reduction <add>, %310, %cst_114 [2] : vector<4x8x8xf32> to vector<4x8xf32>
    %312 = vector.shape_cast %311 : vector<4x8xf32> to vector<4x8x1xf32>
    %313 = vector.broadcast %312 : vector<4x8x1xf32> to vector<4x8x8xf32>
    %314 = arith.divf %310, %313 : vector<4x8x8xf32>
    %315 = arith.truncf %314 : vector<4x8x8xf32> to vector<4x8x8xbf16>
    "tpu.trace_start"() <{level = 10 : i32, message = "bqk,bkd->bqd"}> : () -> ()
    %cst_115 = arith.constant dense<0.000000e+00> : vector<4x8x8xf32>
    %316 = tpu.matmul %315, %304, %cst_115 {dimension_numbers = #tpu.dot_dimension_numbers<[2], [1], [1], [2], [0, 0, 0, 1, 1, 2], [0], [0]>} : vector<4x8x8xbf16>, vector<4x8x8xbf16>, vector<4x8x8xf32> -> vector<4x8x8xf32>
    "tpu.trace_stop"() : () -> ()
    %317 = vector.shape_cast %316 : vector<4x8x8xf32> to vector<32x8xf32>
    %318 = tpu.concatenate %251, %273, %295, %317 in 1 : vector<32x8xf32>, vector<32x8xf32>, vector<32x8xf32>, vector<32x8xf32> -> vector<32x32xf32>
    %319 = arith.truncf %318 : vector<32x32xf32> to vector<32x32xbf16>
    %c1_116 = arith.constant 1 : index
    %c0_117 = arith.constant 0 : index
    %c0_118 = arith.constant 0 : index
    %320 = vector.load %arg11[%c1_116, %c0_117, %c0_118] : memref<2x32x32xbf16, #tpu.memory_space<vmem>>, vector<1x32x32xbf16>
    %321 = vector.shape_cast %320 : vector<1x32x32xbf16> to vector<32x32xbf16>
    %cst_119 = arith.constant dense<0.000000e+00> : vector<32x32xf32>
    %322 = tpu.matmul %319, %321, %cst_119 {dimension_numbers = #tpu.dot_dimension_numbers<[1], [0], [0], [1], [0, 0, 1, 1], [], []>} : vector<32x32xbf16>, vector<32x32xbf16>, vector<32x32xf32> -> vector<32x32xf32>
    %c1_120 = arith.constant 1 : index
    %c0_121 = arith.constant 0 : index
    %323 = vector.load %arg12[%c1_120, %c0_121] : memref<2x32xf32, #tpu.memory_space<vmem>>, vector<1x32xf32>
    %324 = vector.broadcast %323 : vector<1x32xf32> to vector<32x32xf32>
    %325 = arith.addf %322, %324 : vector<32x32xf32>
    %326 = arith.addf %198, %325 : vector<32x32xf32>
    %c1_122 = arith.constant 1 : index
    %c0_123 = arith.constant 0 : index
    %327 = vector.load %arg17[%c1_122, %c0_123] : memref<2x32xf32, #tpu.memory_space<vmem>>, vector<1x32xf32>
    %c1_124 = arith.constant 1 : index
    %c0_125 = arith.constant 0 : index
    %328 = vector.load %arg18[%c1_124, %c0_125] : memref<2x32xf32, #tpu.memory_space<vmem>>, vector<1x32xf32>
    %cst_126 = arith.constant dense<0.000000e+00> : vector<32xf32>
    %329 = vector.multi_reduction <add>, %326, %cst_126 [1] : vector<32x32xf32> to vector<32xf32>
    %330 = vector.shape_cast %329 : vector<32xf32> to vector<32x1xf32>
    %cst_127 = arith.constant 3.200000e+01 : f32
    %331 = vector.broadcast %cst_127 : f32 to vector<32x1xf32>
    %332 = arith.divf %330, %331 : vector<32x1xf32>
    %333 = vector.broadcast %332 : vector<32x1xf32> to vector<32x32xf32>
    %334 = arith.subf %326, %333 : vector<32x32xf32>
    %335 = arith.mulf %334, %334 : vector<32x32xf32>
    %cst_128 = arith.constant dense<0.000000e+00> : vector<32xf32>
    %336 = vector.multi_reduction <add>, %335, %cst_128 [1] : vector<32x32xf32> to vector<32xf32>
    %337 = vector.shape_cast %336 : vector<32xf32> to vector<32x1xf32>
    %cst_129 = arith.constant 3.200000e+01 : f32
    %338 = vector.broadcast %cst_129 : f32 to vector<32x1xf32>
    %339 = arith.divf %337, %338 : vector<32x1xf32>
    %340 = vector.broadcast %332 : vector<32x1xf32> to vector<32x32xf32>
    %341 = arith.subf %326, %340 : vector<32x32xf32>
    %cst_130 = arith.constant 9.99999974E-6 : f32
    %342 = vector.broadcast %cst_130 : f32 to vector<32x1xf32>
    %343 = arith.addf %339, %342 : vector<32x1xf32>
    %344 = math.rsqrt %343 : vector<32x1xf32>
    %345 = vector.broadcast %344 : vector<32x1xf32> to vector<32x32xf32>
    %346 = arith.mulf %341, %345 : vector<32x32xf32>
    %347 = vector.broadcast %327 : vector<1x32xf32> to vector<32x32xf32>
    %348 = arith.mulf %346, %347 : vector<32x32xf32>
    %349 = vector.broadcast %328 : vector<1x32xf32> to vector<32x32xf32>
    %350 = arith.addf %348, %349 : vector<32x32xf32>
    %351 = arith.truncf %350 : vector<32x32xf32> to vector<32x32xbf16>
    %c1_131 = arith.constant 1 : index
    %c0_132 = arith.constant 0 : index
    %c0_133 = arith.constant 0 : index
    %352 = vector.load %arg13[%c1_131, %c0_132, %c0_133] : memref<2x32x64xbf16, #tpu.memory_space<vmem>>, vector<1x32x64xbf16>
    %353 = vector.shape_cast %352 : vector<1x32x64xbf16> to vector<32x64xbf16>
    %cst_134 = arith.constant dense<0.000000e+00> : vector<32x64xf32>
    %354 = tpu.matmul %351, %353, %cst_134 {dimension_numbers = #tpu.dot_dimension_numbers<[1], [0], [0], [1], [0, 0, 1, 1], [], []>} : vector<32x32xbf16>, vector<32x64xbf16>, vector<32x64xf32> -> vector<32x64xf32>
    %c1_135 = arith.constant 1 : index
    %c0_136 = arith.constant 0 : index
    %355 = vector.load %arg14[%c1_135, %c0_136] : memref<2x64xf32, #tpu.memory_space<vmem>>, vector<1x64xf32>
    %356 = vector.broadcast %355 : vector<1x64xf32> to vector<32x64xf32>
    %357 = arith.addf %354, %356 : vector<32x64xf32>
    %cst_137 = arith.constant 0.000000e+00 : f32
    %358 = vector.broadcast %cst_137 : f32 to vector<32x64xf32>
    %359 = arith.maximumf %357, %358 : vector<32x64xf32>
    %360 = arith.truncf %359 : vector<32x64xf32> to vector<32x64xbf16>
    %c1_138 = arith.constant 1 : index
    %c0_139 = arith.constant 0 : index
    %c0_140 = arith.constant 0 : index
    %361 = vector.load %arg15[%c1_138, %c0_139, %c0_140] : memref<2x64x32xbf16, #tpu.memory_space<vmem>>, vector<1x64x32xbf16>
    %362 = vector.shape_cast %361 : vector<1x64x32xbf16> to vector<64x32xbf16>
    %cst_141 = arith.constant dense<0.000000e+00> : vector<32x32xf32>
    %363 = tpu.matmul %360, %362, %cst_141 {dimension_numbers = #tpu.dot_dimension_numbers<[1], [0], [0], [1], [0, 0, 1, 1], [], []>} : vector<32x64xbf16>, vector<64x32xbf16>, vector<32x32xf32> -> vector<32x32xf32>
    %c1_142 = arith.constant 1 : index
    %c0_143 = arith.constant 0 : index
    %364 = vector.load %arg16[%c1_142, %c0_143] : memref<2x32xf32, #tpu.memory_space<vmem>>, vector<1x32xf32>
    %365 = vector.broadcast %364 : vector<1x32xf32> to vector<32x32xf32>
    %366 = arith.addf %363, %365 : vector<32x32xf32>
    %367 = arith.addf %350, %366 : vector<32x32xf32>
    %c1_144 = arith.constant 1 : index
    %c0_145 = arith.constant 0 : index
    %368 = vector.load %arg19[%c1_144, %c0_145] : memref<2x32xf32, #tpu.memory_space<vmem>>, vector<1x32xf32>
    %c1_146 = arith.constant 1 : index
    %c0_147 = arith.constant 0 : index
    %369 = vector.load %arg20[%c1_146, %c0_147] : memref<2x32xf32, #tpu.memory_space<vmem>>, vector<1x32xf32>
    %cst_148 = arith.constant dense<0.000000e+00> : vector<32xf32>
    %370 = vector.multi_reduction <add>, %367, %cst_148 [1] : vector<32x32xf32> to vector<32xf32>
    %371 = vector.shape_cast %370 : vector<32xf32> to vector<32x1xf32>
    %cst_149 = arith.constant 3.200000e+01 : f32
    %372 = vector.broadcast %cst_149 : f32 to vector<32x1xf32>
    %373 = arith.divf %371, %372 : vector<32x1xf32>
    %374 = vector.broadcast %373 : vector<32x1xf32> to vector<32x32xf32>
    %375 = arith.subf %367, %374 : vector<32x32xf32>
    %376 = arith.mulf %375, %375 : vector<32x32xf32>
    %cst_150 = arith.constant dense<0.000000e+00> : vector<32xf32>
    %377 = vector.multi_reduction <add>, %376, %cst_150 [1] : vector<32x32xf32> to vector<32xf32>
    %378 = vector.shape_cast %377 : vector<32xf32> to vector<32x1xf32>
    %cst_151 = arith.constant 3.200000e+01 : f32
    %379 = vector.broadcast %cst_151 : f32 to vector<32x1xf32>
    %380 = arith.divf %378, %379 : vector<32x1xf32>
    %381 = vector.broadcast %373 : vector<32x1xf32> to vector<32x32xf32>
    %382 = arith.subf %367, %381 : vector<32x32xf32>
    %cst_152 = arith.constant 9.99999974E-6 : f32
    %383 = vector.broadcast %cst_152 : f32 to vector<32x1xf32>
    %384 = arith.addf %380, %383 : vector<32x1xf32>
    %385 = math.rsqrt %384 : vector<32x1xf32>
    %386 = vector.broadcast %385 : vector<32x1xf32> to vector<32x32xf32>
    %387 = arith.mulf %382, %386 : vector<32x32xf32>
    %388 = vector.broadcast %368 : vector<1x32xf32> to vector<32x32xf32>
    %389 = arith.mulf %387, %388 : vector<32x32xf32>
    %390 = vector.broadcast %369 : vector<1x32xf32> to vector<32x32xf32>
    %391 = arith.addf %389, %390 : vector<32x32xf32>
    %c0_153 = arith.constant 0 : index
    %c0_154 = arith.constant 0 : index
    %392 = vector.load %arg21[%c0_153, %c0_154] : memref<32x32xf32, #tpu.memory_space<vmem>>, vector<32x32xf32>
    tpu.vector_store %arg21[%c0_153, %c0_154], %391 {strides = array<i32>} : memref<32x32xf32, #tpu.memory_space<vmem>>, vector<32x32xf32>,
    return
  }
  func.func @transform_0(%arg0: i32) -> (i32, i32) {
    %c0_i32 = arith.constant 0 : i32
    %c0_i32_0 = arith.constant 0 : i32
    return %arg0, %c0_i32 : i32, i32
  }
  func.func @transform_1(%arg0: i32) -> (i32, i32) {
    %c0_i32 = arith.constant 0 : i32
    %c0_i32_0 = arith.constant 0 : i32
    %c0_i32_1 = arith.constant 0 : i32
    return %c0_i32, %c0_i32_0 : i32, i32
  }
  func.func @transform_2(%arg0: i32) -> (i32, i32) {
    %c0_i32 = arith.constant 0 : i32
    %c0_i32_0 = arith.constant 0 : i32
    %c0_i32_1 = arith.constant 0 : i32
    return %c0_i32, %c0_i32_0 : i32, i32
  }
  func.func @transform_3(%arg0: i32) -> (i32, i32) {
    %c0_i32 = arith.constant 0 : i32
    %c0_i32_0 = arith.constant 0 : i32
    %c0_i32_1 = arith.constant 0 : i32
    return %c0_i32, %c0_i32_0 : i32, i32
  }
  func.func @transform_4(%arg0: i32) -> (i32, i32, i32) {
    %c0_i32 = arith.constant 0 : i32
    %c0_i32_0 = arith.constant 0 : i32
    %c0_i32_1 = arith.constant 0 : i32
    %c0_i32_2 = arith.constant 0 : i32
    return %c0_i32, %c0_i32_0, %c0_i32_1 : i32, i32, i32
  }
  func.func @transform_5(%arg0: i32) -> (i32, i32) {
    %c0_i32 = arith.constant 0 : i32
    %c0_i32_0 = arith.constant 0 : i32
    %c0_i32_1 = arith.constant 0 : i32
    return %c0_i32, %c0_i32_0 : i32, i32
  }
  func.func @transform_6(%arg0: i32) -> (i32, i32, i32) {
    %c0_i32 = arith.constant 0 : i32
    %c0_i32_0 = arith.constant 0 : i32
    %c0_i32_1 = arith.constant 0 : i32
    %c0_i32_2 = arith.constant 0 : i32
    return %c0_i32, %c0_i32_0, %c0_i32_1 : i32, i32, i32
  }
  func.func @transform_7(%arg0: i32) -> (i32, i32) {
    %c0_i32 = arith.constant 0 : i32
    %c0_i32_0 = arith.constant 0 : i32
    %c0_i32_1 = arith.constant 0 : i32
    return %c0_i32, %c0_i32_0 : i32, i32
  }
  func.func @transform_8(%arg0: i32) -> (i32, i32, i32) {
    %c0_i32 = arith.constant 0 : i32
    %c0_i32_0 = arith.constant 0 : i32
    %c0_i32_1 = arith.constant 0 : i32
    %c0_i32_2 = arith.constant 0 : i32
    return %c0_i32, %c0_i32_0, %c0_i32_1 : i32, i32, i32
  }
  func.func @transform_9(%arg0: i32) -> (i32, i32) {
    %c0_i32 = arith.constant 0 : i32
    %c0_i32_0 = arith.constant 0 : i32
    %c0_i32_1 = arith.constant 0 : i32
    return %c0_i32, %c0_i32_0 : i32, i32
  }
  func.func @transform_10(%arg0: i32) -> (i32, i32, i32) {
    %c0_i32 = arith.constant 0 : i32
    %c0_i32_0 = arith.constant 0 : i32
    %c0_i32_1 = arith.constant 0 : i32
    %c0_i32_2 = arith.constant 0 : i32
    return %c0_i32, %c0_i32_0, %c0_i32_1 : i32, i32, i32
  }
  func.func @transform_11(%arg0: i32) -> (i32, i32) {
    %c0_i32 = arith.constant 0 : i32
    %c0_i32_0 = arith.constant 0 : i32
    %c0_i32_1 = arith.constant 0 : i32
    return %c0_i32, %c0_i32_0 : i32, i32
  }
  func.func @transform_12(%arg0: i32) -> (i32, i32, i32) {
    %c0_i32 = arith.constant 0 : i32
    %c0_i32_0 = arith.constant 0 : i32
    %c0_i32_1 = arith.constant 0 : i32
    %c0_i32_2 = arith.constant 0 : i32
    return %c0_i32, %c0_i32_0, %c0_i32_1 : i32, i32, i32
  }
  func.func @transform_13(%arg0: i32) -> (i32, i32) {
    %c0_i32 = arith.constant 0 : i32
    %c0_i32_0 = arith.constant 0 : i32
    %c0_i32_1 = arith.constant 0 : i32
    return %c0_i32, %c0_i32_0 : i32, i32
  }
  func.func @transform_14(%arg0: i32) -> (i32, i32, i32) {
    %c0_i32 = arith.constant 0 : i32
    %c0_i32_0 = arith.constant 0 : i32
    %c0_i32_1 = arith.constant 0 : i32
    %c0_i32_2 = arith.constant 0 : i32
    return %c0_i32, %c0_i32_0, %c0_i32_1 : i32, i32, i32
  }
  func.func @transform_15(%arg0: i32) -> (i32, i32) {
    %c0_i32 = arith.constant 0 : i32
    %c0_i32_0 = arith.constant 0 : i32
    %c0_i32_1 = arith.constant 0 : i32
    return %c0_i32, %c0_i32_0 : i32, i32
  }
  func.func @transform_16(%arg0: i32) -> (i32, i32) {
    %c0_i32 = arith.constant 0 : i32
    %c0_i32_0 = arith.constant 0 : i32
    %c0_i32_1 = arith.constant 0 : i32
    return %c0_i32, %c0_i32_0 : i32, i32
  }
  func.func @transform_17(%arg0: i32) -> (i32, i32) {
    %c0_i32 = arith.constant 0 : i32
    %c0_i32_0 = arith.constant 0 : i32
    %c0_i32_1 = arith.constant 0 : i32
    return %c0_i32, %c0_i32_0 : i32, i32
  }
  func.func @transform_18(%arg0: i32) -> (i32, i32) {
    %c0_i32 = arith.constant 0 : i32
    %c0_i32_0 = arith.constant 0 : i32
    %c0_i32_1 = arith.constant 0 : i32
    return %c0_i32, %c0_i32_0 : i32, i32
  }
  func.func @transform_19(%arg0: i32) -> (i32, i32) {
    %c0_i32 = arith.constant 0 : i32
    %c0_i32_0 = arith.constant 0 : i32
    %c0_i32_1 = arith.constant 0 : i32
    return %c0_i32, %c0_i32_0 : i32, i32
  }
  func.func @transform_20(%arg0: i32) -> (i32, i32) {
    %c0_i32 = arith.constant 0 : i32
    %c0_i32_0 = arith.constant 0 : i32
    return %arg0, %c0_i32 : i32, i32
  }
}

module attributes {stable_mosaic.version = 11 : i64} {
  func.func @encoder_run_kernel(%arg0: i32, %arg1: memref<8x32xf32, #tpu.memory_space<vmem>>, %arg2: memref<4x32xf32, #tpu.memory_space<vmem>>, %arg3: memref<4x32xf32, #tpu.memory_space<vmem>>, %arg4: memref<32x32xbf16, #tpu.memory_space<vmem>>, %arg5: memref<1x32x32xbf16, #tpu.memory_space<vmem>>, %arg6: memref<1x32xf32, #tpu.memory_space<vmem>>, %arg7: memref<1x32x32xbf16, #tpu.memory_space<vmem>>, %arg8: memref<1x32xf32, #tpu.memory_space<vmem>>, %arg9: memref<1x32x32xbf16, #tpu.memory_space<vmem>>, %arg10: memref<1x32xf32, #tpu.memory_space<vmem>>, %arg11: memref<1x32x32xbf16, #tpu.memory_space<vmem>>, %arg12: memref<1x32xf32, #tpu.memory_space<vmem>>, %arg13: memref<1x32x64xbf16, #tpu.memory_space<vmem>>, %arg14: memref<1x64xf32, #tpu.memory_space<vmem>>, %arg15: memref<1x64x32xbf16, #tpu.memory_space<vmem>>, %arg16: memref<1x32xf32, #tpu.memory_space<vmem>>, %arg17: memref<1x32xf32, #tpu.memory_space<vmem>>, %arg18: memref<1x32xf32, #tpu.memory_space<vmem>>, %arg19: memref<1x32xf32, #tpu.memory_space<vmem>>, %arg20: memref<1x32xf32, #tpu.memory_space<vmem>>, %arg21: memref<8x32xf32, #tpu.memory_space<vmem>>) attributes {dimension_semantics = [#tpu.dimension_semantics<parallel>], iteration_bounds = array<i64: 1>, scalar_prefetch = 0 : i64, scratch_operands = 0 : i64, tpu.core_type = #tpu.core_type<tc>, window_params = [{transform_indices = @transform_0, window_bounds = array<i64: 8, 32>}, {pipeline_mode = #tpu.pipeline_mode<synchronous>, transform_indices = @transform_1, window_bounds = array<i64: 4, 32>}, {pipeline_mode = #tpu.pipeline_mode<synchronous>, transform_indices = @transform_2, window_bounds = array<i64: 4, 32>}, {pipeline_mode = #tpu.pipeline_mode<synchronous>, transform_indices = @transform_3, window_bounds = array<i64: 32, 32>}, {pipeline_mode = #tpu.pipeline_mode<synchronous>, transform_indices = @transform_4, window_bounds = array<i64: 1, 32, 32>}, {pipeline_mode = #tpu.pipeline_mode<synchronous>, transform_indices = @transform_5, window_bounds = array<i64: 1, 32>}, {pipeline_mode = #tpu.pipeline_mode<synchronous>, transform_indices = @transform_6, window_bounds = array<i64: 1, 32, 32>}, {pipeline_mode = #tpu.pipeline_mode<synchronous>, transform_indices = @transform_7, window_bounds = array<i64: 1, 32>}, {pipeline_mode = #tpu.pipeline_mode<synchronous>, transform_indices = @transform_8, window_bounds = array<i64: 1, 32, 32>}, {pipeline_mode = #tpu.pipeline_mode<synchronous>, transform_indices = @transform_9, window_bounds = array<i64: 1, 32>}, {pipeline_mode = #tpu.pipeline_mode<synchronous>, transform_indices = @transform_10, window_bounds = array<i64: 1, 32, 32>}, {pipeline_mode = #tpu.pipeline_mode<synchronous>, transform_indices = @transform_11, window_bounds = array<i64: 1, 32>}, {pipeline_mode = #tpu.pipeline_mode<synchronous>, transform_indices = @transform_12, window_bounds = array<i64: 1, 32, 64>}, {pipeline_mode = #tpu.pipeline_mode<synchronous>, transform_indices = @transform_13, window_bounds = array<i64: 1, 64>}, {pipeline_mode = #tpu.pipeline_mode<synchronous>, transform_indices = @transform_14, window_bounds = array<i64: 1, 64, 32>}, {pipeline_mode = #tpu.pipeline_mode<synchronous>, transform_indices = @transform_15, window_bounds = array<i64: 1, 32>}, {pipeline_mode = #tpu.pipeline_mode<synchronous>, transform_indices = @transform_16, window_bounds = array<i64: 1, 32>}, {pipeline_mode = #tpu.pipeline_mode<synchronous>, transform_indices = @transform_17, window_bounds = array<i64: 1, 32>}, {pipeline_mode = #tpu.pipeline_mode<synchronous>, transform_indices = @transform_18, window_bounds = array<i64: 1, 32>}, {pipeline_mode = #tpu.pipeline_mode<synchronous>, transform_indices = @transform_19, window_bounds = array<i64: 1, 32>}, {transform_indices = @transform_20, window_bounds = array<i64: 8, 32>}]} {
    %c0 = arith.constant 0 : index
    %c0_0 = arith.constant 0 : index
    %0 = vector.load %arg1[%c0, %c0_0] : memref<8x32xf32, #tpu.memory_space<vmem>>, vector<8x32xf32>
    %c0_1 = arith.constant 0 : index
    %c0_2 = arith.constant 0 : index
    %1 = vector.load %arg4[%c0_1, %c0_2] : memref<32x32xbf16, #tpu.memory_space<vmem>>, vector<32x32xbf16>
    %c0_3 = arith.constant 0 : index
    %c0_4 = arith.constant 0 : index
    %2 = vector.load %arg2[%c0_3, %c0_4] : memref<4x32xf32, #tpu.memory_space<vmem>>, vector<4x32xf32>
    %3 = tpu.concatenate %2, %2 in 0 : vector<4x32xf32>, vector<4x32xf32> -> vector<8x32xf32>
    %c0_5 = arith.constant 0 : index
    %c0_6 = arith.constant 0 : index
    %4 = vector.load %arg3[%c0_5, %c0_6] : memref<4x32xf32, #tpu.memory_space<vmem>>, vector<4x32xf32>
    %5 = tpu.concatenate %4, %4 in 0 : vector<4x32xf32>, vector<4x32xf32> -> vector<8x32xf32>
    %6 = arith.truncf %0 : vector<8x32xf32> to vector<8x32xbf16>
    %c0_7 = arith.constant 0 : index
    %c0_8 = arith.constant 0 : index
    %c0_9 = arith.constant 0 : index
    %7 = vector.load %arg5[%c0_7, %c0_8, %c0_9] : memref<1x32x32xbf16, #tpu.memory_space<vmem>>, vector<1x32x32xbf16>
    %8 = vector.shape_cast %7 : vector<1x32x32xbf16> to vector<32x32xbf16>
    %cst = arith.constant dense<0.000000e+00> : vector<8x32xf32>
    %9 = tpu.matmul %6, %8, %cst {dimension_numbers = #tpu.dot_dimension_numbers<[1], [0], [0], [1], [0, 0, 1, 1], [], []>} : vector<8x32xbf16>, vector<32x32xbf16>, vector<8x32xf32> -> vector<8x32xf32>
    %c0_10 = arith.constant 0 : index
    %c0_11 = arith.constant 0 : index
    %10 = vector.load %arg6[%c0_10, %c0_11] : memref<1x32xf32, #tpu.memory_space<vmem>>, vector<1x32xf32>
    %11 = vector.broadcast %10 : vector<1x32xf32> to vector<8x32xf32>
    %12 = arith.addf %9, %11 : vector<8x32xf32>
    %c0_12 = arith.constant 0 : index
    %c0_13 = arith.constant 0 : index
    %c0_14 = arith.constant 0 : index
    %13 = vector.load %arg7[%c0_12, %c0_13, %c0_14] : memref<1x32x32xbf16, #tpu.memory_space<vmem>>, vector<1x32x32xbf16>
    %14 = vector.shape_cast %13 : vector<1x32x32xbf16> to vector<32x32xbf16>
    %cst_15 = arith.constant dense<0.000000e+00> : vector<8x32xf32>
    %15 = tpu.matmul %6, %14, %cst_15 {dimension_numbers = #tpu.dot_dimension_numbers<[1], [0], [0], [1], [0, 0, 1, 1], [], []>} : vector<8x32xbf16>, vector<32x32xbf16>, vector<8x32xf32> -> vector<8x32xf32>
    %c0_16 = arith.constant 0 : index
    %c0_17 = arith.constant 0 : index
    %16 = vector.load %arg8[%c0_16, %c0_17] : memref<1x32xf32, #tpu.memory_space<vmem>>, vector<1x32xf32>
    %17 = vector.broadcast %16 : vector<1x32xf32> to vector<8x32xf32>
    %18 = arith.addf %15, %17 : vector<8x32xf32>
    %c0_18 = arith.constant 0 : index
    %c0_19 = arith.constant 0 : index
    %c0_20 = arith.constant 0 : index
    %19 = vector.load %arg9[%c0_18, %c0_19, %c0_20] : memref<1x32x32xbf16, #tpu.memory_space<vmem>>, vector<1x32x32xbf16>
    %20 = vector.shape_cast %19 : vector<1x32x32xbf16> to vector<32x32xbf16>
    %cst_21 = arith.constant dense<0.000000e+00> : vector<8x32xf32>
    %21 = tpu.matmul %6, %20, %cst_21 {dimension_numbers = #tpu.dot_dimension_numbers<[1], [0], [0], [1], [0, 0, 1, 1], [], []>} : vector<8x32xbf16>, vector<32x32xbf16>, vector<8x32xf32> -> vector<8x32xf32>
    %c0_22 = arith.constant 0 : index
    %c0_23 = arith.constant 0 : index
    %22 = vector.load %arg10[%c0_22, %c0_23] : memref<1x32xf32, #tpu.memory_space<vmem>>, vector<1x32xf32>
    %23 = vector.broadcast %22 : vector<1x32xf32> to vector<8x32xf32>
    %24 = arith.addf %21, %23 : vector<8x32xf32>
    %25 = arith.mulf %12, %3 : vector<8x32xf32>
    %26 = arith.truncf %12 : vector<8x32xf32> to vector<8x32xbf16>
    %cst_24 = arith.constant dense<0.000000e+00> : vector<8x32xf32>
    %27 = tpu.matmul %26, %1, %cst_24 {dimension_numbers = #tpu.dot_dimension_numbers<[1], [0], [0], [1], [0, 0, 1, 1], [], []>} : vector<8x32xbf16>, vector<32x32xbf16>, vector<8x32xf32> -> vector<8x32xf32>
    %28 = arith.mulf %27, %5 : vector<8x32xf32>
    %29 = arith.addf %25, %28 : vector<8x32xf32>
    %30 = arith.mulf %18, %3 : vector<8x32xf32>
    %31 = arith.truncf %18 : vector<8x32xf32> to vector<8x32xbf16>
    %cst_25 = arith.constant dense<0.000000e+00> : vector<8x32xf32>
    %32 = tpu.matmul %31, %1, %cst_25 {dimension_numbers = #tpu.dot_dimension_numbers<[1], [0], [0], [1], [0, 0, 1, 1], [], []>} : vector<8x32xbf16>, vector<32x32xbf16>, vector<8x32xf32> -> vector<8x32xf32>
    %33 = arith.mulf %32, %5 : vector<8x32xf32>
    %34 = arith.addf %30, %33 : vector<8x32xf32>
    %cst_26 = arith.constant 0.353553385 : f32
    %35 = vector.broadcast %cst_26 : f32 to vector<8x32xf32>
    %36 = arith.mulf %29, %35 : vector<8x32xf32>
    %37 = vector.extract_strided_slice %36 {offsets = [0, 0], sizes = [8, 8], strides = [1, 1]} : vector<8x32xf32> to vector<8x8xf32>
    %38 = vector.shape_cast %37 : vector<8x8xf32> to vector<2x4x8xf32>
    %39 = arith.truncf %38 : vector<2x4x8xf32> to vector<2x4x8xbf16>
    %40 = vector.extract_strided_slice %34 {offsets = [0, 0], sizes = [8, 8], strides = [1, 1]} : vector<8x32xf32> to vector<8x8xf32>
    %41 = vector.shape_cast %40 : vector<8x8xf32> to vector<2x4x8xf32>
    %42 = arith.truncf %41 : vector<2x4x8xf32> to vector<2x4x8xbf16>
    %43 = vector.extract_strided_slice %24 {offsets = [0, 0], sizes = [8, 8], strides = [1, 1]} : vector<8x32xf32> to vector<8x8xf32>
    %44 = vector.shape_cast %43 : vector<8x8xf32> to vector<2x4x8xf32>
    %45 = arith.truncf %44 : vector<2x4x8xf32> to vector<2x4x8xbf16>
    "tpu.trace_start"() <{level = 10 : i32, message = "bqd,bkd->bqk"}> : () -> ()
    %cst_27 = arith.constant dense<0.000000e+00> : vector<2x4x4xf32>
    %46 = tpu.matmul %39, %42, %cst_27 {dimension_numbers = #tpu.dot_dimension_numbers<[2], [2], [1], [1], [0, 0, 0, 1, 1, 1], [0], [0]>} : vector<2x4x8xbf16>, vector<2x4x8xbf16>, vector<2x4x4xf32> -> vector<2x4x4xf32>
    "tpu.trace_stop"() : () -> ()
    %cst_28 = arith.constant dense<0xFF800000> : vector<2x4xf32>
    %47 = vector.multi_reduction <maximumf>, %46, %cst_28 [2] : vector<2x4x4xf32> to vector<2x4xf32>
    %48 = vector.shape_cast %47 : vector<2x4xf32> to vector<2x4x1xf32>
    %49 = vector.broadcast %48 : vector<2x4x1xf32> to vector<2x4x4xf32>
    %50 = arith.subf %46, %49 : vector<2x4x4xf32>
    %51 = math.exp %50 : vector<2x4x4xf32>
    %cst_29 = arith.constant dense<0.000000e+00> : vector<2x4xf32>
    %52 = vector.multi_reduction <add>, %51, %cst_29 [2] : vector<2x4x4xf32> to vector<2x4xf32>
    %53 = vector.shape_cast %52 : vector<2x4xf32> to vector<2x4x1xf32>
    %54 = vector.broadcast %53 : vector<2x4x1xf32> to vector<2x4x4xf32>
    %55 = arith.divf %51, %54 : vector<2x4x4xf32>
    %56 = arith.truncf %55 : vector<2x4x4xf32> to vector<2x4x4xbf16>
    "tpu.trace_start"() <{level = 10 : i32, message = "bqk,bkd->bqd"}> : () -> ()
    %cst_30 = arith.constant dense<0.000000e+00> : vector<2x4x8xf32>
    %57 = tpu.matmul %56, %45, %cst_30 {dimension_numbers = #tpu.dot_dimension_numbers<[2], [1], [1], [2], [0, 0, 0, 1, 1, 2], [0], [0]>} : vector<2x4x4xbf16>, vector<2x4x8xbf16>, vector<2x4x8xf32> -> vector<2x4x8xf32>
    "tpu.trace_stop"() : () -> ()
    %58 = vector.shape_cast %57 : vector<2x4x8xf32> to vector<8x8xf32>
    %59 = vector.extract_strided_slice %36 {offsets = [0, 8], sizes = [8, 8], strides = [1, 1]} : vector<8x32xf32> to vector<8x8xf32>
    %60 = vector.shape_cast %59 : vector<8x8xf32> to vector<2x4x8xf32>
    %61 = arith.truncf %60 : vector<2x4x8xf32> to vector<2x4x8xbf16>
    %62 = vector.extract_strided_slice %34 {offsets = [0, 8], sizes = [8, 8], strides = [1, 1]} : vector<8x32xf32> to vector<8x8xf32>
    %63 = vector.shape_cast %62 : vector<8x8xf32> to vector<2x4x8xf32>
    %64 = arith.truncf %63 : vector<2x4x8xf32> to vector<2x4x8xbf16>
    %65 = vector.extract_strided_slice %24 {offsets = [0, 8], sizes = [8, 8], strides = [1, 1]} : vector<8x32xf32> to vector<8x8xf32>
    %66 = vector.shape_cast %65 : vector<8x8xf32> to vector<2x4x8xf32>
    %67 = arith.truncf %66 : vector<2x4x8xf32> to vector<2x4x8xbf16>
    "tpu.trace_start"() <{level = 10 : i32, message = "bqd,bkd->bqk"}> : () -> ()
    %cst_31 = arith.constant dense<0.000000e+00> : vector<2x4x4xf32>
    %68 = tpu.matmul %61, %64, %cst_31 {dimension_numbers = #tpu.dot_dimension_numbers<[2], [2], [1], [1], [0, 0, 0, 1, 1, 1], [0], [0]>} : vector<2x4x8xbf16>, vector<2x4x8xbf16>, vector<2x4x4xf32> -> vector<2x4x4xf32>
    "tpu.trace_stop"() : () -> ()
    %cst_32 = arith.constant dense<0xFF800000> : vector<2x4xf32>
    %69 = vector.multi_reduction <maximumf>, %68, %cst_32 [2] : vector<2x4x4xf32> to vector<2x4xf32>
    %70 = vector.shape_cast %69 : vector<2x4xf32> to vector<2x4x1xf32>
    %71 = vector.broadcast %70 : vector<2x4x1xf32> to vector<2x4x4xf32>
    %72 = arith.subf %68, %71 : vector<2x4x4xf32>
    %73 = math.exp %72 : vector<2x4x4xf32>
    %cst_33 = arith.constant dense<0.000000e+00> : vector<2x4xf32>
    %74 = vector.multi_reduction <add>, %73, %cst_33 [2] : vector<2x4x4xf32> to vector<2x4xf32>
    %75 = vector.shape_cast %74 : vector<2x4xf32> to vector<2x4x1xf32>
    %76 = vector.broadcast %75 : vector<2x4x1xf32> to vector<2x4x4xf32>
    %77 = arith.divf %73, %76 : vector<2x4x4xf32>
    %78 = arith.truncf %77 : vector<2x4x4xf32> to vector<2x4x4xbf16>
    "tpu.trace_start"() <{level = 10 : i32, message = "bqk,bkd->bqd"}> : () -> ()
    %cst_34 = arith.constant dense<0.000000e+00> : vector<2x4x8xf32>
    %79 = tpu.matmul %78, %67, %cst_34 {dimension_numbers = #tpu.dot_dimension_numbers<[2], [1], [1], [2], [0, 0, 0, 1, 1, 2], [0], [0]>} : vector<2x4x4xbf16>, vector<2x4x8xbf16>, vector<2x4x8xf32> -> vector<2x4x8xf32>
    "tpu.trace_stop"() : () -> ()
    %80 = vector.shape_cast %79 : vector<2x4x8xf32> to vector<8x8xf32>
    %81 = vector.extract_strided_slice %36 {offsets = [0, 16], sizes = [8, 8], strides = [1, 1]} : vector<8x32xf32> to vector<8x8xf32>
    %82 = vector.shape_cast %81 : vector<8x8xf32> to vector<2x4x8xf32>
    %83 = arith.truncf %82 : vector<2x4x8xf32> to vector<2x4x8xbf16>
    %84 = vector.extract_strided_slice %34 {offsets = [0, 16], sizes = [8, 8], strides = [1, 1]} : vector<8x32xf32> to vector<8x8xf32>
    %85 = vector.shape_cast %84 : vector<8x8xf32> to vector<2x4x8xf32>
    %86 = arith.truncf %85 : vector<2x4x8xf32> to vector<2x4x8xbf16>
    %87 = vector.extract_strided_slice %24 {offsets = [0, 16], sizes = [8, 8], strides = [1, 1]} : vector<8x32xf32> to vector<8x8xf32>
    %88 = vector.shape_cast %87 : vector<8x8xf32> to vector<2x4x8xf32>
    %89 = arith.truncf %88 : vector<2x4x8xf32> to vector<2x4x8xbf16>
    "tpu.trace_start"() <{level = 10 : i32, message = "bqd,bkd->bqk"}> : () -> ()
    %cst_35 = arith.constant dense<0.000000e+00> : vector<2x4x4xf32>
    %90 = tpu.matmul %83, %86, %cst_35 {dimension_numbers = #tpu.dot_dimension_numbers<[2], [2], [1], [1], [0, 0, 0, 1, 1, 1], [0], [0]>} : vector<2x4x8xbf16>, vector<2x4x8xbf16>, vector<2x4x4xf32> -> vector<2x4x4xf32>
    "tpu.trace_stop"() : () -> ()
    %cst_36 = arith.constant dense<0xFF800000> : vector<2x4xf32>
    %91 = vector.multi_reduction <maximumf>, %90, %cst_36 [2] : vector<2x4x4xf32> to vector<2x4xf32>
    %92 = vector.shape_cast %91 : vector<2x4xf32> to vector<2x4x1xf32>
    %93 = vector.broadcast %92 : vector<2x4x1xf32> to vector<2x4x4xf32>
    %94 = arith.subf %90, %93 : vector<2x4x4xf32>
    %95 = math.exp %94 : vector<2x4x4xf32>
    %cst_37 = arith.constant dense<0.000000e+00> : vector<2x4xf32>
    %96 = vector.multi_reduction <add>, %95, %cst_37 [2] : vector<2x4x4xf32> to vector<2x4xf32>
    %97 = vector.shape_cast %96 : vector<2x4xf32> to vector<2x4x1xf32>
    %98 = vector.broadcast %97 : vector<2x4x1xf32> to vector<2x4x4xf32>
    %99 = arith.divf %95, %98 : vector<2x4x4xf32>
    %100 = arith.truncf %99 : vector<2x4x4xf32> to vector<2x4x4xbf16>
    "tpu.trace_start"() <{level = 10 : i32, message = "bqk,bkd->bqd"}> : () -> ()
    %cst_38 = arith.constant dense<0.000000e+00> : vector<2x4x8xf32>
    %101 = tpu.matmul %100, %89, %cst_38 {dimension_numbers = #tpu.dot_dimension_numbers<[2], [1], [1], [2], [0, 0, 0, 1, 1, 2], [0], [0]>} : vector<2x4x4xbf16>, vector<2x4x8xbf16>, vector<2x4x8xf32> -> vector<2x4x8xf32>
    "tpu.trace_stop"() : () -> ()
    %102 = vector.shape_cast %101 : vector<2x4x8xf32> to vector<8x8xf32>
    %103 = vector.extract_strided_slice %36 {offsets = [0, 24], sizes = [8, 8], strides = [1, 1]} : vector<8x32xf32> to vector<8x8xf32>
    %104 = vector.shape_cast %103 : vector<8x8xf32> to vector<2x4x8xf32>
    %105 = arith.truncf %104 : vector<2x4x8xf32> to vector<2x4x8xbf16>
    %106 = vector.extract_strided_slice %34 {offsets = [0, 24], sizes = [8, 8], strides = [1, 1]} : vector<8x32xf32> to vector<8x8xf32>
    %107 = vector.shape_cast %106 : vector<8x8xf32> to vector<2x4x8xf32>
    %108 = arith.truncf %107 : vector<2x4x8xf32> to vector<2x4x8xbf16>
    %109 = vector.extract_strided_slice %24 {offsets = [0, 24], sizes = [8, 8], strides = [1, 1]} : vector<8x32xf32> to vector<8x8xf32>
    %110 = vector.shape_cast %109 : vector<8x8xf32> to vector<2x4x8xf32>
    %111 = arith.truncf %110 : vector<2x4x8xf32> to vector<2x4x8xbf16>
    "tpu.trace_start"() <{level = 10 : i32, message = "bqd,bkd->bqk"}> : () -> ()
    %cst_39 = arith.constant dense<0.000000e+00> : vector<2x4x4xf32>
    %112 = tpu.matmul %105, %108, %cst_39 {dimension_numbers = #tpu.dot_dimension_numbers<[2], [2], [1], [1], [0, 0, 0, 1, 1, 1], [0], [0]>} : vector<2x4x8xbf16>, vector<2x4x8xbf16>, vector<2x4x4xf32> -> vector<2x4x4xf32>
    "tpu.trace_stop"() : () -> ()
    %cst_40 = arith.constant dense<0xFF800000> : vector<2x4xf32>
    %113 = vector.multi_reduction <maximumf>, %112, %cst_40 [2] : vector<2x4x4xf32> to vector<2x4xf32>
    %114 = vector.shape_cast %113 : vector<2x4xf32> to vector<2x4x1xf32>
    %115 = vector.broadcast %114 : vector<2x4x1xf32> to vector<2x4x4xf32>
    %116 = arith.subf %112, %115 : vector<2x4x4xf32>
    %117 = math.exp %116 : vector<2x4x4xf32>
    %cst_41 = arith.constant dense<0.000000e+00> : vector<2x4xf32>
    %118 = vector.multi_reduction <add>, %117, %cst_41 [2] : vector<2x4x4xf32> to vector<2x4xf32>
    %119 = vector.shape_cast %118 : vector<2x4xf32> to vector<2x4x1xf32>
    %120 = vector.broadcast %119 : vector<2x4x1xf32> to vector<2x4x4xf32>
    %121 = arith.divf %117, %120 : vector<2x4x4xf32>
    %122 = arith.truncf %121 : vector<2x4x4xf32> to vector<2x4x4xbf16>
    "tpu.trace_start"() <{level = 10 : i32, message = "bqk,bkd->bqd"}> : () -> ()
    %cst_42 = arith.constant dense<0.000000e+00> : vector<2x4x8xf32>
    %123 = tpu.matmul %122, %111, %cst_42 {dimension_numbers = #tpu.dot_dimension_numbers<[2], [1], [1], [2], [0, 0, 0, 1, 1, 2], [0], [0]>} : vector<2x4x4xbf16>, vector<2x4x8xbf16>, vector<2x4x8xf32> -> vector<2x4x8xf32>
    "tpu.trace_stop"() : () -> ()
    %124 = vector.shape_cast %123 : vector<2x4x8xf32> to vector<8x8xf32>
    %125 = tpu.concatenate %58, %80, %102, %124 in 1 : vector<8x8xf32>, vector<8x8xf32>, vector<8x8xf32>, vector<8x8xf32> -> vector<8x32xf32>
    %126 = arith.truncf %125 : vector<8x32xf32> to vector<8x32xbf16>
    %c0_43 = arith.constant 0 : index
    %c0_44 = arith.constant 0 : index
    %c0_45 = arith.constant 0 : index
    %127 = vector.load %arg11[%c0_43, %c0_44, %c0_45] : memref<1x32x32xbf16, #tpu.memory_space<vmem>>, vector<1x32x32xbf16>
    %128 = vector.shape_cast %127 : vector<1x32x32xbf16> to vector<32x32xbf16>
    %cst_46 = arith.constant dense<0.000000e+00> : vector<8x32xf32>
    %129 = tpu.matmul %126, %128, %cst_46 {dimension_numbers = #tpu.dot_dimension_numbers<[1], [0], [0], [1], [0, 0, 1, 1], [], []>} : vector<8x32xbf16>, vector<32x32xbf16>, vector<8x32xf32> -> vector<8x32xf32>
    %c0_47 = arith.constant 0 : index
    %c0_48 = arith.constant 0 : index
    %130 = vector.load %arg12[%c0_47, %c0_48] : memref<1x32xf32, #tpu.memory_space<vmem>>, vector<1x32xf32>
    %131 = vector.broadcast %130 : vector<1x32xf32> to vector<8x32xf32>
    %132 = arith.addf %129, %131 : vector<8x32xf32>
    %133 = arith.addf %0, %132 : vector<8x32xf32>
    %c0_49 = arith.constant 0 : index
    %c0_50 = arith.constant 0 : index
    %134 = vector.load %arg17[%c0_49, %c0_50] : memref<1x32xf32, #tpu.memory_space<vmem>>, vector<1x32xf32>
    %c0_51 = arith.constant 0 : index
    %c0_52 = arith.constant 0 : index
    %135 = vector.load %arg18[%c0_51, %c0_52] : memref<1x32xf32, #tpu.memory_space<vmem>>, vector<1x32xf32>
    %cst_53 = arith.constant dense<0.000000e+00> : vector<8xf32>
    %136 = vector.multi_reduction <add>, %133, %cst_53 [1] : vector<8x32xf32> to vector<8xf32>
    %137 = vector.shape_cast %136 : vector<8xf32> to vector<8x1xf32>
    %cst_54 = arith.constant 3.200000e+01 : f32
    %138 = vector.broadcast %cst_54 : f32 to vector<8x1xf32>
    %139 = arith.divf %137, %138 : vector<8x1xf32>
    %140 = vector.broadcast %139 : vector<8x1xf32> to vector<8x32xf32>
    %141 = arith.subf %133, %140 : vector<8x32xf32>
    %142 = arith.mulf %141, %141 : vector<8x32xf32>
    %cst_55 = arith.constant dense<0.000000e+00> : vector<8xf32>
    %143 = vector.multi_reduction <add>, %142, %cst_55 [1] : vector<8x32xf32> to vector<8xf32>
    %144 = vector.shape_cast %143 : vector<8xf32> to vector<8x1xf32>
    %cst_56 = arith.constant 3.200000e+01 : f32
    %145 = vector.broadcast %cst_56 : f32 to vector<8x1xf32>
    %146 = arith.divf %144, %145 : vector<8x1xf32>
    %147 = vector.broadcast %139 : vector<8x1xf32> to vector<8x32xf32>
    %148 = arith.subf %133, %147 : vector<8x32xf32>
    %cst_57 = arith.constant 9.99999974E-6 : f32
    %149 = vector.broadcast %cst_57 : f32 to vector<8x1xf32>
    %150 = arith.addf %146, %149 : vector<8x1xf32>
    %151 = math.rsqrt %150 : vector<8x1xf32>
    %152 = vector.broadcast %151 : vector<8x1xf32> to vector<8x32xf32>
    %153 = arith.mulf %148, %152 : vector<8x32xf32>
    %154 = vector.broadcast %134 : vector<1x32xf32> to vector<8x32xf32>
    %155 = arith.mulf %153, %154 : vector<8x32xf32>
    %156 = vector.broadcast %135 : vector<1x32xf32> to vector<8x32xf32>
    %157 = arith.addf %155, %156 : vector<8x32xf32>
    %158 = arith.truncf %157 : vector<8x32xf32> to vector<8x32xbf16>
    %c0_58 = arith.constant 0 : index
    %c0_59 = arith.constant 0 : index
    %c0_60 = arith.constant 0 : index
    %159 = vector.load %arg13[%c0_58, %c0_59, %c0_60] : memref<1x32x64xbf16, #tpu.memory_space<vmem>>, vector<1x32x64xbf16>
    %160 = vector.shape_cast %159 : vector<1x32x64xbf16> to vector<32x64xbf16>
    %cst_61 = arith.constant dense<0.000000e+00> : vector<8x64xf32>
    %161 = tpu.matmul %158, %160, %cst_61 {dimension_numbers = #tpu.dot_dimension_numbers<[1], [0], [0], [1], [0, 0, 1, 1], [], []>} : vector<8x32xbf16>, vector<32x64xbf16>, vector<8x64xf32> -> vector<8x64xf32>
    %c0_62 = arith.constant 0 : index
    %c0_63 = arith.constant 0 : index
    %162 = vector.load %arg14[%c0_62, %c0_63] : memref<1x64xf32, #tpu.memory_space<vmem>>, vector<1x64xf32>
    %163 = vector.broadcast %162 : vector<1x64xf32> to vector<8x64xf32>
    %164 = arith.addf %161, %163 : vector<8x64xf32>
    %cst_64 = arith.constant 0.000000e+00 : f32
    %165 = vector.broadcast %cst_64 : f32 to vector<8x64xf32>
    %166 = arith.maximumf %164, %165 : vector<8x64xf32>
    %167 = arith.truncf %166 : vector<8x64xf32> to vector<8x64xbf16>
    %c0_65 = arith.constant 0 : index
    %c0_66 = arith.constant 0 : index
    %c0_67 = arith.constant 0 : index
    %168 = vector.load %arg15[%c0_65, %c0_66, %c0_67] : memref<1x64x32xbf16, #tpu.memory_space<vmem>>, vector<1x64x32xbf16>
    %169 = vector.shape_cast %168 : vector<1x64x32xbf16> to vector<64x32xbf16>
    %cst_68 = arith.constant dense<0.000000e+00> : vector<8x32xf32>
    %170 = tpu.matmul %167, %169, %cst_68 {dimension_numbers = #tpu.dot_dimension_numbers<[1], [0], [0], [1], [0, 0, 1, 1], [], []>} : vector<8x64xbf16>, vector<64x32xbf16>, vector<8x32xf32> -> vector<8x32xf32>
    %c0_69 = arith.constant 0 : index
    %c0_70 = arith.constant 0 : index
    %171 = vector.load %arg16[%c0_69, %c0_70] : memref<1x32xf32, #tpu.memory_space<vmem>>, vector<1x32xf32>
    %172 = vector.broadcast %171 : vector<1x32xf32> to vector<8x32xf32>
    %173 = arith.addf %170, %172 : vector<8x32xf32>
    %174 = arith.addf %157, %173 : vector<8x32xf32>
    %c0_71 = arith.constant 0 : index
    %c0_72 = arith.constant 0 : index
    %175 = vector.load %arg19[%c0_71, %c0_72] : memref<1x32xf32, #tpu.memory_space<vmem>>, vector<1x32xf32>
    %c0_73 = arith.constant 0 : index
    %c0_74 = arith.constant 0 : index
    %176 = vector.load %arg20[%c0_73, %c0_74] : memref<1x32xf32, #tpu.memory_space<vmem>>, vector<1x32xf32>
    %cst_75 = arith.constant dense<0.000000e+00> : vector<8xf32>
    %177 = vector.multi_reduction <add>, %174, %cst_75 [1] : vector<8x32xf32> to vector<8xf32>
    %178 = vector.shape_cast %177 : vector<8xf32> to vector<8x1xf32>
    %cst_76 = arith.constant 3.200000e+01 : f32
    %179 = vector.broadcast %cst_76 : f32 to vector<8x1xf32>
    %180 = arith.divf %178, %179 : vector<8x1xf32>
    %181 = vector.broadcast %180 : vector<8x1xf32> to vector<8x32xf32>
    %182 = arith.subf %174, %181 : vector<8x32xf32>
    %183 = arith.mulf %182, %182 : vector<8x32xf32>
    %cst_77 = arith.constant dense<0.000000e+00> : vector<8xf32>
    %184 = vector.multi_reduction <add>, %183, %cst_77 [1] : vector<8x32xf32> to vector<8xf32>
    %185 = vector.shape_cast %184 : vector<8xf32> to vector<8x1xf32>
    %cst_78 = arith.constant 3.200000e+01 : f32
    %186 = vector.broadcast %cst_78 : f32 to vector<8x1xf32>
    %187 = arith.divf %185, %186 : vector<8x1xf32>
    %188 = vector.broadcast %180 : vector<8x1xf32> to vector<8x32xf32>
    %189 = arith.subf %174, %188 : vector<8x32xf32>
    %cst_79 = arith.constant 9.99999974E-6 : f32
    %190 = vector.broadcast %cst_79 : f32 to vector<8x1xf32>
    %191 = arith.addf %187, %190 : vector<8x1xf32>
    %192 = math.rsqrt %191 : vector<8x1xf32>
    %193 = vector.broadcast %192 : vector<8x1xf32> to vector<8x32xf32>
    %194 = arith.mulf %189, %193 : vector<8x32xf32>
    %195 = vector.broadcast %175 : vector<1x32xf32> to vector<8x32xf32>
    %196 = arith.mulf %194, %195 : vector<8x32xf32>
    %197 = vector.broadcast %176 : vector<1x32xf32> to vector<8x32xf32>
    %198 = arith.addf %196, %197 : vector<8x32xf32>
    %c0_80 = arith.constant 0 : index
    %c0_81 = arith.constant 0 : index
    %199 = vector.load %arg21[%c0_80, %c0_81] : memref<8x32xf32, #tpu.memory_space<vmem>>, vector<8x32xf32>
    tpu.vector_store %arg21[%c0_80, %c0_81], %198 {strides = array<i32>} : memref<8x32xf32, #tpu.memory_space<vmem>>, vector<8x32xf32>,
    return
  }
  func.func @transform_0(%arg0: i32) -> (i32, i32) {
    %c0_i32 = arith.constant 0 : i32
    %c0_i32_0 = arith.constant 0 : i32
    return %arg0, %c0_i32 : i32, i32
  }
  func.func @transform_1(%arg0: i32) -> (i32, i32) {
    %c0_i32 = arith.constant 0 : i32
    %c0_i32_0 = arith.constant 0 : i32
    %c0_i32_1 = arith.constant 0 : i32
    return %c0_i32, %c0_i32_0 : i32, i32
  }
  func.func @transform_2(%arg0: i32) -> (i32, i32) {
    %c0_i32 = arith.constant 0 : i32
    %c0_i32_0 = arith.constant 0 : i32
    %c0_i32_1 = arith.constant 0 : i32
    return %c0_i32, %c0_i32_0 : i32, i32
  }
  func.func @transform_3(%arg0: i32) -> (i32, i32) {
    %c0_i32 = arith.constant 0 : i32
    %c0_i32_0 = arith.constant 0 : i32
    %c0_i32_1 = arith.constant 0 : i32
    return %c0_i32, %c0_i32_0 : i32, i32
  }
  func.func @transform_4(%arg0: i32) -> (i32, i32, i32) {
    %c0_i32 = arith.constant 0 : i32
    %c0_i32_0 = arith.constant 0 : i32
    %c0_i32_1 = arith.constant 0 : i32
    %c0_i32_2 = arith.constant 0 : i32
    return %c0_i32, %c0_i32_0, %c0_i32_1 : i32, i32, i32
  }
  func.func @transform_5(%arg0: i32) -> (i32, i32) {
    %c0_i32 = arith.constant 0 : i32
    %c0_i32_0 = arith.constant 0 : i32
    %c0_i32_1 = arith.constant 0 : i32
    return %c0_i32, %c0_i32_0 : i32, i32
  }
  func.func @transform_6(%arg0: i32) -> (i32, i32, i32) {
    %c0_i32 = arith.constant 0 : i32
    %c0_i32_0 = arith.constant 0 : i32
    %c0_i32_1 = arith.constant 0 : i32
    %c0_i32_2 = arith.constant 0 : i32
    return %c0_i32, %c0_i32_0, %c0_i32_1 : i32, i32, i32
  }
  func.func @transform_7(%arg0: i32) -> (i32, i32) {
    %c0_i32 = arith.constant 0 : i32
    %c0_i32_0 = arith.constant 0 : i32
    %c0_i32_1 = arith.constant 0 : i32
    return %c0_i32, %c0_i32_0 : i32, i32
  }
  func.func @transform_8(%arg0: i32) -> (i32, i32, i32) {
    %c0_i32 = arith.constant 0 : i32
    %c0_i32_0 = arith.constant 0 : i32
    %c0_i32_1 = arith.constant 0 : i32
    %c0_i32_2 = arith.constant 0 : i32
    return %c0_i32, %c0_i32_0, %c0_i32_1 : i32, i32, i32
  }
  func.func @transform_9(%arg0: i32) -> (i32, i32) {
    %c0_i32 = arith.constant 0 : i32
    %c0_i32_0 = arith.constant 0 : i32
    %c0_i32_1 = arith.constant 0 : i32
    return %c0_i32, %c0_i32_0 : i32, i32
  }
  func.func @transform_10(%arg0: i32) -> (i32, i32, i32) {
    %c0_i32 = arith.constant 0 : i32
    %c0_i32_0 = arith.constant 0 : i32
    %c0_i32_1 = arith.constant 0 : i32
    %c0_i32_2 = arith.constant 0 : i32
    return %c0_i32, %c0_i32_0, %c0_i32_1 : i32, i32, i32
  }
  func.func @transform_11(%arg0: i32) -> (i32, i32) {
    %c0_i32 = arith.constant 0 : i32
    %c0_i32_0 = arith.constant 0 : i32
    %c0_i32_1 = arith.constant 0 : i32
    return %c0_i32, %c0_i32_0 : i32, i32
  }
  func.func @transform_12(%arg0: i32) -> (i32, i32, i32) {
    %c0_i32 = arith.constant 0 : i32
    %c0_i32_0 = arith.constant 0 : i32
    %c0_i32_1 = arith.constant 0 : i32
    %c0_i32_2 = arith.constant 0 : i32
    return %c0_i32, %c0_i32_0, %c0_i32_1 : i32, i32, i32
  }
  func.func @transform_13(%arg0: i32) -> (i32, i32) {
    %c0_i32 = arith.constant 0 : i32
    %c0_i32_0 = arith.constant 0 : i32
    %c0_i32_1 = arith.constant 0 : i32
    return %c0_i32, %c0_i32_0 : i32, i32
  }
  func.func @transform_14(%arg0: i32) -> (i32, i32, i32) {
    %c0_i32 = arith.constant 0 : i32
    %c0_i32_0 = arith.constant 0 : i32
    %c0_i32_1 = arith.constant 0 : i32
    %c0_i32_2 = arith.constant 0 : i32
    return %c0_i32, %c0_i32_0, %c0_i32_1 : i32, i32, i32
  }
  func.func @transform_15(%arg0: i32) -> (i32, i32) {
    %c0_i32 = arith.constant 0 : i32
    %c0_i32_0 = arith.constant 0 : i32
    %c0_i32_1 = arith.constant 0 : i32
    return %c0_i32, %c0_i32_0 : i32, i32
  }
  func.func @transform_16(%arg0: i32) -> (i32, i32) {
    %c0_i32 = arith.constant 0 : i32
    %c0_i32_0 = arith.constant 0 : i32
    %c0_i32_1 = arith.constant 0 : i32
    return %c0_i32, %c0_i32_0 : i32, i32
  }
  func.func @transform_17(%arg0: i32) -> (i32, i32) {
    %c0_i32 = arith.constant 0 : i32
    %c0_i32_0 = arith.constant 0 : i32
    %c0_i32_1 = arith.constant 0 : i32
    return %c0_i32, %c0_i32_0 : i32, i32
  }
  func.func @transform_18(%arg0: i32) -> (i32, i32) {
    %c0_i32 = arith.constant 0 : i32
    %c0_i32_0 = arith.constant 0 : i32
    %c0_i32_1 = arith.constant 0 : i32
    return %c0_i32, %c0_i32_0 : i32, i32
  }
  func.func @transform_19(%arg0: i32) -> (i32, i32) {
    %c0_i32 = arith.constant 0 : i32
    %c0_i32_0 = arith.constant 0 : i32
    %c0_i32_1 = arith.constant 0 : i32
    return %c0_i32, %c0_i32_0 : i32, i32
  }
  func.func @transform_20(%arg0: i32) -> (i32, i32) {
    %c0_i32 = arith.constant 0 : i32
    %c0_i32_0 = arith.constant 0 : i32
    return %arg0, %c0_i32 : i32, i32
  }
}

</mosaic_0001>

<llo_original>
// kernel: tile.24
$region0: #{tile.24}
  %s0 = inlined_call_operand.vmem [shape: f32[8,4,8], index: 0, kind: input, shape index: {}]
  %s1 = inlined_call_operand.vmem [shape: f32[8,32], index: 1, kind: output, shape index: {}]
  $region1: #{tile.24} parent=0
    #allocation0 [shape = 'u8[32768]{0}', space=vmem, size = 0x8000, scoped, tag = 'scoped mem for input reshape']
    %s3 = sshllo.u32 0, 4
    %s4 = smul.addr 4, 7
    %s5 = scalar_lea.vmem %s0, %s4
    %v6 = vld [vmem:[%s5] sm:%s3]
    %s7 = scalar_lea.vmem [#allocation0], 56
    %8 = vst [vmem:[%s7] sm:%s3] %v6
    %s9 = smul.addr 4, 6
    %s10 = scalar_lea.vmem %s0, %s9
    %v11 = vld [vmem:[%s10] sm:%s3]
    %s12 = scalar_lea.vmem [#allocation0], 48
    %13 = vst [vmem:[%s12] sm:%s3] %v11
    %s14 = smul.addr 4, 5
    %s15 = scalar_lea.vmem %s0, %s14
    %v16 = vld [vmem:[%s15] sm:%s3]
    %s17 = scalar_lea.vmem [#allocation0], 40
    %18 = vst [vmem:[%s17] sm:%s3] %v16
    %s19 = smul.addr 4, 4
    %s20 = scalar_lea.vmem %s0, %s19
    %v21 = vld [vmem:[%s20] sm:%s3]
    %s22 = scalar_lea.vmem [#allocation0], 32
    %23 = vst [vmem:[%s22] sm:%s3] %v21
    %s24 = smul.addr 4, 3
    %s25 = scalar_lea.vmem %s0, %s24
    %v26 = vld [vmem:[%s25] sm:%s3]
    %s27 = scalar_lea.vmem [#allocation0], 24
    %28 = vst [vmem:[%s27] sm:%s3] %v26
    %s29 = smul.addr 4, 2
    %s30 = scalar_lea.vmem %s0, %s29
    %v31 = vld [vmem:[%s30] sm:%s3]
    %s32 = scalar_lea.vmem [#allocation0], 16
    %33 = vst [vmem:[%s32] sm:%s3] %v31
    %s34 = scalar_lea.vmem %s0, 4
    %v35 = vld [vmem:[%s34] sm:%s3]
    %s36 = scalar_lea.vmem [#allocation0], 8
    %37 = vst [vmem:[%s36] sm:%s3] %v35
    %v38 = vld [vmem:[%s0] sm:%s3]
    %39 = vst [vmem:[#allocation0] sm:%s3] %v38
    %v40 = vld [vmem:[#allocation0] ss:$8 sm:$0xf]
    %v41 = vld [vmem:[#allocation0] ss:$8 sm:$0xf0]
    %vm42 = vcmask 1047556
    %v43 = vsel %vm42, %v41, %v40
    %vm44 = vcmask 64512
    %45 = vst.msk [vmem:[%s1] sm:$0xff] %vm44, %v43
    %s46 = scalar_lea.vmem [#allocation0], 3
    %v47 = vld [vmem:[%s46] ss:$8 sm:$0xf]
    %s48 = scalar_lea.vmem [#allocation0], 3
    %v49 = vld [vmem:[%s48] ss:$8 sm:$0xf0]
    %vm50 = vcmask 1047556
    %v51 = vsel %vm50, %v49, %v47
    %52 = vrot.lane.b32.xlu0 %v51, 24
    %v53 = vpop.permute.xlu0 %52
    %vm54 = vcmask 261312
    %55 = vst.msk [vmem:[%s1] sm:$0xff] %vm54, %v53
    %s56 = scalar_lea.vmem [#allocation0], 2
    %v57 = vld [vmem:[%s56] ss:$8 sm:$0xf]
    %s58 = scalar_lea.vmem [#allocation0], 2
    %v59 = vld [vmem:[%s58] ss:$8 sm:$0xf0]
    %vm60 = vcmask 1047556
    %v61 = vsel %vm60, %v59, %v57
    %62 = vrot.lane.b32.xlu0 %v61, 16
    %v63 = vpop.permute.xlu0 %62
    %vm64 = vcmask 195712
    %65 = vst.msk [vmem:[%s1] sm:$0xff] %vm64, %v63
    %s66 = scalar_lea.vmem [#allocation0], 1
    %v67 = vld [vmem:[%s66] ss:$8 sm:$0xf]
    %s68 = scalar_lea.vmem [#allocation0], 1
    %v69 = vld [vmem:[%s68] ss:$8 sm:$0xf0]
    %vm70 = vcmask 1047556
    %v71 = vsel %vm70, %v69, %v67
    %72 = vrot.lane.b32.xlu0 %v71, 8
    %v73 = vpop.permute.xlu0 %72
    %vm74 = vcmask 130112
    %75 = vst.msk [vmem:[%s1] sm:$0xff] %vm74, %v73

// kernel: tile.34
$region0: #{tile.34}
  %s0 = inlined_call_operand.vmem [shape: f32[4,4,8], index: 0, kind: input, shape index: {}]
  %s1 = inlined_call_operand.vmem [shape: f32[4,32], index: 1, kind: output, shape index: {}]
  $region1: #{tile.34} parent=0
    #allocation0 [shape = 'u8[4096]{0}', space=vmem, size = 0x1000, scoped, tag = 'scoped mem for output reshape']
    #allocation1 [shape = 'u8[16384]{0}', space=vmem, size = 0x4000, scoped, tag = 'scoped mem for input reshape']
    %s3 = sshllo.u32 0, 4
    %s4 = smul.addr 4, 3
    %s5 = scalar_lea.vmem %s0, %s4
    %v6 = vld [vmem:[%s5] sm:%s3]
    %s7 = scalar_lea.vmem [#allocation1], 24
    %8 = vst [vmem:[%s7] sm:%s3] %v6
    %s9 = smul.addr 4, 2
    %s10 = scalar_lea.vmem %s0, %s9
    %v11 = vld [vmem:[%s10] sm:%s3]
    %s12 = scalar_lea.vmem [#allocation1], 16
    %13 = vst [vmem:[%s12] sm:%s3] %v11
    %s14 = scalar_lea.vmem %s0, 4
    %v15 = vld [vmem:[%s14] sm:%s3]
    %s16 = scalar_lea.vmem [#allocation1], 8
    %17 = vst [vmem:[%s16] sm:%s3] %v15
    %v18 = vld [vmem:[%s0] sm:%s3]
    %19 = vst [vmem:[#allocation1] sm:%s3] %v18
    %v20 = vld [vmem:[#allocation1] ss:$8 sm:$0xf]
    %vm21 = vcmask 64512
    %22 = vst.msk [vmem:[#allocation0] sm:$0xf] %vm21, %v20
    %s23 = scalar_lea.vmem [#allocation1], 3
    %v24 = vld [vmem:[%s23] ss:$8 sm:$0xf]
    %25 = vrot.lane.b32.xlu0 %v24, 24
    %v26 = vpop.permute.xlu0 %25
    %vm27 = vcmask 261312
    %28 = vst.msk [vmem:[#allocation0] sm:$0xf] %vm27, %v26
    %s29 = scalar_lea.vmem [#allocation1], 2
    %v30 = vld [vmem:[%s29] ss:$8 sm:$0xf]
    %31 = vrot.lane.b32.xlu0 %v30, 16
    %v32 = vpop.permute.xlu0 %31
    %vm33 = vcmask 195712
    %34 = vst.msk [vmem:[#allocation0] sm:$0xf] %vm33, %v32
    %s35 = scalar_lea.vmem [#allocation1], 1
    %v36 = vld [vmem:[%s35] ss:$8 sm:$0xf]
    %37 = vrot.lane.b32.xlu0 %v36, 8
    %v38 = vpop.permute.xlu0 %37
    %vm39 = vcmask 130112
    %40 = vst.msk [vmem:[#allocation0] sm:$0xf] %vm39, %v38
    %s42 = sshllo.u32 0, 4
    %v44 = vld [vmem:[#allocation0] sm:%s42]
    %s45 = sshllo.u32 0, 4
    %46 = vst [vmem:[%s1] sm:%s45] %v44

// kernel: hierarchical_encoder_forward.5
$region0: #{hierarchical_encoder_forward.5}
  #allocation0 [shape = 'u32[]', space=smem, size = 0x4, offset = 0x4, fixed_abs, tag = 'smem constant byte address 0x4 - core index']
  #allocation1 [shape = 'u32[144,128]{1,0:T(1,128)}', space=vmem, size = 0x12000, scoped, tag = 'internal scratch']
  %s0 = inlined_call_operand.vmem [shape: f32[8,32], index: 0, kind: input, shape index: {}]
  %s1 = inlined_call_operand.vmem [shape: f32[4,32], index: 1, kind: input, shape index: {}]
  %s2 = inlined_call_operand.vmem [shape: f32[4,32], index: 2, kind: input, shape index: {}]
  %s3 = inlined_call_operand.vmem [shape: bf16[32,32], index: 3, kind: input, shape index: {}]
  %s4 = inlined_call_operand.vmem [shape: bf16[1,32,32], index: 4, kind: input, shape index: {}]
  %s5 = inlined_call_operand.vmem [shape: f32[1,32], index: 5, kind: input, shape index: {}]
  %s6 = inlined_call_operand.vmem [shape: bf16[1,32,32], index: 6, kind: input, shape index: {}]
  %s7 = inlined_call_operand.vmem [shape: f32[1,32], index: 7, kind: input, shape index: {}]
  %s8 = inlined_call_operand.vmem [shape: bf16[1,32,32], index: 8, kind: input, shape index: {}]
  %s9 = inlined_call_operand.vmem [shape: f32[1,32], index: 9, kind: input, shape index: {}]
  %s10 = inlined_call_operand.vmem [shape: bf16[1,32,32], index: 10, kind: input, shape index: {}]
  %s11 = inlined_call_operand.vmem [shape: f32[1,32], index: 11, kind: input, shape index: {}]
  %s12 = inlined_call_operand.vmem [shape: bf16[1,32,64], index: 12, kind: input, shape index: {}]
  %s13 = inlined_call_operand.vmem [shape: f32[1,64], index: 13, kind: input, shape index: {}]
  %s14 = inlined_call_operand.vmem [shape: bf16[1,64,32], index: 14, kind: input, shape index: {}]
  %s15 = inlined_call_operand.vmem [shape: f32[1,32], index: 15, kind: input, shape index: {}]
  %s16 = inlined_call_operand.vmem [shape: f32[1,32], index: 16, kind: input, shape index: {}]
  %s17 = inlined_call_operand.vmem [shape: f32[1,32], index: 17, kind: input, shape index: {}]
  %s18 = inlined_call_operand.vmem [shape: f32[1,32], index: 18, kind: input, shape index: {}]
  %s19 = inlined_call_operand.vmem [shape: f32[1,32], index: 19, kind: input, shape index: {}]
  %s20 = inlined_call_operand.vmem [shape: f32[8,32], index: 20, kind: output, shape index: {}]
  %s21 = sld [smem:[#allocation0]]
  $region90: #{hierarchical_encoder_forward.5} parent=0
    _
  %s23 = ssub.s32 1, %s21
  %s24 = scalar_select 0, %s23, %s21
  // Predicated region
  $region2: #{hierarchical_encoder_forward.5} parent=0 // pred_check
    _
  $region3: #{hierarchical_encoder_forward.5} parent=0 // pred_check_branch
    %26 = sbr.rel (0) target = $region5
  $region4: #{hierarchical_encoder_forward.5} parent=0 // pred_region
    _
  $region5: #{hierarchical_encoder_forward.5} parent=0 // pred_fallthru
    _
  // Predicated region
  $region6: #{hierarchical_encoder_forward.5} parent=0 // pred_check
    _
  $region7: #{hierarchical_encoder_forward.5} parent=0 // pred_check_branch
    %28 = sbr.rel (0) target = $region9
  $region8: #{hierarchical_encoder_forward.5} parent=0 // pred_region
    _
  $region9: #{hierarchical_encoder_forward.5} parent=0 // pred_fallthru
    _
  // Predicated region
  $region10: #{hierarchical_encoder_forward.5} parent=0 // pred_check
    _
  $region11: #{hierarchical_encoder_forward.5} parent=0 // pred_check_branch
    %30 = sbr.rel (0) target = $region13
  $region12: #{hierarchical_encoder_forward.5} parent=0 // pred_region
    _
  $region13: #{hierarchical_encoder_forward.5} parent=0 // pred_fallthru
    _
  // Predicated region
  $region14: #{hierarchical_encoder_forward.5} parent=0 // pred_check
    _
  $region15: #{hierarchical_encoder_forward.5} parent=0 // pred_check_branch
    %32 = sbr.rel (0) target = $region17
  $region16: #{hierarchical_encoder_forward.5} parent=0 // pred_region
    _
  $region17: #{hierarchical_encoder_forward.5} parent=0 // pred_fallthru
    _
  // Predicated region
  $region18: #{hierarchical_encoder_forward.5} parent=0 // pred_check
    _
  $region19: #{hierarchical_encoder_forward.5} parent=0 // pred_check_branch
    %34 = sbr.rel (0) target = $region21
  $region20: #{hierarchical_encoder_forward.5} parent=0 // pred_region
    _
  $region21: #{hierarchical_encoder_forward.5} parent=0 // pred_fallthru
    _
  // Predicated region
  $region22: #{hierarchical_encoder_forward.5} parent=0 // pred_check
    _
  $region23: #{hierarchical_encoder_forward.5} parent=0 // pred_check_branch
    %36 = sbr.rel (0) target = $region25
  $region24: #{hierarchical_encoder_forward.5} parent=0 // pred_region
    _
  $region25: #{hierarchical_encoder_forward.5} parent=0 // pred_fallthru
    _
  // Predicated region
  $region26: #{hierarchical_encoder_forward.5} parent=0 // pred_check
    _
  $region27: #{hierarchical_encoder_forward.5} parent=0 // pred_check_branch
    %38 = sbr.rel (0) target = $region29
  $region28: #{hierarchical_encoder_forward.5} parent=0 // pred_region
    _
  $region29: #{hierarchical_encoder_forward.5} parent=0 // pred_fallthru
    _
  // Predicated region
  $region30: #{hierarchical_encoder_forward.5} parent=0 // pred_check
    _
  $region31: #{hierarchical_encoder_forward.5} parent=0 // pred_check_branch
    %40 = sbr.rel (0) target = $region33
  $region32: #{hierarchical_encoder_forward.5} parent=0 // pred_region
    _
  $region33: #{hierarchical_encoder_forward.5} parent=0 // pred_fallthru
    _
  // Predicated region
  $region34: #{hierarchical_encoder_forward.5} parent=0 // pred_check
    _
  $region35: #{hierarchical_encoder_forward.5} parent=0 // pred_check_branch
    %42 = sbr.rel (0) target = $region37
  $region36: #{hierarchical_encoder_forward.5} parent=0 // pred_region
    _
  $region37: #{hierarchical_encoder_forward.5} parent=0 // pred_fallthru
    _
  // Predicated region
  $region38: #{hierarchical_encoder_forward.5} parent=0 // pred_check
    _
  $region39: #{hierarchical_encoder_forward.5} parent=0 // pred_check_branch
    %44 = sbr.rel (0) target = $region41
  $region40: #{hierarchical_encoder_forward.5} parent=0 // pred_region
    _
  $region41: #{hierarchical_encoder_forward.5} parent=0 // pred_fallthru
    _
  // Predicated region
  $region42: #{hierarchical_encoder_forward.5} parent=0 // pred_check
    _
  $region43: #{hierarchical_encoder_forward.5} parent=0 // pred_check_branch
    %46 = sbr.rel (0) target = $region45
  $region44: #{hierarchical_encoder_forward.5} parent=0 // pred_region
    _
  $region45: #{hierarchical_encoder_forward.5} parent=0 // pred_fallthru
    _
  // Predicated region
  $region46: #{hierarchical_encoder_forward.5} parent=0 // pred_check
    _
  $region47: #{hierarchical_encoder_forward.5} parent=0 // pred_check_branch
    %48 = sbr.rel (0) target = $region49
  $region48: #{hierarchical_encoder_forward.5} parent=0 // pred_region
    _
  $region49: #{hierarchical_encoder_forward.5} parent=0 // pred_fallthru
    _
  // Predicated region
  $region50: #{hierarchical_encoder_forward.5} parent=0 // pred_check
    _
  $region51: #{hierarchical_encoder_forward.5} parent=0 // pred_check_branch
    %50 = sbr.rel (0) target = $region53
  $region52: #{hierarchical_encoder_forward.5} parent=0 // pred_region
    _
  $region53: #{hierarchical_encoder_forward.5} parent=0 // pred_fallthru
    _
  // Predicated region
  $region54: #{hierarchical_encoder_forward.5} parent=0 // pred_check
    _
  $region55: #{hierarchical_encoder_forward.5} parent=0 // pred_check_branch
    %52 = sbr.rel (0) target = $region57
  $region56: #{hierarchical_encoder_forward.5} parent=0 // pred_region
    _
  $region57: #{hierarchical_encoder_forward.5} parent=0 // pred_fallthru
    _
  // Predicated region
  $region58: #{hierarchical_encoder_forward.5} parent=0 // pred_check
    _
  $region59: #{hierarchical_encoder_forward.5} parent=0 // pred_check_branch
    %54 = sbr.rel (0) target = $region61
  $region60: #{hierarchical_encoder_forward.5} parent=0 // pred_region
    _
  $region61: #{hierarchical_encoder_forward.5} parent=0 // pred_fallthru
    _
  // Predicated region
  $region62: #{hierarchical_encoder_forward.5} parent=0 // pred_check
    _
  $region63: #{hierarchical_encoder_forward.5} parent=0 // pred_check_branch
    %56 = sbr.rel (0) target = $region65
  $region64: #{hierarchical_encoder_forward.5} parent=0 // pred_region
    _
  $region65: #{hierarchical_encoder_forward.5} parent=0 // pred_fallthru
    _
  // Predicated region
  $region66: #{hierarchical_encoder_forward.5} parent=0 // pred_check
    _
  $region67: #{hierarchical_encoder_forward.5} parent=0 // pred_check_branch
    %58 = sbr.rel (0) target = $region69
  $region68: #{hierarchical_encoder_forward.5} parent=0 // pred_region
    _
  $region69: #{hierarchical_encoder_forward.5} parent=0 // pred_fallthru
    _
  // Predicated region
  $region70: #{hierarchical_encoder_forward.5} parent=0 // pred_check
    _
  $region71: #{hierarchical_encoder_forward.5} parent=0 // pred_check_branch
    %60 = sbr.rel (0) target = $region73
  $region72: #{hierarchical_encoder_forward.5} parent=0 // pred_region
    _
  $region73: #{hierarchical_encoder_forward.5} parent=0 // pred_fallthru
    _
  // Predicated region
  $region74: #{hierarchical_encoder_forward.5} parent=0 // pred_check
    _
  $region75: #{hierarchical_encoder_forward.5} parent=0 // pred_check_branch
    %62 = sbr.rel (0) target = $region77
  $region76: #{hierarchical_encoder_forward.5} parent=0 // pred_region
    _
  $region77: #{hierarchical_encoder_forward.5} parent=0 // pred_fallthru
    _
  // Predicated region
  $region78: #{hierarchical_encoder_forward.5} parent=0 // pred_check
    _
  $region79: #{hierarchical_encoder_forward.5} parent=0 // pred_check_branch
    %64 = sbr.rel (0) target = $region81
  $region80: #{hierarchical_encoder_forward.5} parent=0 // pred_region
    _
  $region81: #{hierarchical_encoder_forward.5} parent=0 // pred_fallthru
    _
  %v66 = vld [vmem:[%s0] sm:$0xff]
  %v67 = vld [vmem:[%s3] sm:$0xf]
  %v68 = vld [vmem:[%s3 + $0x4] sm:$0xf]
  %v69 = vld [vmem:[%s3 + $0x8] sm:$0xf]
  %v70 = vld [vmem:[%s3 + $0xc] sm:$0xf]
  %v71 = vld [vmem:[%s1] sm:$0xf]
  %v73 = vrot.slane %v71, 4
  %vm75 = vcmask 1043456
  %v76 = vsel %vm75, %v71, %v73
  %v77 = vld [vmem:[%s2] sm:$0xf]
  %v79 = vrot.slane %v77, 4
  %v81 = vsel %vm75, %v77, %v79
  %v82 = vpack.c.bf16 %v66, %v66
  %v83 = vld [vmem:[%s4] sm:$0xf]
  %v84 = vld [vmem:[%s4 + $0x4] sm:$0xf]
  %v85 = vld [vmem:[%s4 + $0x8] sm:$0xf]
  %v86 = vld [vmem:[%s4 + $0xc] sm:$0xf]
  %v87 = vld [vmem:[%s5] sm:$0x1]
  %v89 = vlaneseq
  %v90 = vshrl.u32 %v89, 7
  %v91 = vsub.s32 0, %v90
  %v92 = vrot.slane %v87, %v91
  %v98 = vunpack.c.l.b16 %v83
  %v99 = vunpack.c.l.b16 %v84
  %v100 = vunpack.c.l.b16 %v85
  %v101 = vunpack.c.l.b16 %v86
  %v102 = vpack.c.b16 %v99, %v98
  %v103 = vpack.c.b16 %v101, %v100
  %vm106 = vcmask 261120
  %v108 = vsel %vm106, %v82, 0
  %110 = vmatprep.subr.bf16.mxu0 0
  %111 = vmatpush1.bf16.msra.mxu0 %v102
  %112 = vmatprep.subr.bf16.mxu0 0
  %113 = vmatpush1.bf16.msra.mxu0 %v103
  %114 = vmatprep.subr.bf16.mxu0 0
  %115 = vmatpush1.bf16.msra.mxu0 0
  %116 = vmatprep.subr.bf16.mxu0 0
  %117 = vmatpush1.bf16.msra.mxu0 0
  %118 = vmatprep.subr.bf16.mxu0 0
  %119 = vmatpush1.bf16.msra.mxu0 0
  %120 = vmatprep.subr.bf16.mxu0 0
  %121 = vmatpush1.bf16.msra.mxu0 0
  %122 = vmatprep.subr.bf16.mxu0 0
  %123 = vmatpush1.bf16.msra.mxu0 0
  %124 = vmatprep.subr.bf16.mxu0 0
  %125 = vmatpush1.bf16.msra.mxu0 0
  %126 = vmatprep.subr.bf16.mxu0 0
  %127 = vmatpush1.bf16.msra.mxu0 0
  %128 = vmatprep.subr.bf16.mxu0 0
  %129 = vmatpush1.bf16.msra.mxu0 0
  %130 = vmatprep.subr.bf16.mxu0 0
  %131 = vmatpush1.bf16.msra.mxu0 0
  %132 = vmatprep.subr.bf16.mxu0 0
  %133 = vmatpush1.bf16.msra.mxu0 0
  %134 = vmatprep.subr.bf16.mxu0 0
  %135 = vmatpush1.bf16.msra.mxu0 0
  %136 = vmatprep.subr.bf16.mxu0 0
  %137 = vmatpush1.bf16.msra.mxu0 0
  %138 = vmatprep.subr.bf16.mxu0 0
  %139 = vmatpush1.bf16.msra.mxu0 0
  %140 = vmatprep.subr.bf16.mxu0 0
  %141 = vmatpush1.bf16.msra.mxu0 0
  %142 = vmatprep.mubr.bf16.mxu0 0
  %143 = vmatmul.mubr.bf16.gmra.mrb[0].mxu0 %v108
  %v144 = vpop.f32.mrb[0].mxu0
  %v145 = vadd.f32 %v92, %v144
  %v146 = vpop.f32.mrb[0].mxu0
  %v147 = vpop.f32.mrb[0].mxu0
  %v148 = vpop.f32.mrb[0].mxu0
  %149 = vdwg.mxu0
  %v150 = vld [vmem:[%s6] sm:$0xf]
  %v151 = vld [vmem:[%s6 + $0x4] sm:$0xf]
  %v152 = vld [vmem:[%s6 + $0x8] sm:$0xf]
  %v153 = vld [vmem:[%s6 + $0xc] sm:$0xf]
  %v154 = vld [vmem:[%s7] sm:$0x1]
  %v156 = vlaneseq
  %v157 = vshrl.u32 %v156, 7
  %v158 = vsub.s32 0, %v157
  %v159 = vrot.slane %v154, %v158
  %v165 = vunpack.c.l.b16 %v150
  %v166 = vunpack.c.l.b16 %v151
  %v167 = vunpack.c.l.b16 %v152
  %v168 = vunpack.c.l.b16 %v153
  %v169 = vpack.c.b16 %v166, %v165
  %v170 = vpack.c.b16 %v168, %v167
  %173 = vmatprep.subr.bf16.mxu0 0
  %174 = vmatpush1.bf16.msra.mxu0 %v169
  %175 = vmatprep.subr.bf16.mxu0 0
  %176 = vmatpush1.bf16.msra.mxu0 %v170
  %177 = vmatprep.subr.bf16.mxu0 0
  %178 = vmatpush1.bf16.msra.mxu0 0
  %179 = vmatprep.subr.bf16.mxu0 0
  %180 = vmatpush1.bf16.msra.mxu0 0
  %181 = vmatprep.subr.bf16.mxu0 0
  %182 = vmatpush1.bf16.msra.mxu0 0
  %183 = vmatprep.subr.bf16.mxu0 0
  %184 = vmatpush1.bf16.msra.mxu0 0
  %185 = vmatprep.subr.bf16.mxu0 0
  %186 = vmatpush1.bf16.msra.mxu0 0
  %187 = vmatprep.subr.bf16.mxu0 0
  %188 = vmatpush1.bf16.msra.mxu0 0
  %189 = vmatprep.subr.bf16.mxu0 0
  %190 = vmatpush1.bf16.msra.mxu0 0
  %191 = vmatprep.subr.bf16.mxu0 0
  %192 = vmatpush1.bf16.msra.mxu0 0
  %193 = vmatprep.subr.bf16.mxu0 0
  %194 = vmatpush1.bf16.msra.mxu0 0
  %195 = vmatprep.subr.bf16.mxu0 0
  %196 = vmatpush1.bf16.msra.mxu0 0
  %197 = vmatprep.subr.bf16.mxu0 0
  %198 = vmatpush1.bf16.msra.mxu0 0
  %199 = vmatprep.subr.bf16.mxu0 0
  %200 = vmatpush1.bf16.msra.mxu0 0
  %201 = vmatprep.subr.bf16.mxu0 0
  %202 = vmatpush1.bf16.msra.mxu0 0
  %203 = vmatprep.subr.bf16.mxu0 0
  %204 = vmatpush1.bf16.msra.mxu0 0
  %205 = vmatprep.mubr.bf16.mxu0 0
  %206 = vmatmul.mubr.bf16.gmra.mrb[0].mxu0 %v108
  %v207 = vpop.f32.mrb[0].mxu0
  %v208 = vadd.f32 %v159, %v207
  %v209 = vpop.f32.mrb[0].mxu0
  %v210 = vpop.f32.mrb[0].mxu0
  %v211 = vpop.f32.mrb[0].mxu0
  %212 = vdwg.mxu0
  %v213 = vld [vmem:[%s8] sm:$0xf]
  %v214 = vld [vmem:[%s8 + $0x4] sm:$0xf]
  %v215 = vld [vmem:[%s8 + $0x8] sm:$0xf]
  %v216 = vld [vmem:[%s8 + $0xc] sm:$0xf]
  %v217 = vld [vmem:[%s9] sm:$0x1]
  %v219 = vlaneseq
  %v220 = vshrl.u32 %v219, 7
  %v221 = vsub.s32 0, %v220
  %v222 = vrot.slane %v217, %v221
  %v228 = vunpack.c.l.b16 %v213
  %v229 = vunpack.c.l.b16 %v214
  %v230 = vunpack.c.l.b16 %v215
  %v231 = vunpack.c.l.b16 %v216
  %v232 = vpack.c.b16 %v229, %v228
  %v233 = vpack.c.b16 %v231, %v230
  %236 = vmatprep.subr.bf16.mxu0 0
  %237 = vmatpush1.bf16.msra.mxu0 %v232
  %238 = vmatprep.subr.bf16.mxu0 0
  %239 = vmatpush1.bf16.msra.mxu0 %v233
  %240 = vmatprep.subr.bf16.mxu0 0
  %241 = vmatpush1.bf16.msra.mxu0 0
  %242 = vmatprep.subr.bf16.mxu0 0
  %243 = vmatpush1.bf16.msra.mxu0 0
  %244 = vmatprep.subr.bf16.mxu0 0
  %245 = vmatpush1.bf16.msra.mxu0 0
  %246 = vmatprep.subr.bf16.mxu0 0
  %247 = vmatpush1.bf16.msra.mxu0 0
  %248 = vmatprep.subr.bf16.mxu0 0
  %249 = vmatpush1.bf16.msra.mxu0 0
  %250 = vmatprep.subr.bf16.mxu0 0
  %251 = vmatpush1.bf16.msra.mxu0 0
  %252 = vmatprep.subr.bf16.mxu0 0
  %253 = vmatpush1.bf16.msra.mxu0 0
  %254 = vmatprep.subr.bf16.mxu0 0
  %255 = vmatpush1.bf16.msra.mxu0 0
  %256 = vmatprep.subr.bf16.mxu0 0
  %257 = vmatpush1.bf16.msra.mxu0 0
  %258 = vmatprep.subr.bf16.mxu0 0
  %259 = vmatpush1.bf16.msra.mxu0 0
  %260 = vmatprep.subr.bf16.mxu0 0
  %261 = vmatpush1.bf16.msra.mxu0 0
  %262 = vmatprep.subr.bf16.mxu0 0
  %263 = vmatpush1.bf16.msra.mxu0 0
  %264 = vmatprep.subr.bf16.mxu0 0
  %265 = vmatpush1.bf16.msra.mxu0 0
  %266 = vmatprep.subr.bf16.mxu0 0
  %267 = vmatpush1.bf16.msra.mxu0 0
  %268 = vmatprep.mubr.bf16.mxu0 0
  %269 = vmatmul.mubr.bf16.gmra.mrb[0].mxu0 %v108
  %v270 = vpop.f32.mrb[0].mxu0
  %v271 = vadd.f32 %v222, %v270
  %v272 = vpop.f32.mrb[0].mxu0
  %v273 = vpop.f32.mrb[0].mxu0
  %v274 = vpop.f32.mrb[0].mxu0
  %275 = vdwg.mxu0
  %v276 = vmul.f32 %v145, %v76
  %v277 = vpack.c.bf16 %v145, %v145
  %v282 = vunpack.c.l.b16 %v67
  %v283 = vunpack.c.l.b16 %v68
  %v284 = vunpack.c.l.b16 %v69
  %v285 = vunpack.c.l.b16 %v70
  %v286 = vpack.c.b16 %v283, %v282
  %v287 = vpack.c.b16 %v285, %v284
  %v291 = vsel %vm106, %v277, 0
  %293 = vmatprep.subr.bf16.mxu0 0
  %294 = vmatpush1.bf16.msra.mxu0 %v286
  %295 = vmatprep.subr.bf16.mxu0 0
  %296 = vmatpush1.bf16.msra.mxu0 %v287
  %297 = vmatprep.subr.bf16.mxu0 0
  %298 = vmatpush1.bf16.msra.mxu0 0
  %299 = vmatprep.subr.bf16.mxu0 0
  %300 = vmatpush1.bf16.msra.mxu0 0
  %301 = vmatprep.subr.bf16.mxu0 0
  %302 = vmatpush1.bf16.msra.mxu0 0
  %303 = vmatprep.subr.bf16.mxu0 0
  %304 = vmatpush1.bf16.msra.mxu0 0
  %305 = vmatprep.subr.bf16.mxu0 0
  %306 = vmatpush1.bf16.msra.mxu0 0
  %307 = vmatprep.subr.bf16.mxu0 0
  %308 = vmatpush1.bf16.msra.mxu0 0
  %309 = vmatprep.subr.bf16.mxu0 0
  %310 = vmatpush1.bf16.msra.mxu0 0
  %311 = vmatprep.subr.bf16.mxu0 0
  %312 = vmatpush1.bf16.msra.mxu0 0
  %313 = vmatprep.subr.bf16.mxu0 0
  %314 = vmatpush1.bf16.msra.mxu0 0
  %315 = vmatprep.subr.bf16.mxu0 0
  %316 = vmatpush1.bf16.msra.mxu0 0
  %317 = vmatprep.subr.bf16.mxu0 0
  %318 = vmatpush1.bf16.msra.mxu0 0
  %319 = vmatprep.subr.bf16.mxu0 0
  %320 = vmatpush1.bf16.msra.mxu0 0
  %321 = vmatprep.subr.bf16.mxu0 0
  %322 = vmatpush1.bf16.msra.mxu0 0
  %323 = vmatprep.subr.bf16.mxu0 0
  %324 = vmatpush1.bf16.msra.mxu0 0
  %325 = vmatprep.mubr.bf16.mxu0 0
  %326 = vmatmul.mubr.bf16.gmra.mrb[0].mxu0 %v291
  %v327 = vpop.f32.mrb[0].mxu0
  %v328 = vadd.f32 0.0, %v327
  %v329 = vpop.f32.mrb[0].mxu0
  %v330 = vpop.f32.mrb[0].mxu0
  %v331 = vpop.f32.mrb[0].mxu0
  %332 = vdwg.mxu0
  %v333 = vmul.f32 %v328, %v81
  %v334 = vadd.f32 %v276, %v333
  %v335 = vmul.f32 %v208, %v76
  %v336 = vpack.c.bf16 %v208, %v208
  %v338 = vsel %vm106, %v336, 0
  %340 = vmatprep.subr.bf16.mxu0 0
  %341 = vmatpush1.bf16.msra.mxu0 %v286
  %342 = vmatprep.subr.bf16.mxu0 0
  %343 = vmatpush1.bf16.msra.mxu0 %v287
  %344 = vmatprep.subr.bf16.mxu0 0
  %345 = vmatpush1.bf16.msra.mxu0 0
  %346 = vmatprep.subr.bf16.mxu0 0
  %347 = vmatpush1.bf16.msra.mxu0 0
  %348 = vmatprep.subr.bf16.mxu0 0
  %349 = vmatpush1.bf16.msra.mxu0 0
  %350 = vmatprep.subr.bf16.mxu0 0
  %351 = vmatpush1.bf16.msra.mxu0 0
  %352 = vmatprep.subr.bf16.mxu0 0
  %353 = vmatpush1.bf16.msra.mxu0 0
  %354 = vmatprep.subr.bf16.mxu0 0
  %355 = vmatpush1.bf16.msra.mxu0 0
  %356 = vmatprep.subr.bf16.mxu0 0
  %357 = vmatpush1.bf16.msra.mxu0 0
  %358 = vmatprep.subr.bf16.mxu0 0
  %359 = vmatpush1.bf16.msra.mxu0 0
  %360 = vmatprep.subr.bf16.mxu0 0
  %361 = vmatpush1.bf16.msra.mxu0 0
  %362 = vmatprep.subr.bf16.mxu0 0
  %363 = vmatpush1.bf16.msra.mxu0 0
  %364 = vmatprep.subr.bf16.mxu0 0
  %365 = vmatpush1.bf16.msra.mxu0 0
  %366 = vmatprep.subr.bf16.mxu0 0
  %367 = vmatpush1.bf16.msra.mxu0 0
  %368 = vmatprep.subr.bf16.mxu0 0
  %369 = vmatpush1.bf16.msra.mxu0 0
  %370 = vmatprep.subr.bf16.mxu0 0
  %371 = vmatpush1.bf16.msra.mxu0 0
  %372 = vmatprep.mubr.bf16.mxu0 0
  %373 = vmatmul.mubr.bf16.gmra.mrb[0].mxu0 %v338
  %v374 = vpop.f32.mrb[0].mxu0
  %v375 = vadd.f32 0.0, %v374
  %v376 = vpop.f32.mrb[0].mxu0
  %v377 = vpop.f32.mrb[0].mxu0
  %v378 = vpop.f32.mrb[0].mxu0
  %379 = vdwg.mxu0
  %v380 = vmul.f32 %v375, %v81
  %v381 = vadd.f32 %v335, %v380
  %v382 = vmul.f32 %v334, 0.35355338
  %v384 = vcombine.high %v382, %v382
  %v386 = vpack.c.bf16 %v382, %v382
  %v387 = vpack.c.bf16 %v384, %v384
  %v389 = vcombine.high %v381, %v381
  %v391 = vpack.c.bf16 %v381, %v381
  %v392 = vpack.c.bf16 %v389, %v389
  %v394 = vcombine.high %v271, %v271
  %v396 = vpack.c.bf16 %v271, %v271
  %v397 = vpack.c.bf16 %v394, %v394
  %vm398 = vcmask 64512
  %v400 = vsel %vm398, %v386, 0
  %v403 = vsel %vm398, %v391, 0
  %405 = vmatprep.subr.bf16.mxu0 0
  %406 = vmatpush1.bf16.xpose.msra.mxu0 %v403
  %407 = vmatprep.subr.bf16.mxu0 0
  %408 = vmatpush1.bf16.xpose.msra.mxu0 0
  %409 = vmatprep.subr.bf16.mxu0 0
  %410 = vmatpush1.bf16.xpose.msra.mxu0 0
  %411 = vmatprep.subr.bf16.mxu0 0
  %412 = vmatpush1.bf16.xpose.msra.mxu0 0
  %413 = vmatprep.subr.bf16.mxu0 0
  %414 = vmatpush1.bf16.xpose.msra.mxu0 0
  %415 = vmatprep.subr.bf16.mxu0 0
  %416 = vmatpush1.bf16.xpose.msra.mxu0 0
  %417 = vmatprep.subr.bf16.mxu0 0
  %418 = vmatpush1.bf16.xpose.msra.mxu0 0
  %419 = vmatprep.subr.bf16.mxu0 0
  %420 = vmatpush1.bf16.xpose.msra.mxu0 0
  %421 = vmatprep.subr.bf16.mxu0 0
  %422 = vmatpush1.bf16.xpose.msra.mxu0 0
  %423 = vmatprep.subr.bf16.mxu0 0
  %424 = vmatpush1.bf16.xpose.msra.mxu0 0
  %425 = vmatprep.subr.bf16.mxu0 0
  %426 = vmatpush1.bf16.xpose.msra.mxu0 0
  %427 = vmatprep.subr.bf16.mxu0 0
  %428 = vmatpush1.bf16.xpose.msra.mxu0 0
  %429 = vmatprep.subr.bf16.mxu0 0
  %430 = vmatpush1.bf16.xpose.msra.mxu0 0
  %431 = vmatprep.subr.bf16.mxu0 0
  %432 = vmatpush1.bf16.xpose.msra.mxu0 0
  %433 = vmatprep.subr.bf16.mxu0 0
  %434 = vmatpush1.bf16.xpose.msra.mxu0 0
  %435 = vmatprep.subr.bf16.mxu0 0
  %436 = vmatpush1.bf16.xpose.msra.mxu0 0
  %437 = vmatprep.mubr.bf16.mxu0 0
  %438 = vmatmul.mubr.bf16.gmra.mrb[0].mxu0 %v400
  %v439 = vpop.f32.mrb[0].mxu0
  %v440 = vadd.f32 0.0, %v439
  %v441 = vpop.f32.mrb[0].mxu0
  %v442 = vpop.f32.mrb[0].mxu0
  %v443 = vpop.f32.mrb[0].mxu0
  %444 = vdwg.mxu0
  %v446 = vsel %vm398, %v387, 0
  %v449 = vsel %vm398, %v392, 0
  %451 = vmatprep.subr.bf16.mxu0 0
  %452 = vmatpush1.bf16.xpose.msra.mxu0 %v449
  %453 = vmatprep.subr.bf16.mxu0 0
  %454 = vmatpush1.bf16.xpose.msra.mxu0 0
  %455 = vmatprep.subr.bf16.mxu0 0
  %456 = vmatpush1.bf16.xpose.msra.mxu0 0
  %457 = vmatprep.subr.bf16.mxu0 0
  %458 = vmatpush1.bf16.xpose.msra.mxu0 0
  %459 = vmatprep.subr.bf16.mxu0 0
  %460 = vmatpush1.bf16.xpose.msra.mxu0 0
  %461 = vmatprep.subr.bf16.mxu0 0
  %462 = vmatpush1.bf16.xpose.msra.mxu0 0
  %463 = vmatprep.subr.bf16.mxu0 0
  %464 = vmatpush1.bf16.xpose.msra.mxu0 0
  %465 = vmatprep.subr.bf16.mxu0 0
  %466 = vmatpush1.bf16.xpose.msra.mxu0 0
  %467 = vmatprep.subr.bf16.mxu0 0
  %468 = vmatpush1.bf16.xpose.msra.mxu0 0
  %469 = vmatprep.subr.bf16.mxu0 0
  %470 = vmatpush1.bf16.xpose.msra.mxu0 0
  %471 = vmatprep.subr.bf16.mxu0 0
  %472 = vmatpush1.bf16.xpose.msra.mxu0 0
  %473 = vmatprep.subr.bf16.mxu0 0
  %474 = vmatpush1.bf16.xpose.msra.mxu0 0
  %475 = vmatprep.subr.bf16.mxu0 0
  %476 = vmatpush1.bf16.xpose.msra.mxu0 0
  %477 = vmatprep.subr.bf16.mxu0 0
  %478 = vmatpush1.bf16.xpose.msra.mxu0 0
  %479 = vmatprep.subr.bf16.mxu0 0
  %480 = vmatpush1.bf16.xpose.msra.mxu0 0
  %481 = vmatprep.subr.bf16.mxu0 0
  %482 = vmatpush1.bf16.xpose.msra.mxu0 0
  %483 = vmatprep.mubr.bf16.mxu0 0
  %484 = vmatmul.mubr.bf16.gmra.mrb[0].mxu0 %v446
  %v485 = vpop.f32.mrb[0].mxu0
  %v486 = vadd.f32 0.0, %v485
  %v487 = vpop.f32.mrb[0].mxu0
  %v488 = vpop.f32.mrb[0].mxu0
  %v489 = vpop.f32.mrb[0].mxu0
  %490 = vdwg.mxu0
  %vm491 = vcmask 27648
  %v492 = vsel %vm491, %v440, -inf
  %493 = vmax.xlane.f32.xlu0 %v492
  %v494 = vpop.xlane.xlu0 %493
  %v495 = vsel %vm491, %v486, -inf
  %496 = vmax.xlane.f32.xlu0 %v495
  %v497 = vpop.xlane.xlu0 %496
  %v498 = vsub.f32 %v440, %v494
  %v499 = vsub.f32 %v486, %v497
  %v500 = vmul.f32 %v498, 1.442695
  %v501 = vpow.pop %v500
  %v502 = vmul.f32 %v499, 1.442695
  %v503 = vpow.pop %v502
  %v504 = vsel %vm491, %v501, 0.0
  %505 = vadd.xlane.f32.xlu0 %v504
  %v506 = vpop.xlane.xlu0 %505
  %v507 = vsel %vm491, %v503, 0.0
  %508 = vadd.xlane.f32.xlu0 %v507
  %v509 = vpop.xlane.xlu0 %508
  %v510 = vrcp.pop %v506
  %v511 = vmul.f32 %v501, %v510
  %v512 = vrcp.pop %v509
  %v513 = vmul.f32 %v503, %v512
  %v514 = vpack.c.bf16 %v511, %v511
  %v515 = vpack.c.bf16 %v513, %v513
  %vm516 = vcmask 31744
  %v518 = vsel %vm516, %v514, 0
  %vm520 = vcmask 1041408
  %v522 = vsel %vm520, %v396, 0
  %524 = vmatprep.subr.bf16.mxu0 0
  %525 = vmatpush1.bf16.msra.mxu0 %v522
  %526 = vmatprep.subr.bf16.mxu0 0
  %527 = vmatpush1.bf16.msra.mxu0 0
  %528 = vmatprep.subr.bf16.mxu0 0
  %529 = vmatpush1.bf16.msra.mxu0 0
  %530 = vmatprep.subr.bf16.mxu0 0
  %531 = vmatpush1.bf16.msra.mxu0 0
  %532 = vmatprep.subr.bf16.mxu0 0
  %533 = vmatpush1.bf16.msra.mxu0 0
  %534 = vmatprep.subr.bf16.mxu0 0
  %535 = vmatpush1.bf16.msra.mxu0 0
  %536 = vmatprep.subr.bf16.mxu0 0
  %537 = vmatpush1.bf16.msra.mxu0 0
  %538 = vmatprep.subr.bf16.mxu0 0
  %539 = vmatpush1.bf16.msra.mxu0 0
  %540 = vmatprep.subr.bf16.mxu0 0
  %541 = vmatpush1.bf16.msra.mxu0 0
  %542 = vmatprep.subr.bf16.mxu0 0
  %543 = vmatpush1.bf16.msra.mxu0 0
  %544 = vmatprep.subr.bf16.mxu0 0
  %545 = vmatpush1.bf16.msra.mxu0 0
  %546 = vmatprep.subr.bf16.mxu0 0
  %547 = vmatpush1.bf16.msra.mxu0 0
  %548 = vmatprep.subr.bf16.mxu0 0
  %549 = vmatpush1.bf16.msra.mxu0 0
  %550 = vmatprep.subr.bf16.mxu0 0
  %551 = vmatpush1.bf16.msra.mxu0 0
  %552 = vmatprep.subr.bf16.mxu0 0
  %553 = vmatpush1.bf16.msra.mxu0 0
  %554 = vmatprep.subr.bf16.mxu0 0
  %555 = vmatpush1.bf16.msra.mxu0 0
  %556 = vmatprep.mubr.bf16.mxu0 0
  %557 = vmatmul.mubr.bf16.gmra.mrb[0].mxu0 %v518
  %v558 = vpop.f32.mrb[0].mxu0
  %v559 = vadd.f32 0.0, %v558
  %v560 = vpop.f32.mrb[0].mxu0
  %v561 = vpop.f32.mrb[0].mxu0
  %v562 = vpop.f32.mrb[0].mxu0
  %563 = vdwg.mxu0
  %v565 = vsel %vm516, %v515, 0
  %v568 = vsel %vm520, %v397, 0
  %570 = vmatprep.subr.bf16.mxu0 0
  %571 = vmatpush1.bf16.msra.mxu0 %v568
  %572 = vmatprep.subr.bf16.mxu0 0
  %573 = vmatpush1.bf16.msra.mxu0 0
  %574 = vmatprep.subr.bf16.mxu0 0
  %575 = vmatpush1.bf16.msra.mxu0 0
  %576 = vmatprep.subr.bf16.mxu0 0
  %577 = vmatpush1.bf16.msra.mxu0 0
  %578 = vmatprep.subr.bf16.mxu0 0
  %579 = vmatpush1.bf16.msra.mxu0 0
  %580 = vmatprep.subr.bf16.mxu0 0
  %581 = vmatpush1.bf16.msra.mxu0 0
  %582 = vmatprep.subr.bf16.mxu0 0
  %583 = vmatpush1.bf16.msra.mxu0 0
  %584 = vmatprep.subr.bf16.mxu0 0
  %585 = vmatpush1.bf16.msra.mxu0 0
  %586 = vmatprep.subr.bf16.mxu0 0
  %587 = vmatpush1.bf16.msra.mxu0 0
  %588 = vmatprep.subr.bf16.mxu0 0
  %589 = vmatpush1.bf16.msra.mxu0 0
  %590 = vmatprep.subr.bf16.mxu0 0
  %591 = vmatpush1.bf16.msra.mxu0 0
  %592 = vmatprep.subr.bf16.mxu0 0
  %593 = vmatpush1.bf16.msra.mxu0 0
  %594 = vmatprep.subr.bf16.mxu0 0
  %595 = vmatpush1.bf16.msra.mxu0 0
  %596 = vmatprep.subr.bf16.mxu0 0
  %597 = vmatpush1.bf16.msra.mxu0 0
  %598 = vmatprep.subr.bf16.mxu0 0
  %599 = vmatpush1.bf16.msra.mxu0 0
  %600 = vmatprep.subr.bf16.mxu0 0
  %601 = vmatpush1.bf16.msra.mxu0 0
  %602 = vmatprep.mubr.bf16.mxu0 0
  %603 = vmatmul.mubr.bf16.gmra.mrb[0].mxu0 %v565
  %v604 = vpop.f32.mrb[0].mxu0
  %v605 = vadd.f32 0.0, %v604
  %v606 = vpop.f32.mrb[0].mxu0
  %v607 = vpop.f32.mrb[0].mxu0
  %v608 = vpop.f32.mrb[0].mxu0
  %609 = vdwg.mxu0
  %611 = vrot.lane.b32.xlu0 %v386, 120
  %v612 = vpop.permute.xlu0 %611
  %614 = vrot.lane.b32.xlu0 %v391, 120
  %v615 = vpop.permute.xlu0 %614
  %v617 = vsel %vm398, %v612, 0
  %v620 = vsel %vm398, %v615, 0
  %622 = vmatprep.subr.bf16.mxu0 0
  %623 = vmatpush1.bf16.xpose.msra.mxu0 %v620
  %624 = vmatprep.subr.bf16.mxu0 0
  %625 = vmatpush1.bf16.xpose.msra.mxu0 0
  %626 = vmatprep.subr.bf16.mxu0 0
  %627 = vmatpush1.bf16.xpose.msra.mxu0 0
  %628 = vmatprep.subr.bf16.mxu0 0
  %629 = vmatpush1.bf16.xpose.msra.mxu0 0
  %630 = vmatprep.subr.bf16.mxu0 0
  %631 = vmatpush1.bf16.xpose.msra.mxu0 0
  %632 = vmatprep.subr.bf16.mxu0 0
  %633 = vmatpush1.bf16.xpose.msra.mxu0 0
  %634 = vmatprep.subr.bf16.mxu0 0
  %635 = vmatpush1.bf16.xpose.msra.mxu0 0
  %636 = vmatprep.subr.bf16.mxu0 0
  %637 = vmatpush1.bf16.xpose.msra.mxu0 0
  %638 = vmatprep.subr.bf16.mxu0 0
  %639 = vmatpush1.bf16.xpose.msra.mxu0 0
  %640 = vmatprep.subr.bf16.mxu0 0
  %641 = vmatpush1.bf16.xpose.msra.mxu0 0
  %642 = vmatprep.subr.bf16.mxu0 0
  %643 = vmatpush1.bf16.xpose.msra.mxu0 0
  %644 = vmatprep.subr.bf16.mxu0 0
  %645 = vmatpush1.bf16.xpose.msra.mxu0 0
  %646 = vmatprep.subr.bf16.mxu0 0
  %647 = vmatpush1.bf16.xpose.msra.mxu0 0
  %648 = vmatprep.subr.bf16.mxu0 0
  %649 = vmatpush1.bf16.xpose.msra.mxu0 0
  %650 = vmatprep.subr.bf16.mxu0 0
  %651 = vmatpush1.bf16.xpose.msra.mxu0 0
  %652 = vmatprep.subr.bf16.mxu0 0
  %653 = vmatpush1.bf16.xpose.msra.mxu0 0
  %654 = vmatprep.mubr.bf16.mxu0 0
  %655 = vmatmul.mubr.bf16.gmra.mrb[0].mxu0 %v617
  %v656 = vpop.f32.mrb[0].mxu0
  %v657 = vadd.f32 0.0, %v656
  %v658 = vpop.f32.mrb[0].mxu0
  %v659 = vpop.f32.mrb[0].mxu0
  %v660 = vpop.f32.mrb[0].mxu0
  %661 = vdwg.mxu0
  %663 = vrot.lane.b32.xlu0 %v387, 120
  %v664 = vpop.permute.xlu0 %663
  %666 = vrot.lane.b32.xlu0 %v392, 120
  %v667 = vpop.permute.xlu0 %666
  %v669 = vsel %vm398, %v664, 0
  %v672 = vsel %vm398, %v667, 0
  %674 = vmatprep.subr.bf16.mxu0 0
  %675 = vmatpush1.bf16.xpose.msra.mxu0 %v672
  %676 = vmatprep.subr.bf16.mxu0 0
  %677 = vmatpush1.bf16.xpose.msra.mxu0 0
  %678 = vmatprep.subr.bf16.mxu0 0
  %679 = vmatpush1.bf16.xpose.msra.mxu0 0
  %680 = vmatprep.subr.bf16.mxu0 0
  %681 = vmatpush1.bf16.xpose.msra.mxu0 0
  %682 = vmatprep.subr.bf16.mxu0 0
  %683 = vmatpush1.bf16.xpose.msra.mxu0 0
  %684 = vmatprep.subr.bf16.mxu0 0
  %685 = vmatpush1.bf16.xpose.msra.mxu0 0
  %686 = vmatprep.subr.bf16.mxu0 0
  %687 = vmatpush1.bf16.xpose.msra.mxu0 0
  %688 = vmatprep.subr.bf16.mxu0 0
  %689 = vmatpush1.bf16.xpose.msra.mxu0 0
  %690 = vmatprep.subr.bf16.mxu0 0
  %691 = vmatpush1.bf16.xpose.msra.mxu0 0
  %692 = vmatprep.subr.bf16.mxu0 0
  %693 = vmatpush1.bf16.xpose.msra.mxu0 0
  %694 = vmatprep.subr.bf16.mxu0 0
  %695 = vmatpush1.bf16.xpose.msra.mxu0 0
  %696 = vmatprep.subr.bf16.mxu0 0
  %697 = vmatpush1.bf16.xpose.msra.mxu0 0
  %698 = vmatprep.subr.bf16.mxu0 0
  %699 = vmatpush1.bf16.xpose.msra.mxu0 0
  %700 = vmatprep.subr.bf16.mxu0 0
  %701 = vmatpush1.bf16.xpose.msra.mxu0 0
  %702 = vmatprep.subr.bf16.mxu0 0
  %703 = vmatpush1.bf16.xpose.msra.mxu0 0
  %704 = vmatprep.subr.bf16.mxu0 0
  %705 = vmatpush1.bf16.xpose.msra.mxu0 0
  %706 = vmatprep.mubr.bf16.mxu0 0
  %707 = vmatmul.mubr.bf16.gmra.mrb[0].mxu0 %v669
  %v708 = vpop.f32.mrb[0].mxu0
  %v709 = vadd.f32 0.0, %v708
  %v710 = vpop.f32.mrb[0].mxu0
  %v711 = vpop.f32.mrb[0].mxu0
  %v712 = vpop.f32.mrb[0].mxu0
  %713 = vdwg.mxu0
  %v714 = vsel %vm491, %v657, -inf
  %715 = vmax.xlane.f32.xlu0 %v714
  %v716 = vpop.xlane.xlu0 %715
  %v717 = vsel %vm491, %v709, -inf
  %718 = vmax.xlane.f32.xlu0 %v717
  %v719 = vpop.xlane.xlu0 %718
  %v720 = vsub.f32 %v657, %v716
  %v721 = vsub.f32 %v709, %v719
  %v722 = vmul.f32 %v720, 1.442695
  %v723 = vpow.pop %v722
  %v724 = vmul.f32 %v721, 1.442695
  %v725 = vpow.pop %v724
  %v726 = vsel %vm491, %v723, 0.0
  %727 = vadd.xlane.f32.xlu0 %v726
  %v728 = vpop.xlane.xlu0 %727
  %v729 = vsel %vm491, %v725, 0.0
  %730 = vadd.xlane.f32.xlu0 %v729
  %v731 = vpop.xlane.xlu0 %730
  %v732 = vrcp.pop %v728
  %v733 = vmul.f32 %v723, %v732
  %v734 = vrcp.pop %v731
  %v735 = vmul.f32 %v725, %v734
  %v736 = vpack.c.bf16 %v733, %v733
  %v737 = vpack.c.bf16 %v735, %v735
  %739 = vrot.lane.b32.xlu0 %v396, 120
  %v740 = vpop.permute.xlu0 %739
  %v742 = vsel %vm516, %v736, 0
  %v745 = vsel %vm520, %v740, 0
  %747 = vmatprep.subr.bf16.mxu0 0
  %748 = vmatpush1.bf16.msra.mxu0 %v745
  %749 = vmatprep.subr.bf16.mxu0 0
  %750 = vmatpush1.bf16.msra.mxu0 0
  %751 = vmatprep.subr.bf16.mxu0 0
  %752 = vmatpush1.bf16.msra.mxu0 0
  %753 = vmatprep.subr.bf16.mxu0 0
  %754 = vmatpush1.bf16.msra.mxu0 0
  %755 = vmatprep.subr.bf16.mxu0 0
  %756 = vmatpush1.bf16.msra.mxu0 0
  %757 = vmatprep.subr.bf16.mxu0 0
  %758 = vmatpush1.bf16.msra.mxu0 0
  %759 = vmatprep.subr.bf16.mxu0 0
  %760 = vmatpush1.bf16.msra.mxu0 0
  %761 = vmatprep.subr.bf16.mxu0 0
  %762 = vmatpush1.bf16.msra.mxu0 0
  %763 = vmatprep.subr.bf16.mxu0 0
  %764 = vmatpush1.bf16.msra.mxu0 0
  %765 = vmatprep.subr.bf16.mxu0 0
  %766 = vmatpush1.bf16.msra.mxu0 0
  %767 = vmatprep.subr.bf16.mxu0 0
  %768 = vmatpush1.bf16.msra.mxu0 0
  %769 = vmatprep.subr.bf16.mxu0 0
  %770 = vmatpush1.bf16.msra.mxu0 0
  %771 = vmatprep.subr.bf16.mxu0 0
  %772 = vmatpush1.bf16.msra.mxu0 0
  %773 = vmatprep.subr.bf16.mxu0 0
  %774 = vmatpush1.bf16.msra.mxu0 0
  %775 = vmatprep.subr.bf16.mxu0 0
  %776 = vmatpush1.bf16.msra.mxu0 0
  %777 = vmatprep.subr.bf16.mxu0 0
  %778 = vmatpush1.bf16.msra.mxu0 0
  %779 = vmatprep.mubr.bf16.mxu0 0
  %780 = vmatmul.mubr.bf16.gmra.mrb[0].mxu0 %v742
  %v781 = vpop.f32.mrb[0].mxu0
  %v782 = vadd.f32 0.0, %v781
  %v783 = vpop.f32.mrb[0].mxu0
  %v784 = vpop.f32.mrb[0].mxu0
  %v785 = vpop.f32.mrb[0].mxu0
  %786 = vdwg.mxu0
  %788 = vrot.lane.b32.xlu0 %v397, 120
  %v789 = vpop.permute.xlu0 %788
  %v791 = vsel %vm516, %v737, 0
  %v794 = vsel %vm520, %v789, 0
  %796 = vmatprep.subr.bf16.mxu0 0
  %797 = vmatpush1.bf16.msra.mxu0 %v794
  %798 = vmatprep.subr.bf16.mxu0 0
  %799 = vmatpush1.bf16.msra.mxu0 0
  %800 = vmatprep.subr.bf16.mxu0 0
  %801 = vmatpush1.bf16.msra.mxu0 0
  %802 = vmatprep.subr.bf16.mxu0 0
  %803 = vmatpush1.bf16.msra.mxu0 0
  %804 = vmatprep.subr.bf16.mxu0 0
  %805 = vmatpush1.bf16.msra.mxu0 0
  %806 = vmatprep.subr.bf16.mxu0 0
  %807 = vmatpush1.bf16.msra.mxu0 0
  %808 = vmatprep.subr.bf16.mxu0 0
  %809 = vmatpush1.bf16.msra.mxu0 0
  %810 = vmatprep.subr.bf16.mxu0 0
  %811 = vmatpush1.bf16.msra.mxu0 0
  %812 = vmatprep.subr.bf16.mxu0 0
  %813 = vmatpush1.bf16.msra.mxu0 0
  %814 = vmatprep.subr.bf16.mxu0 0
  %815 = vmatpush1.bf16.msra.mxu0 0
  %816 = vmatprep.subr.bf16.mxu0 0
  %817 = vmatpush1.bf16.msra.mxu0 0
  %818 = vmatprep.subr.bf16.mxu0 0
  %819 = vmatpush1.bf16.msra.mxu0 0
  %820 = vmatprep.subr.bf16.mxu0 0
  %821 = vmatpush1.bf16.msra.mxu0 0
  %822 = vmatprep.subr.bf16.mxu0 0
  %823 = vmatpush1.bf16.msra.mxu0 0
  %824 = vmatprep.subr.bf16.mxu0 0
  %825 = vmatpush1.bf16.msra.mxu0 0
  %826 = vmatprep.subr.bf16.mxu0 0
  %827 = vmatpush1.bf16.msra.mxu0 0
  %828 = vmatprep.mubr.bf16.mxu0 0
  %829 = vmatmul.mubr.bf16.gmra.mrb[0].mxu0 %v791
  %v830 = vpop.f32.mrb[0].mxu0
  %v831 = vadd.f32 0.0, %v830
  %v832 = vpop.f32.mrb[0].mxu0
  %v833 = vpop.f32.mrb[0].mxu0
  %v834 = vpop.f32.mrb[0].mxu0
  %835 = vdwg.mxu0
  %836 = vrot.lane.b32.xlu0 %v386, 112
  %v837 = vpop.permute.xlu0 %836
  %838 = vrot.lane.b32.xlu0 %v391, 112
  %v839 = vpop.permute.xlu0 %838
  %v841 = vsel %vm398, %v837, 0
  %v844 = vsel %vm398, %v839, 0
  %846 = vmatprep.subr.bf16.mxu0 0
  %847 = vmatpush1.bf16.xpose.msra.mxu0 %v844
  %848 = vmatprep.subr.bf16.mxu0 0
  %849 = vmatpush1.bf16.xpose.msra.mxu0 0
  %850 = vmatprep.subr.bf16.mxu0 0
  %851 = vmatpush1.bf16.xpose.msra.mxu0 0
  %852 = vmatprep.subr.bf16.mxu0 0
  %853 = vmatpush1.bf16.xpose.msra.mxu0 0
  %854 = vmatprep.subr.bf16.mxu0 0
  %855 = vmatpush1.bf16.xpose.msra.mxu0 0
  %856 = vmatprep.subr.bf16.mxu0 0
  %857 = vmatpush1.bf16.xpose.msra.mxu0 0
  %858 = vmatprep.subr.bf16.mxu0 0
  %859 = vmatpush1.bf16.xpose.msra.mxu0 0
  %860 = vmatprep.subr.bf16.mxu0 0
  %861 = vmatpush1.bf16.xpose.msra.mxu0 0
  %862 = vmatprep.subr.bf16.mxu0 0
  %863 = vmatpush1.bf16.xpose.msra.mxu0 0
  %864 = vmatprep.subr.bf16.mxu0 0
  %865 = vmatpush1.bf16.xpose.msra.mxu0 0
  %866 = vmatprep.subr.bf16.mxu0 0
  %867 = vmatpush1.bf16.xpose.msra.mxu0 0
  %868 = vmatprep.subr.bf16.mxu0 0
  %869 = vmatpush1.bf16.xpose.msra.mxu0 0
  %870 = vmatprep.subr.bf16.mxu0 0
  %871 = vmatpush1.bf16.xpose.msra.mxu0 0
  %872 = vmatprep.subr.bf16.mxu0 0
  %873 = vmatpush1.bf16.xpose.msra.mxu0 0
  %874 = vmatprep.subr.bf16.mxu0 0
  %875 = vmatpush1.bf16.xpose.msra.mxu0 0
  %876 = vmatprep.subr.bf16.mxu0 0
  %877 = vmatpush1.bf16.xpose.msra.mxu0 0
  %878 = vmatprep.mubr.bf16.mxu0 0
  %879 = vmatmul.mubr.bf16.gmra.mrb[0].mxu0 %v841
  %v880 = vpop.f32.mrb[0].mxu0
  %v881 = vadd.f32 0.0, %v880
  %v882 = vpop.f32.mrb[0].mxu0
  %v883 = vpop.f32.mrb[0].mxu0
  %v884 = vpop.f32.mrb[0].mxu0
  %885 = vdwg.mxu0
  %886 = vrot.lane.b32.xlu0 %v387, 112
  %v887 = vpop.permute.xlu0 %886
  %888 = vrot.lane.b32.xlu0 %v392, 112
  %v889 = vpop.permute.xlu0 %888
  %v891 = vsel %vm398, %v887, 0
  %v894 = vsel %vm398, %v889, 0
  %896 = vmatprep.subr.bf16.mxu0 0
  %897 = vmatpush1.bf16.xpose.msra.mxu0 %v894
  %898 = vmatprep.subr.bf16.mxu0 0
  %899 = vmatpush1.bf16.xpose.msra.mxu0 0
  %900 = vmatprep.subr.bf16.mxu0 0
  %901 = vmatpush1.bf16.xpose.msra.mxu0 0
  %902 = vmatprep.subr.bf16.mxu0 0
  %903 = vmatpush1.bf16.xpose.msra.mxu0 0
  %904 = vmatprep.subr.bf16.mxu0 0
  %905 = vmatpush1.bf16.xpose.msra.mxu0 0
  %906 = vmatprep.subr.bf16.mxu0 0
  %907 = vmatpush1.bf16.xpose.msra.mxu0 0
  %908 = vmatprep.subr.bf16.mxu0 0
  %909 = vmatpush1.bf16.xpose.msra.mxu0 0
  %910 = vmatprep.subr.bf16.mxu0 0
  %911 = vmatpush1.bf16.xpose.msra.mxu0 0
  %912 = vmatprep.subr.bf16.mxu0 0
  %913 = vmatpush1.bf16.xpose.msra.mxu0 0
  %914 = vmatprep.subr.bf16.mxu0 0
  %915 = vmatpush1.bf16.xpose.msra.mxu0 0
  %916 = vmatprep.subr.bf16.mxu0 0
  %917 = vmatpush1.bf16.xpose.msra.mxu0 0
  %918 = vmatprep.subr.bf16.mxu0 0
  %919 = vmatpush1.bf16.xpose.msra.mxu0 0
  %920 = vmatprep.subr.bf16.mxu0 0
  %921 = vmatpush1.bf16.xpose.msra.mxu0 0
  %922 = vmatprep.subr.bf16.mxu0 0
  %923 = vmatpush1.bf16.xpose.msra.mxu0 0
  %924 = vmatprep.subr.bf16.mxu0 0
  %925 = vmatpush1.bf16.xpose.msra.mxu0 0
  %926 = vmatprep.subr.bf16.mxu0 0
  %927 = vmatpush1.bf16.xpose.msra.mxu0 0
  %928 = vmatprep.mubr.bf16.mxu0 0
  %929 = vmatmul.mubr.bf16.gmra.mrb[0].mxu0 %v891
  %v930 = vpop.f32.mrb[0].mxu0
  %v931 = vadd.f32 0.0, %v930
  %v932 = vpop.f32.mrb[0].mxu0
  %v933 = vpop.f32.mrb[0].mxu0
  %v934 = vpop.f32.mrb[0].mxu0
  %935 = vdwg.mxu0
  %v936 = vsel %vm491, %v881, -inf
  %937 = vmax.xlane.f32.xlu0 %v936
  %v938 = vpop.xlane.xlu0 %937
  %v939 = vsel %vm491, %v931, -inf
  %940 = vmax.xlane.f32.xlu0 %v939
  %v941 = vpop.xlane.xlu0 %940
  %v942 = vsub.f32 %v881, %v938
  %v943 = vsub.f32 %v931, %v941
  %v944 = vmul.f32 %v942, 1.442695
  %v945 = vpow.pop %v944
  %v946 = vmul.f32 %v943, 1.442695
  %v947 = vpow.pop %v946
  %v948 = vsel %vm491, %v945, 0.0
  %949 = vadd.xlane.f32.xlu0 %v948
  %v950 = vpop.xlane.xlu0 %949
  %v951 = vsel %vm491, %v947, 0.0
  %952 = vadd.xlane.f32.xlu0 %v951
  %v953 = vpop.xlane.xlu0 %952
  %v954 = vrcp.pop %v950
  %v955 = vmul.f32 %v945, %v954
  %v956 = vrcp.pop %v953
  %v957 = vmul.f32 %v947, %v956
  %v958 = vpack.c.bf16 %v955, %v955
  %v959 = vpack.c.bf16 %v957, %v957
  %960 = vrot.lane.b32.xlu0 %v396, 112
  %v961 = vpop.permute.xlu0 %960
  %v963 = vsel %vm516, %v958, 0
  %v966 = vsel %vm520, %v961, 0
  %968 = vmatprep.subr.bf16.mxu0 0
  %969 = vmatpush1.bf16.msra.mxu0 %v966
  %970 = vmatprep.subr.bf16.mxu0 0
  %971 = vmatpush1.bf16.msra.mxu0 0
  %972 = vmatprep.subr.bf16.mxu0 0
  %973 = vmatpush1.bf16.msra.mxu0 0
  %974 = vmatprep.subr.bf16.mxu0 0
  %975 = vmatpush1.bf16.msra.mxu0 0
  %976 = vmatprep.subr.bf16.mxu0 0
  %977 = vmatpush1.bf16.msra.mxu0 0
  %978 = vmatprep.subr.bf16.mxu0 0
  %979 = vmatpush1.bf16.msra.mxu0 0
  %980 = vmatprep.subr.bf16.mxu0 0
  %981 = vmatpush1.bf16.msra.mxu0 0
  %982 = vmatprep.subr.bf16.mxu0 0
  %983 = vmatpush1.bf16.msra.mxu0 0
  %984 = vmatprep.subr.bf16.mxu0 0
  %985 = vmatpush1.bf16.msra.mxu0 0
  %986 = vmatprep.subr.bf16.mxu0 0
  %987 = vmatpush1.bf16.msra.mxu0 0
  %988 = vmatprep.subr.bf16.mxu0 0
  %989 = vmatpush1.bf16.msra.mxu0 0
  %990 = vmatprep.subr.bf16.mxu0 0
  %991 = vmatpush1.bf16.msra.mxu0 0
  %992 = vmatprep.subr.bf16.mxu0 0
  %993 = vmatpush1.bf16.msra.mxu0 0
  %994 = vmatprep.subr.bf16.mxu0 0
  %995 = vmatpush1.bf16.msra.mxu0 0
  %996 = vmatprep.subr.bf16.mxu0 0
  %997 = vmatpush1.bf16.msra.mxu0 0
  %998 = vmatprep.subr.bf16.mxu0 0
  %999 = vmatpush1.bf16.msra.mxu0 0
  %1000 = vmatprep.mubr.bf16.mxu0 0
  %1001 = vmatmul.mubr.bf16.gmra.mrb[0].mxu0 %v963
  %v1002 = vpop.f32.mrb[0].mxu0
  %v1003 = vadd.f32 0.0, %v1002
  %v1004 = vpop.f32.mrb[0].mxu0
  %v1005 = vpop.f32.mrb[0].mxu0
  %v1006 = vpop.f32.mrb[0].mxu0
  %1007 = vdwg.mxu0
  %1008 = vrot.lane.b32.xlu0 %v397, 112
  %v1009 = vpop.permute.xlu0 %1008
  %v1011 = vsel %vm516, %v959, 0
  %v1014 = vsel %vm520, %v1009, 0
  %1016 = vmatprep.subr.bf16.mxu0 0
  %1017 = vmatpush1.bf16.msra.mxu0 %v1014
  %1018 = vmatprep.subr.bf16.mxu0 0
  %1019 = vmatpush1.bf16.msra.mxu0 0
  %1020 = vmatprep.subr.bf16.mxu0 0
  %1021 = vmatpush1.bf16.msra.mxu0 0
  %1022 = vmatprep.subr.bf16.mxu0 0
  %1023 = vmatpush1.bf16.msra.mxu0 0
  %1024 = vmatprep.subr.bf16.mxu0 0
  %1025 = vmatpush1.bf16.msra.mxu0 0
  %1026 = vmatprep.subr.bf16.mxu0 0
  %1027 = vmatpush1.bf16.msra.mxu0 0
  %1028 = vmatprep.subr.bf16.mxu0 0
  %1029 = vmatpush1.bf16.msra.mxu0 0
  %1030 = vmatprep.subr.bf16.mxu0 0
  %1031 = vmatpush1.bf16.msra.mxu0 0
  %1032 = vmatprep.subr.bf16.mxu0 0
  %1033 = vmatpush1.bf16.msra.mxu0 0
  %1034 = vmatprep.subr.bf16.mxu0 0
  %1035 = vmatpush1.bf16.msra.mxu0 0
  %1036 = vmatprep.subr.bf16.mxu0 0
  %1037 = vmatpush1.bf16.msra.mxu0 0
  %1038 = vmatprep.subr.bf16.mxu0 0
  %1039 = vmatpush1.bf16.msra.mxu0 0
  %1040 = vmatprep.subr.bf16.mxu0 0
  %1041 = vmatpush1.bf16.msra.mxu0 0
  %1042 = vmatprep.subr.bf16.mxu0 0
  %1043 = vmatpush1.bf16.msra.mxu0 0
  %1044 = vmatprep.subr.bf16.mxu0 0
  %1045 = vmatpush1.bf16.msra.mxu0 0
  %1046 = vmatprep.subr.bf16.mxu0 0
  %1047 = vmatpush1.bf16.msra.mxu0 0
  %1048 = vmatprep.mubr.bf16.mxu0 0
  %1049 = vmatmul.mubr.bf16.gmra.mrb[0].mxu0 %v1011
  %v1050 = vpop.f32.mrb[0].mxu0
  %v1051 = vadd.f32 0.0, %v1050
  %v1052 = vpop.f32.mrb[0].mxu0
  %v1053 = vpop.f32.mrb[0].mxu0
  %v1054 = vpop.f32.mrb[0].mxu0
  %1055 = vdwg.mxu0
  %1056 = vrot.lane.b32.xlu0 %v386, 104
  %v1057 = vpop.permute.xlu0 %1056
  %1058 = vrot.lane.b32.xlu0 %v391, 104
  %v1059 = vpop.permute.xlu0 %1058
  %v1061 = vsel %vm398, %v1057, 0
  %v1064 = vsel %vm398, %v1059, 0
  %1066 = vmatprep.subr.bf16.mxu0 0
  %1067 = vmatpush1.bf16.xpose.msra.mxu0 %v1064
  %1068 = vmatprep.subr.bf16.mxu0 0
  %1069 = vmatpush1.bf16.xpose.msra.mxu0 0
  %1070 = vmatprep.subr.bf16.mxu0 0
  %1071 = vmatpush1.bf16.xpose.msra.mxu0 0
  %1072 = vmatprep.subr.bf16.mxu0 0
  %1073 = vmatpush1.bf16.xpose.msra.mxu0 0
  %1074 = vmatprep.subr.bf16.mxu0 0
  %1075 = vmatpush1.bf16.xpose.msra.mxu0 0
  %1076 = vmatprep.subr.bf16.mxu0 0
  %1077 = vmatpush1.bf16.xpose.msra.mxu0 0
  %1078 = vmatprep.subr.bf16.mxu0 0
  %1079 = vmatpush1.bf16.xpose.msra.mxu0 0
  %1080 = vmatprep.subr.bf16.mxu0 0
  %1081 = vmatpush1.bf16.xpose.msra.mxu0 0
  %1082 = vmatprep.subr.bf16.mxu0 0
  %1083 = vmatpush1.bf16.xpose.msra.mxu0 0
  %1084 = vmatprep.subr.bf16.mxu0 0
  %1085 = vmatpush1.bf16.xpose.msra.mxu0 0
  %1086 = vmatprep.subr.bf16.mxu0 0
  %1087 = vmatpush1.bf16.xpose.msra.mxu0 0
  %1088 = vmatprep.subr.bf16.mxu0 0
  %1089 = vmatpush1.bf16.xpose.msra.mxu0 0
  %1090 = vmatprep.subr.bf16.mxu0 0
  %1091 = vmatpush1.bf16.xpose.msra.mxu0 0
  %1092 = vmatprep.subr.bf16.mxu0 0
  %1093 = vmatpush1.bf16.xpose.msra.mxu0 0
  %1094 = vmatprep.subr.bf16.mxu0 0
  %1095 = vmatpush1.bf16.xpose.msra.mxu0 0
  %1096 = vmatprep.subr.bf16.mxu0 0
  %1097 = vmatpush1.bf16.xpose.msra.mxu0 0
  %1098 = vmatprep.mubr.bf16.mxu0 0
  %1099 = vmatmul.mubr.bf16.gmra.mrb[0].mxu0 %v1061
  %v1100 = vpop.f32.mrb[0].mxu0
  %v1101 = vadd.f32 0.0, %v1100
  %v1102 = vpop.f32.mrb[0].mxu0
  %v1103 = vpop.f32.mrb[0].mxu0
  %v1104 = vpop.f32.mrb[0].mxu0
  %1105 = vdwg.mxu0
  %1106 = vrot.lane.b32.xlu0 %v387, 104
  %v1107 = vpop.permute.xlu0 %1106
  %1108 = vrot.lane.b32.xlu0 %v392, 104
  %v1109 = vpop.permute.xlu0 %1108
  %v1111 = vsel %vm398, %v1107, 0
  %v1114 = vsel %vm398, %v1109, 0
  %1116 = vmatprep.subr.bf16.mxu0 0
  %1117 = vmatpush1.bf16.xpose.msra.mxu0 %v1114
  %1118 = vmatprep.subr.bf16.mxu0 0
  %1119 = vmatpush1.bf16.xpose.msra.mxu0 0
  %1120 = vmatprep.subr.bf16.mxu0 0
  %1121 = vmatpush1.bf16.xpose.msra.mxu0 0
  %1122 = vmatprep.subr.bf16.mxu0 0
  %1123 = vmatpush1.bf16.xpose.msra.mxu0 0
  %1124 = vmatprep.subr.bf16.mxu0 0
  %1125 = vmatpush1.bf16.xpose.msra.mxu0 0
  %1126 = vmatprep.subr.bf16.mxu0 0
  %1127 = vmatpush1.bf16.xpose.msra.mxu0 0
  %1128 = vmatprep.subr.bf16.mxu0 0
  %1129 = vmatpush1.bf16.xpose.msra.mxu0 0
  %1130 = vmatprep.subr.bf16.mxu0 0
  %1131 = vmatpush1.bf16.xpose.msra.mxu0 0
  %1132 = vmatprep.subr.bf16.mxu0 0
  %1133 = vmatpush1.bf16.xpose.msra.mxu0 0
  %1134 = vmatprep.subr.bf16.mxu0 0
  %1135 = vmatpush1.bf16.xpose.msra.mxu0 0
  %1136 = vmatprep.subr.bf16.mxu0 0
  %1137 = vmatpush1.bf16.xpose.msra.mxu0 0
  %1138 = vmatprep.subr.bf16.mxu0 0
  %1139 = vmatpush1.bf16.xpose.msra.mxu0 0
  %1140 = vmatprep.subr.bf16.mxu0 0
  %1141 = vmatpush1.bf16.xpose.msra.mxu0 0
  %1142 = vmatprep.subr.bf16.mxu0 0
  %1143 = vmatpush1.bf16.xpose.msra.mxu0 0
  %1144 = vmatprep.subr.bf16.mxu0 0
  %1145 = vmatpush1.bf16.xpose.msra.mxu0 0
  %1146 = vmatprep.subr.bf16.mxu0 0
  %1147 = vmatpush1.bf16.xpose.msra.mxu0 0
  %1148 = vmatprep.mubr.bf16.mxu0 0
  %1149 = vmatmul.mubr.bf16.gmra.mrb[0].mxu0 %v1111
  %v1150 = vpop.f32.mrb[0].mxu0
  %v1151 = vadd.f32 0.0, %v1150
  %v1152 = vpop.f32.mrb[0].mxu0
  %v1153 = vpop.f32.mrb[0].mxu0
  %v1154 = vpop.f32.mrb[0].mxu0
  %1155 = vdwg.mxu0
  %v1156 = vsel %vm491, %v1101, -inf
  %1157 = vmax.xlane.f32.xlu0 %v1156
  %v1158 = vpop.xlane.xlu0 %1157
  %v1159 = vsel %vm491, %v1151, -inf
  %1160 = vmax.xlane.f32.xlu0 %v1159
  %v1161 = vpop.xlane.xlu0 %1160
  %v1162 = vsub.f32 %v1101, %v1158
  %v1163 = vsub.f32 %v1151, %v1161
  %v1164 = vmul.f32 %v1162, 1.442695
  %v1165 = vpow.pop %v1164
  %v1166 = vmul.f32 %v1163, 1.442695
  %v1167 = vpow.pop %v1166
  %v1168 = vsel %vm491, %v1165, 0.0
  %1169 = vadd.xlane.f32.xlu0 %v1168
  %v1170 = vpop.xlane.xlu0 %1169
  %v1171 = vsel %vm491, %v1167, 0.0
  %1172 = vadd.xlane.f32.xlu0 %v1171
  %v1173 = vpop.xlane.xlu0 %1172
  %v1174 = vrcp.pop %v1170
  %v1175 = vmul.f32 %v1165, %v1174
  %v1176 = vrcp.pop %v1173
  %v1177 = vmul.f32 %v1167, %v1176
  %v1178 = vpack.c.bf16 %v1175, %v1175
  %v1179 = vpack.c.bf16 %v1177, %v1177
  %1180 = vrot.lane.b32.xlu0 %v396, 104
  %v1181 = vpop.permute.xlu0 %1180
  %v1183 = vsel %vm516, %v1178, 0
  %v1186 = vsel %vm520, %v1181, 0
  %1188 = vmatprep.subr.bf16.mxu0 0
  %1189 = vmatpush1.bf16.msra.mxu0 %v1186
  %1190 = vmatprep.subr.bf16.mxu0 0
  %1191 = vmatpush1.bf16.msra.mxu0 0
  %1192 = vmatprep.subr.bf16.mxu0 0
  %1193 = vmatpush1.bf16.msra.mxu0 0
  %1194 = vmatprep.subr.bf16.mxu0 0
  %1195 = vmatpush1.bf16.msra.mxu0 0
  %1196 = vmatprep.subr.bf16.mxu0 0
  %1197 = vmatpush1.bf16.msra.mxu0 0
  %1198 = vmatprep.subr.bf16.mxu0 0
  %1199 = vmatpush1.bf16.msra.mxu0 0
  %1200 = vmatprep.subr.bf16.mxu0 0
  %1201 = vmatpush1.bf16.msra.mxu0 0
  %1202 = vmatprep.subr.bf16.mxu0 0
  %1203 = vmatpush1.bf16.msra.mxu0 0
  %1204 = vmatprep.subr.bf16.mxu0 0
  %1205 = vmatpush1.bf16.msra.mxu0 0
  %1206 = vmatprep.subr.bf16.mxu0 0
  %1207 = vmatpush1.bf16.msra.mxu0 0
  %1208 = vmatprep.subr.bf16.mxu0 0
  %1209 = vmatpush1.bf16.msra.mxu0 0
  %1210 = vmatprep.subr.bf16.mxu0 0
  %1211 = vmatpush1.bf16.msra.mxu0 0
  %1212 = vmatprep.subr.bf16.mxu0 0
  %1213 = vmatpush1.bf16.msra.mxu0 0
  %1214 = vmatprep.subr.bf16.mxu0 0
  %1215 = vmatpush1.bf16.msra.mxu0 0
  %1216 = vmatprep.subr.bf16.mxu0 0
  %1217 = vmatpush1.bf16.msra.mxu0 0
  %1218 = vmatprep.subr.bf16.mxu0 0
  %1219 = vmatpush1.bf16.msra.mxu0 0
  %1220 = vmatprep.mubr.bf16.mxu0 0
  %1221 = vmatmul.mubr.bf16.gmra.mrb[0].mxu0 %v1183
  %v1222 = vpop.f32.mrb[0].mxu0
  %v1223 = vadd.f32 0.0, %v1222
  %v1224 = vpop.f32.mrb[0].mxu0
  %v1225 = vpop.f32.mrb[0].mxu0
  %v1226 = vpop.f32.mrb[0].mxu0
  %1227 = vdwg.mxu0
  %1228 = vrot.lane.b32.xlu0 %v397, 104
  %v1229 = vpop.permute.xlu0 %1228
  %v1231 = vsel %vm516, %v1179, 0
  %v1234 = vsel %vm520, %v1229, 0
  %1236 = vmatprep.subr.bf16.mxu0 0
  %1237 = vmatpush1.bf16.msra.mxu0 %v1234
  %1238 = vmatprep.subr.bf16.mxu0 0
  %1239 = vmatpush1.bf16.msra.mxu0 0
  %1240 = vmatprep.subr.bf16.mxu0 0
  %1241 = vmatpush1.bf16.msra.mxu0 0
  %1242 = vmatprep.subr.bf16.mxu0 0
  %1243 = vmatpush1.bf16.msra.mxu0 0
  %1244 = vmatprep.subr.bf16.mxu0 0
  %1245 = vmatpush1.bf16.msra.mxu0 0
  %1246 = vmatprep.subr.bf16.mxu0 0
  %1247 = vmatpush1.bf16.msra.mxu0 0
  %1248 = vmatprep.subr.bf16.mxu0 0
  %1249 = vmatpush1.bf16.msra.mxu0 0
  %1250 = vmatprep.subr.bf16.mxu0 0
  %1251 = vmatpush1.bf16.msra.mxu0 0
  %1252 = vmatprep.subr.bf16.mxu0 0
  %1253 = vmatpush1.bf16.msra.mxu0 0
  %1254 = vmatprep.subr.bf16.mxu0 0
  %1255 = vmatpush1.bf16.msra.mxu0 0
  %1256 = vmatprep.subr.bf16.mxu0 0
  %1257 = vmatpush1.bf16.msra.mxu0 0
  %1258 = vmatprep.subr.bf16.mxu0 0
  %1259 = vmatpush1.bf16.msra.mxu0 0
  %1260 = vmatprep.subr.bf16.mxu0 0
  %1261 = vmatpush1.bf16.msra.mxu0 0
  %1262 = vmatprep.subr.bf16.mxu0 0
  %1263 = vmatpush1.bf16.msra.mxu0 0
  %1264 = vmatprep.subr.bf16.mxu0 0
  %1265 = vmatpush1.bf16.msra.mxu0 0
  %1266 = vmatprep.subr.bf16.mxu0 0
  %1267 = vmatpush1.bf16.msra.mxu0 0
  %1268 = vmatprep.mubr.bf16.mxu0 0
  %1269 = vmatmul.mubr.bf16.gmra.mrb[0].mxu0 %v1231
  %v1270 = vpop.f32.mrb[0].mxu0
  %v1271 = vadd.f32 0.0, %v1270
  %v1272 = vpop.f32.mrb[0].mxu0
  %v1273 = vpop.f32.mrb[0].mxu0
  %v1274 = vpop.f32.mrb[0].mxu0
  %1275 = vdwg.mxu0
  %v1278 = vcombine.low %v559, %v605
  %v1282 = vcombine.low %v782, %v831
  %1283 = vrot.lane.b32.xlu0 %v1282, 8
  %v1284 = vpop.permute.xlu0 %1283
  %v1288 = vcombine.low %v1003, %v1051
  %1289 = vrot.lane.b32.xlu0 %v1288, 16
  %v1290 = vpop.permute.xlu0 %1289
  %v1294 = vcombine.low %v1223, %v1271
  %1295 = vrot.lane.b32.xlu0 %v1294, 24
  %v1296 = vpop.permute.xlu0 %1295
  %v1298 = vsel %vm398, %v1278, %v1284
  %vm1299 = vcmask 130048
  %v1300 = vsel %vm1299, %v1298, %v1290
  %vm1301 = vcmask 195584
  %v1302 = vsel %vm1301, %v1300, %v1296
  %v1303 = vpack.c.bf16 %v1302, %v1302
  %v1304 = vld [vmem:[%s10] sm:$0xf]
  %v1305 = vld [vmem:[%s10 + $0x4] sm:$0xf]
  %v1306 = vld [vmem:[%s10 + $0x8] sm:$0xf]
  %v1307 = vld [vmem:[%s10 + $0xc] sm:$0xf]
  %v1308 = vld [vmem:[%s11] sm:$0x1]
  %v1310 = vlaneseq
  %v1311 = vshrl.u32 %v1310, 7
  %v1312 = vsub.s32 0, %v1311
  %v1313 = vrot.slane %v1308, %v1312
  %v1319 = vunpack.c.l.b16 %v1304
  %v1320 = vunpack.c.l.b16 %v1305
  %v1321 = vunpack.c.l.b16 %v1306
  %v1322 = vunpack.c.l.b16 %v1307
  %v1323 = vpack.c.b16 %v1320, %v1319
  %v1324 = vpack.c.b16 %v1322, %v1321
  %v1328 = vsel %vm106, %v1303, 0
  %1330 = vmatprep.subr.bf16.mxu0 0
  %1331 = vmatpush1.bf16.msra.mxu0 %v1323
  %1332 = vmatprep.subr.bf16.mxu0 0
  %1333 = vmatpush1.bf16.msra.mxu0 %v1324
  %1334 = vmatprep.subr.bf16.mxu0 0
  %1335 = vmatpush1.bf16.msra.mxu0 0
  %1336 = vmatprep.subr.bf16.mxu0 0
  %1337 = vmatpush1.bf16.msra.mxu0 0
  %1338 = vmatprep.subr.bf16.mxu0 0
  %1339 = vmatpush1.bf16.msra.mxu0 0
  %1340 = vmatprep.subr.bf16.mxu0 0
  %1341 = vmatpush1.bf16.msra.mxu0 0
  %1342 = vmatprep.subr.bf16.mxu0 0
  %1343 = vmatpush1.bf16.msra.mxu0 0
  %1344 = vmatprep.subr.bf16.mxu0 0
  %1345 = vmatpush1.bf16.msra.mxu0 0
  %1346 = vmatprep.subr.bf16.mxu0 0
  %1347 = vmatpush1.bf16.msra.mxu0 0
  %1348 = vmatprep.subr.bf16.mxu0 0
  %1349 = vmatpush1.bf16.msra.mxu0 0
  %1350 = vmatprep.subr.bf16.mxu0 0
  %1351 = vmatpush1.bf16.msra.mxu0 0
  %1352 = vmatprep.subr.bf16.mxu0 0
  %1353 = vmatpush1.bf16.msra.mxu0 0
  %1354 = vmatprep.subr.bf16.mxu0 0
  %1355 = vmatpush1.bf16.msra.mxu0 0
  %1356 = vmatprep.subr.bf16.mxu0 0
  %1357 = vmatpush1.bf16.msra.mxu0 0
  %1358 = vmatprep.subr.bf16.mxu0 0
  %1359 = vmatpush1.bf16.msra.mxu0 0
  %1360 = vmatprep.subr.bf16.mxu0 0
  %1361 = vmatpush1.bf16.msra.mxu0 0
  %1362 = vmatprep.mubr.bf16.mxu0 0
  %1363 = vmatmul.mubr.bf16.gmra.mrb[0].mxu0 %v1328
  %v1364 = vpop.f32.mrb[0].mxu0
  %v1365 = vadd.f32 %v1313, %v1364
  %v1366 = vpop.f32.mrb[0].mxu0
  %v1367 = vpop.f32.mrb[0].mxu0
  %v1368 = vpop.f32.mrb[0].mxu0
  %1369 = vdwg.mxu0
  %v1370 = vadd.f32 %v66, %v1365
  %v1371 = vld [vmem:[%s16] sm:$0x1]
  %v1372 = vld [vmem:[%s17] sm:$0x1]
  %v1373 = vsel %vm106, %v1370, 0.0
  %1374 = vadd.xlane.f32.xlu0 %v1373
  %v1375 = vpop.xlane.xlu0 %1374
  %v1376 = vrcp.pop 32.0
  %v1377 = vmul.f32 %v1375, %v1376
  %v1378 = vsub.f32 %v1370, %v1377
  %v1379 = vmul.f32 %v1378, %v1378
  %v1380 = vsel %vm106, %v1379, 0.0
  %1381 = vadd.xlane.f32.xlu0 %v1380
  %v1382 = vpop.xlane.xlu0 %1381
  %v1383 = vmul.f32 %v1382, %v1376
  %v1384 = vadd.f32 %v1383, 1e-05
  %v1385 = vrsqrt.pop %v1384
  %v1386 = vmul.f32 %v1378, %v1385
  %v1388 = vlaneseq
  %v1389 = vshrl.u32 %v1388, 7
  %v1390 = vsub.s32 0, %v1389
  %v1391 = vrot.slane %v1371, %v1390
  %v1393 = vmul.f32 %v1386, %v1391
  %v1395 = vlaneseq
  %v1396 = vshrl.u32 %v1395, 7
  %v1397 = vsub.s32 0, %v1396
  %v1398 = vrot.slane %v1372, %v1397
  %v1400 = vadd.f32 %v1393, %v1398
  %v1401 = vpack.c.bf16 %v1400, %v1400
  %v1402 = vld [vmem:[%s12] sm:$0xf]
  %v1403 = vld [vmem:[%s12 + $0x4] sm:$0xf]
  %v1404 = vld [vmem:[%s12 + $0x8] sm:$0xf]
  %v1405 = vld [vmem:[%s12 + $0xc] sm:$0xf]
  %v1406 = vld [vmem:[%s13] sm:$0x1]
  %v1408 = vlaneseq
  %v1409 = vshrl.u32 %v1408, 7
  %v1410 = vsub.s32 0, %v1409
  %v1411 = vrot.slane %v1406, %v1410
  %v1417 = vunpack.c.l.b16 %v1402
  %v1418 = vunpack.c.l.b16 %v1403
  %v1419 = vunpack.c.l.b16 %v1404
  %v1420 = vunpack.c.l.b16 %v1405
  %v1421 = vpack.c.b16 %v1418, %v1417
  %v1422 = vpack.c.b16 %v1420, %v1419
  %v1426 = vsel %vm106, %v1401, 0
  %1428 = vmatprep.subr.bf16.mxu0 0
  %1429 = vmatpush1.bf16.msra.mxu0 %v1421
  %1430 = vmatprep.subr.bf16.mxu0 0
  %1431 = vmatpush1.bf16.msra.mxu0 %v1422
  %1432 = vmatprep.subr.bf16.mxu0 0
  %1433 = vmatpush1.bf16.msra.mxu0 0
  %1434 = vmatprep.subr.bf16.mxu0 0
  %1435 = vmatpush1.bf16.msra.mxu0 0
  %1436 = vmatprep.subr.bf16.mxu0 0
  %1437 = vmatpush1.bf16.msra.mxu0 0
  %1438 = vmatprep.subr.bf16.mxu0 0
  %1439 = vmatpush1.bf16.msra.mxu0 0
  %1440 = vmatprep.subr.bf16.mxu0 0
  %1441 = vmatpush1.bf16.msra.mxu0 0
  %1442 = vmatprep.subr.bf16.mxu0 0
  %1443 = vmatpush1.bf16.msra.mxu0 0
  %1444 = vmatprep.subr.bf16.mxu0 0
  %1445 = vmatpush1.bf16.msra.mxu0 0
  %1446 = vmatprep.subr.bf16.mxu0 0
  %1447 = vmatpush1.bf16.msra.mxu0 0
  %1448 = vmatprep.subr.bf16.mxu0 0
  %1449 = vmatpush1.bf16.msra.mxu0 0
  %1450 = vmatprep.subr.bf16.mxu0 0
  %1451 = vmatpush1.bf16.msra.mxu0 0
  %1452 = vmatprep.subr.bf16.mxu0 0
  %1453 = vmatpush1.bf16.msra.mxu0 0
  %1454 = vmatprep.subr.bf16.mxu0 0
  %1455 = vmatpush1.bf16.msra.mxu0 0
  %1456 = vmatprep.subr.bf16.mxu0 0
  %1457 = vmatpush1.bf16.msra.mxu0 0
  %1458 = vmatprep.subr.bf16.mxu0 0
  %1459 = vmatpush1.bf16.msra.mxu0 0
  %1460 = vmatprep.mubr.bf16.mxu0 0
  %1461 = vmatmul.mubr.bf16.gmra.mrb[0].mxu0 %v1426
  %v1462 = vpop.f32.mrb[0].mxu0
  %v1463 = vadd.f32 %v1411, %v1462
  %v1464 = vpop.f32.mrb[0].mxu0
  %v1465 = vpop.f32.mrb[0].mxu0
  %v1466 = vpop.f32.mrb[0].mxu0
  %1467 = vdwg.mxu0
  %v1468 = vmax.f32 %v1463, 0.0
  %v1469 = vpack.c.bf16 %v1468, %v1468
  %v1470 = vld [vmem:[%s14] sm:$0xf]
  %v1471 = vld [vmem:[%s14 + $0x4] sm:$0xf]
  %v1472 = vld [vmem:[%s14 + $0x8] sm:$0xf]
  %v1473 = vld [vmem:[%s14 + $0xc] sm:$0xf]
  %v1474 = vld [vmem:[%s14 + $0x10] sm:$0xf]
  %v1475 = vld [vmem:[%s14 + $0x14] sm:$0xf]
  %v1476 = vld [vmem:[%s14 + $0x18] sm:$0xf]
  %v1477 = vld [vmem:[%s14 + $0x1c] sm:$0xf]
  %v1478 = vld [vmem:[%s15] sm:$0x1]
  %v1480 = vlaneseq
  %v1481 = vshrl.u32 %v1480, 7
  %v1482 = vsub.s32 0, %v1481
  %v1483 = vrot.slane %v1478, %v1482
  %v1493 = vunpack.c.l.b16 %v1470
  %v1494 = vunpack.c.l.b16 %v1471
  %v1495 = vunpack.c.l.b16 %v1472
  %v1496 = vunpack.c.l.b16 %v1473
  %v1497 = vunpack.c.l.b16 %v1474
  %v1498 = vunpack.c.l.b16 %v1475
  %v1499 = vunpack.c.l.b16 %v1476
  %v1500 = vunpack.c.l.b16 %v1477
  %v1501 = vpack.c.b16 %v1494, %v1493
  %v1502 = vpack.c.b16 %v1496, %v1495
  %v1503 = vpack.c.b16 %v1498, %v1497
  %v1504 = vpack.c.b16 %v1500, %v1499
  %vm1509 = vcmask 523264
  %v1511 = vsel %vm1509, %v1469, 0
  %1513 = vmatprep.subr.bf16.mxu0 0
  %1514 = vmatpush1.bf16.msra.mxu0 %v1501
  %1515 = vmatprep.subr.bf16.mxu0 0
  %1516 = vmatpush1.bf16.msra.mxu0 %v1502
  %1517 = vmatprep.subr.bf16.mxu0 0
  %1518 = vmatpush1.bf16.msra.mxu0 %v1503
  %1519 = vmatprep.subr.bf16.mxu0 0
  %1520 = vmatpush1.bf16.msra.mxu0 %v1504
  %1521 = vmatprep.subr.bf16.mxu0 0
  %1522 = vmatpush1.bf16.msra.mxu0 0
  %1523 = vmatprep.subr.bf16.mxu0 0
  %1524 = vmatpush1.bf16.msra.mxu0 0
  %1525 = vmatprep.subr.bf16.mxu0 0
  %1526 = vmatpush1.bf16.msra.mxu0 0
  %1527 = vmatprep.subr.bf16.mxu0 0
  %1528 = vmatpush1.bf16.msra.mxu0 0
  %1529 = vmatprep.subr.bf16.mxu0 0
  %1530 = vmatpush1.bf16.msra.mxu0 0
  %1531 = vmatprep.subr.bf16.mxu0 0
  %1532 = vmatpush1.bf16.msra.mxu0 0
  %1533 = vmatprep.subr.bf16.mxu0 0
  %1534 = vmatpush1.bf16.msra.mxu0 0
  %1535 = vmatprep.subr.bf16.mxu0 0
  %1536 = vmatpush1.bf16.msra.mxu0 0
  %1537 = vmatprep.subr.bf16.mxu0 0
  %1538 = vmatpush1.bf16.msra.mxu0 0
  %1539 = vmatprep.subr.bf16.mxu0 0
  %1540 = vmatpush1.bf16.msra.mxu0 0
  %1541 = vmatprep.subr.bf16.mxu0 0
  %1542 = vmatpush1.bf16.msra.mxu0 0
  %1543 = vmatprep.subr.bf16.mxu0 0
  %1544 = vmatpush1.bf16.msra.mxu0 0
  %1545 = vmatprep.mubr.bf16.mxu0 0
  %1546 = vmatmul.mubr.bf16.gmra.mrb[0].mxu0 %v1511
  %v1547 = vpop.f32.mrb[0].mxu0
  %v1548 = vadd.f32 %v1483, %v1547
  %v1549 = vpop.f32.mrb[0].mxu0
  %v1550 = vpop.f32.mrb[0].mxu0
  %v1551 = vpop.f32.mrb[0].mxu0
  %1552 = vdwg.mxu0
  %v1553 = vadd.f32 %v1400, %v1548
  %v1554 = vld [vmem:[%s18] sm:$0x1]
  %v1555 = vld [vmem:[%s19] sm:$0x1]
  %v1556 = vsel %vm106, %v1553, 0.0
  %1557 = vadd.xlane.f32.xlu0 %v1556
  %v1558 = vpop.xlane.xlu0 %1557
  %v1559 = vmul.f32 %v1558, %v1376
  %v1560 = vsub.f32 %v1553, %v1559
  %v1561 = vmul.f32 %v1560, %v1560
  %v1562 = vsel %vm106, %v1561, 0.0
  %1563 = vadd.xlane.f32.xlu0 %v1562
  %v1564 = vpop.xlane.xlu0 %1563
  %v1565 = vmul.f32 %v1564, %v1376
  %v1566 = vadd.f32 %v1565, 1e-05
  %v1567 = vrsqrt.pop %v1566
  %v1568 = vmul.f32 %v1560, %v1567
  %v1570 = vlaneseq
  %v1571 = vshrl.u32 %v1570, 7
  %v1572 = vsub.s32 0, %v1571
  %v1573 = vrot.slane %v1554, %v1572
  %v1575 = vmul.f32 %v1568, %v1573
  %v1577 = vlaneseq
  %v1578 = vshrl.u32 %v1577, 7
  %v1579 = vsub.s32 0, %v1578
  %v1580 = vrot.slane %v1555, %v1579
  %v1582 = vadd.f32 %v1575, %v1580
  %1583 = vst.msk [vmem:[%s20] sm:$0xff] %vm106, %v1582
  // Predicated region
  $region82: #{hierarchical_encoder_forward.5} parent=0 // pred_check
    _
  $region83: #{hierarchical_encoder_forward.5} parent=0 // pred_check_branch
    %1585 = sbr.rel (0) target = $region85
  $region84: #{hierarchical_encoder_forward.5} parent=0 // pred_region
    _
  $region85: #{hierarchical_encoder_forward.5} parent=0 // pred_fallthru
    _
  // Predicated region
  $region86: #{hierarchical_encoder_forward.5} parent=0 // pred_check
    _
  $region87: #{hierarchical_encoder_forward.5} parent=0 // pred_check_branch
    %1587 = sbr.rel (0) target = $region89
  $region88: #{hierarchical_encoder_forward.5} parent=0 // pred_region
    _
  $region89: #{hierarchical_encoder_forward.5} parent=0 // pred_fallthru
    _

// kernel: hierarchical_encoder_forward.4
$region0: #{hierarchical_encoder_forward.4}
  #allocation0 [shape = 'u32[]', space=smem, size = 0x4, offset = 0x4, fixed_abs, tag = 'smem constant byte address 0x4 - core index']
  #allocation1 [shape = 'u32[144,128]{1,0:T(1,128)}', space=vmem, size = 0x12000, scoped, tag = 'internal scratch']
  %s0 = inlined_call_operand.vmem [shape: f32[64,32], index: 0, kind: input, shape index: {}]
  %s1 = inlined_call_operand.vmem [shape: f32[8,32], index: 1, kind: input, shape index: {}]
  %s2 = inlined_call_operand.vmem [shape: f32[8,32], index: 2, kind: input, shape index: {}]
  %s3 = inlined_call_operand.vmem [shape: bf16[32,32], index: 3, kind: input, shape index: {}]
  %s4 = inlined_call_operand.vmem [shape: bf16[2,32,32], index: 4, kind: input, shape index: {}]
  %s5 = inlined_call_operand.vmem [shape: f32[2,32], index: 5, kind: input, shape index: {}]
  %s6 = inlined_call_operand.vmem [shape: bf16[2,32,32], index: 6, kind: input, shape index: {}]
  %s7 = inlined_call_operand.vmem [shape: f32[2,32], index: 7, kind: input, shape index: {}]
  %s8 = inlined_call_operand.vmem [shape: bf16[2,32,32], index: 8, kind: input, shape index: {}]
  %s9 = inlined_call_operand.vmem [shape: f32[2,32], index: 9, kind: input, shape index: {}]
  %s10 = inlined_call_operand.vmem [shape: bf16[2,32,32], index: 10, kind: input, shape index: {}]
  %s11 = inlined_call_operand.vmem [shape: f32[2,32], index: 11, kind: input, shape index: {}]
  %s12 = inlined_call_operand.vmem [shape: bf16[2,32,64], index: 12, kind: input, shape index: {}]
  %s13 = inlined_call_operand.vmem [shape: f32[2,64], index: 13, kind: input, shape index: {}]
  %s14 = inlined_call_operand.vmem [shape: bf16[2,64,32], index: 14, kind: input, shape index: {}]
  %s15 = inlined_call_operand.vmem [shape: f32[2,32], index: 15, kind: input, shape index: {}]
  %s16 = inlined_call_operand.vmem [shape: f32[2,32], index: 16, kind: input, shape index: {}]
  %s17 = inlined_call_operand.vmem [shape: f32[2,32], index: 17, kind: input, shape index: {}]
  %s18 = inlined_call_operand.vmem [shape: f32[2,32], index: 18, kind: input, shape index: {}]
  %s19 = inlined_call_operand.vmem [shape: f32[2,32], index: 19, kind: input, shape index: {}]
  %s20 = inlined_call_operand.vmem [shape: f32[64,32], index: 20, kind: output, shape index: {}]
  %s21 = sld [smem:[#allocation0]]
  $region113: #{hierarchical_encoder_forward.4} parent=0
    _
  %s23 = ssub.s32 1, %s21
  %s24 = scalar_select 0, %s23, %s21
  loop: start=0, step=1, limit=4
  $region2: #{hierarchical_encoder_forward.4} parent=0 // loop_pre_header
    _
  $region3: #{hierarchical_encoder_forward.4} parent=0 // loop_header
    %s26 = sphi 0, %s30
    %p27 = scmp.ge.s32.totalorder %s26, 4
    %s36 = sphi 0, %s38
    %s39 = sphi 0, %s36
    %s40 = sphi 0, %s39
    %s56 = sphi 0, %s40
    %s60 = sphi 0, %s60
    %s62 = sphi 0, %s60
    %s63 = sphi 0, %s62
    %s77 = sphi 0, %s63
    %s81 = sphi 0, %s81
    %s83 = sphi 0, %s81
    %s84 = sphi 0, %s83
    %s98 = sphi 0, %s84
    %s102 = sphi 0, %s102
    %s104 = sphi 0, %s102
    %s105 = sphi 0, %s104
    %s119 = sphi 0, %s105
    %s123 = sphi 0, %s123
    %s125 = sphi 0, %s123
    %s126 = sphi 0, %s125
    %s140 = sphi 0, %s126
    %s144 = sphi 0, %s144
    %s146 = sphi 0, %s144
    %s147 = sphi 0, %s146
    %s161 = sphi 0, %s147
    %s165 = sphi 0, %s165
    %s167 = sphi 0, %s165
    %s168 = sphi 0, %s167
    %s182 = sphi 0, %s168
    %s186 = sphi 0, %s186
    %s188 = sphi 0, %s186
    %s189 = sphi 0, %s188
    %s203 = sphi 0, %s189
    %s207 = sphi 0, %s207
    %s209 = sphi 0, %s207
    %s210 = sphi 0, %s209
    %s224 = sphi 0, %s210
    %s228 = sphi 0, %s228
    %s230 = sphi 0, %s228
    %s231 = sphi 0, %s230
    %s245 = sphi 0, %s231
    %s249 = sphi 0, %s249
    %s251 = sphi 0, %s249
    %s252 = sphi 0, %s251
    %s266 = sphi 0, %s252
    %s270 = sphi 0, %s270
    %s272 = sphi 0, %s270
    %s273 = sphi 0, %s272
    %s287 = sphi 0, %s273
    %s291 = sphi 0, %s291
    %s293 = sphi 0, %s291
    %s294 = sphi 0, %s293
    %s308 = sphi 0, %s294
    %s312 = sphi 0, %s312
    %s314 = sphi 0, %s312
    %s315 = sphi 0, %s314
    %s329 = sphi 0, %s315
    %s333 = sphi 0, %s333
    %s335 = sphi 0, %s333
    %s336 = sphi 0, %s335
    %s350 = sphi 0, %s336
    %s354 = sphi 0, %s354
    %s356 = sphi 0, %s354
    %s357 = sphi 0, %s356
    %s371 = sphi 0, %s357
    %s375 = sphi 0, %s375
    %s377 = sphi 0, %s375
    %s378 = sphi 0, %s377
    %s392 = sphi 0, %s378
    %s396 = sphi 0, %s396
    %s398 = sphi 0, %s396
    %s399 = sphi 0, %s398
    %s413 = sphi 0, %s399
    %s417 = sphi 0, %s417
    %s419 = sphi 0, %s417
    %s420 = sphi 0, %s419
    %s434 = sphi 0, %s420
    %s438 = sphi 0, %s438
    %s440 = sphi 0, %s438
    %s441 = sphi 0, %s440
    %s455 = sphi 0, %s441
    %s461 = sphi 0, %s463
    %s464 = sphi 0, %s461
    %s465 = sphi 0, %s464
    %s481 = sphi 0, %s465
  $region4: #{hierarchical_encoder_forward.4} parent=0 // loop_header_branch
    %29 = sbr.rel (%p27) target = $region8
  $region5: #{hierarchical_encoder_forward.4} parent=0 // loop_body
    %s31 = ssub.s32 %s26, 1
    %s32 = ssub.s32 %s26, 2
    %s33 = sadd.s32 %s26, 1
    %s34 = ssub.s32 %s26, %s33
    %p35 = scmp.eq.s32.totalorder %s34, 0
    %s37 = sadd.s32 %s36, 1
    %s38 = scalar_select %p35, %s36, %s37
    %p41 = pneg %p35
    %p42 = scmp.eq.s32.totalorder %s26, 1
    %p43 = por %p41, %p42
    %p44 = scmp.ne.s32.totalorder %s36, %s39
    %p45 = scmp.eq.s32.totalorder %s26, 0
    %p46 = por %p44, %p45
    %p47 = scmp.ne.s32.totalorder %s36, %s39
    %p48 = scmp.eq.s32.totalorder %s31, 1
    %p49 = por %p47, %p48
    %p50 = scmp.ne.s32.totalorder %s39, %s40
    %p51 = scmp.eq.s32.totalorder %s31, 0
    %p52 = por %p50, %p51
    %p53 = scmp.ne.s32.totalorder %s39, %s40
    %p54 = scmp.eq.s32.totalorder %s32, 1
    %p55 = por %p53, %p54
    %p57 = scmp.ne.s32.totalorder %s40, %s56
    %p58 = scmp.eq.s32.totalorder %s32, 0
    %p59 = por %p57, %p58
    %s61 = sadd.s32 %s60, 1
    %p64 = scmp.eq.s32.totalorder %s26, 1
    %p65 = scmp.ne.s32.totalorder %s60, %s62
    %p66 = scmp.eq.s32.totalorder %s26, 0
    %p67 = por %p65, %p66
    %p68 = scmp.ne.s32.totalorder %s60, %s62
    %p69 = scmp.eq.s32.totalorder %s31, 1
    %p70 = por %p68, %p69
    %p71 = scmp.ne.s32.totalorder %s62, %s63
    %p72 = scmp.eq.s32.totalorder %s31, 0
    %p73 = por %p71, %p72
    %p74 = scmp.ne.s32.totalorder %s62, %s63
    %p75 = scmp.eq.s32.totalorder %s32, 1
    %p76 = por %p74, %p75
    %p78 = scmp.ne.s32.totalorder %s63, %s77
    %p79 = scmp.eq.s32.totalorder %s32, 0
    %p80 = por %p78, %p79
    %s82 = sadd.s32 %s81, 1
    %p85 = scmp.eq.s32.totalorder %s26, 1
    %p86 = scmp.ne.s32.totalorder %s81, %s83
    %p87 = scmp.eq.s32.totalorder %s26, 0
    %p88 = por %p86, %p87
    %p89 = scmp.ne.s32.totalorder %s81, %s83
    %p90 = scmp.eq.s32.totalorder %s31, 1
    %p91 = por %p89, %p90
    %p92 = scmp.ne.s32.totalorder %s83, %s84
    %p93 = scmp.eq.s32.totalorder %s31, 0
    %p94 = por %p92, %p93
    %p95 = scmp.ne.s32.totalorder %s83, %s84
    %p96 = scmp.eq.s32.totalorder %s32, 1
    %p97 = por %p95, %p96
    %p99 = scmp.ne.s32.totalorder %s84, %s98
    %p100 = scmp.eq.s32.totalorder %s32, 0
    %p101 = por %p99, %p100
    %s103 = sadd.s32 %s102, 1
    %p106 = scmp.eq.s32.totalorder %s26, 1
    %p107 = scmp.ne.s32.totalorder %s102, %s104
    %p108 = scmp.eq.s32.totalorder %s26, 0
    %p109 = por %p107, %p108
    %p110 = scmp.ne.s32.totalorder %s102, %s104
    %p111 = scmp.eq.s32.totalorder %s31, 1
    %p112 = por %p110, %p111
    %p113 = scmp.ne.s32.totalorder %s104, %s105
    %p114 = scmp.eq.s32.totalorder %s31, 0
    %p115 = por %p113, %p114
    %p116 = scmp.ne.s32.totalorder %s104, %s105
    %p117 = scmp.eq.s32.totalorder %s32, 1
    %p118 = por %p116, %p117
    %p120 = scmp.ne.s32.totalorder %s105, %s119
    %p121 = scmp.eq.s32.totalorder %s32, 0
    %p122 = por %p120, %p121
    %s124 = sadd.s32 %s123, 1
    %p127 = scmp.eq.s32.totalorder %s26, 1
    %p128 = scmp.ne.s32.totalorder %s123, %s125
    %p129 = scmp.eq.s32.totalorder %s26, 0
    %p130 = por %p128, %p129
    %p131 = scmp.ne.s32.totalorder %s123, %s125
    %p132 = scmp.eq.s32.totalorder %s31, 1
    %p133 = por %p131, %p132
    %p134 = scmp.ne.s32.totalorder %s125, %s126
    %p135 = scmp.eq.s32.totalorder %s31, 0
    %p136 = por %p134, %p135
    %p137 = scmp.ne.s32.totalorder %s125, %s126
    %p138 = scmp.eq.s32.totalorder %s32, 1
    %p139 = por %p137, %p138
    %p141 = scmp.ne.s32.totalorder %s126, %s140
    %p142 = scmp.eq.s32.totalorder %s32, 0
    %p143 = por %p141, %p142
    %s145 = sadd.s32 %s144, 1
    %p148 = scmp.eq.s32.totalorder %s26, 1
    %p149 = scmp.ne.s32.totalorder %s144, %s146
    %p150 = scmp.eq.s32.totalorder %s26, 0
    %p151 = por %p149, %p150
    %p152 = scmp.ne.s32.totalorder %s144, %s146
    %p153 = scmp.eq.s32.totalorder %s31, 1
    %p154 = por %p152, %p153
    %p155 = scmp.ne.s32.totalorder %s146, %s147
    %p156 = scmp.eq.s32.totalorder %s31, 0
    %p157 = por %p155, %p156
    %p158 = scmp.ne.s32.totalorder %s146, %s147
    %p159 = scmp.eq.s32.totalorder %s32, 1
    %p160 = por %p158, %p159
    %p162 = scmp.ne.s32.totalorder %s147, %s161
    %p163 = scmp.eq.s32.totalorder %s32, 0
    %p164 = por %p162, %p163
    %s166 = sadd.s32 %s165, 1
    %p169 = scmp.eq.s32.totalorder %s26, 1
    %p170 = scmp.ne.s32.totalorder %s165, %s167
    %p171 = scmp.eq.s32.totalorder %s26, 0
    %p172 = por %p170, %p171
    %p173 = scmp.ne.s32.totalorder %s165, %s167
    %p174 = scmp.eq.s32.totalorder %s31, 1
    %p175 = por %p173, %p174
    %p176 = scmp.ne.s32.totalorder %s167, %s168
    %p177 = scmp.eq.s32.totalorder %s31, 0
    %p178 = por %p176, %p177
    %p179 = scmp.ne.s32.totalorder %s167, %s168
    %p180 = scmp.eq.s32.totalorder %s32, 1
    %p181 = por %p179, %p180
    %p183 = scmp.ne.s32.totalorder %s168, %s182
    %p184 = scmp.eq.s32.totalorder %s32, 0
    %p185 = por %p183, %p184
    %s187 = sadd.s32 %s186, 1
    %p190 = scmp.eq.s32.totalorder %s26, 1
    %p191 = scmp.ne.s32.totalorder %s186, %s188
    %p192 = scmp.eq.s32.totalorder %s26, 0
    %p193 = por %p191, %p192
    %p194 = scmp.ne.s32.totalorder %s186, %s188
    %p195 = scmp.eq.s32.totalorder %s31, 1
    %p196 = por %p194, %p195
    %p197 = scmp.ne.s32.totalorder %s188, %s189
    %p198 = scmp.eq.s32.totalorder %s31, 0
    %p199 = por %p197, %p198
    %p200 = scmp.ne.s32.totalorder %s188, %s189
    %p201 = scmp.eq.s32.totalorder %s32, 1
    %p202 = por %p200, %p201
    %p204 = scmp.ne.s32.totalorder %s189, %s203
    %p205 = scmp.eq.s32.totalorder %s32, 0
    %p206 = por %p204, %p205
    %s208 = sadd.s32 %s207, 1
    %p211 = scmp.eq.s32.totalorder %s26, 1
    %p212 = scmp.ne.s32.totalorder %s207, %s209
    %p213 = scmp.eq.s32.totalorder %s26, 0
    %p214 = por %p212, %p213
    %p215 = scmp.ne.s32.totalorder %s207, %s209
    %p216 = scmp.eq.s32.totalorder %s31, 1
    %p217 = por %p215, %p216
    %p218 = scmp.ne.s32.totalorder %s209, %s210
    %p219 = scmp.eq.s32.totalorder %s31, 0
    %p220 = por %p218, %p219
    %p221 = scmp.ne.s32.totalorder %s209, %s210
    %p222 = scmp.eq.s32.totalorder %s32, 1
    %p223 = por %p221, %p222
    %p225 = scmp.ne.s32.totalorder %s210, %s224
    %p226 = scmp.eq.s32.totalorder %s32, 0
    %p227 = por %p225, %p226
    %s229 = sadd.s32 %s228, 1
    %p232 = scmp.eq.s32.totalorder %s26, 1
    %p233 = scmp.ne.s32.totalorder %s228, %s230
    %p234 = scmp.eq.s32.totalorder %s26, 0
    %p235 = por %p233, %p234
    %p236 = scmp.ne.s32.totalorder %s228, %s230
    %p237 = scmp.eq.s32.totalorder %s31, 1
    %p238 = por %p236, %p237
    %p239 = scmp.ne.s32.totalorder %s230, %s231
    %p240 = scmp.eq.s32.totalorder %s31, 0
    %p241 = por %p239, %p240
    %p242 = scmp.ne.s32.totalorder %s230, %s231
    %p243 = scmp.eq.s32.totalorder %s32, 1
    %p244 = por %p242, %p243
    %p246 = scmp.ne.s32.totalorder %s231, %s245
    %p247 = scmp.eq.s32.totalorder %s32, 0
    %p248 = por %p246, %p247
    %s250 = sadd.s32 %s249, 1
    %p253 = scmp.eq.s32.totalorder %s26, 1
    %p254 = scmp.ne.s32.totalorder %s249, %s251
    %p255 = scmp.eq.s32.totalorder %s26, 0
    %p256 = por %p254, %p255
    %p257 = scmp.ne.s32.totalorder %s249, %s251
    %p258 = scmp.eq.s32.totalorder %s31, 1
    %p259 = por %p257, %p258
    %p260 = scmp.ne.s32.totalorder %s251, %s252
    %p261 = scmp.eq.s32.totalorder %s31, 0
    %p262 = por %p260, %p261
    %p263 = scmp.ne.s32.totalorder %s251, %s252
    %p264 = scmp.eq.s32.totalorder %s32, 1
    %p265 = por %p263, %p264
    %p267 = scmp.ne.s32.totalorder %s252, %s266
    %p268 = scmp.eq.s32.totalorder %s32, 0
    %p269 = por %p267, %p268
    %s271 = sadd.s32 %s270, 1
    %p274 = scmp.eq.s32.totalorder %s26, 1
    %p275 = scmp.ne.s32.totalorder %s270, %s272
    %p276 = scmp.eq.s32.totalorder %s26, 0
    %p277 = por %p275, %p276
    %p278 = scmp.ne.s32.totalorder %s270, %s272
    %p279 = scmp.eq.s32.totalorder %s31, 1
    %p280 = por %p278, %p279
    %p281 = scmp.ne.s32.totalorder %s272, %s273
    %p282 = scmp.eq.s32.totalorder %s31, 0
    %p283 = por %p281, %p282
    %p284 = scmp.ne.s32.totalorder %s272, %s273
    %p285 = scmp.eq.s32.totalorder %s32, 1
    %p286 = por %p284, %p285
    %p288 = scmp.ne.s32.totalorder %s273, %s287
    %p289 = scmp.eq.s32.totalorder %s32, 0
    %p290 = por %p288, %p289
    %s292 = sadd.s32 %s291, 1
    %p295 = scmp.eq.s32.totalorder %s26, 1
    %p296 = scmp.ne.s32.totalorder %s291, %s293
    %p297 = scmp.eq.s32.totalorder %s26, 0
    %p298 = por %p296, %p297
    %p299 = scmp.ne.s32.totalorder %s291, %s293
    %p300 = scmp.eq.s32.totalorder %s31, 1
    %p301 = por %p299, %p300
    %p302 = scmp.ne.s32.totalorder %s293, %s294
    %p303 = scmp.eq.s32.totalorder %s31, 0
    %p304 = por %p302, %p303
    %p305 = scmp.ne.s32.totalorder %s293, %s294
    %p306 = scmp.eq.s32.totalorder %s32, 1
    %p307 = por %p305, %p306
    %p309 = scmp.ne.s32.totalorder %s294, %s308
    %p310 = scmp.eq.s32.totalorder %s32, 0
    %p311 = por %p309, %p310
    %s313 = sadd.s32 %s312, 1
    %p316 = scmp.eq.s32.totalorder %s26, 1
    %p317 = scmp.ne.s32.totalorder %s312, %s314
    %p318 = scmp.eq.s32.totalorder %s26, 0
    %p319 = por %p317, %p318
    %p320 = scmp.ne.s32.totalorder %s312, %s314
    %p321 = scmp.eq.s32.totalorder %s31, 1
    %p322 = por %p320, %p321
    %p323 = scmp.ne.s32.totalorder %s314, %s315
    %p324 = scmp.eq.s32.totalorder %s31, 0
    %p325 = por %p323, %p324
    %p326 = scmp.ne.s32.totalorder %s314, %s315
    %p327 = scmp.eq.s32.totalorder %s32, 1
    %p328 = por %p326, %p327
    %p330 = scmp.ne.s32.totalorder %s315, %s329
    %p331 = scmp.eq.s32.totalorder %s32, 0
    %p332 = por %p330, %p331
    %s334 = sadd.s32 %s333, 1
    %p337 = scmp.eq.s32.totalorder %s26, 1
    %p338 = scmp.ne.s32.totalorder %s333, %s335
    %p339 = scmp.eq.s32.totalorder %s26, 0
    %p340 = por %p338, %p339
    %p341 = scmp.ne.s32.totalorder %s333, %s335
    %p342 = scmp.eq.s32.totalorder %s31, 1
    %p343 = por %p341, %p342
    %p344 = scmp.ne.s32.totalorder %s335, %s336
    %p345 = scmp.eq.s32.totalorder %s31, 0
    %p346 = por %p344, %p345
    %p347 = scmp.ne.s32.totalorder %s335, %s336
    %p348 = scmp.eq.s32.totalorder %s32, 1
    %p349 = por %p347, %p348
    %p351 = scmp.ne.s32.totalorder %s336, %s350
    %p352 = scmp.eq.s32.totalorder %s32, 0
    %p353 = por %p351, %p352
    %s355 = sadd.s32 %s354, 1
    %p358 = scmp.eq.s32.totalorder %s26, 1
    %p359 = scmp.ne.s32.totalorder %s354, %s356
    %p360 = scmp.eq.s32.totalorder %s26, 0
    %p361 = por %p359, %p360
    %p362 = scmp.ne.s32.totalorder %s354, %s356
    %p363 = scmp.eq.s32.totalorder %s31, 1
    %p364 = por %p362, %p363
    %p365 = scmp.ne.s32.totalorder %s356, %s357
    %p366 = scmp.eq.s32.totalorder %s31, 0
    %p367 = por %p365, %p366
    %p368 = scmp.ne.s32.totalorder %s356, %s357
    %p369 = scmp.eq.s32.totalorder %s32, 1
    %p370 = por %p368, %p369
    %p372 = scmp.ne.s32.totalorder %s357, %s371
    %p373 = scmp.eq.s32.totalorder %s32, 0
    %p374 = por %p372, %p373
    %s376 = sadd.s32 %s375, 1
    %p379 = scmp.eq.s32.totalorder %s26, 1
    %p380 = scmp.ne.s32.totalorder %s375, %s377
    %p381 = scmp.eq.s32.totalorder %s26, 0
    %p382 = por %p380, %p381
    %p383 = scmp.ne.s32.totalorder %s375, %s377
    %p384 = scmp.eq.s32.totalorder %s31, 1
    %p385 = por %p383, %p384
    %p386 = scmp.ne.s32.totalorder %s377, %s378
    %p387 = scmp.eq.s32.totalorder %s31, 0
    %p388 = por %p386, %p387
    %p389 = scmp.ne.s32.totalorder %s377, %s378
    %p390 = scmp.eq.s32.totalorder %s32, 1
    %p391 = por %p389, %p390
    %p393 = scmp.ne.s32.totalorder %s378, %s392
    %p394 = scmp.eq.s32.totalorder %s32, 0
    %p395 = por %p393, %p394
    %s397 = sadd.s32 %s396, 1
    %p400 = scmp.eq.s32.totalorder %s26, 1
    %p401 = scmp.ne.s32.totalorder %s396, %s398
    %p402 = scmp.eq.s32.totalorder %s26, 0
    %p403 = por %p401, %p402
    %p404 = scmp.ne.s32.totalorder %s396, %s398
    %p405 = scmp.eq.s32.totalorder %s31, 1
    %p406 = por %p404, %p405
    %p407 = scmp.ne.s32.totalorder %s398, %s399
    %p408 = scmp.eq.s32.totalorder %s31, 0
    %p409 = por %p407, %p408
    %p410 = scmp.ne.s32.totalorder %s398, %s399
    %p411 = scmp.eq.s32.totalorder %s32, 1
    %p412 = por %p410, %p411
    %p414 = scmp.ne.s32.totalorder %s399, %s413
    %p415 = scmp.eq.s32.totalorder %s32, 0
    %p416 = por %p414, %p415
    %s418 = sadd.s32 %s417, 1
    %p421 = scmp.eq.s32.totalorder %s26, 1
    %p422 = scmp.ne.s32.totalorder %s417, %s419
    %p423 = scmp.eq.s32.totalorder %s26, 0
    %p424 = por %p422, %p423
    %p425 = scmp.ne.s32.totalorder %s417, %s419
    %p426 = scmp.eq.s32.totalorder %s31, 1
    %p427 = por %p425, %p426
    %p428 = scmp.ne.s32.totalorder %s419, %s420
    %p429 = scmp.eq.s32.totalorder %s31, 0
    %p430 = por %p428, %p429
    %p431 = scmp.ne.s32.totalorder %s419, %s420
    %p432 = scmp.eq.s32.totalorder %s32, 1
    %p433 = por %p431, %p432
    %p435 = scmp.ne.s32.totalorder %s420, %s434
    %p436 = scmp.eq.s32.totalorder %s32, 0
    %p437 = por %p435, %p436
    %s439 = sadd.s32 %s438, 1
    %p442 = scmp.eq.s32.totalorder %s26, 1
    %p443 = scmp.ne.s32.totalorder %s438, %s440
    %p444 = scmp.eq.s32.totalorder %s26, 0
    %p445 = por %p443, %p444
    %p446 = scmp.ne.s32.totalorder %s438, %s440
    %p447 = scmp.eq.s32.totalorder %s31, 1
    %p448 = por %p446, %p447
    %p449 = scmp.ne.s32.totalorder %s440, %s441
    %p450 = scmp.eq.s32.totalorder %s31, 0
    %p451 = por %p449, %p450
    %p452 = scmp.ne.s32.totalorder %s440, %s441
    %p453 = scmp.eq.s32.totalorder %s32, 1
    %p454 = por %p452, %p453
    %p456 = scmp.ne.s32.totalorder %s441, %s455
    %p457 = scmp.eq.s32.totalorder %s32, 0
    %p458 = por %p456, %p457
    %s459 = ssub.s32 %s26, %s33
    %p460 = scmp.eq.s32.totalorder %s459, 0
    %s462 = sadd.s32 %s461, 1
    %s463 = scalar_select %p460, %s461, %s462
    %p466 = pneg %p460
    %p467 = scmp.eq.s32.totalorder %s26, 1
    %p468 = por %p466, %p467
    %p469 = scmp.ne.s32.totalorder %s461, %s464
    %p470 = scmp.eq.s32.totalorder %s26, 0
    %p471 = por %p469, %p470
    %p472 = scmp.ne.s32.totalorder %s461, %s464
    %p473 = scmp.eq.s32.totalorder %s31, 1
    %p474 = por %p472, %p473
    %p475 = scmp.ne.s32.totalorder %s464, %s465
    %p476 = scmp.eq.s32.totalorder %s31, 0
    %p477 = por %p475, %p476
    %p478 = scmp.ne.s32.totalorder %s464, %s465
    %p479 = scmp.eq.s32.totalorder %s32, 1
    %p480 = por %p478, %p479
    %p482 = scmp.ne.s32.totalorder %s465, %s481
    %p483 = scmp.eq.s32.totalorder %s32, 0
    %p484 = por %p482, %p483
    %p485 = scmp.le.s32.totalorder 1, %s26
    %p486 = scmp.lt.s32.totalorder %s26, 3
    %p487 = pnand %p485, %p486
    %p488 = pneg %p487
    // Predicated region
    $region9: #{hierarchical_encoder_forward.4} parent=5 // pred_check
      _
    $region10: #{hierarchical_encoder_forward.4} parent=5 // pred_check_branch
      %490 = sbr.rel (%p487) target = $region12
    $region11: #{hierarchical_encoder_forward.4} parent=5 // pred_region
      %s491 = ssub.s32 %s26, 1
      // Predicated region
      $region13: #{hierarchical_encoder_forward.4} parent=11 // pred_check
        %p492 = pneg %p73
      $region14: #{hierarchical_encoder_forward.4} parent=11 // pred_check_branch
        %494 = sbr.rel (%p492) target = $region16
      $region15: #{hierarchical_encoder_forward.4} parent=11 // pred_region
        _
      $region16: #{hierarchical_encoder_forward.4} parent=11 // pred_fallthru
        _
      // Predicated region
      $region17: #{hierarchical_encoder_forward.4} parent=11 // pred_check
        %p495 = pneg %p94
      $region18: #{hierarchical_encoder_forward.4} parent=11 // pred_check_branch
        %497 = sbr.rel (%p495) target = $region20
      $region19: #{hierarchical_encoder_forward.4} parent=11 // pred_region
        _
      $region20: #{hierarchical_encoder_forward.4} parent=11 // pred_fallthru
        _
      // Predicated region
      $region21: #{hierarchical_encoder_forward.4} parent=11 // pred_check
        %p498 = pneg %p115
      $region22: #{hierarchical_encoder_forward.4} parent=11 // pred_check_branch
        %500 = sbr.rel (%p498) target = $region24
      $region23: #{hierarchical_encoder_forward.4} parent=11 // pred_region
        _
      $region24: #{hierarchical_encoder_forward.4} parent=11 // pred_fallthru
        _
      // Predicated region
      $region25: #{hierarchical_encoder_forward.4} parent=11 // pred_check
        %p501 = pneg %p136
      $region26: #{hierarchical_encoder_forward.4} parent=11 // pred_check_branch
        %503 = sbr.rel (%p501) target = $region28
      $region27: #{hierarchical_encoder_forward.4} parent=11 // pred_region
        _
      $region28: #{hierarchical_encoder_forward.4} parent=11 // pred_fallthru
        _
      // Predicated region
      $region29: #{hierarchical_encoder_forward.4} parent=11 // pred_check
        %p504 = pneg %p157
      $region30: #{hierarchical_encoder_forward.4} parent=11 // pred_check_branch
        %506 = sbr.rel (%p504) target = $region32
      $region31: #{hierarchical_encoder_forward.4} parent=11 // pred_region
        _
      $region32: #{hierarchical_encoder_forward.4} parent=11 // pred_fallthru
        _
      // Predicated region
      $region33: #{hierarchical_encoder_forward.4} parent=11 // pred_check
        %p507 = pneg %p178
      $region34: #{hierarchical_encoder_forward.4} parent=11 // pred_check_branch
        %509 = sbr.rel (%p507) target = $region36
      $region35: #{hierarchical_encoder_forward.4} parent=11 // pred_region
        _
      $region36: #{hierarchical_encoder_forward.4} parent=11 // pred_fallthru
        _
      // Predicated region
      $region37: #{hierarchical_encoder_forward.4} parent=11 // pred_check
        %p510 = pneg %p199
      $region38: #{hierarchical_encoder_forward.4} parent=11 // pred_check_branch
        %512 = sbr.rel (%p510) target = $region40
      $region39: #{hierarchical_encoder_forward.4} parent=11 // pred_region
        _
      $region40: #{hierarchical_encoder_forward.4} parent=11 // pred_fallthru
        _
      // Predicated region
      $region41: #{hierarchical_encoder_forward.4} parent=11 // pred_check
        %p513 = pneg %p220
      $region42: #{hierarchical_encoder_forward.4} parent=11 // pred_check_branch
        %515 = sbr.rel (%p513) target = $region44
      $region43: #{hierarchical_encoder_forward.4} parent=11 // pred_region
        _
      $region44: #{hierarchical_encoder_forward.4} parent=11 // pred_fallthru
        _
      // Predicated region
      $region45: #{hierarchical_encoder_forward.4} parent=11 // pred_check
        %p516 = pneg %p241
      $region46: #{hierarchical_encoder_forward.4} parent=11 // pred_check_branch
        %518 = sbr.rel (%p516) target = $region48
      $region47: #{hierarchical_encoder_forward.4} parent=11 // pred_region
        _
      $region48: #{hierarchical_encoder_forward.4} parent=11 // pred_fallthru
        _
      // Predicated region
      $region49: #{hierarchical_encoder_forward.4} parent=11 // pred_check
        %p519 = pneg %p262
      $region50: #{hierarchical_encoder_forward.4} parent=11 // pred_check_branch
        %521 = sbr.rel (%p519) target = $region52
      $region51: #{hierarchical_encoder_forward.4} parent=11 // pred_region
        _
      $region52: #{hierarchical_encoder_forward.4} parent=11 // pred_fallthru
        _
      // Predicated region
      $region53: #{hierarchical_encoder_forward.4} parent=11 // pred_check
        %p522 = pneg %p283
      $region54: #{hierarchical_encoder_forward.4} parent=11 // pred_check_branch
        %524 = sbr.rel (%p522) target = $region56
      $region55: #{hierarchical_encoder_forward.4} parent=11 // pred_region
        _
      $region56: #{hierarchical_encoder_forward.4} parent=11 // pred_fallthru
        _
      // Predicated region
      $region57: #{hierarchical_encoder_forward.4} parent=11 // pred_check
        %p525 = pneg %p304
      $region58: #{hierarchical_encoder_forward.4} parent=11 // pred_check_branch
        %527 = sbr.rel (%p525) target = $region60
      $region59: #{hierarchical_encoder_forward.4} parent=11 // pred_region
        _
      $region60: #{hierarchical_encoder_forward.4} parent=11 // pred_fallthru
        _
      // Predicated region
      $region61: #{hierarchical_encoder_forward.4} parent=11 // pred_check
        %p528 = pneg %p325
      $region62: #{hierarchical_encoder_forward.4} parent=11 // pred_check_branch
        %530 = sbr.rel (%p528) target = $region64
      $region63: #{hierarchical_encoder_forward.4} parent=11 // pred_region
        _
      $region64: #{hierarchical_encoder_forward.4} parent=11 // pred_fallthru
        _
      // Predicated region
      $region65: #{hierarchical_encoder_forward.4} parent=11 // pred_check
        %p531 = pneg %p346
      $region66: #{hierarchical_encoder_forward.4} parent=11 // pred_check_branch
        %533 = sbr.rel (%p531) target = $region68
      $region67: #{hierarchical_encoder_forward.4} parent=11 // pred_region
        _
      $region68: #{hierarchical_encoder_forward.4} parent=11 // pred_fallthru
        _
      // Predicated region
      $region69: #{hierarchical_encoder_forward.4} parent=11 // pred_check
        %p534 = pneg %p367
      $region70: #{hierarchical_encoder_forward.4} parent=11 // pred_check_branch
        %536 = sbr.rel (%p534) target = $region72
      $region71: #{hierarchical_encoder_forward.4} parent=11 // pred_region
        _
      $region72: #{hierarchical_encoder_forward.4} parent=11 // pred_fallthru
        _
      // Predicated region
      $region73: #{hierarchical_encoder_forward.4} parent=11 // pred_check
        %p537 = pneg %p388
      $region74: #{hierarchical_encoder_forward.4} parent=11 // pred_check_branch
        %539 = sbr.rel (%p537) target = $region76
      $region75: #{hierarchical_encoder_forward.4} parent=11 // pred_region
        _
      $region76: #{hierarchical_encoder_forward.4} parent=11 // pred_fallthru
        _
      // Predicated region
      $region77: #{hierarchical_encoder_forward.4} parent=11 // pred_check
        %p540 = pneg %p409
      $region78: #{hierarchical_encoder_forward.4} parent=11 // pred_check_branch
        %542 = sbr.rel (%p540) target = $region80
      $region79: #{hierarchical_encoder_forward.4} parent=11 // pred_region
        _
      $region80: #{hierarchical_encoder_forward.4} parent=11 // pred_fallthru
        _
      // Predicated region
      $region81: #{hierarchical_encoder_forward.4} parent=11 // pred_check
        %p543 = pneg %p430
      $region82: #{hierarchical_encoder_forward.4} parent=11 // pred_check_branch
        %545 = sbr.rel (%p543) target = $region84
      $region83: #{hierarchical_encoder_forward.4} parent=11 // pred_region
        _
      $region84: #{hierarchical_encoder_forward.4} parent=11 // pred_fallthru
        _
      // Predicated region
      $region85: #{hierarchical_encoder_forward.4} parent=11 // pred_check
        %p546 = pneg %p451
      $region86: #{hierarchical_encoder_forward.4} parent=11 // pred_check_branch
        %548 = sbr.rel (%p546) target = $region88
      $region87: #{hierarchical_encoder_forward.4} parent=11 // pred_region
        _
      $region88: #{hierarchical_encoder_forward.4} parent=11 // pred_fallthru
        _
    $region12: #{hierarchical_encoder_forward.4} parent=5 // pred_fallthru
      _
    %p549 = scmp.lt.s32.totalorder %s26, 2
    // Predicated region
    $region89: #{hierarchical_encoder_forward.4} parent=5 // pred_check
      %p550 = pneg %p549
    $region90: #{hierarchical_encoder_forward.4} parent=5 // pred_check_branch
      %552 = sbr.rel (%p550) target = $region92
    $region91: #{hierarchical_encoder_forward.4} parent=5 // pred_region
      // Predicated region
      $region93: #{hierarchical_encoder_forward.4} parent=91 // pred_check
        %p553 = pneg %p46
      $region94: #{hierarchical_encoder_forward.4} parent=91 // pred_check_branch
        %555 = sbr.rel (%p553) target = $region96
      $region95: #{hierarchical_encoder_forward.4} parent=91 // pred_region
        %s556 = smul.u32 4, %s26
        %p557 = scmp.lt.s32.totalorder %s556, 7
        %s558 = scalar_select %p557, %s556, 7
        %s559 = smul.addr %s558, 8
        %s560 = scalar_lea.vmem %s0, %s559
        %s561 = smul.u32 4, %s26
      $region96: #{hierarchical_encoder_forward.4} parent=91 // pred_fallthru
        _
    $region92: #{hierarchical_encoder_forward.4} parent=5 // pred_fallthru
      _
    %p562 = scmp.le.s32.totalorder 1, %s26
    %p563 = scmp.lt.s32.totalorder %s26, 3
    %p564 = pnand %p562, %p563
    %p565 = pneg %p564
    // Predicated region
    $region97: #{hierarchical_encoder_forward.4} parent=5 // pred_check
      _
    $region98: #{hierarchical_encoder_forward.4} parent=5 // pred_check_branch
      %567 = sbr.rel (%p564) target = $region100
    $region99: #{hierarchical_encoder_forward.4} parent=5 // pred_region
      %s568 = ssub.s32 %s26, 1
      %s569 = smul.u32 4, %s31
      %p570 = scmp.lt.s32.totalorder %s569, 7
      %s571 = scalar_select %p570, %s569, 7
      %s572 = smul.addr %s571, 8
      %s573 = scalar_lea.vmem %s0, %s572
      %p574 = pneg %p52
      %p575 = pneg %p49
      %p576 = pneg %p73
      %p577 = pneg %p70
      %p578 = pneg %p94
      %p579 = pneg %p91
      %p580 = pneg %p115
      %p581 = pneg %p112
      %p582 = pneg %p136
      %p583 = pneg %p133
      %p584 = pneg %p157
      %p585 = pneg %p154
      %p586 = pneg %p178
      %p587 = pneg %p175
      %p588 = pneg %p199
      %p589 = pneg %p196
      %p590 = pneg %p220
      %p591 = pneg %p217
      %p592 = pneg %p241
      %p593 = pneg %p238
      %p594 = pneg %p262
      %p595 = pneg %p259
      %p596 = pneg %p283
      %p597 = pneg %p280
      %p598 = pneg %p304
      %p599 = pneg %p301
      %p600 = pneg %p325
      %p601 = pneg %p322
      %p602 = pneg %p346
      %p603 = pneg %p343
      %p604 = pneg %p367
      %p605 = pneg %p364
      %p606 = pneg %p388
      %p607 = pneg %p385
      %p608 = pneg %p409
      %p609 = pneg %p406
      %p610 = pneg %p430
      %p611 = pneg %p427
      %p612 = pneg %p451
      %p613 = pneg %p448
      %p614 = pneg %p477
      %p615 = pneg %p474
      %s616 = smul.u32 4, %s31
      %p617 = scmp.lt.s32.totalorder %s616, 7
      %s618 = scalar_select %p617, %s616, 7
      %s619 = smul.addr %s618, 8
      %s620 = scalar_lea.vmem %s20, %s619
      %s621 = smul.u32 4, %s31
      %p622 = scmp.lt.s32.totalorder %s621, 7
      %s623 = scalar_select %p622, %s621, 7
      %s624 = smul.addr %s623, 8
      %s625 = scalar_lea.vmem %s0, %s624
      %s626 = smul.u32 4, %s31
      %s627 = smul.u32 4, %s31
      %p628 = scmp.lt.s32.totalorder %s627, 7
      %s629 = scalar_select %p628, %s627, 7
      %s630 = smul.addr %s629, 8
      %s631 = scalar_lea.vmem %s20, %s630
      %s632 = smul.u32 4, %s31
      %v634 = vld [vmem:[%s625] sm:$0xff]
      %v635 = vld [vmem:[%s625 + $0x8] sm:$0xff]
      %v636 = vld [vmem:[%s625 + $0x10] sm:$0xff]
      %v637 = vld [vmem:[%s625 + $0x18] sm:$0xff]
      %v638 = vld [vmem:[%s3] sm:$0xf]
      %v639 = vld [vmem:[%s3 + $0x4] sm:$0xf]
      %v640 = vld [vmem:[%s3 + $0x8] sm:$0xf]
      %v641 = vld [vmem:[%s3 + $0xc] sm:$0xf]
      %v642 = vld [vmem:[%s1] sm:$0xff]
      %v643 = vld [vmem:[%s2] sm:$0xff]
      %v644 = vpack.c.bf16 %v635, %v634
      %v645 = vpack.c.bf16 %v637, %v636
      %v646 = vld [vmem:[%s4] sm:$0xf]
      %v647 = vld [vmem:[%s4 + $0x4] sm:$0xf]
      %v648 = vld [vmem:[%s4 + $0x8] sm:$0xf]
      %v649 = vld [vmem:[%s4 + $0xc] sm:$0xf]
      %v650 = vld [vmem:[%s5] sm:$0x1]
      %v651 = vlaneseq
      %v652 = vshrl.u32 %v651, 7
      %v653 = vsub.s32 0, %v652
      %v654 = vrot.slane %v650, %v653
      %v659 = vunpack.c.l.b16 %v646
      %v660 = vunpack.c.l.b16 %v647
      %v661 = vunpack.c.l.b16 %v648
      %v662 = vunpack.c.l.b16 %v649
      %v663 = vpack.c.b16 %v660, %v659
      %v664 = vpack.c.b16 %v662, %v661
      %vm667 = vcmask 261120
      %v669 = vsel %vm667, %v644, 0
      %v672 = vsel %vm667, %v645, 0
      %674 = vmatprep.subr.bf16.mxu0 0
      %675 = vmatpush1.bf16.msra.mxu0 %v663
      %676 = vmatprep.subr.bf16.mxu0 0
      %677 = vmatpush1.bf16.msra.mxu0 %v664
      %678 = vmatprep.subr.bf16.mxu0 0
      %679 = vmatpush1.bf16.msra.mxu0 0
      %680 = vmatprep.subr.bf16.mxu0 0
      %681 = vmatpush1.bf16.msra.mxu0 0
      %682 = vmatprep.subr.bf16.mxu0 0
      %683 = vmatpush1.bf16.msra.mxu0 0
      %684 = vmatprep.subr.bf16.mxu0 0
      %685 = vmatpush1.bf16.msra.mxu0 0
      %686 = vmatprep.subr.bf16.mxu0 0
      %687 = vmatpush1.bf16.msra.mxu0 0
      %688 = vmatprep.subr.bf16.mxu0 0
      %689 = vmatpush1.bf16.msra.mxu0 0
      %690 = vmatprep.subr.bf16.mxu0 0
      %691 = vmatpush1.bf16.msra.mxu0 0
      %692 = vmatprep.subr.bf16.mxu0 0
      %693 = vmatpush1.bf16.msra.mxu0 0
      %694 = vmatprep.subr.bf16.mxu0 0
      %695 = vmatpush1.bf16.msra.mxu0 0
      %696 = vmatprep.subr.bf16.mxu0 0
      %697 = vmatpush1.bf16.msra.mxu0 0
      %698 = vmatprep.subr.bf16.mxu0 0
      %699 = vmatpush1.bf16.msra.mxu0 0
      %700 = vmatprep.subr.bf16.mxu0 0
      %701 = vmatpush1.bf16.msra.mxu0 0
      %702 = vmatprep.subr.bf16.mxu0 0
      %703 = vmatpush1.bf16.msra.mxu0 0
      %704 = vmatprep.subr.bf16.mxu0 0
      %705 = vmatpush1.bf16.msra.mxu0 0
      %706 = vmatprep.mubr.bf16.mxu0 0
      %707 = vmatmul.mubr.bf16.gmra.mrb[0].mxu0 %v669
      %v708 = vpop.f32.mrb[0].mxu0
      %v709 = vadd.f32 %v654, %v708
      %v710 = vpop.f32.mrb[0].mxu0
      %v711 = vpop.f32.mrb[0].mxu0
      %v712 = vadd.f32 %v654, %v711
      %v713 = vpop.f32.mrb[0].mxu0
      %714 = vmatprep.mubr.bf16.mxu0 0
      %715 = vmatmul.mubr.bf16.gmra.mrb[0].mxu0 %v672
      %v716 = vpop.f32.mrb[0].mxu0
      %v717 = vadd.f32 %v654, %v716
      %v718 = vpop.f32.mrb[0].mxu0
      %v719 = vpop.f32.mrb[0].mxu0
      %v720 = vadd.f32 %v654, %v719
      %v721 = vpop.f32.mrb[0].mxu0
      %722 = vdwg.mxu0
      %v723 = vld [vmem:[%s6] sm:$0xf]
      %v724 = vld [vmem:[%s6 + $0x4] sm:$0xf]
      %v725 = vld [vmem:[%s6 + $0x8] sm:$0xf]
      %v726 = vld [vmem:[%s6 + $0xc] sm:$0xf]
      %v727 = vld [vmem:[%s7] sm:$0x1]
      %v728 = vlaneseq
      %v729 = vshrl.u32 %v728, 7
      %v730 = vsub.s32 0, %v729
      %v731 = vrot.slane %v727, %v730
      %v736 = vunpack.c.l.b16 %v723
      %v737 = vunpack.c.l.b16 %v724
      %v738 = vunpack.c.l.b16 %v725
      %v739 = vunpack.c.l.b16 %v726
      %v740 = vpack.c.b16 %v737, %v736
      %v741 = vpack.c.b16 %v739, %v738
      %744 = vmatprep.subr.bf16.mxu0 0
      %745 = vmatpush1.bf16.msra.mxu0 %v740
      %746 = vmatprep.subr.bf16.mxu0 0
      %747 = vmatpush1.bf16.msra.mxu0 %v741
      %748 = vmatprep.subr.bf16.mxu0 0
      %749 = vmatpush1.bf16.msra.mxu0 0
      %750 = vmatprep.subr.bf16.mxu0 0
      %751 = vmatpush1.bf16.msra.mxu0 0
      %752 = vmatprep.subr.bf16.mxu0 0
      %753 = vmatpush1.bf16.msra.mxu0 0
      %754 = vmatprep.subr.bf16.mxu0 0
      %755 = vmatpush1.bf16.msra.mxu0 0
      %756 = vmatprep.subr.bf16.mxu0 0
      %757 = vmatpush1.bf16.msra.mxu0 0
      %758 = vmatprep.subr.bf16.mxu0 0
      %759 = vmatpush1.bf16.msra.mxu0 0
      %760 = vmatprep.subr.bf16.mxu0 0
      %761 = vmatpush1.bf16.msra.mxu0 0
      %762 = vmatprep.subr.bf16.mxu0 0
      %763 = vmatpush1.bf16.msra.mxu0 0
      %764 = vmatprep.subr.bf16.mxu0 0
      %765 = vmatpush1.bf16.msra.mxu0 0
      %766 = vmatprep.subr.bf16.mxu0 0
      %767 = vmatpush1.bf16.msra.mxu0 0
      %768 = vmatprep.subr.bf16.mxu0 0
      %769 = vmatpush1.bf16.msra.mxu0 0
      %770 = vmatprep.subr.bf16.mxu0 0
      %771 = vmatpush1.bf16.msra.mxu0 0
      %772 = vmatprep.subr.bf16.mxu0 0
      %773 = vmatpush1.bf16.msra.mxu0 0
      %774 = vmatprep.subr.bf16.mxu0 0
      %775 = vmatpush1.bf16.msra.mxu0 0
      %776 = vmatprep.mubr.bf16.mxu0 0
      %777 = vmatmul.mubr.bf16.gmra.mrb[0].mxu0 %v669
      %v778 = vpop.f32.mrb[0].mxu0
      %v779 = vadd.f32 %v731, %v778
      %v780 = vpop.f32.mrb[0].mxu0
      %v781 = vpop.f32.mrb[0].mxu0
      %v782 = vadd.f32 %v731, %v781
      %v783 = vpop.f32.mrb[0].mxu0
      %784 = vmatprep.mubr.bf16.mxu0 0
      %785 = vmatmul.mubr.bf16.gmra.mrb[0].mxu0 %v672
      %v786 = vpop.f32.mrb[0].mxu0
      %v787 = vadd.f32 %v731, %v786
      %v788 = vpop.f32.mrb[0].mxu0
      %v789 = vpop.f32.mrb[0].mxu0
      %v790 = vadd.f32 %v731, %v789
      %v791 = vpop.f32.mrb[0].mxu0
      %792 = vdwg.mxu0
      %v793 = vld [vmem:[%s8] sm:$0xf]
      %v794 = vld [vmem:[%s8 + $0x4] sm:$0xf]
      %v795 = vld [vmem:[%s8 + $0x8] sm:$0xf]
      %v796 = vld [vmem:[%s8 + $0xc] sm:$0xf]
      %v797 = vld [vmem:[%s9] sm:$0x1]
      %v798 = vlaneseq
      %v799 = vshrl.u32 %v798, 7
      %v800 = vsub.s32 0, %v799
      %v801 = vrot.slane %v797, %v800
      %v806 = vunpack.c.l.b16 %v793
      %v807 = vunpack.c.l.b16 %v794
      %v808 = vunpack.c.l.b16 %v795
      %v809 = vunpack.c.l.b16 %v796
      %v810 = vpack.c.b16 %v807, %v806
      %v811 = vpack.c.b16 %v809, %v808
      %814 = vmatprep.subr.bf16.mxu0 0
      %815 = vmatpush1.bf16.msra.mxu0 %v810
      %816 = vmatprep.subr.bf16.mxu0 0
      %817 = vmatpush1.bf16.msra.mxu0 %v811
      %818 = vmatprep.subr.bf16.mxu0 0
      %819 = vmatpush1.bf16.msra.mxu0 0
      %820 = vmatprep.subr.bf16.mxu0 0
      %821 = vmatpush1.bf16.msra.mxu0 0
      %822 = vmatprep.subr.bf16.mxu0 0
      %823 = vmatpush1.bf16.msra.mxu0 0
      %824 = vmatprep.subr.bf16.mxu0 0
      %825 = vmatpush1.bf16.msra.mxu0 0
      %826 = vmatprep.subr.bf16.mxu0 0
      %827 = vmatpush1.bf16.msra.mxu0 0
      %828 = vmatprep.subr.bf16.mxu0 0
      %829 = vmatpush1.bf16.msra.mxu0 0
      %830 = vmatprep.subr.bf16.mxu0 0
      %831 = vmatpush1.bf16.msra.mxu0 0
      %832 = vmatprep.subr.bf16.mxu0 0
      %833 = vmatpush1.bf16.msra.mxu0 0
      %834 = vmatprep.subr.bf16.mxu0 0
      %835 = vmatpush1.bf16.msra.mxu0 0
      %836 = vmatprep.subr.bf16.mxu0 0
      %837 = vmatpush1.bf16.msra.mxu0 0
      %838 = vmatprep.subr.bf16.mxu0 0
      %839 = vmatpush1.bf16.msra.mxu0 0
      %840 = vmatprep.subr.bf16.mxu0 0
      %841 = vmatpush1.bf16.msra.mxu0 0
      %842 = vmatprep.subr.bf16.mxu0 0
      %843 = vmatpush1.bf16.msra.mxu0 0
      %844 = vmatprep.subr.bf16.mxu0 0
      %845 = vmatpush1.bf16.msra.mxu0 0
      %846 = vmatprep.mubr.bf16.mxu0 0
      %847 = vmatmul.mubr.bf16.gmra.mrb[0].mxu0 %v669
      %v848 = vpop.f32.mrb[0].mxu0
      %v849 = vadd.f32 %v801, %v848
      %v850 = vpop.f32.mrb[0].mxu0
      %v851 = vpop.f32.mrb[0].mxu0
      %v852 = vadd.f32 %v801, %v851
      %v853 = vpop.f32.mrb[0].mxu0
      %854 = vmatprep.mubr.bf16.mxu0 0
      %855 = vmatmul.mubr.bf16.gmra.mrb[0].mxu0 %v672
      %v856 = vpop.f32.mrb[0].mxu0
      %v857 = vadd.f32 %v801, %v856
      %v858 = vpop.f32.mrb[0].mxu0
      %v859 = vpop.f32.mrb[0].mxu0
      %v860 = vadd.f32 %v801, %v859
      %v861 = vpop.f32.mrb[0].mxu0
      %862 = vdwg.mxu0
      %v863 = vmul.f32 %v709, %v642
      %v864 = vmul.f32 %v712, %v642
      %v865 = vmul.f32 %v717, %v642
      %v866 = vmul.f32 %v720, %v642
      %v867 = vpack.c.bf16 %v712, %v709
      %v868 = vpack.c.bf16 %v720, %v717
      %v873 = vunpack.c.l.b16 %v638
      %v874 = vunpack.c.l.b16 %v639
      %v875 = vunpack.c.l.b16 %v640
      %v876 = vunpack.c.l.b16 %v641
      %v877 = vpack.c.b16 %v874, %v873
      %v878 = vpack.c.b16 %v876, %v875
      %v882 = vsel %vm667, %v867, 0
      %v885 = vsel %vm667, %v868, 0
      %887 = vmatprep.subr.bf16.mxu0 0
      %888 = vmatpush1.bf16.msra.mxu0 %v877
      %889 = vmatprep.subr.bf16.mxu0 0
      %890 = vmatpush1.bf16.msra.mxu0 %v878
      %891 = vmatprep.subr.bf16.mxu0 0
      %892 = vmatpush1.bf16.msra.mxu0 0
      %893 = vmatprep.subr.bf16.mxu0 0
      %894 = vmatpush1.bf16.msra.mxu0 0
      %895 = vmatprep.subr.bf16.mxu0 0
      %896 = vmatpush1.bf16.msra.mxu0 0
      %897 = vmatprep.subr.bf16.mxu0 0
      %898 = vmatpush1.bf16.msra.mxu0 0
      %899 = vmatprep.subr.bf16.mxu0 0
      %900 = vmatpush1.bf16.msra.mxu0 0
      %901 = vmatprep.subr.bf16.mxu0 0
      %902 = vmatpush1.bf16.msra.mxu0 0
      %903 = vmatprep.subr.bf16.mxu0 0
      %904 = vmatpush1.bf16.msra.mxu0 0
      %905 = vmatprep.subr.bf16.mxu0 0
      %906 = vmatpush1.bf16.msra.mxu0 0
      %907 = vmatprep.subr.bf16.mxu0 0
      %908 = vmatpush1.bf16.msra.mxu0 0
      %909 = vmatprep.subr.bf16.mxu0 0
      %910 = vmatpush1.bf16.msra.mxu0 0
      %911 = vmatprep.subr.bf16.mxu0 0
      %912 = vmatpush1.bf16.msra.mxu0 0
      %913 = vmatprep.subr.bf16.mxu0 0
      %914 = vmatpush1.bf16.msra.mxu0 0
      %915 = vmatprep.subr.bf16.mxu0 0
      %916 = vmatpush1.bf16.msra.mxu0 0
      %917 = vmatprep.subr.bf16.mxu0 0
      %918 = vmatpush1.bf16.msra.mxu0 0
      %919 = vmatprep.mubr.bf16.mxu0 0
      %920 = vmatmul.mubr.bf16.gmra.mrb[0].mxu0 %v882
      %v921 = vpop.f32.mrb[0].mxu0
      %v922 = vadd.f32 0.0, %v921
      %v923 = vpop.f32.mrb[0].mxu0
      %v924 = vpop.f32.mrb[0].mxu0
      %v925 = vadd.f32 0.0, %v924
      %v926 = vpop.f32.mrb[0].mxu0
      %927 = vmatprep.mubr.bf16.mxu0 0
      %928 = vmatmul.mubr.bf16.gmra.mrb[0].mxu0 %v885
      %v929 = vpop.f32.mrb[0].mxu0
      %v930 = vadd.f32 0.0, %v929
      %v931 = vpop.f32.mrb[0].mxu0
      %v932 = vpop.f32.mrb[0].mxu0
      %v933 = vadd.f32 0.0, %v932
      %v934 = vpop.f32.mrb[0].mxu0
      %935 = vdwg.mxu0
      %v936 = vmul.f32 %v922, %v643
      %v937 = vmul.f32 %v925, %v643
      %v938 = vmul.f32 %v930, %v643
      %v939 = vmul.f32 %v933, %v643
      %v940 = vadd.f32 %v863, %v936
      %v941 = vadd.f32 %v864, %v937
      %v942 = vadd.f32 %v865, %v938
      %v943 = vadd.f32 %v866, %v939
      %v944 = vmul.f32 %v779, %v642
      %v945 = vmul.f32 %v782, %v642
      %v946 = vmul.f32 %v787, %v642
      %v947 = vmul.f32 %v790, %v642
      %v948 = vpack.c.bf16 %v782, %v779
      %v949 = vpack.c.bf16 %v790, %v787
      %v951 = vsel %vm667, %v948, 0
      %v954 = vsel %vm667, %v949, 0
      %956 = vmatprep.subr.bf16.mxu0 0
      %957 = vmatpush1.bf16.msra.mxu0 %v877
      %958 = vmatprep.subr.bf16.mxu0 0
      %959 = vmatpush1.bf16.msra.mxu0 %v878
      %960 = vmatprep.subr.bf16.mxu0 0
      %961 = vmatpush1.bf16.msra.mxu0 0
      %962 = vmatprep.subr.bf16.mxu0 0
      %963 = vmatpush1.bf16.msra.mxu0 0
      %964 = vmatprep.subr.bf16.mxu0 0
      %965 = vmatpush1.bf16.msra.mxu0 0
      %966 = vmatprep.subr.bf16.mxu0 0
      %967 = vmatpush1.bf16.msra.mxu0 0
      %968 = vmatprep.subr.bf16.mxu0 0
      %969 = vmatpush1.bf16.msra.mxu0 0
      %970 = vmatprep.subr.bf16.mxu0 0
      %971 = vmatpush1.bf16.msra.mxu0 0
      %972 = vmatprep.subr.bf16.mxu0 0
      %973 = vmatpush1.bf16.msra.mxu0 0
      %974 = vmatprep.subr.bf16.mxu0 0
      %975 = vmatpush1.bf16.msra.mxu0 0
      %976 = vmatprep.subr.bf16.mxu0 0
      %977 = vmatpush1.bf16.msra.mxu0 0
      %978 = vmatprep.subr.bf16.mxu0 0
      %979 = vmatpush1.bf16.msra.mxu0 0
      %980 = vmatprep.subr.bf16.mxu0 0
      %981 = vmatpush1.bf16.msra.mxu0 0
      %982 = vmatprep.subr.bf16.mxu0 0
      %983 = vmatpush1.bf16.msra.mxu0 0
      %984 = vmatprep.subr.bf16.mxu0 0
      %985 = vmatpush1.bf16.msra.mxu0 0
      %986 = vmatprep.subr.bf16.mxu0 0
      %987 = vmatpush1.bf16.msra.mxu0 0
      %988 = vmatprep.mubr.bf16.mxu0 0
      %989 = vmatmul.mubr.bf16.gmra.mrb[0].mxu0 %v951
      %v990 = vpop.f32.mrb[0].mxu0
      %v991 = vadd.f32 0.0, %v990
      %v992 = vpop.f32.mrb[0].mxu0
      %v993 = vpop.f32.mrb[0].mxu0
      %v994 = vadd.f32 0.0, %v993
      %v995 = vpop.f32.mrb[0].mxu0
      %996 = vmatprep.mubr.bf16.mxu0 0
      %997 = vmatmul.mubr.bf16.gmra.mrb[0].mxu0 %v954
      %v998 = vpop.f32.mrb[0].mxu0
      %v999 = vadd.f32 0.0, %v998
      %v1000 = vpop.f32.mrb[0].mxu0
      %v1001 = vpop.f32.mrb[0].mxu0
      %v1002 = vadd.f32 0.0, %v1001
      %v1003 = vpop.f32.mrb[0].mxu0
      %1004 = vdwg.mxu0
      %v1005 = vmul.f32 %v991, %v643
      %v1006 = vmul.f32 %v994, %v643
      %v1007 = vmul.f32 %v999, %v643
      %v1008 = vmul.f32 %v1002, %v643
      %v1009 = vadd.f32 %v944, %v1005
      %v1010 = vadd.f32 %v945, %v1006
      %v1011 = vadd.f32 %v946, %v1007
      %v1012 = vadd.f32 %v947, %v1008
      %v1013 = vmul.f32 %v940, 0.35355338
      %v1014 = vmul.f32 %v941, 0.35355338
      %v1015 = vmul.f32 %v942, 0.35355338
      %v1016 = vmul.f32 %v943, 0.35355338
      %v1017 = vpack.c.bf16 %v1013, %v1013
      %v1018 = vpack.c.bf16 %v1014, %v1014
      %v1019 = vpack.c.bf16 %v1015, %v1015
      %v1020 = vpack.c.bf16 %v1016, %v1016
      %v1021 = vpack.c.bf16 %v1009, %v1009
      %v1022 = vpack.c.bf16 %v1010, %v1010
      %v1023 = vpack.c.bf16 %v1011, %v1011
      %v1024 = vpack.c.bf16 %v1012, %v1012
      %v1025 = vpack.c.bf16 %v849, %v849
      %v1026 = vpack.c.bf16 %v852, %v852
      %v1027 = vpack.c.bf16 %v857, %v857
      %v1028 = vpack.c.bf16 %v860, %v860
      %vm1029 = vcmask 64512
      %v1031 = vsel %vm1029, %v1017, 0
      %v1034 = vsel %vm1029, %v1021, 0
      %1036 = vmatprep.subr.bf16.mxu0 0
      %1037 = vmatpush1.bf16.xpose.msra.mxu0 %v1034
      %1038 = vmatprep.subr.bf16.mxu0 0
      %1039 = vmatpush1.bf16.xpose.msra.mxu0 0
      %1040 = vmatprep.subr.bf16.mxu0 0
      %1041 = vmatpush1.bf16.xpose.msra.mxu0 0
      %1042 = vmatprep.subr.bf16.mxu0 0
      %1043 = vmatpush1.bf16.xpose.msra.mxu0 0
      %1044 = vmatprep.subr.bf16.mxu0 0
      %1045 = vmatpush1.bf16.xpose.msra.mxu0 0
      %1046 = vmatprep.subr.bf16.mxu0 0
      %1047 = vmatpush1.bf16.xpose.msra.mxu0 0
      %1048 = vmatprep.subr.bf16.mxu0 0
      %1049 = vmatpush1.bf16.xpose.msra.mxu0 0
      %1050 = vmatprep.subr.bf16.mxu0 0
      %1051 = vmatpush1.bf16.xpose.msra.mxu0 0
      %1052 = vmatprep.subr.bf16.mxu0 0
      %1053 = vmatpush1.bf16.xpose.msra.mxu0 0
      %1054 = vmatprep.subr.bf16.mxu0 0
      %1055 = vmatpush1.bf16.xpose.msra.mxu0 0
      %1056 = vmatprep.subr.bf16.mxu0 0
      %1057 = vmatpush1.bf16.xpose.msra.mxu0 0
      %1058 = vmatprep.subr.bf16.mxu0 0
      %1059 = vmatpush1.bf16.xpose.msra.mxu0 0
      %1060 = vmatprep.subr.bf16.mxu0 0
      %1061 = vmatpush1.bf16.xpose.msra.mxu0 0
      %1062 = vmatprep.subr.bf16.mxu0 0
      %1063 = vmatpush1.bf16.xpose.msra.mxu0 0
      %1064 = vmatprep.subr.bf16.mxu0 0
      %1065 = vmatpush1.bf16.xpose.msra.mxu0 0
      %1066 = vmatprep.subr.bf16.mxu0 0
      %1067 = vmatpush1.bf16.xpose.msra.mxu0 0
      %1068 = vmatprep.mubr.bf16.mxu0 0
      %1069 = vmatmul.mubr.bf16.gmra.mrb[0].mxu0 %v1031
      %v1070 = vpop.f32.mrb[0].mxu0
      %v1071 = vadd.f32 0.0, %v1070
      %v1072 = vpop.f32.mrb[0].mxu0
      %v1073 = vpop.f32.mrb[0].mxu0
      %v1074 = vpop.f32.mrb[0].mxu0
      %1075 = vdwg.mxu0
      %v1077 = vsel %vm1029, %v1018, 0
      %v1080 = vsel %vm1029, %v1022, 0
      %1082 = vmatprep.subr.bf16.mxu0 0
      %1083 = vmatpush1.bf16.xpose.msra.mxu0 %v1080
      %1084 = vmatprep.subr.bf16.mxu0 0
      %1085 = vmatpush1.bf16.xpose.msra.mxu0 0
      %1086 = vmatprep.subr.bf16.mxu0 0
      %1087 = vmatpush1.bf16.xpose.msra.mxu0 0
      %1088 = vmatprep.subr.bf16.mxu0 0
      %1089 = vmatpush1.bf16.xpose.msra.mxu0 0
      %1090 = vmatprep.subr.bf16.mxu0 0
      %1091 = vmatpush1.bf16.xpose.msra.mxu0 0
      %1092 = vmatprep.subr.bf16.mxu0 0
      %1093 = vmatpush1.bf16.xpose.msra.mxu0 0
      %1094 = vmatprep.subr.bf16.mxu0 0
      %1095 = vmatpush1.bf16.xpose.msra.mxu0 0
      %1096 = vmatprep.subr.bf16.mxu0 0
      %1097 = vmatpush1.bf16.xpose.msra.mxu0 0
      %1098 = vmatprep.subr.bf16.mxu0 0
      %1099 = vmatpush1.bf16.xpose.msra.mxu0 0
      %1100 = vmatprep.subr.bf16.mxu0 0
      %1101 = vmatpush1.bf16.xpose.msra.mxu0 0
      %1102 = vmatprep.subr.bf16.mxu0 0
      %1103 = vmatpush1.bf16.xpose.msra.mxu0 0
      %1104 = vmatprep.subr.bf16.mxu0 0
      %1105 = vmatpush1.bf16.xpose.msra.mxu0 0
      %1106 = vmatprep.subr.bf16.mxu0 0
      %1107 = vmatpush1.bf16.xpose.msra.mxu0 0
      %1108 = vmatprep.subr.bf16.mxu0 0
      %1109 = vmatpush1.bf16.xpose.msra.mxu0 0
      %1110 = vmatprep.subr.bf16.mxu0 0
      %1111 = vmatpush1.bf16.xpose.msra.mxu0 0
      %1112 = vmatprep.subr.bf16.mxu0 0
      %1113 = vmatpush1.bf16.xpose.msra.mxu0 0
      %1114 = vmatprep.mubr.bf16.mxu0 0
      %1115 = vmatmul.mubr.bf16.gmra.mrb[0].mxu0 %v1077
      %v1116 = vpop.f32.mrb[0].mxu0
      %v1117 = vadd.f32 0.0, %v1116
      %v1118 = vpop.f32.mrb[0].mxu0
      %v1119 = vpop.f32.mrb[0].mxu0
      %v1120 = vpop.f32.mrb[0].mxu0
      %1121 = vdwg.mxu0
      %v1123 = vsel %vm1029, %v1019, 0
      %v1126 = vsel %vm1029, %v1023, 0
      %1128 = vmatprep.subr.bf16.mxu0 0
      %1129 = vmatpush1.bf16.xpose.msra.mxu0 %v1126
      %1130 = vmatprep.subr.bf16.mxu0 0
      %1131 = vmatpush1.bf16.xpose.msra.mxu0 0
      %1132 = vmatprep.subr.bf16.mxu0 0
      %1133 = vmatpush1.bf16.xpose.msra.mxu0 0
      %1134 = vmatprep.subr.bf16.mxu0 0
      %1135 = vmatpush1.bf16.xpose.msra.mxu0 0
      %1136 = vmatprep.subr.bf16.mxu0 0
      %1137 = vmatpush1.bf16.xpose.msra.mxu0 0
      %1138 = vmatprep.subr.bf16.mxu0 0
      %1139 = vmatpush1.bf16.xpose.msra.mxu0 0
      %1140 = vmatprep.subr.bf16.mxu0 0
      %1141 = vmatpush1.bf16.xpose.msra.mxu0 0
      %1142 = vmatprep.subr.bf16.mxu0 0
      %1143 = vmatpush1.bf16.xpose.msra.mxu0 0
      %1144 = vmatprep.subr.bf16.mxu0 0
      %1145 = vmatpush1.bf16.xpose.msra.mxu0 0
      %1146 = vmatprep.subr.bf16.mxu0 0
      %1147 = vmatpush1.bf16.xpose.msra.mxu0 0
      %1148 = vmatprep.subr.bf16.mxu0 0
      %1149 = vmatpush1.bf16.xpose.msra.mxu0 0
      %1150 = vmatprep.subr.bf16.mxu0 0
      %1151 = vmatpush1.bf16.xpose.msra.mxu0 0
      %1152 = vmatprep.subr.bf16.mxu0 0
      %1153 = vmatpush1.bf16.xpose.msra.mxu0 0
      %1154 = vmatprep.subr.bf16.mxu0 0
      %1155 = vmatpush1.bf16.xpose.msra.mxu0 0
      %1156 = vmatprep.subr.bf16.mxu0 0
      %1157 = vmatpush1.bf16.xpose.msra.mxu0 0
      %1158 = vmatprep.subr.bf16.mxu0 0
      %1159 = vmatpush1.bf16.xpose.msra.mxu0 0
      %1160 = vmatprep.mubr.bf16.mxu0 0
      %1161 = vmatmul.mubr.bf16.gmra.mrb[0].mxu0 %v1123
      %v1162 = vpop.f32.mrb[0].mxu0
      %v1163 = vadd.f32 0.0, %v1162
      %v1164 = vpop.f32.mrb[0].mxu0
      %v1165 = vpop.f32.mrb[0].mxu0
      %v1166 = vpop.f32.mrb[0].mxu0
      %1167 = vdwg.mxu0
      %v1169 = vsel %vm1029, %v1020, 0
      %v1172 = vsel %vm1029, %v1024, 0
      %1174 = vmatprep.subr.bf16.mxu0 0
      %1175 = vmatpush1.bf16.xpose.msra.mxu0 %v1172
      %1176 = vmatprep.subr.bf16.mxu0 0
      %1177 = vmatpush1.bf16.xpose.msra.mxu0 0
      %1178 = vmatprep.subr.bf16.mxu0 0
      %1179 = vmatpush1.bf16.xpose.msra.mxu0 0
      %1180 = vmatprep.subr.bf16.mxu0 0
      %1181 = vmatpush1.bf16.xpose.msra.mxu0 0
      %1182 = vmatprep.subr.bf16.mxu0 0
      %1183 = vmatpush1.bf16.xpose.msra.mxu0 0
      %1184 = vmatprep.subr.bf16.mxu0 0
      %1185 = vmatpush1.bf16.xpose.msra.mxu0 0
      %1186 = vmatprep.subr.bf16.mxu0 0
      %1187 = vmatpush1.bf16.xpose.msra.mxu0 0
      %1188 = vmatprep.subr.bf16.mxu0 0
      %1189 = vmatpush1.bf16.xpose.msra.mxu0 0
      %1190 = vmatprep.subr.bf16.mxu0 0
      %1191 = vmatpush1.bf16.xpose.msra.mxu0 0
      %1192 = vmatprep.subr.bf16.mxu0 0
      %1193 = vmatpush1.bf16.xpose.msra.mxu0 0
      %1194 = vmatprep.subr.bf16.mxu0 0
      %1195 = vmatpush1.bf16.xpose.msra.mxu0 0
      %1196 = vmatprep.subr.bf16.mxu0 0
      %1197 = vmatpush1.bf16.xpose.msra.mxu0 0
      %1198 = vmatprep.subr.bf16.mxu0 0
      %1199 = vmatpush1.bf16.xpose.msra.mxu0 0
      %1200 = vmatprep.subr.bf16.mxu0 0
      %1201 = vmatpush1.bf16.xpose.msra.mxu0 0
      %1202 = vmatprep.subr.bf16.mxu0 0
      %1203 = vmatpush1.bf16.xpose.msra.mxu0 0
      %1204 = vmatprep.subr.bf16.mxu0 0
      %1205 = vmatpush1.bf16.xpose.msra.mxu0 0
      %1206 = vmatprep.mubr.bf16.mxu0 0
      %1207 = vmatmul.mubr.bf16.gmra.mrb[0].mxu0 %v1169
      %v1208 = vpop.f32.mrb[0].mxu0
      %v1209 = vadd.f32 0.0, %v1208
      %v1210 = vpop.f32.mrb[0].mxu0
      %v1211 = vpop.f32.mrb[0].mxu0
      %v1212 = vpop.f32.mrb[0].mxu0
      %1213 = vdwg.mxu0
      %v1214 = vsel %vm1029, %v1071, -inf
      %1215 = vmax.xlane.f32.xlu0 %v1214
      %v1216 = vpop.xlane.xlu0 %1215
      %v1217 = vsel %vm1029, %v1117, -inf
      %1218 = vmax.xlane.f32.xlu0 %v1217
      %v1219 = vpop.xlane.xlu0 %1218
      %v1220 = vsel %vm1029, %v1163, -inf
      %1221 = vmax.xlane.f32.xlu0 %v1220
      %v1222 = vpop.xlane.xlu0 %1221
      %v1223 = vsel %vm1029, %v1209, -inf
      %1224 = vmax.xlane.f32.xlu0 %v1223
      %v1225 = vpop.xlane.xlu0 %1224
      %v1226 = vsub.f32 %v1071, %v1216
      %v1227 = vsub.f32 %v1117, %v1219
      %v1228 = vsub.f32 %v1163, %v1222
      %v1229 = vsub.f32 %v1209, %v1225
      %v1230 = vmul.f32 %v1226, 1.442695
      %v1231 = vpow.pop %v1230
      %v1232 = vmul.f32 %v1227, 1.442695
      %v1233 = vpow.pop %v1232
      %v1234 = vmul.f32 %v1228, 1.442695
      %v1235 = vpow.pop %v1234
      %v1236 = vmul.f32 %v1229, 1.442695
      %v1237 = vpow.pop %v1236
      %v1238 = vsel %vm1029, %v1231, 0.0
      %1239 = vadd.xlane.f32.xlu0 %v1238
      %v1240 = vpop.xlane.xlu0 %1239
      %v1241 = vsel %vm1029, %v1233, 0.0
      %1242 = vadd.xlane.f32.xlu0 %v1241
      %v1243 = vpop.xlane.xlu0 %1242
      %v1244 = vsel %vm1029, %v1235, 0.0
      %1245 = vadd.xlane.f32.xlu0 %v1244
      %v1246 = vpop.xlane.xlu0 %1245
      %v1247 = vsel %vm1029, %v1237, 0.0
      %1248 = vadd.xlane.f32.xlu0 %v1247
      %v1249 = vpop.xlane.xlu0 %1248
      %v1250 = vrcp.pop %v1240
      %v1251 = vmul.f32 %v1231, %v1250
      %v1252 = vrcp.pop %v1243
      %v1253 = vmul.f32 %v1233, %v1252
      %v1254 = vrcp.pop %v1246
      %v1255 = vmul.f32 %v1235, %v1254
      %v1256 = vrcp.pop %v1249
      %v1257 = vmul.f32 %v1237, %v1256
      %v1258 = vpack.c.bf16 %v1251, %v1251
      %v1259 = vpack.c.bf16 %v1253, %v1253
      %v1260 = vpack.c.bf16 %v1255, %v1255
      %v1261 = vpack.c.bf16 %v1257, %v1257
      %v1263 = vsel %vm1029, %v1258, 0
      %vm1265 = vcmask 1043456
      %v1267 = vsel %vm1265, %v1025, 0
      %1269 = vmatprep.subr.bf16.mxu0 0
      %1270 = vmatpush1.bf16.msra.mxu0 %v1267
      %1271 = vmatprep.subr.bf16.mxu0 0
      %1272 = vmatpush1.bf16.msra.mxu0 0
      %1273 = vmatprep.subr.bf16.mxu0 0
      %1274 = vmatpush1.bf16.msra.mxu0 0
      %1275 = vmatprep.subr.bf16.mxu0 0
      %1276 = vmatpush1.bf16.msra.mxu0 0
      %1277 = vmatprep.subr.bf16.mxu0 0
      %1278 = vmatpush1.bf16.msra.mxu0 0
      %1279 = vmatprep.subr.bf16.mxu0 0
      %1280 = vmatpush1.bf16.msra.mxu0 0
      %1281 = vmatprep.subr.bf16.mxu0 0
      %1282 = vmatpush1.bf16.msra.mxu0 0
      %1283 = vmatprep.subr.bf16.mxu0 0
      %1284 = vmatpush1.bf16.msra.mxu0 0
      %1285 = vmatprep.subr.bf16.mxu0 0
      %1286 = vmatpush1.bf16.msra.mxu0 0
      %1287 = vmatprep.subr.bf16.mxu0 0
      %1288 = vmatpush1.bf16.msra.mxu0 0
      %1289 = vmatprep.subr.bf16.mxu0 0
      %1290 = vmatpush1.bf16.msra.mxu0 0
      %1291 = vmatprep.subr.bf16.mxu0 0
      %1292 = vmatpush1.bf16.msra.mxu0 0
      %1293 = vmatprep.subr.bf16.mxu0 0
      %1294 = vmatpush1.bf16.msra.mxu0 0
      %1295 = vmatprep.subr.bf16.mxu0 0
      %1296 = vmatpush1.bf16.msra.mxu0 0
      %1297 = vmatprep.subr.bf16.mxu0 0
      %1298 = vmatpush1.bf16.msra.mxu0 0
      %1299 = vmatprep.subr.bf16.mxu0 0
      %1300 = vmatpush1.bf16.msra.mxu0 0
      %1301 = vmatprep.mubr.bf16.mxu0 0
      %1302 = vmatmul.mubr.bf16.gmra.mrb[0].mxu0 %v1263
      %v1303 = vpop.f32.mrb[0].mxu0
      %v1304 = vadd.f32 0.0, %v1303
      %v1305 = vpop.f32.mrb[0].mxu0
      %v1306 = vpop.f32.mrb[0].mxu0
      %v1307 = vpop.f32.mrb[0].mxu0
      %1308 = vdwg.mxu0
      %v1310 = vsel %vm1029, %v1259, 0
      %v1313 = vsel %vm1265, %v1026, 0
      %1315 = vmatprep.subr.bf16.mxu0 0
      %1316 = vmatpush1.bf16.msra.mxu0 %v1313
      %1317 = vmatprep.subr.bf16.mxu0 0
      %1318 = vmatpush1.bf16.msra.mxu0 0
      %1319 = vmatprep.subr.bf16.mxu0 0
      %1320 = vmatpush1.bf16.msra.mxu0 0
      %1321 = vmatprep.subr.bf16.mxu0 0
      %1322 = vmatpush1.bf16.msra.mxu0 0
      %1323 = vmatprep.subr.bf16.mxu0 0
      %1324 = vmatpush1.bf16.msra.mxu0 0
      %1325 = vmatprep.subr.bf16.mxu0 0
      %1326 = vmatpush1.bf16.msra.mxu0 0
      %1327 = vmatprep.subr.bf16.mxu0 0
      %1328 = vmatpush1.bf16.msra.mxu0 0
      %1329 = vmatprep.subr.bf16.mxu0 0
      %1330 = vmatpush1.bf16.msra.mxu0 0
      %1331 = vmatprep.subr.bf16.mxu0 0
      %1332 = vmatpush1.bf16.msra.mxu0 0
      %1333 = vmatprep.subr.bf16.mxu0 0
      %1334 = vmatpush1.bf16.msra.mxu0 0
      %1335 = vmatprep.subr.bf16.mxu0 0
      %1336 = vmatpush1.bf16.msra.mxu0 0
      %1337 = vmatprep.subr.bf16.mxu0 0
      %1338 = vmatpush1.bf16.msra.mxu0 0
      %1339 = vmatprep.subr.bf16.mxu0 0
      %1340 = vmatpush1.bf16.msra.mxu0 0
      %1341 = vmatprep.subr.bf16.mxu0 0
      %1342 = vmatpush1.bf16.msra.mxu0 0
      %1343 = vmatprep.subr.bf16.mxu0 0
      %1344 = vmatpush1.bf16.msra.mxu0 0
      %1345 = vmatprep.subr.bf16.mxu0 0
      %1346 = vmatpush1.bf16.msra.mxu0 0
      %1347 = vmatprep.mubr.bf16.mxu0 0
      %1348 = vmatmul.mubr.bf16.gmra.mrb[0].mxu0 %v1310
      %v1349 = vpop.f32.mrb[0].mxu0
      %v1350 = vadd.f32 0.0, %v1349
      %v1351 = vpop.f32.mrb[0].mxu0
      %v1352 = vpop.f32.mrb[0].mxu0
      %v1353 = vpop.f32.mrb[0].mxu0
      %1354 = vdwg.mxu0
      %v1356 = vsel %vm1029, %v1260, 0
      %v1359 = vsel %vm1265, %v1027, 0
      %1361 = vmatprep.subr.bf16.mxu0 0
      %1362 = vmatpush1.bf16.msra.mxu0 %v1359
      %1363 = vmatprep.subr.bf16.mxu0 0
      %1364 = vmatpush1.bf16.msra.mxu0 0
      %1365 = vmatprep.subr.bf16.mxu0 0
      %1366 = vmatpush1.bf16.msra.mxu0 0
      %1367 = vmatprep.subr.bf16.mxu0 0
      %1368 = vmatpush1.bf16.msra.mxu0 0
      %1369 = vmatprep.subr.bf16.mxu0 0
      %1370 = vmatpush1.bf16.msra.mxu0 0
      %1371 = vmatprep.subr.bf16.mxu0 0
      %1372 = vmatpush1.bf16.msra.mxu0 0
      %1373 = vmatprep.subr.bf16.mxu0 0
      %1374 = vmatpush1.bf16.msra.mxu0 0
      %1375 = vmatprep.subr.bf16.mxu0 0
      %1376 = vmatpush1.bf16.msra.mxu0 0
      %1377 = vmatprep.subr.bf16.mxu0 0
      %1378 = vmatpush1.bf16.msra.mxu0 0
      %1379 = vmatprep.subr.bf16.mxu0 0
      %1380 = vmatpush1.bf16.msra.mxu0 0
      %1381 = vmatprep.subr.bf16.mxu0 0
      %1382 = vmatpush1.bf16.msra.mxu0 0
      %1383 = vmatprep.subr.bf16.mxu0 0
      %1384 = vmatpush1.bf16.msra.mxu0 0
      %1385 = vmatprep.subr.bf16.mxu0 0
      %1386 = vmatpush1.bf16.msra.mxu0 0
      %1387 = vmatprep.subr.bf16.mxu0 0
      %1388 = vmatpush1.bf16.msra.mxu0 0
      %1389 = vmatprep.subr.bf16.mxu0 0
      %1390 = vmatpush1.bf16.msra.mxu0 0
      %1391 = vmatprep.subr.bf16.mxu0 0
      %1392 = vmatpush1.bf16.msra.mxu0 0
      %1393 = vmatprep.mubr.bf16.mxu0 0
      %1394 = vmatmul.mubr.bf16.gmra.mrb[0].mxu0 %v1356
      %v1395 = vpop.f32.mrb[0].mxu0
      %v1396 = vadd.f32 0.0, %v1395
      %v1397 = vpop.f32.mrb[0].mxu0
      %v1398 = vpop.f32.mrb[0].mxu0
      %v1399 = vpop.f32.mrb[0].mxu0
      %1400 = vdwg.mxu0
      %v1402 = vsel %vm1029, %v1261, 0
      %v1405 = vsel %vm1265, %v1028, 0
      %1407 = vmatprep.subr.bf16.mxu0 0
      %1408 = vmatpush1.bf16.msra.mxu0 %v1405
      %1409 = vmatprep.subr.bf16.mxu0 0
      %1410 = vmatpush1.bf16.msra.mxu0 0
      %1411 = vmatprep.subr.bf16.mxu0 0
      %1412 = vmatpush1.bf16.msra.mxu0 0
      %1413 = vmatprep.subr.bf16.mxu0 0
      %1414 = vmatpush1.bf16.msra.mxu0 0
      %1415 = vmatprep.subr.bf16.mxu0 0
      %1416 = vmatpush1.bf16.msra.mxu0 0
      %1417 = vmatprep.subr.bf16.mxu0 0
      %1418 = vmatpush1.bf16.msra.mxu0 0
      %1419 = vmatprep.subr.bf16.mxu0 0
      %1420 = vmatpush1.bf16.msra.mxu0 0
      %1421 = vmatprep.subr.bf16.mxu0 0
      %1422 = vmatpush1.bf16.msra.mxu0 0
      %1423 = vmatprep.subr.bf16.mxu0 0
      %1424 = vmatpush1.bf16.msra.mxu0 0
      %1425 = vmatprep.subr.bf16.mxu0 0
      %1426 = vmatpush1.bf16.msra.mxu0 0
      %1427 = vmatprep.subr.bf16.mxu0 0
      %1428 = vmatpush1.bf16.msra.mxu0 0
      %1429 = vmatprep.subr.bf16.mxu0 0
      %1430 = vmatpush1.bf16.msra.mxu0 0
      %1431 = vmatprep.subr.bf16.mxu0 0
      %1432 = vmatpush1.bf16.msra.mxu0 0
      %1433 = vmatprep.subr.bf16.mxu0 0
      %1434 = vmatpush1.bf16.msra.mxu0 0
      %1435 = vmatprep.subr.bf16.mxu0 0
      %1436 = vmatpush1.bf16.msra.mxu0 0
      %1437 = vmatprep.subr.bf16.mxu0 0
      %1438 = vmatpush1.bf16.msra.mxu0 0
      %1439 = vmatprep.mubr.bf16.mxu0 0
      %1440 = vmatmul.mubr.bf16.gmra.mrb[0].mxu0 %v1402
      %v1441 = vpop.f32.mrb[0].mxu0
      %v1442 = vadd.f32 0.0, %v1441
      %v1443 = vpop.f32.mrb[0].mxu0
      %v1444 = vpop.f32.mrb[0].mxu0
      %v1445 = vpop.f32.mrb[0].mxu0
      %1446 = vdwg.mxu0
      %1448 = vrot.lane.b32.xlu0 %v1017, 120
      %v1449 = vpop.permute.xlu0 %1448
      %1451 = vrot.lane.b32.xlu0 %v1021, 120
      %v1452 = vpop.permute.xlu0 %1451
      %v1454 = vsel %vm1029, %v1449, 0
      %v1457 = vsel %vm1029, %v1452, 0
      %1459 = vmatprep.subr.bf16.mxu0 0
      %1460 = vmatpush1.bf16.xpose.msra.mxu0 %v1457
      %1461 = vmatprep.subr.bf16.mxu0 0
      %1462 = vmatpush1.bf16.xpose.msra.mxu0 0
      %1463 = vmatprep.subr.bf16.mxu0 0
      %1464 = vmatpush1.bf16.xpose.msra.mxu0 0
      %1465 = vmatprep.subr.bf16.mxu0 0
      %1466 = vmatpush1.bf16.xpose.msra.mxu0 0
      %1467 = vmatprep.subr.bf16.mxu0 0
      %1468 = vmatpush1.bf16.xpose.msra.mxu0 0
      %1469 = vmatprep.subr.bf16.mxu0 0
      %1470 = vmatpush1.bf16.xpose.msra.mxu0 0
      %1471 = vmatprep.subr.bf16.mxu0 0
      %1472 = vmatpush1.bf16.xpose.msra.mxu0 0
      %1473 = vmatprep.subr.bf16.mxu0 0
      %1474 = vmatpush1.bf16.xpose.msra.mxu0 0
      %1475 = vmatprep.subr.bf16.mxu0 0
      %1476 = vmatpush1.bf16.xpose.msra.mxu0 0
      %1477 = vmatprep.subr.bf16.mxu0 0
      %1478 = vmatpush1.bf16.xpose.msra.mxu0 0
      %1479 = vmatprep.subr.bf16.mxu0 0
      %1480 = vmatpush1.bf16.xpose.msra.mxu0 0
      %1481 = vmatprep.subr.bf16.mxu0 0
      %1482 = vmatpush1.bf16.xpose.msra.mxu0 0
      %1483 = vmatprep.subr.bf16.mxu0 0
      %1484 = vmatpush1.bf16.xpose.msra.mxu0 0
      %1485 = vmatprep.subr.bf16.mxu0 0
      %1486 = vmatpush1.bf16.xpose.msra.mxu0 0
      %1487 = vmatprep.subr.bf16.mxu0 0
      %1488 = vmatpush1.bf16.xpose.msra.mxu0 0
      %1489 = vmatprep.subr.bf16.mxu0 0
      %1490 = vmatpush1.bf16.xpose.msra.mxu0 0
      %1491 = vmatprep.mubr.bf16.mxu0 0
      %1492 = vmatmul.mubr.bf16.gmra.mrb[0].mxu0 %v1454
      %v1493 = vpop.f32.mrb[0].mxu0
      %v1494 = vadd.f32 0.0, %v1493
      %v1495 = vpop.f32.mrb[0].mxu0
      %v1496 = vpop.f32.mrb[0].mxu0
      %v1497 = vpop.f32.mrb[0].mxu0
      %1498 = vdwg.mxu0
      %1500 = vrot.lane.b32.xlu0 %v1018, 120
      %v1501 = vpop.permute.xlu0 %1500
      %1503 = vrot.lane.b32.xlu0 %v1022, 120
      %v1504 = vpop.permute.xlu0 %1503
      %v1506 = vsel %vm1029, %v1501, 0
      %v1509 = vsel %vm1029, %v1504, 0
      %1511 = vmatprep.subr.bf16.mxu0 0
      %1512 = vmatpush1.bf16.xpose.msra.mxu0 %v1509
      %1513 = vmatprep.subr.bf16.mxu0 0
      %1514 = vmatpush1.bf16.xpose.msra.mxu0 0
      %1515 = vmatprep.subr.bf16.mxu0 0
      %1516 = vmatpush1.bf16.xpose.msra.mxu0 0
      %1517 = vmatprep.subr.bf16.mxu0 0
      %1518 = vmatpush1.bf16.xpose.msra.mxu0 0
      %1519 = vmatprep.subr.bf16.mxu0 0
      %1520 = vmatpush1.bf16.xpose.msra.mxu0 0
      %1521 = vmatprep.subr.bf16.mxu0 0
      %1522 = vmatpush1.bf16.xpose.msra.mxu0 0
      %1523 = vmatprep.subr.bf16.mxu0 0
      %1524 = vmatpush1.bf16.xpose.msra.mxu0 0
      %1525 = vmatprep.subr.bf16.mxu0 0
      %1526 = vmatpush1.bf16.xpose.msra.mxu0 0
      %1527 = vmatprep.subr.bf16.mxu0 0
      %1528 = vmatpush1.bf16.xpose.msra.mxu0 0
      %1529 = vmatprep.subr.bf16.mxu0 0
      %1530 = vmatpush1.bf16.xpose.msra.mxu0 0
      %1531 = vmatprep.subr.bf16.mxu0 0
      %1532 = vmatpush1.bf16.xpose.msra.mxu0 0
      %1533 = vmatprep.subr.bf16.mxu0 0
      %1534 = vmatpush1.bf16.xpose.msra.mxu0 0
      %1535 = vmatprep.subr.bf16.mxu0 0
      %1536 = vmatpush1.bf16.xpose.msra.mxu0 0
      %1537 = vmatprep.subr.bf16.mxu0 0
      %1538 = vmatpush1.bf16.xpose.msra.mxu0 0
      %1539 = vmatprep.subr.bf16.mxu0 0
      %1540 = vmatpush1.bf16.xpose.msra.mxu0 0
      %1541 = vmatprep.subr.bf16.mxu0 0
      %1542 = vmatpush1.bf16.xpose.msra.mxu0 0
      %1543 = vmatprep.mubr.bf16.mxu0 0
      %1544 = vmatmul.mubr.bf16.gmra.mrb[0].mxu0 %v1506
      %v1545 = vpop.f32.mrb[0].mxu0
      %v1546 = vadd.f32 0.0, %v1545
      %v1547 = vpop.f32.mrb[0].mxu0
      %v1548 = vpop.f32.mrb[0].mxu0
      %v1549 = vpop.f32.mrb[0].mxu0
      %1550 = vdwg.mxu0
      %1552 = vrot.lane.b32.xlu0 %v1019, 120
      %v1553 = vpop.permute.xlu0 %1552
      %1555 = vrot.lane.b32.xlu0 %v1023, 120
      %v1556 = vpop.permute.xlu0 %1555
      %v1558 = vsel %vm1029, %v1553, 0
      %v1561 = vsel %vm1029, %v1556, 0
      %1563 = vmatprep.subr.bf16.mxu0 0
      %1564 = vmatpush1.bf16.xpose.msra.mxu0 %v1561
      %1565 = vmatprep.subr.bf16.mxu0 0
      %1566 = vmatpush1.bf16.xpose.msra.mxu0 0
      %1567 = vmatprep.subr.bf16.mxu0 0
      %1568 = vmatpush1.bf16.xpose.msra.mxu0 0
      %1569 = vmatprep.subr.bf16.mxu0 0
      %1570 = vmatpush1.bf16.xpose.msra.mxu0 0
      %1571 = vmatprep.subr.bf16.mxu0 0
      %1572 = vmatpush1.bf16.xpose.msra.mxu0 0
      %1573 = vmatprep.subr.bf16.mxu0 0
      %1574 = vmatpush1.bf16.xpose.msra.mxu0 0
      %1575 = vmatprep.subr.bf16.mxu0 0
      %1576 = vmatpush1.bf16.xpose.msra.mxu0 0
      %1577 = vmatprep.subr.bf16.mxu0 0
      %1578 = vmatpush1.bf16.xpose.msra.mxu0 0
      %1579 = vmatprep.subr.bf16.mxu0 0
      %1580 = vmatpush1.bf16.xpose.msra.mxu0 0
      %1581 = vmatprep.subr.bf16.mxu0 0
      %1582 = vmatpush1.bf16.xpose.msra.mxu0 0
      %1583 = vmatprep.subr.bf16.mxu0 0
      %1584 = vmatpush1.bf16.xpose.msra.mxu0 0
      %1585 = vmatprep.subr.bf16.mxu0 0
      %1586 = vmatpush1.bf16.xpose.msra.mxu0 0
      %1587 = vmatprep.subr.bf16.mxu0 0
      %1588 = vmatpush1.bf16.xpose.msra.mxu0 0
      %1589 = vmatprep.subr.bf16.mxu0 0
      %1590 = vmatpush1.bf16.xpose.msra.mxu0 0
      %1591 = vmatprep.subr.bf16.mxu0 0
      %1592 = vmatpush1.bf16.xpose.msra.mxu0 0
      %1593 = vmatprep.subr.bf16.mxu0 0
      %1594 = vmatpush1.bf16.xpose.msra.mxu0 0
      %1595 = vmatprep.mubr.bf16.mxu0 0
      %1596 = vmatmul.mubr.bf16.gmra.mrb[0].mxu0 %v1558
      %v1597 = vpop.f32.mrb[0].mxu0
      %v1598 = vadd.f32 0.0, %v1597
      %v1599 = vpop.f32.mrb[0].mxu0
      %v1600 = vpop.f32.mrb[0].mxu0
      %v1601 = vpop.f32.mrb[0].mxu0
      %1602 = vdwg.mxu0
      %1604 = vrot.lane.b32.xlu0 %v1020, 120
      %v1605 = vpop.permute.xlu0 %1604
      %1607 = vrot.lane.b32.xlu0 %v1024, 120
      %v1608 = vpop.permute.xlu0 %1607
      %v1610 = vsel %vm1029, %v1605, 0
      %v1613 = vsel %vm1029, %v1608, 0
      %1615 = vmatprep.subr.bf16.mxu0 0
      %1616 = vmatpush1.bf16.xpose.msra.mxu0 %v1613
      %1617 = vmatprep.subr.bf16.mxu0 0
      %1618 = vmatpush1.bf16.xpose.msra.mxu0 0
      %1619 = vmatprep.subr.bf16.mxu0 0
      %1620 = vmatpush1.bf16.xpose.msra.mxu0 0
      %1621 = vmatprep.subr.bf16.mxu0 0
      %1622 = vmatpush1.bf16.xpose.msra.mxu0 0
      %1623 = vmatprep.subr.bf16.mxu0 0
      %1624 = vmatpush1.bf16.xpose.msra.mxu0 0
      %1625 = vmatprep.subr.bf16.mxu0 0
      %1626 = vmatpush1.bf16.xpose.msra.mxu0 0
      %1627 = vmatprep.subr.bf16.mxu0 0
      %1628 = vmatpush1.bf16.xpose.msra.mxu0 0
      %1629 = vmatprep.subr.bf16.mxu0 0
      %1630 = vmatpush1.bf16.xpose.msra.mxu0 0
      %1631 = vmatprep.subr.bf16.mxu0 0
      %1632 = vmatpush1.bf16.xpose.msra.mxu0 0
      %1633 = vmatprep.subr.bf16.mxu0 0
      %1634 = vmatpush1.bf16.xpose.msra.mxu0 0
      %1635 = vmatprep.subr.bf16.mxu0 0
      %1636 = vmatpush1.bf16.xpose.msra.mxu0 0
      %1637 = vmatprep.subr.bf16.mxu0 0
      %1638 = vmatpush1.bf16.xpose.msra.mxu0 0
      %1639 = vmatprep.subr.bf16.mxu0 0
      %1640 = vmatpush1.bf16.xpose.msra.mxu0 0
      %1641 = vmatprep.subr.bf16.mxu0 0
      %1642 = vmatpush1.bf16.xpose.msra.mxu0 0
      %1643 = vmatprep.subr.bf16.mxu0 0
      %1644 = vmatpush1.bf16.xpose.msra.mxu0 0
      %1645 = vmatprep.subr.bf16.mxu0 0
      %1646 = vmatpush1.bf16.xpose.msra.mxu0 0
      %1647 = vmatprep.mubr.bf16.mxu0 0
      %1648 = vmatmul.mubr.bf16.gmra.mrb[0].mxu0 %v1610
      %v1649 = vpop.f32.mrb[0].mxu0
      %v1650 = vadd.f32 0.0, %v1649
      %v1651 = vpop.f32.mrb[0].mxu0
      %v1652 = vpop.f32.mrb[0].mxu0
      %v1653 = vpop.f32.mrb[0].mxu0
      %1654 = vdwg.mxu0
      %v1655 = vsel %vm1029, %v1494, -inf
      %1656 = vmax.xlane.f32.xlu0 %v1655
      %v1657 = vpop.xlane.xlu0 %1656
      %v1658 = vsel %vm1029, %v1546, -inf
      %1659 = vmax.xlane.f32.xlu0 %v1658
      %v1660 = vpop.xlane.xlu0 %1659
      %v1661 = vsel %vm1029, %v1598, -inf
      %1662 = vmax.xlane.f32.xlu0 %v1661
      %v1663 = vpop.xlane.xlu0 %1662
      %v1664 = vsel %vm1029, %v1650, -inf
      %1665 = vmax.xlane.f32.xlu0 %v1664
      %v1666 = vpop.xlane.xlu0 %1665
      %v1667 = vsub.f32 %v1494, %v1657
      %v1668 = vsub.f32 %v1546, %v1660
      %v1669 = vsub.f32 %v1598, %v1663
      %v1670 = vsub.f32 %v1650, %v1666
      %v1671 = vmul.f32 %v1667, 1.442695
      %v1672 = vpow.pop %v1671
      %v1673 = vmul.f32 %v1668, 1.442695
      %v1674 = vpow.pop %v1673
      %v1675 = vmul.f32 %v1669, 1.442695
      %v1676 = vpow.pop %v1675
      %v1677 = vmul.f32 %v1670, 1.442695
      %v1678 = vpow.pop %v1677
      %v1679 = vsel %vm1029, %v1672, 0.0
      %1680 = vadd.xlane.f32.xlu0 %v1679
      %v1681 = vpop.xlane.xlu0 %1680
      %v1682 = vsel %vm1029, %v1674, 0.0
      %1683 = vadd.xlane.f32.xlu0 %v1682
      %v1684 = vpop.xlane.xlu0 %1683
      %v1685 = vsel %vm1029, %v1676, 0.0
      %1686 = vadd.xlane.f32.xlu0 %v1685
      %v1687 = vpop.xlane.xlu0 %1686
      %v1688 = vsel %vm1029, %v1678, 0.0
      %1689 = vadd.xlane.f32.xlu0 %v1688
      %v1690 = vpop.xlane.xlu0 %1689
      %v1691 = vrcp.pop %v1681
      %v1692 = vmul.f32 %v1672, %v1691
      %v1693 = vrcp.pop %v1684
      %v1694 = vmul.f32 %v1674, %v1693
      %v1695 = vrcp.pop %v1687
      %v1696 = vmul.f32 %v1676, %v1695
      %v1697 = vrcp.pop %v1690
      %v1698 = vmul.f32 %v1678, %v1697
      %v1699 = vpack.c.bf16 %v1692, %v1692
      %v1700 = vpack.c.bf16 %v1694, %v1694
      %v1701 = vpack.c.bf16 %v1696, %v1696
      %v1702 = vpack.c.bf16 %v1698, %v1698
      %1704 = vrot.lane.b32.xlu0 %v1025, 120
      %v1705 = vpop.permute.xlu0 %1704
      %v1707 = vsel %vm1029, %v1699, 0
      %v1710 = vsel %vm1265, %v1705, 0
      %1712 = vmatprep.subr.bf16.mxu0 0
      %1713 = vmatpush1.bf16.msra.mxu0 %v1710
      %1714 = vmatprep.subr.bf16.mxu0 0
      %1715 = vmatpush1.bf16.msra.mxu0 0
      %1716 = vmatprep.subr.bf16.mxu0 0
      %1717 = vmatpush1.bf16.msra.mxu0 0
      %1718 = vmatprep.subr.bf16.mxu0 0
      %1719 = vmatpush1.bf16.msra.mxu0 0
      %1720 = vmatprep.subr.bf16.mxu0 0
      %1721 = vmatpush1.bf16.msra.mxu0 0
      %1722 = vmatprep.subr.bf16.mxu0 0
      %1723 = vmatpush1.bf16.msra.mxu0 0
      %1724 = vmatprep.subr.bf16.mxu0 0
      %1725 = vmatpush1.bf16.msra.mxu0 0
      %1726 = vmatprep.subr.bf16.mxu0 0
      %1727 = vmatpush1.bf16.msra.mxu0 0
      %1728 = vmatprep.subr.bf16.mxu0 0
      %1729 = vmatpush1.bf16.msra.mxu0 0
      %1730 = vmatprep.subr.bf16.mxu0 0
      %1731 = vmatpush1.bf16.msra.mxu0 0
      %1732 = vmatprep.subr.bf16.mxu0 0
      %1733 = vmatpush1.bf16.msra.mxu0 0
      %1734 = vmatprep.subr.bf16.mxu0 0
      %1735 = vmatpush1.bf16.msra.mxu0 0
      %1736 = vmatprep.subr.bf16.mxu0 0
      %1737 = vmatpush1.bf16.msra.mxu0 0
      %1738 = vmatprep.subr.bf16.mxu0 0
      %1739 = vmatpush1.bf16.msra.mxu0 0
      %1740 = vmatprep.subr.bf16.mxu0 0
      %1741 = vmatpush1.bf16.msra.mxu0 0
      %1742 = vmatprep.subr.bf16.mxu0 0
      %1743 = vmatpush1.bf16.msra.mxu0 0
      %1744 = vmatprep.mubr.bf16.mxu0 0
      %1745 = vmatmul.mubr.bf16.gmra.mrb[0].mxu0 %v1707
      %v1746 = vpop.f32.mrb[0].mxu0
      %v1747 = vadd.f32 0.0, %v1746
      %v1748 = vpop.f32.mrb[0].mxu0
      %v1749 = vpop.f32.mrb[0].mxu0
      %v1750 = vpop.f32.mrb[0].mxu0
      %1751 = vdwg.mxu0
      %1753 = vrot.lane.b32.xlu0 %v1026, 120
      %v1754 = vpop.permute.xlu0 %1753
      %v1756 = vsel %vm1029, %v1700, 0
      %v1759 = vsel %vm1265, %v1754, 0
      %1761 = vmatprep.subr.bf16.mxu0 0
      %1762 = vmatpush1.bf16.msra.mxu0 %v1759
      %1763 = vmatprep.subr.bf16.mxu0 0
      %1764 = vmatpush1.bf16.msra.mxu0 0
      %1765 = vmatprep.subr.bf16.mxu0 0
      %1766 = vmatpush1.bf16.msra.mxu0 0
      %1767 = vmatprep.subr.bf16.mxu0 0
      %1768 = vmatpush1.bf16.msra.mxu0 0
      %1769 = vmatprep.subr.bf16.mxu0 0
      %1770 = vmatpush1.bf16.msra.mxu0 0
      %1771 = vmatprep.subr.bf16.mxu0 0
      %1772 = vmatpush1.bf16.msra.mxu0 0
      %1773 = vmatprep.subr.bf16.mxu0 0
      %1774 = vmatpush1.bf16.msra.mxu0 0
      %1775 = vmatprep.subr.bf16.mxu0 0
      %1776 = vmatpush1.bf16.msra.mxu0 0
      %1777 = vmatprep.subr.bf16.mxu0 0
      %1778 = vmatpush1.bf16.msra.mxu0 0
      %1779 = vmatprep.subr.bf16.mxu0 0
      %1780 = vmatpush1.bf16.msra.mxu0 0
      %1781 = vmatprep.subr.bf16.mxu0 0
      %1782 = vmatpush1.bf16.msra.mxu0 0
      %1783 = vmatprep.subr.bf16.mxu0 0
      %1784 = vmatpush1.bf16.msra.mxu0 0
      %1785 = vmatprep.subr.bf16.mxu0 0
      %1786 = vmatpush1.bf16.msra.mxu0 0
      %1787 = vmatprep.subr.bf16.mxu0 0
      %1788 = vmatpush1.bf16.msra.mxu0 0
      %1789 = vmatprep.subr.bf16.mxu0 0
      %1790 = vmatpush1.bf16.msra.mxu0 0
      %1791 = vmatprep.subr.bf16.mxu0 0
      %1792 = vmatpush1.bf16.msra.mxu0 0
      %1793 = vmatprep.mubr.bf16.mxu0 0
      %1794 = vmatmul.mubr.bf16.gmra.mrb[0].mxu0 %v1756
      %v1795 = vpop.f32.mrb[0].mxu0
      %v1796 = vadd.f32 0.0, %v1795
      %v1797 = vpop.f32.mrb[0].mxu0
      %v1798 = vpop.f32.mrb[0].mxu0
      %v1799 = vpop.f32.mrb[0].mxu0
      %1800 = vdwg.mxu0
      %1802 = vrot.lane.b32.xlu0 %v1027, 120
      %v1803 = vpop.permute.xlu0 %1802
      %v1805 = vsel %vm1029, %v1701, 0
      %v1808 = vsel %vm1265, %v1803, 0
      %1810 = vmatprep.subr.bf16.mxu0 0
      %1811 = vmatpush1.bf16.msra.mxu0 %v1808
      %1812 = vmatprep.subr.bf16.mxu0 0
      %1813 = vmatpush1.bf16.msra.mxu0 0
      %1814 = vmatprep.subr.bf16.mxu0 0
      %1815 = vmatpush1.bf16.msra.mxu0 0
      %1816 = vmatprep.subr.bf16.mxu0 0
      %1817 = vmatpush1.bf16.msra.mxu0 0
      %1818 = vmatprep.subr.bf16.mxu0 0
      %1819 = vmatpush1.bf16.msra.mxu0 0
      %1820 = vmatprep.subr.bf16.mxu0 0
      %1821 = vmatpush1.bf16.msra.mxu0 0
      %1822 = vmatprep.subr.bf16.mxu0 0
      %1823 = vmatpush1.bf16.msra.mxu0 0
      %1824 = vmatprep.subr.bf16.mxu0 0
      %1825 = vmatpush1.bf16.msra.mxu0 0
      %1826 = vmatprep.subr.bf16.mxu0 0
      %1827 = vmatpush1.bf16.msra.mxu0 0
      %1828 = vmatprep.subr.bf16.mxu0 0
      %1829 = vmatpush1.bf16.msra.mxu0 0
      %1830 = vmatprep.subr.bf16.mxu0 0
      %1831 = vmatpush1.bf16.msra.mxu0 0
      %1832 = vmatprep.subr.bf16.mxu0 0
      %1833 = vmatpush1.bf16.msra.mxu0 0
      %1834 = vmatprep.subr.bf16.mxu0 0
      %1835 = vmatpush1.bf16.msra.mxu0 0
      %1836 = vmatprep.subr.bf16.mxu0 0
      %1837 = vmatpush1.bf16.msra.mxu0 0
      %1838 = vmatprep.subr.bf16.mxu0 0
      %1839 = vmatpush1.bf16.msra.mxu0 0
      %1840 = vmatprep.subr.bf16.mxu0 0
      %1841 = vmatpush1.bf16.msra.mxu0 0
      %1842 = vmatprep.mubr.bf16.mxu0 0
      %1843 = vmatmul.mubr.bf16.gmra.mrb[0].mxu0 %v1805
      %v1844 = vpop.f32.mrb[0].mxu0
      %v1845 = vadd.f32 0.0, %v1844
      %v1846 = vpop.f32.mrb[0].mxu0
      %v1847 = vpop.f32.mrb[0].mxu0
      %v1848 = vpop.f32.mrb[0].mxu0
      %1849 = vdwg.mxu0
      %1851 = vrot.lane.b32.xlu0 %v1028, 120
      %v1852 = vpop.permute.xlu0 %1851
      %v1854 = vsel %vm1029, %v1702, 0
      %v1857 = vsel %vm1265, %v1852, 0
      %1859 = vmatprep.subr.bf16.mxu0 0
      %1860 = vmatpush1.bf16.msra.mxu0 %v1857
      %1861 = vmatprep.subr.bf16.mxu0 0
      %1862 = vmatpush1.bf16.msra.mxu0 0
      %1863 = vmatprep.subr.bf16.mxu0 0
      %1864 = vmatpush1.bf16.msra.mxu0 0
      %1865 = vmatprep.subr.bf16.mxu0 0
      %1866 = vmatpush1.bf16.msra.mxu0 0
      %1867 = vmatprep.subr.bf16.mxu0 0
      %1868 = vmatpush1.bf16.msra.mxu0 0
      %1869 = vmatprep.subr.bf16.mxu0 0
      %1870 = vmatpush1.bf16.msra.mxu0 0
      %1871 = vmatprep.subr.bf16.mxu0 0
      %1872 = vmatpush1.bf16.msra.mxu0 0
      %1873 = vmatprep.subr.bf16.mxu0 0
      %1874 = vmatpush1.bf16.msra.mxu0 0
      %1875 = vmatprep.subr.bf16.mxu0 0
      %1876 = vmatpush1.bf16.msra.mxu0 0
      %1877 = vmatprep.subr.bf16.mxu0 0
      %1878 = vmatpush1.bf16.msra.mxu0 0
      %1879 = vmatprep.subr.bf16.mxu0 0
      %1880 = vmatpush1.bf16.msra.mxu0 0
      %1881 = vmatprep.subr.bf16.mxu0 0
      %1882 = vmatpush1.bf16.msra.mxu0 0
      %1883 = vmatprep.subr.bf16.mxu0 0
      %1884 = vmatpush1.bf16.msra.mxu0 0
      %1885 = vmatprep.subr.bf16.mxu0 0
      %1886 = vmatpush1.bf16.msra.mxu0 0
      %1887 = vmatprep.subr.bf16.mxu0 0
      %1888 = vmatpush1.bf16.msra.mxu0 0
      %1889 = vmatprep.subr.bf16.mxu0 0
      %1890 = vmatpush1.bf16.msra.mxu0 0
      %1891 = vmatprep.mubr.bf16.mxu0 0
      %1892 = vmatmul.mubr.bf16.gmra.mrb[0].mxu0 %v1854
      %v1893 = vpop.f32.mrb[0].mxu0
      %v1894 = vadd.f32 0.0, %v1893
      %v1895 = vpop.f32.mrb[0].mxu0
      %v1896 = vpop.f32.mrb[0].mxu0
      %v1897 = vpop.f32.mrb[0].mxu0
      %1898 = vdwg.mxu0
      %1899 = vrot.lane.b32.xlu0 %v1017, 112
      %v1900 = vpop.permute.xlu0 %1899
      %1901 = vrot.lane.b32.xlu0 %v1021, 112
      %v1902 = vpop.permute.xlu0 %1901
      %v1904 = vsel %vm1029, %v1900, 0
      %v1907 = vsel %vm1029, %v1902, 0
      %1909 = vmatprep.subr.bf16.mxu0 0
      %1910 = vmatpush1.bf16.xpose.msra.mxu0 %v1907
      %1911 = vmatprep.subr.bf16.mxu0 0
      %1912 = vmatpush1.bf16.xpose.msra.mxu0 0
      %1913 = vmatprep.subr.bf16.mxu0 0
      %1914 = vmatpush1.bf16.xpose.msra.mxu0 0
      %1915 = vmatprep.subr.bf16.mxu0 0
      %1916 = vmatpush1.bf16.xpose.msra.mxu0 0
      %1917 = vmatprep.subr.bf16.mxu0 0
      %1918 = vmatpush1.bf16.xpose.msra.mxu0 0
      %1919 = vmatprep.subr.bf16.mxu0 0
      %1920 = vmatpush1.bf16.xpose.msra.mxu0 0
      %1921 = vmatprep.subr.bf16.mxu0 0
      %1922 = vmatpush1.bf16.xpose.msra.mxu0 0
      %1923 = vmatprep.subr.bf16.mxu0 0
      %1924 = vmatpush1.bf16.xpose.msra.mxu0 0
      %1925 = vmatprep.subr.bf16.mxu0 0
      %1926 = vmatpush1.bf16.xpose.msra.mxu0 0
      %1927 = vmatprep.subr.bf16.mxu0 0
      %1928 = vmatpush1.bf16.xpose.msra.mxu0 0
      %1929 = vmatprep.subr.bf16.mxu0 0
      %1930 = vmatpush1.bf16.xpose.msra.mxu0 0
      %1931 = vmatprep.subr.bf16.mxu0 0
      %1932 = vmatpush1.bf16.xpose.msra.mxu0 0
      %1933 = vmatprep.subr.bf16.mxu0 0
      %1934 = vmatpush1.bf16.xpose.msra.mxu0 0
      %1935 = vmatprep.subr.bf16.mxu0 0
      %1936 = vmatpush1.bf16.xpose.msra.mxu0 0
      %1937 = vmatprep.subr.bf16.mxu0 0
      %1938 = vmatpush1.bf16.xpose.msra.mxu0 0
      %1939 = vmatprep.subr.bf16.mxu0 0
      %1940 = vmatpush1.bf16.xpose.msra.mxu0 0
      %1941 = vmatprep.mubr.bf16.mxu0 0
      %1942 = vmatmul.mubr.bf16.gmra.mrb[0].mxu0 %v1904
      %v1943 = vpop.f32.mrb[0].mxu0
      %v1944 = vadd.f32 0.0, %v1943
      %v1945 = vpop.f32.mrb[0].mxu0
      %v1946 = vpop.f32.mrb[0].mxu0
      %v1947 = vpop.f32.mrb[0].mxu0
      %1948 = vdwg.mxu0
      %1949 = vrot.lane.b32.xlu0 %v1018, 112
      %v1950 = vpop.permute.xlu0 %1949
      %1951 = vrot.lane.b32.xlu0 %v1022, 112
      %v1952 = vpop.permute.xlu0 %1951
      %v1954 = vsel %vm1029, %v1950, 0
      %v1957 = vsel %vm1029, %v1952, 0
      %1959 = vmatprep.subr.bf16.mxu0 0
      %1960 = vmatpush1.bf16.xpose.msra.mxu0 %v1957
      %1961 = vmatprep.subr.bf16.mxu0 0
      %1962 = vmatpush1.bf16.xpose.msra.mxu0 0
      %1963 = vmatprep.subr.bf16.mxu0 0
      %1964 = vmatpush1.bf16.xpose.msra.mxu0 0
      %1965 = vmatprep.subr.bf16.mxu0 0
      %1966 = vmatpush1.bf16.xpose.msra.mxu0 0
      %1967 = vmatprep.subr.bf16.mxu0 0
      %1968 = vmatpush1.bf16.xpose.msra.mxu0 0
      %1969 = vmatprep.subr.bf16.mxu0 0
      %1970 = vmatpush1.bf16.xpose.msra.mxu0 0
      %1971 = vmatprep.subr.bf16.mxu0 0
      %1972 = vmatpush1.bf16.xpose.msra.mxu0 0
      %1973 = vmatprep.subr.bf16.mxu0 0
      %1974 = vmatpush1.bf16.xpose.msra.mxu0 0
      %1975 = vmatprep.subr.bf16.mxu0 0
      %1976 = vmatpush1.bf16.xpose.msra.mxu0 0
      %1977 = vmatprep.subr.bf16.mxu0 0
      %1978 = vmatpush1.bf16.xpose.msra.mxu0 0
      %1979 = vmatprep.subr.bf16.mxu0 0
      %1980 = vmatpush1.bf16.xpose.msra.mxu0 0
      %1981 = vmatprep.subr.bf16.mxu0 0
      %1982 = vmatpush1.bf16.xpose.msra.mxu0 0
      %1983 = vmatprep.subr.bf16.mxu0 0
      %1984 = vmatpush1.bf16.xpose.msra.mxu0 0
      %1985 = vmatprep.subr.bf16.mxu0 0
      %1986 = vmatpush1.bf16.xpose.msra.mxu0 0
      %1987 = vmatprep.subr.bf16.mxu0 0
      %1988 = vmatpush1.bf16.xpose.msra.mxu0 0
      %1989 = vmatprep.subr.bf16.mxu0 0
      %1990 = vmatpush1.bf16.xpose.msra.mxu0 0
      %1991 = vmatprep.mubr.bf16.mxu0 0
      %1992 = vmatmul.mubr.bf16.gmra.mrb[0].mxu0 %v1954
      %v1993 = vpop.f32.mrb[0].mxu0
      %v1994 = vadd.f32 0.0, %v1993
      %v1995 = vpop.f32.mrb[0].mxu0
      %v1996 = vpop.f32.mrb[0].mxu0
      %v1997 = vpop.f32.mrb[0].mxu0
      %1998 = vdwg.mxu0
      %1999 = vrot.lane.b32.xlu0 %v1019, 112
      %v2000 = vpop.permute.xlu0 %1999
      %2001 = vrot.lane.b32.xlu0 %v1023, 112
      %v2002 = vpop.permute.xlu0 %2001
      %v2004 = vsel %vm1029, %v2000, 0
      %v2007 = vsel %vm1029, %v2002, 0
      %2009 = vmatprep.subr.bf16.mxu0 0
      %2010 = vmatpush1.bf16.xpose.msra.mxu0 %v2007
      %2011 = vmatprep.subr.bf16.mxu0 0
      %2012 = vmatpush1.bf16.xpose.msra.mxu0 0
      %2013 = vmatprep.subr.bf16.mxu0 0
      %2014 = vmatpush1.bf16.xpose.msra.mxu0 0
      %2015 = vmatprep.subr.bf16.mxu0 0
      %2016 = vmatpush1.bf16.xpose.msra.mxu0 0
      %2017 = vmatprep.subr.bf16.mxu0 0
      %2018 = vmatpush1.bf16.xpose.msra.mxu0 0
      %2019 = vmatprep.subr.bf16.mxu0 0
      %2020 = vmatpush1.bf16.xpose.msra.mxu0 0
      %2021 = vmatprep.subr.bf16.mxu0 0
      %2022 = vmatpush1.bf16.xpose.msra.mxu0 0
      %2023 = vmatprep.subr.bf16.mxu0 0
      %2024 = vmatpush1.bf16.xpose.msra.mxu0 0
      %2025 = vmatprep.subr.bf16.mxu0 0
      %2026 = vmatpush1.bf16.xpose.msra.mxu0 0
      %2027 = vmatprep.subr.bf16.mxu0 0
      %2028 = vmatpush1.bf16.xpose.msra.mxu0 0
      %2029 = vmatprep.subr.bf16.mxu0 0
      %2030 = vmatpush1.bf16.xpose.msra.mxu0 0
      %2031 = vmatprep.subr.bf16.mxu0 0
      %2032 = vmatpush1.bf16.xpose.msra.mxu0 0
      %2033 = vmatprep.subr.bf16.mxu0 0
      %2034 = vmatpush1.bf16.xpose.msra.mxu0 0
      %2035 = vmatprep.subr.bf16.mxu0 0
      %2036 = vmatpush1.bf16.xpose.msra.mxu0 0
      %2037 = vmatprep.subr.bf16.mxu0 0
      %2038 = vmatpush1.bf16.xpose.msra.mxu0 0
      %2039 = vmatprep.subr.bf16.mxu0 0
      %2040 = vmatpush1.bf16.xpose.msra.mxu0 0
      %2041 = vmatprep.mubr.bf16.mxu0 0
      %2042 = vmatmul.mubr.bf16.gmra.mrb[0].mxu0 %v2004
      %v2043 = vpop.f32.mrb[0].mxu0
      %v2044 = vadd.f32 0.0, %v2043
      %v2045 = vpop.f32.mrb[0].mxu0
      %v2046 = vpop.f32.mrb[0].mxu0
      %v2047 = vpop.f32.mrb[0].mxu0
      %2048 = vdwg.mxu0
      %2049 = vrot.lane.b32.xlu0 %v1020, 112
      %v2050 = vpop.permute.xlu0 %2049
      %2051 = vrot.lane.b32.xlu0 %v1024, 112
      %v2052 = vpop.permute.xlu0 %2051
      %v2054 = vsel %vm1029, %v2050, 0
      %v2057 = vsel %vm1029, %v2052, 0
      %2059 = vmatprep.subr.bf16.mxu0 0
      %2060 = vmatpush1.bf16.xpose.msra.mxu0 %v2057
      %2061 = vmatprep.subr.bf16.mxu0 0
      %2062 = vmatpush1.bf16.xpose.msra.mxu0 0
      %2063 = vmatprep.subr.bf16.mxu0 0
      %2064 = vmatpush1.bf16.xpose.msra.mxu0 0
      %2065 = vmatprep.subr.bf16.mxu0 0
      %2066 = vmatpush1.bf16.xpose.msra.mxu0 0
      %2067 = vmatprep.subr.bf16.mxu0 0
      %2068 = vmatpush1.bf16.xpose.msra.mxu0 0
      %2069 = vmatprep.subr.bf16.mxu0 0
      %2070 = vmatpush1.bf16.xpose.msra.mxu0 0
      %2071 = vmatprep.subr.bf16.mxu0 0
      %2072 = vmatpush1.bf16.xpose.msra.mxu0 0
      %2073 = vmatprep.subr.bf16.mxu0 0
      %2074 = vmatpush1.bf16.xpose.msra.mxu0 0
      %2075 = vmatprep.subr.bf16.mxu0 0
      %2076 = vmatpush1.bf16.xpose.msra.mxu0 0
      %2077 = vmatprep.subr.bf16.mxu0 0
      %2078 = vmatpush1.bf16.xpose.msra.mxu0 0
      %2079 = vmatprep.subr.bf16.mxu0 0
      %2080 = vmatpush1.bf16.xpose.msra.mxu0 0
      %2081 = vmatprep.subr.bf16.mxu0 0
      %2082 = vmatpush1.bf16.xpose.msra.mxu0 0
      %2083 = vmatprep.subr.bf16.mxu0 0
      %2084 = vmatpush1.bf16.xpose.msra.mxu0 0
      %2085 = vmatprep.subr.bf16.mxu0 0
      %2086 = vmatpush1.bf16.xpose.msra.mxu0 0
      %2087 = vmatprep.subr.bf16.mxu0 0
      %2088 = vmatpush1.bf16.xpose.msra.mxu0 0
      %2089 = vmatprep.subr.bf16.mxu0 0
      %2090 = vmatpush1.bf16.xpose.msra.mxu0 0
      %2091 = vmatprep.mubr.bf16.mxu0 0
      %2092 = vmatmul.mubr.bf16.gmra.mrb[0].mxu0 %v2054
      %v2093 = vpop.f32.mrb[0].mxu0
      %v2094 = vadd.f32 0.0, %v2093
      %v2095 = vpop.f32.mrb[0].mxu0
      %v2096 = vpop.f32.mrb[0].mxu0
      %v2097 = vpop.f32.mrb[0].mxu0
      %2098 = vdwg.mxu0
      %v2099 = vsel %vm1029, %v1944, -inf
      %2100 = vmax.xlane.f32.xlu0 %v2099
      %v2101 = vpop.xlane.xlu0 %2100
      %v2102 = vsel %vm1029, %v1994, -inf
      %2103 = vmax.xlane.f32.xlu0 %v2102
      %v2104 = vpop.xlane.xlu0 %2103
      %v2105 = vsel %vm1029, %v2044, -inf
      %2106 = vmax.xlane.f32.xlu0 %v2105
      %v2107 = vpop.xlane.xlu0 %2106
      %v2108 = vsel %vm1029, %v2094, -inf
      %2109 = vmax.xlane.f32.xlu0 %v2108
      %v2110 = vpop.xlane.xlu0 %2109
      %v2111 = vsub.f32 %v1944, %v2101
      %v2112 = vsub.f32 %v1994, %v2104
      %v2113 = vsub.f32 %v2044, %v2107
      %v2114 = vsub.f32 %v2094, %v2110
      %v2115 = vmul.f32 %v2111, 1.442695
      %v2116 = vpow.pop %v2115
      %v2117 = vmul.f32 %v2112, 1.442695
      %v2118 = vpow.pop %v2117
      %v2119 = vmul.f32 %v2113, 1.442695
      %v2120 = vpow.pop %v2119
      %v2121 = vmul.f32 %v2114, 1.442695
      %v2122 = vpow.pop %v2121
      %v2123 = vsel %vm1029, %v2116, 0.0
      %2124 = vadd.xlane.f32.xlu0 %v2123
      %v2125 = vpop.xlane.xlu0 %2124
      %v2126 = vsel %vm1029, %v2118, 0.0
      %2127 = vadd.xlane.f32.xlu0 %v2126
      %v2128 = vpop.xlane.xlu0 %2127
      %v2129 = vsel %vm1029, %v2120, 0.0
      %2130 = vadd.xlane.f32.xlu0 %v2129
      %v2131 = vpop.xlane.xlu0 %2130
      %v2132 = vsel %vm1029, %v2122, 0.0
      %2133 = vadd.xlane.f32.xlu0 %v2132
      %v2134 = vpop.xlane.xlu0 %2133
      %v2135 = vrcp.pop %v2125
      %v2136 = vmul.f32 %v2116, %v2135
      %v2137 = vrcp.pop %v2128
      %v2138 = vmul.f32 %v2118, %v2137
      %v2139 = vrcp.pop %v2131
      %v2140 = vmul.f32 %v2120, %v2139
      %v2141 = vrcp.pop %v2134
      %v2142 = vmul.f32 %v2122, %v2141
      %v2143 = vpack.c.bf16 %v2136, %v2136
      %v2144 = vpack.c.bf16 %v2138, %v2138
      %v2145 = vpack.c.bf16 %v2140, %v2140
      %v2146 = vpack.c.bf16 %v2142, %v2142
      %2147 = vrot.lane.b32.xlu0 %v1025, 112
      %v2148 = vpop.permute.xlu0 %2147
      %v2150 = vsel %vm1029, %v2143, 0
      %v2153 = vsel %vm1265, %v2148, 0
      %2155 = vmatprep.subr.bf16.mxu0 0
      %2156 = vmatpush1.bf16.msra.mxu0 %v2153
      %2157 = vmatprep.subr.bf16.mxu0 0
      %2158 = vmatpush1.bf16.msra.mxu0 0
      %2159 = vmatprep.subr.bf16.mxu0 0
      %2160 = vmatpush1.bf16.msra.mxu0 0
      %2161 = vmatprep.subr.bf16.mxu0 0
      %2162 = vmatpush1.bf16.msra.mxu0 0
      %2163 = vmatprep.subr.bf16.mxu0 0
      %2164 = vmatpush1.bf16.msra.mxu0 0
      %2165 = vmatprep.subr.bf16.mxu0 0
      %2166 = vmatpush1.bf16.msra.mxu0 0
      %2167 = vmatprep.subr.bf16.mxu0 0
      %2168 = vmatpush1.bf16.msra.mxu0 0
      %2169 = vmatprep.subr.bf16.mxu0 0
      %2170 = vmatpush1.bf16.msra.mxu0 0
      %2171 = vmatprep.subr.bf16.mxu0 0
      %2172 = vmatpush1.bf16.msra.mxu0 0
      %2173 = vmatprep.subr.bf16.mxu0 0
      %2174 = vmatpush1.bf16.msra.mxu0 0
      %2175 = vmatprep.subr.bf16.mxu0 0
      %2176 = vmatpush1.bf16.msra.mxu0 0
      %2177 = vmatprep.subr.bf16.mxu0 0
      %2178 = vmatpush1.bf16.msra.mxu0 0
      %2179 = vmatprep.subr.bf16.mxu0 0
      %2180 = vmatpush1.bf16.msra.mxu0 0
      %2181 = vmatprep.subr.bf16.mxu0 0
      %2182 = vmatpush1.bf16.msra.mxu0 0
      %2183 = vmatprep.subr.bf16.mxu0 0
      %2184 = vmatpush1.bf16.msra.mxu0 0
      %2185 = vmatprep.subr.bf16.mxu0 0
      %2186 = vmatpush1.bf16.msra.mxu0 0
      %2187 = vmatprep.mubr.bf16.mxu0 0
      %2188 = vmatmul.mubr.bf16.gmra.mrb[0].mxu0 %v2150
      %v2189 = vpop.f32.mrb[0].mxu0
      %v2190 = vadd.f32 0.0, %v2189
      %v2191 = vpop.f32.mrb[0].mxu0
      %v2192 = vpop.f32.mrb[0].mxu0
      %v2193 = vpop.f32.mrb[0].mxu0
      %2194 = vdwg.mxu0
      %2195 = vrot.lane.b32.xlu0 %v1026, 112
      %v2196 = vpop.permute.xlu0 %2195
      %v2198 = vsel %vm1029, %v2144, 0
      %v2201 = vsel %vm1265, %v2196, 0
      %2203 = vmatprep.subr.bf16.mxu0 0
      %2204 = vmatpush1.bf16.msra.mxu0 %v2201
      %2205 = vmatprep.subr.bf16.mxu0 0
      %2206 = vmatpush1.bf16.msra.mxu0 0
      %2207 = vmatprep.subr.bf16.mxu0 0
      %2208 = vmatpush1.bf16.msra.mxu0 0
      %2209 = vmatprep.subr.bf16.mxu0 0
      %2210 = vmatpush1.bf16.msra.mxu0 0
      %2211 = vmatprep.subr.bf16.mxu0 0
      %2212 = vmatpush1.bf16.msra.mxu0 0
      %2213 = vmatprep.subr.bf16.mxu0 0
      %2214 = vmatpush1.bf16.msra.mxu0 0
      %2215 = vmatprep.subr.bf16.mxu0 0
      %2216 = vmatpush1.bf16.msra.mxu0 0
      %2217 = vmatprep.subr.bf16.mxu0 0
      %2218 = vmatpush1.bf16.msra.mxu0 0
      %2219 = vmatprep.subr.bf16.mxu0 0
      %2220 = vmatpush1.bf16.msra.mxu0 0
      %2221 = vmatprep.subr.bf16.mxu0 0
      %2222 = vmatpush1.bf16.msra.mxu0 0
      %2223 = vmatprep.subr.bf16.mxu0 0
      %2224 = vmatpush1.bf16.msra.mxu0 0
      %2225 = vmatprep.subr.bf16.mxu0 0
      %2226 = vmatpush1.bf16.msra.mxu0 0
      %2227 = vmatprep.subr.bf16.mxu0 0
      %2228 = vmatpush1.bf16.msra.mxu0 0
      %2229 = vmatprep.subr.bf16.mxu0 0
      %2230 = vmatpush1.bf16.msra.mxu0 0
      %2231 = vmatprep.subr.bf16.mxu0 0
      %2232 = vmatpush1.bf16.msra.mxu0 0
      %2233 = vmatprep.subr.bf16.mxu0 0
      %2234 = vmatpush1.bf16.msra.mxu0 0
      %2235 = vmatprep.mubr.bf16.mxu0 0
      %2236 = vmatmul.mubr.bf16.gmra.mrb[0].mxu0 %v2198
      %v2237 = vpop.f32.mrb[0].mxu0
      %v2238 = vadd.f32 0.0, %v2237
      %v2239 = vpop.f32.mrb[0].mxu0
      %v2240 = vpop.f32.mrb[0].mxu0
      %v2241 = vpop.f32.mrb[0].mxu0
      %2242 = vdwg.mxu0
      %2243 = vrot.lane.b32.xlu0 %v1027, 112
      %v2244 = vpop.permute.xlu0 %2243
      %v2246 = vsel %vm1029, %v2145, 0
      %v2249 = vsel %vm1265, %v2244, 0
      %2251 = vmatprep.subr.bf16.mxu0 0
      %2252 = vmatpush1.bf16.msra.mxu0 %v2249
      %2253 = vmatprep.subr.bf16.mxu0 0
      %2254 = vmatpush1.bf16.msra.mxu0 0
      %2255 = vmatprep.subr.bf16.mxu0 0
      %2256 = vmatpush1.bf16.msra.mxu0 0
      %2257 = vmatprep.subr.bf16.mxu0 0
      %2258 = vmatpush1.bf16.msra.mxu0 0
      %2259 = vmatprep.subr.bf16.mxu0 0
      %2260 = vmatpush1.bf16.msra.mxu0 0
      %2261 = vmatprep.subr.bf16.mxu0 0
      %2262 = vmatpush1.bf16.msra.mxu0 0
      %2263 = vmatprep.subr.bf16.mxu0 0
      %2264 = vmatpush1.bf16.msra.mxu0 0
      %2265 = vmatprep.subr.bf16.mxu0 0
      %2266 = vmatpush1.bf16.msra.mxu0 0
      %2267 = vmatprep.subr.bf16.mxu0 0
      %2268 = vmatpush1.bf16.msra.mxu0 0
      %2269 = vmatprep.subr.bf16.mxu0 0
      %2270 = vmatpush1.bf16.msra.mxu0 0
      %2271 = vmatprep.subr.bf16.mxu0 0
      %2272 = vmatpush1.bf16.msra.mxu0 0
      %2273 = vmatprep.subr.bf16.mxu0 0
      %2274 = vmatpush1.bf16.msra.mxu0 0
      %2275 = vmatprep.subr.bf16.mxu0 0
      %2276 = vmatpush1.bf16.msra.mxu0 0
      %2277 = vmatprep.subr.bf16.mxu0 0
      %2278 = vmatpush1.bf16.msra.mxu0 0
      %2279 = vmatprep.subr.bf16.mxu0 0
      %2280 = vmatpush1.bf16.msra.mxu0 0
      %2281 = vmatprep.subr.bf16.mxu0 0
      %2282 = vmatpush1.bf16.msra.mxu0 0
      %2283 = vmatprep.mubr.bf16.mxu0 0
      %2284 = vmatmul.mubr.bf16.gmra.mrb[0].mxu0 %v2246
      %v2285 = vpop.f32.mrb[0].mxu0
      %v2286 = vadd.f32 0.0, %v2285
      %v2287 = vpop.f32.mrb[0].mxu0
      %v2288 = vpop.f32.mrb[0].mxu0
      %v2289 = vpop.f32.mrb[0].mxu0
      %2290 = vdwg.mxu0
      %2291 = vrot.lane.b32.xlu0 %v1028, 112
      %v2292 = vpop.permute.xlu0 %2291
      %v2294 = vsel %vm1029, %v2146, 0
      %v2297 = vsel %vm1265, %v2292, 0
      %2299 = vmatprep.subr.bf16.mxu0 0
      %2300 = vmatpush1.bf16.msra.mxu0 %v2297
      %2301 = vmatprep.subr.bf16.mxu0 0
      %2302 = vmatpush1.bf16.msra.mxu0 0
      %2303 = vmatprep.subr.bf16.mxu0 0
      %2304 = vmatpush1.bf16.msra.mxu0 0
      %2305 = vmatprep.subr.bf16.mxu0 0
      %2306 = vmatpush1.bf16.msra.mxu0 0
      %2307 = vmatprep.subr.bf16.mxu0 0
      %2308 = vmatpush1.bf16.msra.mxu0 0
      %2309 = vmatprep.subr.bf16.mxu0 0
      %2310 = vmatpush1.bf16.msra.mxu0 0
      %2311 = vmatprep.subr.bf16.mxu0 0
      %2312 = vmatpush1.bf16.msra.mxu0 0
      %2313 = vmatprep.subr.bf16.mxu0 0
      %2314 = vmatpush1.bf16.msra.mxu0 0
      %2315 = vmatprep.subr.bf16.mxu0 0
      %2316 = vmatpush1.bf16.msra.mxu0 0
      %2317 = vmatprep.subr.bf16.mxu0 0
      %2318 = vmatpush1.bf16.msra.mxu0 0
      %2319 = vmatprep.subr.bf16.mxu0 0
      %2320 = vmatpush1.bf16.msra.mxu0 0
      %2321 = vmatprep.subr.bf16.mxu0 0
      %2322 = vmatpush1.bf16.msra.mxu0 0
      %2323 = vmatprep.subr.bf16.mxu0 0
      %2324 = vmatpush1.bf16.msra.mxu0 0
      %2325 = vmatprep.subr.bf16.mxu0 0
      %2326 = vmatpush1.bf16.msra.mxu0 0
      %2327 = vmatprep.subr.bf16.mxu0 0
      %2328 = vmatpush1.bf16.msra.mxu0 0
      %2329 = vmatprep.subr.bf16.mxu0 0
      %2330 = vmatpush1.bf16.msra.mxu0 0
      %2331 = vmatprep.mubr.bf16.mxu0 0
      %2332 = vmatmul.mubr.bf16.gmra.mrb[0].mxu0 %v2294
      %v2333 = vpop.f32.mrb[0].mxu0
      %v2334 = vadd.f32 0.0, %v2333
      %v2335 = vpop.f32.mrb[0].mxu0
      %v2336 = vpop.f32.mrb[0].mxu0
      %v2337 = vpop.f32.mrb[0].mxu0
      %2338 = vdwg.mxu0
      %2339 = vrot.lane.b32.xlu0 %v1017, 104
      %v2340 = vpop.permute.xlu0 %2339
      %2341 = vrot.lane.b32.xlu0 %v1021, 104
      %v2342 = vpop.permute.xlu0 %2341
      %v2344 = vsel %vm1029, %v2340, 0
      %v2347 = vsel %vm1029, %v2342, 0
      %2349 = vmatprep.subr.bf16.mxu0 0
      %2350 = vmatpush1.bf16.xpose.msra.mxu0 %v2347
      %2351 = vmatprep.subr.bf16.mxu0 0
      %2352 = vmatpush1.bf16.xpose.msra.mxu0 0
      %2353 = vmatprep.subr.bf16.mxu0 0
      %2354 = vmatpush1.bf16.xpose.msra.mxu0 0
      %2355 = vmatprep.subr.bf16.mxu0 0
      %2356 = vmatpush1.bf16.xpose.msra.mxu0 0
      %2357 = vmatprep.subr.bf16.mxu0 0
      %2358 = vmatpush1.bf16.xpose.msra.mxu0 0
      %2359 = vmatprep.subr.bf16.mxu0 0
      %2360 = vmatpush1.bf16.xpose.msra.mxu0 0
      %2361 = vmatprep.subr.bf16.mxu0 0
      %2362 = vmatpush1.bf16.xpose.msra.mxu0 0
      %2363 = vmatprep.subr.bf16.mxu0 0
      %2364 = vmatpush1.bf16.xpose.msra.mxu0 0
      %2365 = vmatprep.subr.bf16.mxu0 0
      %2366 = vmatpush1.bf16.xpose.msra.mxu0 0
      %2367 = vmatprep.subr.bf16.mxu0 0
      %2368 = vmatpush1.bf16.xpose.msra.mxu0 0
      %2369 = vmatprep.subr.bf16.mxu0 0
      %2370 = vmatpush1.bf16.xpose.msra.mxu0 0
      %2371 = vmatprep.subr.bf16.mxu0 0
      %2372 = vmatpush1.bf16.xpose.msra.mxu0 0
      %2373 = vmatprep.subr.bf16.mxu0 0
      %2374 = vmatpush1.bf16.xpose.msra.mxu0 0
      %2375 = vmatprep.subr.bf16.mxu0 0
      %2376 = vmatpush1.bf16.xpose.msra.mxu0 0
      %2377 = vmatprep.subr.bf16.mxu0 0
      %2378 = vmatpush1.bf16.xpose.msra.mxu0 0
      %2379 = vmatprep.subr.bf16.mxu0 0
      %2380 = vmatpush1.bf16.xpose.msra.mxu0 0
      %2381 = vmatprep.mubr.bf16.mxu0 0
      %2382 = vmatmul.mubr.bf16.gmra.mrb[0].mxu0 %v2344
      %v2383 = vpop.f32.mrb[0].mxu0
      %v2384 = vadd.f32 0.0, %v2383
      %v2385 = vpop.f32.mrb[0].mxu0
      %v2386 = vpop.f32.mrb[0].mxu0
      %v2387 = vpop.f32.mrb[0].mxu0
      %2388 = vdwg.mxu0
      %2389 = vrot.lane.b32.xlu0 %v1018, 104
      %v2390 = vpop.permute.xlu0 %2389
      %2391 = vrot.lane.b32.xlu0 %v1022, 104
      %v2392 = vpop.permute.xlu0 %2391
      %v2394 = vsel %vm1029, %v2390, 0
      %v2397 = vsel %vm1029, %v2392, 0
      %2399 = vmatprep.subr.bf16.mxu0 0
      %2400 = vmatpush1.bf16.xpose.msra.mxu0 %v2397
      %2401 = vmatprep.subr.bf16.mxu0 0
      %2402 = vmatpush1.bf16.xpose.msra.mxu0 0
      %2403 = vmatprep.subr.bf16.mxu0 0
      %2404 = vmatpush1.bf16.xpose.msra.mxu0 0
      %2405 = vmatprep.subr.bf16.mxu0 0
      %2406 = vmatpush1.bf16.xpose.msra.mxu0 0
      %2407 = vmatprep.subr.bf16.mxu0 0
      %2408 = vmatpush1.bf16.xpose.msra.mxu0 0
      %2409 = vmatprep.subr.bf16.mxu0 0
      %2410 = vmatpush1.bf16.xpose.msra.mxu0 0
      %2411 = vmatprep.subr.bf16.mxu0 0
      %2412 = vmatpush1.bf16.xpose.msra.mxu0 0
      %2413 = vmatprep.subr.bf16.mxu0 0
      %2414 = vmatpush1.bf16.xpose.msra.mxu0 0
      %2415 = vmatprep.subr.bf16.mxu0 0
      %2416 = vmatpush1.bf16.xpose.msra.mxu0 0
      %2417 = vmatprep.subr.bf16.mxu0 0
      %2418 = vmatpush1.bf16.xpose.msra.mxu0 0
      %2419 = vmatprep.subr.bf16.mxu0 0
      %2420 = vmatpush1.bf16.xpose.msra.mxu0 0
      %2421 = vmatprep.subr.bf16.mxu0 0
      %2422 = vmatpush1.bf16.xpose.msra.mxu0 0
      %2423 = vmatprep.subr.bf16.mxu0 0
      %2424 = vmatpush1.bf16.xpose.msra.mxu0 0
      %2425 = vmatprep.subr.bf16.mxu0 0
      %2426 = vmatpush1.bf16.xpose.msra.mxu0 0
      %2427 = vmatprep.subr.bf16.mxu0 0
      %2428 = vmatpush1.bf16.xpose.msra.mxu0 0
      %2429 = vmatprep.subr.bf16.mxu0 0
      %2430 = vmatpush1.bf16.xpose.msra.mxu0 0
      %2431 = vmatprep.mubr.bf16.mxu0 0
      %2432 = vmatmul.mubr.bf16.gmra.mrb[0].mxu0 %v2394
      %v2433 = vpop.f32.mrb[0].mxu0
      %v2434 = vadd.f32 0.0, %v2433
      %v2435 = vpop.f32.mrb[0].mxu0
      %v2436 = vpop.f32.mrb[0].mxu0
      %v2437 = vpop.f32.mrb[0].mxu0
      %2438 = vdwg.mxu0
      %2439 = vrot.lane.b32.xlu0 %v1019, 104
      %v2440 = vpop.permute.xlu0 %2439
      %2441 = vrot.lane.b32.xlu0 %v1023, 104
      %v2442 = vpop.permute.xlu0 %2441
      %v2444 = vsel %vm1029, %v2440, 0
      %v2447 = vsel %vm1029, %v2442, 0
      %2449 = vmatprep.subr.bf16.mxu0 0
      %2450 = vmatpush1.bf16.xpose.msra.mxu0 %v2447
      %2451 = vmatprep.subr.bf16.mxu0 0
      %2452 = vmatpush1.bf16.xpose.msra.mxu0 0
      %2453 = vmatprep.subr.bf16.mxu0 0
      %2454 = vmatpush1.bf16.xpose.msra.mxu0 0
      %2455 = vmatprep.subr.bf16.mxu0 0
      %2456 = vmatpush1.bf16.xpose.msra.mxu0 0
      %2457 = vmatprep.subr.bf16.mxu0 0
      %2458 = vmatpush1.bf16.xpose.msra.mxu0 0
      %2459 = vmatprep.subr.bf16.mxu0 0
      %2460 = vmatpush1.bf16.xpose.msra.mxu0 0
      %2461 = vmatprep.subr.bf16.mxu0 0
      %2462 = vmatpush1.bf16.xpose.msra.mxu0 0
      %2463 = vmatprep.subr.bf16.mxu0 0
      %2464 = vmatpush1.bf16.xpose.msra.mxu0 0
      %2465 = vmatprep.subr.bf16.mxu0 0
      %2466 = vmatpush1.bf16.xpose.msra.mxu0 0
      %2467 = vmatprep.subr.bf16.mxu0 0
      %2468 = vmatpush1.bf16.xpose.msra.mxu0 0
      %2469 = vmatprep.subr.bf16.mxu0 0
      %2470 = vmatpush1.bf16.xpose.msra.mxu0 0
      %2471 = vmatprep.subr.bf16.mxu0 0
      %2472 = vmatpush1.bf16.xpose.msra.mxu0 0
      %2473 = vmatprep.subr.bf16.mxu0 0
      %2474 = vmatpush1.bf16.xpose.msra.mxu0 0
      %2475 = vmatprep.subr.bf16.mxu0 0
      %2476 = vmatpush1.bf16.xpose.msra.mxu0 0
      %2477 = vmatprep.subr.bf16.mxu0 0
      %2478 = vmatpush1.bf16.xpose.msra.mxu0 0
      %2479 = vmatprep.subr.bf16.mxu0 0
      %2480 = vmatpush1.bf16.xpose.msra.mxu0 0
      %2481 = vmatprep.mubr.bf16.mxu0 0
      %2482 = vmatmul.mubr.bf16.gmra.mrb[0].mxu0 %v2444
      %v2483 = vpop.f32.mrb[0].mxu0
      %v2484 = vadd.f32 0.0, %v2483
      %v2485 = vpop.f32.mrb[0].mxu0
      %v2486 = vpop.f32.mrb[0].mxu0
      %v2487 = vpop.f32.mrb[0].mxu0
      %2488 = vdwg.mxu0
      %2489 = vrot.lane.b32.xlu0 %v1020, 104
      %v2490 = vpop.permute.xlu0 %2489
      %2491 = vrot.lane.b32.xlu0 %v1024, 104
      %v2492 = vpop.permute.xlu0 %2491
      %v2494 = vsel %vm1029, %v2490, 0
      %v2497 = vsel %vm1029, %v2492, 0
      %2499 = vmatprep.subr.bf16.mxu0 0
      %2500 = vmatpush1.bf16.xpose.msra.mxu0 %v2497
      %2501 = vmatprep.subr.bf16.mxu0 0
      %2502 = vmatpush1.bf16.xpose.msra.mxu0 0
      %2503 = vmatprep.subr.bf16.mxu0 0
      %2504 = vmatpush1.bf16.xpose.msra.mxu0 0
      %2505 = vmatprep.subr.bf16.mxu0 0
      %2506 = vmatpush1.bf16.xpose.msra.mxu0 0
      %2507 = vmatprep.subr.bf16.mxu0 0
      %2508 = vmatpush1.bf16.xpose.msra.mxu0 0
      %2509 = vmatprep.subr.bf16.mxu0 0
      %2510 = vmatpush1.bf16.xpose.msra.mxu0 0
      %2511 = vmatprep.subr.bf16.mxu0 0
      %2512 = vmatpush1.bf16.xpose.msra.mxu0 0
      %2513 = vmatprep.subr.bf16.mxu0 0
      %2514 = vmatpush1.bf16.xpose.msra.mxu0 0
      %2515 = vmatprep.subr.bf16.mxu0 0
      %2516 = vmatpush1.bf16.xpose.msra.mxu0 0
      %2517 = vmatprep.subr.bf16.mxu0 0
      %2518 = vmatpush1.bf16.xpose.msra.mxu0 0
      %2519 = vmatprep.subr.bf16.mxu0 0
      %2520 = vmatpush1.bf16.xpose.msra.mxu0 0
      %2521 = vmatprep.subr.bf16.mxu0 0
      %2522 = vmatpush1.bf16.xpose.msra.mxu0 0
      %2523 = vmatprep.subr.bf16.mxu0 0
      %2524 = vmatpush1.bf16.xpose.msra.mxu0 0
      %2525 = vmatprep.subr.bf16.mxu0 0
      %2526 = vmatpush1.bf16.xpose.msra.mxu0 0
      %2527 = vmatprep.subr.bf16.mxu0 0
      %2528 = vmatpush1.bf16.xpose.msra.mxu0 0
      %2529 = vmatprep.subr.bf16.mxu0 0
      %2530 = vmatpush1.bf16.xpose.msra.mxu0 0
      %2531 = vmatprep.mubr.bf16.mxu0 0
      %2532 = vmatmul.mubr.bf16.gmra.mrb[0].mxu0 %v2494
      %v2533 = vpop.f32.mrb[0].mxu0
      %v2534 = vadd.f32 0.0, %v2533
      %v2535 = vpop.f32.mrb[0].mxu0
      %v2536 = vpop.f32.mrb[0].mxu0
      %v2537 = vpop.f32.mrb[0].mxu0
      %2538 = vdwg.mxu0
      %v2539 = vsel %vm1029, %v2384, -inf
      %2540 = vmax.xlane.f32.xlu0 %v2539
      %v2541 = vpop.xlane.xlu0 %2540
      %v2542 = vsel %vm1029, %v2434, -inf
      %2543 = vmax.xlane.f32.xlu0 %v2542
      %v2544 = vpop.xlane.xlu0 %2543
      %v2545 = vsel %vm1029, %v2484, -inf
      %2546 = vmax.xlane.f32.xlu0 %v2545
      %v2547 = vpop.xlane.xlu0 %2546
      %v2548 = vsel %vm1029, %v2534, -inf
      %2549 = vmax.xlane.f32.xlu0 %v2548
      %v2550 = vpop.xlane.xlu0 %2549
      %v2551 = vsub.f32 %v2384, %v2541
      %v2552 = vsub.f32 %v2434, %v2544
      %v2553 = vsub.f32 %v2484, %v2547
      %v2554 = vsub.f32 %v2534, %v2550
      %v2555 = vmul.f32 %v2551, 1.442695
      %v2556 = vpow.pop %v2555
      %v2557 = vmul.f32 %v2552, 1.442695
      %v2558 = vpow.pop %v2557
      %v2559 = vmul.f32 %v2553, 1.442695
      %v2560 = vpow.pop %v2559
      %v2561 = vmul.f32 %v2554, 1.442695
      %v2562 = vpow.pop %v2561
      %v2563 = vsel %vm1029, %v2556, 0.0
      %2564 = vadd.xlane.f32.xlu0 %v2563
      %v2565 = vpop.xlane.xlu0 %2564
      %v2566 = vsel %vm1029, %v2558, 0.0
      %2567 = vadd.xlane.f32.xlu0 %v2566
      %v2568 = vpop.xlane.xlu0 %2567
      %v2569 = vsel %vm1029, %v2560, 0.0
      %2570 = vadd.xlane.f32.xlu0 %v2569
      %v2571 = vpop.xlane.xlu0 %2570
      %v2572 = vsel %vm1029, %v2562, 0.0
      %2573 = vadd.xlane.f32.xlu0 %v2572
      %v2574 = vpop.xlane.xlu0 %2573
      %v2575 = vrcp.pop %v2565
      %v2576 = vmul.f32 %v2556, %v2575
      %v2577 = vrcp.pop %v2568
      %v2578 = vmul.f32 %v2558, %v2577
      %v2579 = vrcp.pop %v2571
      %v2580 = vmul.f32 %v2560, %v2579
      %v2581 = vrcp.pop %v2574
      %v2582 = vmul.f32 %v2562, %v2581
      %v2583 = vpack.c.bf16 %v2576, %v2576
      %v2584 = vpack.c.bf16 %v2578, %v2578
      %v2585 = vpack.c.bf16 %v2580, %v2580
      %v2586 = vpack.c.bf16 %v2582, %v2582
      %2587 = vrot.lane.b32.xlu0 %v1025, 104
      %v2588 = vpop.permute.xlu0 %2587
      %v2590 = vsel %vm1029, %v2583, 0
      %v2593 = vsel %vm1265, %v2588, 0
      %2595 = vmatprep.subr.bf16.mxu0 0
      %2596 = vmatpush1.bf16.msra.mxu0 %v2593
      %2597 = vmatprep.subr.bf16.mxu0 0
      %2598 = vmatpush1.bf16.msra.mxu0 0
      %2599 = vmatprep.subr.bf16.mxu0 0
      %2600 = vmatpush1.bf16.msra.mxu0 0
      %2601 = vmatprep.subr.bf16.mxu0 0
      %2602 = vmatpush1.bf16.msra.mxu0 0
      %2603 = vmatprep.subr.bf16.mxu0 0
      %2604 = vmatpush1.bf16.msra.mxu0 0
      %2605 = vmatprep.subr.bf16.mxu0 0
      %2606 = vmatpush1.bf16.msra.mxu0 0
      %2607 = vmatprep.subr.bf16.mxu0 0
      %2608 = vmatpush1.bf16.msra.mxu0 0
      %2609 = vmatprep.subr.bf16.mxu0 0
      %2610 = vmatpush1.bf16.msra.mxu0 0
      %2611 = vmatprep.subr.bf16.mxu0 0
      %2612 = vmatpush1.bf16.msra.mxu0 0
      %2613 = vmatprep.subr.bf16.mxu0 0
      %2614 = vmatpush1.bf16.msra.mxu0 0
      %2615 = vmatprep.subr.bf16.mxu0 0
      %2616 = vmatpush1.bf16.msra.mxu0 0
      %2617 = vmatprep.subr.bf16.mxu0 0
      %2618 = vmatpush1.bf16.msra.mxu0 0
      %2619 = vmatprep.subr.bf16.mxu0 0
      %2620 = vmatpush1.bf16.msra.mxu0 0
      %2621 = vmatprep.subr.bf16.mxu0 0
      %2622 = vmatpush1.bf16.msra.mxu0 0
      %2623 = vmatprep.subr.bf16.mxu0 0
      %2624 = vmatpush1.bf16.msra.mxu0 0
      %2625 = vmatprep.subr.bf16.mxu0 0
      %2626 = vmatpush1.bf16.msra.mxu0 0
      %2627 = vmatprep.mubr.bf16.mxu0 0
      %2628 = vmatmul.mubr.bf16.gmra.mrb[0].mxu0 %v2590
      %v2629 = vpop.f32.mrb[0].mxu0
      %v2630 = vadd.f32 0.0, %v2629
      %v2631 = vpop.f32.mrb[0].mxu0
      %v2632 = vpop.f32.mrb[0].mxu0
      %v2633 = vpop.f32.mrb[0].mxu0
      %2634 = vdwg.mxu0
      %2635 = vrot.lane.b32.xlu0 %v1026, 104
      %v2636 = vpop.permute.xlu0 %2635
      %v2638 = vsel %vm1029, %v2584, 0
      %v2641 = vsel %vm1265, %v2636, 0
      %2643 = vmatprep.subr.bf16.mxu0 0
      %2644 = vmatpush1.bf16.msra.mxu0 %v2641
      %2645 = vmatprep.subr.bf16.mxu0 0
      %2646 = vmatpush1.bf16.msra.mxu0 0
      %2647 = vmatprep.subr.bf16.mxu0 0
      %2648 = vmatpush1.bf16.msra.mxu0 0
      %2649 = vmatprep.subr.bf16.mxu0 0
      %2650 = vmatpush1.bf16.msra.mxu0 0
      %2651 = vmatprep.subr.bf16.mxu0 0
      %2652 = vmatpush1.bf16.msra.mxu0 0
      %2653 = vmatprep.subr.bf16.mxu0 0
      %2654 = vmatpush1.bf16.msra.mxu0 0
      %2655 = vmatprep.subr.bf16.mxu0 0
      %2656 = vmatpush1.bf16.msra.mxu0 0
      %2657 = vmatprep.subr.bf16.mxu0 0
      %2658 = vmatpush1.bf16.msra.mxu0 0
      %2659 = vmatprep.subr.bf16.mxu0 0
      %2660 = vmatpush1.bf16.msra.mxu0 0
      %2661 = vmatprep.subr.bf16.mxu0 0
      %2662 = vmatpush1.bf16.msra.mxu0 0
      %2663 = vmatprep.subr.bf16.mxu0 0
      %2664 = vmatpush1.bf16.msra.mxu0 0
      %2665 = vmatprep.subr.bf16.mxu0 0
      %2666 = vmatpush1.bf16.msra.mxu0 0
      %2667 = vmatprep.subr.bf16.mxu0 0
      %2668 = vmatpush1.bf16.msra.mxu0 0
      %2669 = vmatprep.subr.bf16.mxu0 0
      %2670 = vmatpush1.bf16.msra.mxu0 0
      %2671 = vmatprep.subr.bf16.mxu0 0
      %2672 = vmatpush1.bf16.msra.mxu0 0
      %2673 = vmatprep.subr.bf16.mxu0 0
      %2674 = vmatpush1.bf16.msra.mxu0 0
      %2675 = vmatprep.mubr.bf16.mxu0 0
      %2676 = vmatmul.mubr.bf16.gmra.mrb[0].mxu0 %v2638
      %v2677 = vpop.f32.mrb[0].mxu0
      %v2678 = vadd.f32 0.0, %v2677
      %v2679 = vpop.f32.mrb[0].mxu0
      %v2680 = vpop.f32.mrb[0].mxu0
      %v2681 = vpop.f32.mrb[0].mxu0
      %2682 = vdwg.mxu0
      %2683 = vrot.lane.b32.xlu0 %v1027, 104
      %v2684 = vpop.permute.xlu0 %2683
      %v2686 = vsel %vm1029, %v2585, 0
      %v2689 = vsel %vm1265, %v2684, 0
      %2691 = vmatprep.subr.bf16.mxu0 0
      %2692 = vmatpush1.bf16.msra.mxu0 %v2689
      %2693 = vmatprep.subr.bf16.mxu0 0
      %2694 = vmatpush1.bf16.msra.mxu0 0
      %2695 = vmatprep.subr.bf16.mxu0 0
      %2696 = vmatpush1.bf16.msra.mxu0 0
      %2697 = vmatprep.subr.bf16.mxu0 0
      %2698 = vmatpush1.bf16.msra.mxu0 0
      %2699 = vmatprep.subr.bf16.mxu0 0
      %2700 = vmatpush1.bf16.msra.mxu0 0
      %2701 = vmatprep.subr.bf16.mxu0 0
      %2702 = vmatpush1.bf16.msra.mxu0 0
      %2703 = vmatprep.subr.bf16.mxu0 0
      %2704 = vmatpush1.bf16.msra.mxu0 0
      %2705 = vmatprep.subr.bf16.mxu0 0
      %2706 = vmatpush1.bf16.msra.mxu0 0
      %2707 = vmatprep.subr.bf16.mxu0 0
      %2708 = vmatpush1.bf16.msra.mxu0 0
      %2709 = vmatprep.subr.bf16.mxu0 0
      %2710 = vmatpush1.bf16.msra.mxu0 0
      %2711 = vmatprep.subr.bf16.mxu0 0
      %2712 = vmatpush1.bf16.msra.mxu0 0
      %2713 = vmatprep.subr.bf16.mxu0 0
      %2714 = vmatpush1.bf16.msra.mxu0 0
      %2715 = vmatprep.subr.bf16.mxu0 0
      %2716 = vmatpush1.bf16.msra.mxu0 0
      %2717 = vmatprep.subr.bf16.mxu0 0
      %2718 = vmatpush1.bf16.msra.mxu0 0
      %2719 = vmatprep.subr.bf16.mxu0 0
      %2720 = vmatpush1.bf16.msra.mxu0 0
      %2721 = vmatprep.subr.bf16.mxu0 0
      %2722 = vmatpush1.bf16.msra.mxu0 0
      %2723 = vmatprep.mubr.bf16.mxu0 0
      %2724 = vmatmul.mubr.bf16.gmra.mrb[0].mxu0 %v2686
      %v2725 = vpop.f32.mrb[0].mxu0
      %v2726 = vadd.f32 0.0, %v2725
      %v2727 = vpop.f32.mrb[0].mxu0
      %v2728 = vpop.f32.mrb[0].mxu0
      %v2729 = vpop.f32.mrb[0].mxu0
      %2730 = vdwg.mxu0
      %2731 = vrot.lane.b32.xlu0 %v1028, 104
      %v2732 = vpop.permute.xlu0 %2731
      %v2734 = vsel %vm1029, %v2586, 0
      %v2737 = vsel %vm1265, %v2732, 0
      %2739 = vmatprep.subr.bf16.mxu0 0
      %2740 = vmatpush1.bf16.msra.mxu0 %v2737
      %2741 = vmatprep.subr.bf16.mxu0 0
      %2742 = vmatpush1.bf16.msra.mxu0 0
      %2743 = vmatprep.subr.bf16.mxu0 0
      %2744 = vmatpush1.bf16.msra.mxu0 0
      %2745 = vmatprep.subr.bf16.mxu0 0
      %2746 = vmatpush1.bf16.msra.mxu0 0
      %2747 = vmatprep.subr.bf16.mxu0 0
      %2748 = vmatpush1.bf16.msra.mxu0 0
      %2749 = vmatprep.subr.bf16.mxu0 0
      %2750 = vmatpush1.bf16.msra.mxu0 0
      %2751 = vmatprep.subr.bf16.mxu0 0
      %2752 = vmatpush1.bf16.msra.mxu0 0
      %2753 = vmatprep.subr.bf16.mxu0 0
      %2754 = vmatpush1.bf16.msra.mxu0 0
      %2755 = vmatprep.subr.bf16.mxu0 0
      %2756 = vmatpush1.bf16.msra.mxu0 0
      %2757 = vmatprep.subr.bf16.mxu0 0
      %2758 = vmatpush1.bf16.msra.mxu0 0
      %2759 = vmatprep.subr.bf16.mxu0 0
      %2760 = vmatpush1.bf16.msra.mxu0 0
      %2761 = vmatprep.subr.bf16.mxu0 0
      %2762 = vmatpush1.bf16.msra.mxu0 0
      %2763 = vmatprep.subr.bf16.mxu0 0
      %2764 = vmatpush1.bf16.msra.mxu0 0
      %2765 = vmatprep.subr.bf16.mxu0 0
      %2766 = vmatpush1.bf16.msra.mxu0 0
      %2767 = vmatprep.subr.bf16.mxu0 0
      %2768 = vmatpush1.bf16.msra.mxu0 0
      %2769 = vmatprep.subr.bf16.mxu0 0
      %2770 = vmatpush1.bf16.msra.mxu0 0
      %2771 = vmatprep.mubr.bf16.mxu0 0
      %2772 = vmatmul.mubr.bf16.gmra.mrb[0].mxu0 %v2734
      %v2773 = vpop.f32.mrb[0].mxu0
      %v2774 = vadd.f32 0.0, %v2773
      %v2775 = vpop.f32.mrb[0].mxu0
      %v2776 = vpop.f32.mrb[0].mxu0
      %v2777 = vpop.f32.mrb[0].mxu0
      %2778 = vdwg.mxu0
      %2783 = vrot.lane.b32.xlu0 %v1747, 8
      %v2784 = vpop.permute.xlu0 %2783
      %2785 = vrot.lane.b32.xlu0 %v1796, 8
      %v2786 = vpop.permute.xlu0 %2785
      %2787 = vrot.lane.b32.xlu0 %v1845, 8
      %v2788 = vpop.permute.xlu0 %2787
      %2789 = vrot.lane.b32.xlu0 %v1894, 8
      %v2790 = vpop.permute.xlu0 %2789
      %2799 = vrot.lane.b32.xlu0 %v2190, 16
      %v2800 = vpop.permute.xlu0 %2799
      %2801 = vrot.lane.b32.xlu0 %v2238, 16
      %v2802 = vpop.permute.xlu0 %2801
      %2803 = vrot.lane.b32.xlu0 %v2286, 16
      %v2804 = vpop.permute.xlu0 %2803
      %2805 = vrot.lane.b32.xlu0 %v2334, 16
      %v2806 = vpop.permute.xlu0 %2805
      %2815 = vrot.lane.b32.xlu0 %v2630, 24
      %v2816 = vpop.permute.xlu0 %2815
      %2817 = vrot.lane.b32.xlu0 %v2678, 24
      %v2818 = vpop.permute.xlu0 %2817
      %2819 = vrot.lane.b32.xlu0 %v2726, 24
      %v2820 = vpop.permute.xlu0 %2819
      %2821 = vrot.lane.b32.xlu0 %v2774, 24
      %v2822 = vpop.permute.xlu0 %2821
      %v2827 = vsel %vm1029, %v1304, %v2784
      %v2828 = vsel %vm1029, %v1350, %v2786
      %v2829 = vsel %vm1029, %v1396, %v2788
      %v2830 = vsel %vm1029, %v1442, %v2790
      %vm2831 = vcmask 130048
      %v2832 = vsel %vm2831, %v2827, %v2800
      %v2833 = vsel %vm2831, %v2828, %v2802
      %v2834 = vsel %vm2831, %v2829, %v2804
      %v2835 = vsel %vm2831, %v2830, %v2806
      %vm2836 = vcmask 195584
      %v2837 = vsel %vm2836, %v2832, %v2816
      %v2838 = vsel %vm2836, %v2833, %v2818
      %v2839 = vsel %vm2836, %v2834, %v2820
      %v2840 = vsel %vm2836, %v2835, %v2822
      %v2841 = vpack.c.bf16 %v2838, %v2837
      %v2842 = vpack.c.bf16 %v2840, %v2839
      %v2843 = vld [vmem:[%s10] sm:$0xf]
      %v2844 = vld [vmem:[%s10 + $0x4] sm:$0xf]
      %v2845 = vld [vmem:[%s10 + $0x8] sm:$0xf]
      %v2846 = vld [vmem:[%s10 + $0xc] sm:$0xf]
      %v2847 = vld [vmem:[%s11] sm:$0x1]
      %v2848 = vlaneseq
      %v2849 = vshrl.u32 %v2848, 7
      %v2850 = vsub.s32 0, %v2849
      %v2851 = vrot.slane %v2847, %v2850
      %v2856 = vunpack.c.l.b16 %v2843
      %v2857 = vunpack.c.l.b16 %v2844
      %v2858 = vunpack.c.l.b16 %v2845
      %v2859 = vunpack.c.l.b16 %v2846
      %v2860 = vpack.c.b16 %v2857, %v2856
      %v2861 = vpack.c.b16 %v2859, %v2858
      %v2865 = vsel %vm667, %v2841, 0
      %v2868 = vsel %vm667, %v2842, 0
      %2870 = vmatprep.subr.bf16.mxu0 0
      %2871 = vmatpush1.bf16.msra.mxu0 %v2860
      %2872 = vmatprep.subr.bf16.mxu0 0
      %2873 = vmatpush1.bf16.msra.mxu0 %v2861
      %2874 = vmatprep.subr.bf16.mxu0 0
      %2875 = vmatpush1.bf16.msra.mxu0 0
      %2876 = vmatprep.subr.bf16.mxu0 0
      %2877 = vmatpush1.bf16.msra.mxu0 0
      %2878 = vmatprep.subr.bf16.mxu0 0
      %2879 = vmatpush1.bf16.msra.mxu0 0
      %2880 = vmatprep.subr.bf16.mxu0 0
      %2881 = vmatpush1.bf16.msra.mxu0 0
      %2882 = vmatprep.subr.bf16.mxu0 0
      %2883 = vmatpush1.bf16.msra.mxu0 0
      %2884 = vmatprep.subr.bf16.mxu0 0
      %2885 = vmatpush1.bf16.msra.mxu0 0
      %2886 = vmatprep.subr.bf16.mxu0 0
      %2887 = vmatpush1.bf16.msra.mxu0 0
      %2888 = vmatprep.subr.bf16.mxu0 0
      %2889 = vmatpush1.bf16.msra.mxu0 0
      %2890 = vmatprep.subr.bf16.mxu0 0
      %2891 = vmatpush1.bf16.msra.mxu0 0
      %2892 = vmatprep.subr.bf16.mxu0 0
      %2893 = vmatpush1.bf16.msra.mxu0 0
      %2894 = vmatprep.subr.bf16.mxu0 0
      %2895 = vmatpush1.bf16.msra.mxu0 0
      %2896 = vmatprep.subr.bf16.mxu0 0
      %2897 = vmatpush1.bf16.msra.mxu0 0
      %2898 = vmatprep.subr.bf16.mxu0 0
      %2899 = vmatpush1.bf16.msra.mxu0 0
      %2900 = vmatprep.subr.bf16.mxu0 0
      %2901 = vmatpush1.bf16.msra.mxu0 0
      %2902 = vmatprep.mubr.bf16.mxu0 0
      %2903 = vmatmul.mubr.bf16.gmra.mrb[0].mxu0 %v2865
      %v2904 = vpop.f32.mrb[0].mxu0
      %v2905 = vadd.f32 %v2851, %v2904
      %v2906 = vpop.f32.mrb[0].mxu0
      %v2907 = vpop.f32.mrb[0].mxu0
      %v2908 = vadd.f32 %v2851, %v2907
      %v2909 = vpop.f32.mrb[0].mxu0
      %2910 = vmatprep.mubr.bf16.mxu0 0
      %2911 = vmatmul.mubr.bf16.gmra.mrb[0].mxu0 %v2868
      %v2912 = vpop.f32.mrb[0].mxu0
      %v2913 = vadd.f32 %v2851, %v2912
      %v2914 = vpop.f32.mrb[0].mxu0
      %v2915 = vpop.f32.mrb[0].mxu0
      %v2916 = vadd.f32 %v2851, %v2915
      %v2917 = vpop.f32.mrb[0].mxu0
      %2918 = vdwg.mxu0
      %v2919 = vadd.f32 %v634, %v2905
      %v2920 = vadd.f32 %v635, %v2908
      %v2921 = vadd.f32 %v636, %v2913
      %v2922 = vadd.f32 %v637, %v2916
      %v2923 = vld [vmem:[%s16] sm:$0x1]
      %v2924 = vld [vmem:[%s17] sm:$0x1]
      %v2925 = vsel %vm667, %v2919, 0.0
      %2926 = vadd.xlane.f32.xlu0 %v2925
      %v2927 = vpop.xlane.xlu0 %2926
      %v2928 = vsel %vm667, %v2920, 0.0
      %2929 = vadd.xlane.f32.xlu0 %v2928
      %v2930 = vpop.xlane.xlu0 %2929
      %v2931 = vsel %vm667, %v2921, 0.0
      %2932 = vadd.xlane.f32.xlu0 %v2931
      %v2933 = vpop.xlane.xlu0 %2932
      %v2934 = vsel %vm667, %v2922, 0.0
      %2935 = vadd.xlane.f32.xlu0 %v2934
      %v2936 = vpop.xlane.xlu0 %2935
      %v2937 = vrcp.pop 32.0
      %v2938 = vmul.f32 %v2927, %v2937
      %v2939 = vmul.f32 %v2930, %v2937
      %v2940 = vmul.f32 %v2933, %v2937
      %v2941 = vmul.f32 %v2936, %v2937
      %v2942 = vsub.f32 %v2919, %v2938
      %v2943 = vsub.f32 %v2920, %v2939
      %v2944 = vsub.f32 %v2921, %v2940
      %v2945 = vsub.f32 %v2922, %v2941
      %v2946 = vmul.f32 %v2942, %v2942
      %v2947 = vmul.f32 %v2943, %v2943
      %v2948 = vmul.f32 %v2944, %v2944
      %v2949 = vmul.f32 %v2945, %v2945
      %v2950 = vsel %vm667, %v2946, 0.0
      %2951 = vadd.xlane.f32.xlu0 %v2950
      %v2952 = vpop.xlane.xlu0 %2951
      %v2953 = vsel %vm667, %v2947, 0.0
      %2954 = vadd.xlane.f32.xlu0 %v2953
      %v2955 = vpop.xlane.xlu0 %2954
      %v2956 = vsel %vm667, %v2948, 0.0
      %2957 = vadd.xlane.f32.xlu0 %v2956
      %v2958 = vpop.xlane.xlu0 %2957
      %v2959 = vsel %vm667, %v2949, 0.0
      %2960 = vadd.xlane.f32.xlu0 %v2959
      %v2961 = vpop.xlane.xlu0 %2960
      %v2962 = vmul.f32 %v2952, %v2937
      %v2963 = vmul.f32 %v2955, %v2937
      %v2964 = vmul.f32 %v2958, %v2937
      %v2965 = vmul.f32 %v2961, %v2937
      %v2966 = vadd.f32 %v2962, 1e-05
      %v2967 = vadd.f32 %v2963, 1e-05
      %v2968 = vadd.f32 %v2964, 1e-05
      %v2969 = vadd.f32 %v2965, 1e-05
      %v2970 = vrsqrt.pop %v2966
      %v2971 = vrsqrt.pop %v2967
      %v2972 = vrsqrt.pop %v2968
      %v2973 = vrsqrt.pop %v2969
      %v2974 = vmul.f32 %v2942, %v2970
      %v2975 = vmul.f32 %v2943, %v2971
      %v2976 = vmul.f32 %v2944, %v2972
      %v2977 = vmul.f32 %v2945, %v2973
      %v2978 = vlaneseq
      %v2979 = vshrl.u32 %v2978, 7
      %v2980 = vsub.s32 0, %v2979
      %v2981 = vrot.slane %v2923, %v2980
      %v2982 = vmul.f32 %v2974, %v2981
      %v2983 = vmul.f32 %v2975, %v2981
      %v2984 = vmul.f32 %v2976, %v2981
      %v2985 = vmul.f32 %v2977, %v2981
      %v2986 = vlaneseq
      %v2987 = vshrl.u32 %v2986, 7
      %v2988 = vsub.s32 0, %v2987
      %v2989 = vrot.slane %v2924, %v2988
      %v2990 = vadd.f32 %v2982, %v2989
      %v2991 = vadd.f32 %v2983, %v2989
      %v2992 = vadd.f32 %v2984, %v2989
      %v2993 = vadd.f32 %v2985, %v2989
      %v2994 = vpack.c.bf16 %v2991, %v2990
      %v2995 = vpack.c.bf16 %v2993, %v2992
      %v2996 = vld [vmem:[%s12] sm:$0xf]
      %v2997 = vld [vmem:[%s12 + $0x4] sm:$0xf]
      %v2998 = vld [vmem:[%s12 + $0x8] sm:$0xf]
      %v2999 = vld [vmem:[%s12 + $0xc] sm:$0xf]
      %v3000 = vld [vmem:[%s13] sm:$0x1]
      %v3001 = vlaneseq
      %v3002 = vshrl.u32 %v3001, 7
      %v3003 = vsub.s32 0, %v3002
      %v3004 = vrot.slane %v3000, %v3003
      %v3009 = vunpack.c.l.b16 %v2996
      %v3010 = vunpack.c.l.b16 %v2997
      %v3011 = vunpack.c.l.b16 %v2998
      %v3012 = vunpack.c.l.b16 %v2999
      %v3013 = vpack.c.b16 %v3010, %v3009
      %v3014 = vpack.c.b16 %v3012, %v3011
      %v3018 = vsel %vm667, %v2994, 0
      %v3021 = vsel %vm667, %v2995, 0
      %3023 = vmatprep.subr.bf16.mxu0 0
      %3024 = vmatpush1.bf16.msra.mxu0 %v3013
      %3025 = vmatprep.subr.bf16.mxu0 0
      %3026 = vmatpush1.bf16.msra.mxu0 %v3014
      %3027 = vmatprep.subr.bf16.mxu0 0
      %3028 = vmatpush1.bf16.msra.mxu0 0
      %3029 = vmatprep.subr.bf16.mxu0 0
      %3030 = vmatpush1.bf16.msra.mxu0 0
      %3031 = vmatprep.subr.bf16.mxu0 0
      %3032 = vmatpush1.bf16.msra.mxu0 0
      %3033 = vmatprep.subr.bf16.mxu0 0
      %3034 = vmatpush1.bf16.msra.mxu0 0
      %3035 = vmatprep.subr.bf16.mxu0 0
      %3036 = vmatpush1.bf16.msra.mxu0 0
      %3037 = vmatprep.subr.bf16.mxu0 0
      %3038 = vmatpush1.bf16.msra.mxu0 0
      %3039 = vmatprep.subr.bf16.mxu0 0
      %3040 = vmatpush1.bf16.msra.mxu0 0
      %3041 = vmatprep.subr.bf16.mxu0 0
      %3042 = vmatpush1.bf16.msra.mxu0 0
      %3043 = vmatprep.subr.bf16.mxu0 0
      %3044 = vmatpush1.bf16.msra.mxu0 0
      %3045 = vmatprep.subr.bf16.mxu0 0
      %3046 = vmatpush1.bf16.msra.mxu0 0
      %3047 = vmatprep.subr.bf16.mxu0 0
      %3048 = vmatpush1.bf16.msra.mxu0 0
      %3049 = vmatprep.subr.bf16.mxu0 0
      %3050 = vmatpush1.bf16.msra.mxu0 0
      %3051 = vmatprep.subr.bf16.mxu0 0
      %3052 = vmatpush1.bf16.msra.mxu0 0
      %3053 = vmatprep.subr.bf16.mxu0 0
      %3054 = vmatpush1.bf16.msra.mxu0 0
      %3055 = vmatprep.mubr.bf16.mxu0 0
      %3056 = vmatmul.mubr.bf16.gmra.mrb[0].mxu0 %v3018
      %v3057 = vpop.f32.mrb[0].mxu0
      %v3058 = vadd.f32 %v3004, %v3057
      %v3059 = vpop.f32.mrb[0].mxu0
      %v3060 = vpop.f32.mrb[0].mxu0
      %v3061 = vadd.f32 %v3004, %v3060
      %v3062 = vpop.f32.mrb[0].mxu0
      %3063 = vmatprep.mubr.bf16.mxu0 0
      %3064 = vmatmul.mubr.bf16.gmra.mrb[0].mxu0 %v3021
      %v3065 = vpop.f32.mrb[0].mxu0
      %v3066 = vadd.f32 %v3004, %v3065
      %v3067 = vpop.f32.mrb[0].mxu0
      %v3068 = vpop.f32.mrb[0].mxu0
      %v3069 = vadd.f32 %v3004, %v3068
      %v3070 = vpop.f32.mrb[0].mxu0
      %3071 = vdwg.mxu0
      %v3072 = vmax.f32 %v3058, 0.0
      %v3073 = vmax.f32 %v3061, 0.0
      %v3074 = vmax.f32 %v3066, 0.0
      %v3075 = vmax.f32 %v3069, 0.0
      %v3076 = vpack.c.bf16 %v3073, %v3072
      %v3077 = vpack.c.bf16 %v3075, %v3074
      %v3078 = vld [vmem:[%s14] sm:$0xf]
      %v3079 = vld [vmem:[%s14 + $0x4] sm:$0xf]
      %v3080 = vld [vmem:[%s14 + $0x8] sm:$0xf]
      %v3081 = vld [vmem:[%s14 + $0xc] sm:$0xf]
      %v3082 = vld [vmem:[%s14 + $0x10] sm:$0xf]
      %v3083 = vld [vmem:[%s14 + $0x14] sm:$0xf]
      %v3084 = vld [vmem:[%s14 + $0x18] sm:$0xf]
      %v3085 = vld [vmem:[%s14 + $0x1c] sm:$0xf]
      %v3086 = vld [vmem:[%s15] sm:$0x1]
      %v3087 = vlaneseq
      %v3088 = vshrl.u32 %v3087, 7
      %v3089 = vsub.s32 0, %v3088
      %v3090 = vrot.slane %v3086, %v3089
      %v3099 = vunpack.c.l.b16 %v3078
      %v3100 = vunpack.c.l.b16 %v3079
      %v3101 = vunpack.c.l.b16 %v3080
      %v3102 = vunpack.c.l.b16 %v3081
      %v3103 = vunpack.c.l.b16 %v3082
      %v3104 = vunpack.c.l.b16 %v3083
      %v3105 = vunpack.c.l.b16 %v3084
      %v3106 = vunpack.c.l.b16 %v3085
      %v3107 = vpack.c.b16 %v3100, %v3099
      %v3108 = vpack.c.b16 %v3102, %v3101
      %v3109 = vpack.c.b16 %v3104, %v3103
      %v3110 = vpack.c.b16 %v3106, %v3105
      %vm3115 = vcmask 523264
      %v3117 = vsel %vm3115, %v3076, 0
      %v3120 = vsel %vm3115, %v3077, 0
      %3122 = vmatprep.subr.bf16.mxu0 0
      %3123 = vmatpush1.bf16.msra.mxu0 %v3107
      %3124 = vmatprep.subr.bf16.mxu0 0
      %3125 = vmatpush1.bf16.msra.mxu0 %v3108
      %3126 = vmatprep.subr.bf16.mxu0 0
      %3127 = vmatpush1.bf16.msra.mxu0 %v3109
      %3128 = vmatprep.subr.bf16.mxu0 0
      %3129 = vmatpush1.bf16.msra.mxu0 %v3110
      %3130 = vmatprep.subr.bf16.mxu0 0
      %3131 = vmatpush1.bf16.msra.mxu0 0
      %3132 = vmatprep.subr.bf16.mxu0 0
      %3133 = vmatpush1.bf16.msra.mxu0 0
      %3134 = vmatprep.subr.bf16.mxu0 0
      %3135 = vmatpush1.bf16.msra.mxu0 0
      %3136 = vmatprep.subr.bf16.mxu0 0
      %3137 = vmatpush1.bf16.msra.mxu0 0
      %3138 = vmatprep.subr.bf16.mxu0 0
      %3139 = vmatpush1.bf16.msra.mxu0 0
      %3140 = vmatprep.subr.bf16.mxu0 0
      %3141 = vmatpush1.bf16.msra.mxu0 0
      %3142 = vmatprep.subr.bf16.mxu0 0
      %3143 = vmatpush1.bf16.msra.mxu0 0
      %3144 = vmatprep.subr.bf16.mxu0 0
      %3145 = vmatpush1.bf16.msra.mxu0 0
      %3146 = vmatprep.subr.bf16.mxu0 0
      %3147 = vmatpush1.bf16.msra.mxu0 0
      %3148 = vmatprep.subr.bf16.mxu0 0
      %3149 = vmatpush1.bf16.msra.mxu0 0
      %3150 = vmatprep.subr.bf16.mxu0 0
      %3151 = vmatpush1.bf16.msra.mxu0 0
      %3152 = vmatprep.subr.bf16.mxu0 0
      %3153 = vmatpush1.bf16.msra.mxu0 0
      %3154 = vmatprep.mubr.bf16.mxu0 0
      %3155 = vmatmul.mubr.bf16.gmra.mrb[0].mxu0 %v3117
      %v3156 = vpop.f32.mrb[0].mxu0
      %v3157 = vadd.f32 %v3090, %v3156
      %v3158 = vpop.f32.mrb[0].mxu0
      %v3159 = vpop.f32.mrb[0].mxu0
      %v3160 = vadd.f32 %v3090, %v3159
      %v3161 = vpop.f32.mrb[0].mxu0
      %3162 = vmatprep.mubr.bf16.mxu0 0
      %3163 = vmatmul.mubr.bf16.gmra.mrb[0].mxu0 %v3120
      %v3164 = vpop.f32.mrb[0].mxu0
      %v3165 = vadd.f32 %v3090, %v3164
      %v3166 = vpop.f32.mrb[0].mxu0
      %v3167 = vpop.f32.mrb[0].mxu0
      %v3168 = vadd.f32 %v3090, %v3167
      %v3169 = vpop.f32.mrb[0].mxu0
      %3170 = vdwg.mxu0
      %v3171 = vadd.f32 %v2990, %v3157
      %v3172 = vadd.f32 %v2991, %v3160
      %v3173 = vadd.f32 %v2992, %v3165
      %v3174 = vadd.f32 %v2993, %v3168
      %v3175 = vld [vmem:[%s18] sm:$0x1]
      %v3176 = vld [vmem:[%s19] sm:$0x1]
      %v3177 = vsel %vm667, %v3171, 0.0
      %3178 = vadd.xlane.f32.xlu0 %v3177
      %v3179 = vpop.xlane.xlu0 %3178
      %v3180 = vsel %vm667, %v3172, 0.0
      %3181 = vadd.xlane.f32.xlu0 %v3180
      %v3182 = vpop.xlane.xlu0 %3181
      %v3183 = vsel %vm667, %v3173, 0.0
      %3184 = vadd.xlane.f32.xlu0 %v3183
      %v3185 = vpop.xlane.xlu0 %3184
      %v3186 = vsel %vm667, %v3174, 0.0
      %3187 = vadd.xlane.f32.xlu0 %v3186
      %v3188 = vpop.xlane.xlu0 %3187
      %v3189 = vmul.f32 %v3179, %v2937
      %v3190 = vmul.f32 %v3182, %v2937
      %v3191 = vmul.f32 %v3185, %v2937
      %v3192 = vmul.f32 %v3188, %v2937
      %v3193 = vsub.f32 %v3171, %v3189
      %v3194 = vsub.f32 %v3172, %v3190
      %v3195 = vsub.f32 %v3173, %v3191
      %v3196 = vsub.f32 %v3174, %v3192
      %v3197 = vmul.f32 %v3193, %v3193
      %v3198 = vmul.f32 %v3194, %v3194
      %v3199 = vmul.f32 %v3195, %v3195
      %v3200 = vmul.f32 %v3196, %v3196
      %v3201 = vsel %vm667, %v3197, 0.0
      %3202 = vadd.xlane.f32.xlu0 %v3201
      %v3203 = vpop.xlane.xlu0 %3202
      %v3204 = vsel %vm667, %v3198, 0.0
      %3205 = vadd.xlane.f32.xlu0 %v3204
      %v3206 = vpop.xlane.xlu0 %3205
      %v3207 = vsel %vm667, %v3199, 0.0
      %3208 = vadd.xlane.f32.xlu0 %v3207
      %v3209 = vpop.xlane.xlu0 %3208
      %v3210 = vsel %vm667, %v3200, 0.0
      %3211 = vadd.xlane.f32.xlu0 %v3210
      %v3212 = vpop.xlane.xlu0 %3211
      %v3213 = vmul.f32 %v3203, %v2937
      %v3214 = vmul.f32 %v3206, %v2937
      %v3215 = vmul.f32 %v3209, %v2937
      %v3216 = vmul.f32 %v3212, %v2937
      %v3217 = vadd.f32 %v3213, 1e-05
      %v3218 = vadd.f32 %v3214, 1e-05
      %v3219 = vadd.f32 %v3215, 1e-05
      %v3220 = vadd.f32 %v3216, 1e-05
      %v3221 = vrsqrt.pop %v3217
      %v3222 = vrsqrt.pop %v3218
      %v3223 = vrsqrt.pop %v3219
      %v3224 = vrsqrt.pop %v3220
      %v3225 = vmul.f32 %v3193, %v3221
      %v3226 = vmul.f32 %v3194, %v3222
      %v3227 = vmul.f32 %v3195, %v3223
      %v3228 = vmul.f32 %v3196, %v3224
      %v3229 = vlaneseq
      %v3230 = vshrl.u32 %v3229, 7
      %v3231 = vsub.s32 0, %v3230
      %v3232 = vrot.slane %v3175, %v3231
      %v3233 = vmul.f32 %v3225, %v3232
      %v3234 = vmul.f32 %v3226, %v3232
      %v3235 = vmul.f32 %v3227, %v3232
      %v3236 = vmul.f32 %v3228, %v3232
      %v3237 = vlaneseq
      %v3238 = vshrl.u32 %v3237, 7
      %v3239 = vsub.s32 0, %v3238
      %v3240 = vrot.slane %v3176, %v3239
      %v3241 = vadd.f32 %v3233, %v3240
      %v3242 = vadd.f32 %v3234, %v3240
      %v3243 = vadd.f32 %v3235, %v3240
      %v3244 = vadd.f32 %v3236, %v3240
      %v3245 = vpack.c.bf16 %v3242, %v3241
      %v3246 = vpack.c.bf16 %v3244, %v3243
      %s3247 = scalar_lea.vmem %s4, 16
      %v3248 = vld [vmem:[%s3247] sm:$0xf]
      %v3249 = vld [vmem:[%s3247 + $0x4] sm:$0xf]
      %v3250 = vld [vmem:[%s3247 + $0x8] sm:$0xf]
      %v3251 = vld [vmem:[%s3247 + $0xc] sm:$0xf]
      %v3252 = vld [vmem:[%s5 + $0x1] sm:$0x1]
      %v3253 = vlaneseq
      %v3254 = vshrl.u32 %v3253, 7
      %v3255 = vsub.s32 0, %v3254
      %v3256 = vrot.slane %v3252, %v3255
      %v3261 = vunpack.c.l.b16 %v3248
      %v3262 = vunpack.c.l.b16 %v3249
      %v3263 = vunpack.c.l.b16 %v3250
      %v3264 = vunpack.c.l.b16 %v3251
      %v3265 = vpack.c.b16 %v3262, %v3261
      %v3266 = vpack.c.b16 %v3264, %v3263
      %v3270 = vsel %vm667, %v3245, 0
      %v3273 = vsel %vm667, %v3246, 0
      %3275 = vmatprep.subr.bf16.mxu0 0
      %3276 = vmatpush1.bf16.msra.mxu0 %v3265
      %3277 = vmatprep.subr.bf16.mxu0 0
      %3278 = vmatpush1.bf16.msra.mxu0 %v3266
      %3279 = vmatprep.subr.bf16.mxu0 0
      %3280 = vmatpush1.bf16.msra.mxu0 0
      %3281 = vmatprep.subr.bf16.mxu0 0
      %3282 = vmatpush1.bf16.msra.mxu0 0
      %3283 = vmatprep.subr.bf16.mxu0 0
      %3284 = vmatpush1.bf16.msra.mxu0 0
      %3285 = vmatprep.subr.bf16.mxu0 0
      %3286 = vmatpush1.bf16.msra.mxu0 0
      %3287 = vmatprep.subr.bf16.mxu0 0
      %3288 = vmatpush1.bf16.msra.mxu0 0
      %3289 = vmatprep.subr.bf16.mxu0 0
      %3290 = vmatpush1.bf16.msra.mxu0 0
      %3291 = vmatprep.subr.bf16.mxu0 0
      %3292 = vmatpush1.bf16.msra.mxu0 0
      %3293 = vmatprep.subr.bf16.mxu0 0
      %3294 = vmatpush1.bf16.msra.mxu0 0
      %3295 = vmatprep.subr.bf16.mxu0 0
      %3296 = vmatpush1.bf16.msra.mxu0 0
      %3297 = vmatprep.subr.bf16.mxu0 0
      %3298 = vmatpush1.bf16.msra.mxu0 0
      %3299 = vmatprep.subr.bf16.mxu0 0
      %3300 = vmatpush1.bf16.msra.mxu0 0
      %3301 = vmatprep.subr.bf16.mxu0 0
      %3302 = vmatpush1.bf16.msra.mxu0 0
      %3303 = vmatprep.subr.bf16.mxu0 0
      %3304 = vmatpush1.bf16.msra.mxu0 0
      %3305 = vmatprep.subr.bf16.mxu0 0
      %3306 = vmatpush1.bf16.msra.mxu0 0
      %3307 = vmatprep.mubr.bf16.mxu0 0
      %3308 = vmatmul.mubr.bf16.gmra.mrb[0].mxu0 %v3270
      %v3309 = vpop.f32.mrb[0].mxu0
      %v3310 = vadd.f32 %v3256, %v3309
      %v3311 = vpop.f32.mrb[0].mxu0
      %v3312 = vpop.f32.mrb[0].mxu0
      %v3313 = vadd.f32 %v3256, %v3312
      %v3314 = vpop.f32.mrb[0].mxu0
      %3315 = vmatprep.mubr.bf16.mxu0 0
      %3316 = vmatmul.mubr.bf16.gmra.mrb[0].mxu0 %v3273
      %v3317 = vpop.f32.mrb[0].mxu0
      %v3318 = vadd.f32 %v3256, %v3317
      %v3319 = vpop.f32.mrb[0].mxu0
      %v3320 = vpop.f32.mrb[0].mxu0
      %v3321 = vadd.f32 %v3256, %v3320
      %v3322 = vpop.f32.mrb[0].mxu0
      %3323 = vdwg.mxu0
      %s3324 = scalar_lea.vmem %s6, 16
      %v3325 = vld [vmem:[%s3324] sm:$0xf]
      %v3326 = vld [vmem:[%s3324 + $0x4] sm:$0xf]
      %v3327 = vld [vmem:[%s3324 + $0x8] sm:$0xf]
      %v3328 = vld [vmem:[%s3324 + $0xc] sm:$0xf]
      %v3329 = vld [vmem:[%s7 + $0x1] sm:$0x1]
      %v3330 = vlaneseq
      %v3331 = vshrl.u32 %v3330, 7
      %v3332 = vsub.s32 0, %v3331
      %v3333 = vrot.slane %v3329, %v3332
      %v3338 = vunpack.c.l.b16 %v3325
      %v3339 = vunpack.c.l.b16 %v3326
      %v3340 = vunpack.c.l.b16 %v3327
      %v3341 = vunpack.c.l.b16 %v3328
      %v3342 = vpack.c.b16 %v3339, %v3338
      %v3343 = vpack.c.b16 %v3341, %v3340
      %3346 = vmatprep.subr.bf16.mxu0 0
      %3347 = vmatpush1.bf16.msra.mxu0 %v3342
      %3348 = vmatprep.subr.bf16.mxu0 0
      %3349 = vmatpush1.bf16.msra.mxu0 %v3343
      %3350 = vmatprep.subr.bf16.mxu0 0
      %3351 = vmatpush1.bf16.msra.mxu0 0
      %3352 = vmatprep.subr.bf16.mxu0 0
      %3353 = vmatpush1.bf16.msra.mxu0 0
      %3354 = vmatprep.subr.bf16.mxu0 0
      %3355 = vmatpush1.bf16.msra.mxu0 0
      %3356 = vmatprep.subr.bf16.mxu0 0
      %3357 = vmatpush1.bf16.msra.mxu0 0
      %3358 = vmatprep.subr.bf16.mxu0 0
      %3359 = vmatpush1.bf16.msra.mxu0 0
      %3360 = vmatprep.subr.bf16.mxu0 0
      %3361 = vmatpush1.bf16.msra.mxu0 0
      %3362 = vmatprep.subr.bf16.mxu0 0
      %3363 = vmatpush1.bf16.msra.mxu0 0
      %3364 = vmatprep.subr.bf16.mxu0 0
      %3365 = vmatpush1.bf16.msra.mxu0 0
      %3366 = vmatprep.subr.bf16.mxu0 0
      %3367 = vmatpush1.bf16.msra.mxu0 0
      %3368 = vmatprep.subr.bf16.mxu0 0
      %3369 = vmatpush1.bf16.msra.mxu0 0
      %3370 = vmatprep.subr.bf16.mxu0 0
      %3371 = vmatpush1.bf16.msra.mxu0 0
      %3372 = vmatprep.subr.bf16.mxu0 0
      %3373 = vmatpush1.bf16.msra.mxu0 0
      %3374 = vmatprep.subr.bf16.mxu0 0
      %3375 = vmatpush1.bf16.msra.mxu0 0
      %3376 = vmatprep.subr.bf16.mxu0 0
      %3377 = vmatpush1.bf16.msra.mxu0 0
      %3378 = vmatprep.mubr.bf16.mxu0 0
      %3379 = vmatmul.mubr.bf16.gmra.mrb[0].mxu0 %v3270
      %v3380 = vpop.f32.mrb[0].mxu0
      %v3381 = vadd.f32 %v3333, %v3380
      %v3382 = vpop.f32.mrb[0].mxu0
      %v3383 = vpop.f32.mrb[0].mxu0
      %v3384 = vadd.f32 %v3333, %v3383
      %v3385 = vpop.f32.mrb[0].mxu0
      %3386 = vmatprep.mubr.bf16.mxu0 0
      %3387 = vmatmul.mubr.bf16.gmra.mrb[0].mxu0 %v3273
      %v3388 = vpop.f32.mrb[0].mxu0
      %v3389 = vadd.f32 %v3333, %v3388
      %v3390 = vpop.f32.mrb[0].mxu0
      %v3391 = vpop.f32.mrb[0].mxu0
      %v3392 = vadd.f32 %v3333, %v3391
      %v3393 = vpop.f32.mrb[0].mxu0
      %3394 = vdwg.mxu0
      %s3395 = scalar_lea.vmem %s8, 16
      %v3396 = vld [vmem:[%s3395] sm:$0xf]
      %v3397 = vld [vmem:[%s3395 + $0x4] sm:$0xf]
      %v3398 = vld [vmem:[%s3395 + $0x8] sm:$0xf]
      %v3399 = vld [vmem:[%s3395 + $0xc] sm:$0xf]
      %v3400 = vld [vmem:[%s9 + $0x1] sm:$0x1]
      %v3401 = vlaneseq
      %v3402 = vshrl.u32 %v3401, 7
      %v3403 = vsub.s32 0, %v3402
      %v3404 = vrot.slane %v3400, %v3403
      %v3409 = vunpack.c.l.b16 %v3396
      %v3410 = vunpack.c.l.b16 %v3397
      %v3411 = vunpack.c.l.b16 %v3398
      %v3412 = vunpack.c.l.b16 %v3399
      %v3413 = vpack.c.b16 %v3410, %v3409
      %v3414 = vpack.c.b16 %v3412, %v3411
      %3417 = vmatprep.subr.bf16.mxu0 0
      %3418 = vmatpush1.bf16.msra.mxu0 %v3413
      %3419 = vmatprep.subr.bf16.mxu0 0
      %3420 = vmatpush1.bf16.msra.mxu0 %v3414
      %3421 = vmatprep.subr.bf16.mxu0 0
      %3422 = vmatpush1.bf16.msra.mxu0 0
      %3423 = vmatprep.subr.bf16.mxu0 0
      %3424 = vmatpush1.bf16.msra.mxu0 0
      %3425 = vmatprep.subr.bf16.mxu0 0
      %3426 = vmatpush1.bf16.msra.mxu0 0
      %3427 = vmatprep.subr.bf16.mxu0 0
      %3428 = vmatpush1.bf16.msra.mxu0 0
      %3429 = vmatprep.subr.bf16.mxu0 0
      %3430 = vmatpush1.bf16.msra.mxu0 0
      %3431 = vmatprep.subr.bf16.mxu0 0
      %3432 = vmatpush1.bf16.msra.mxu0 0
      %3433 = vmatprep.subr.bf16.mxu0 0
      %3434 = vmatpush1.bf16.msra.mxu0 0
      %3435 = vmatprep.subr.bf16.mxu0 0
      %3436 = vmatpush1.bf16.msra.mxu0 0
      %3437 = vmatprep.subr.bf16.mxu0 0
      %3438 = vmatpush1.bf16.msra.mxu0 0
      %3439 = vmatprep.subr.bf16.mxu0 0
      %3440 = vmatpush1.bf16.msra.mxu0 0
      %3441 = vmatprep.subr.bf16.mxu0 0
      %3442 = vmatpush1.bf16.msra.mxu0 0
      %3443 = vmatprep.subr.bf16.mxu0 0
      %3444 = vmatpush1.bf16.msra.mxu0 0
      %3445 = vmatprep.subr.bf16.mxu0 0
      %3446 = vmatpush1.bf16.msra.mxu0 0
      %3447 = vmatprep.subr.bf16.mxu0 0
      %3448 = vmatpush1.bf16.msra.mxu0 0
      %3449 = vmatprep.mubr.bf16.mxu0 0
      %3450 = vmatmul.mubr.bf16.gmra.mrb[0].mxu0 %v3270
      %v3451 = vpop.f32.mrb[0].mxu0
      %v3452 = vadd.f32 %v3404, %v3451
      %v3453 = vpop.f32.mrb[0].mxu0
      %v3454 = vpop.f32.mrb[0].mxu0
      %v3455 = vadd.f32 %v3404, %v3454
      %v3456 = vpop.f32.mrb[0].mxu0
      %3457 = vmatprep.mubr.bf16.mxu0 0
      %3458 = vmatmul.mubr.bf16.gmra.mrb[0].mxu0 %v3273
      %v3459 = vpop.f32.mrb[0].mxu0
      %v3460 = vadd.f32 %v3404, %v3459
      %v3461 = vpop.f32.mrb[0].mxu0
      %v3462 = vpop.f32.mrb[0].mxu0
      %v3463 = vadd.f32 %v3404, %v3462
      %v3464 = vpop.f32.mrb[0].mxu0
      %3465 = vdwg.mxu0
      %v3466 = vmul.f32 %v3310, %v642
      %v3467 = vmul.f32 %v3313, %v642
      %v3468 = vmul.f32 %v3318, %v642
      %v3469 = vmul.f32 %v3321, %v642
      %v3470 = vpack.c.bf16 %v3313, %v3310
      %v3471 = vpack.c.bf16 %v3321, %v3318
      %v3473 = vsel %vm667, %v3470, 0
      %v3476 = vsel %vm667, %v3471, 0
      %3478 = vmatprep.subr.bf16.mxu0 0
      %3479 = vmatpush1.bf16.msra.mxu0 %v877
      %3480 = vmatprep.subr.bf16.mxu0 0
      %3481 = vmatpush1.bf16.msra.mxu0 %v878
      %3482 = vmatprep.subr.bf16.mxu0 0
      %3483 = vmatpush1.bf16.msra.mxu0 0
      %3484 = vmatprep.subr.bf16.mxu0 0
      %3485 = vmatpush1.bf16.msra.mxu0 0
      %3486 = vmatprep.subr.bf16.mxu0 0
      %3487 = vmatpush1.bf16.msra.mxu0 0
      %3488 = vmatprep.subr.bf16.mxu0 0
      %3489 = vmatpush1.bf16.msra.mxu0 0
      %3490 = vmatprep.subr.bf16.mxu0 0
      %3491 = vmatpush1.bf16.msra.mxu0 0
      %3492 = vmatprep.subr.bf16.mxu0 0
      %3493 = vmatpush1.bf16.msra.mxu0 0
      %3494 = vmatprep.subr.bf16.mxu0 0
      %3495 = vmatpush1.bf16.msra.mxu0 0
      %3496 = vmatprep.subr.bf16.mxu0 0
      %3497 = vmatpush1.bf16.msra.mxu0 0
      %3498 = vmatprep.subr.bf16.mxu0 0
      %3499 = vmatpush1.bf16.msra.mxu0 0
      %3500 = vmatprep.subr.bf16.mxu0 0
      %3501 = vmatpush1.bf16.msra.mxu0 0
      %3502 = vmatprep.subr.bf16.mxu0 0
      %3503 = vmatpush1.bf16.msra.mxu0 0
      %3504 = vmatprep.subr.bf16.mxu0 0
      %3505 = vmatpush1.bf16.msra.mxu0 0
      %3506 = vmatprep.subr.bf16.mxu0 0
      %3507 = vmatpush1.bf16.msra.mxu0 0
      %3508 = vmatprep.subr.bf16.mxu0 0
      %3509 = vmatpush1.bf16.msra.mxu0 0
      %3510 = vmatprep.mubr.bf16.mxu0 0
      %3511 = vmatmul.mubr.bf16.gmra.mrb[0].mxu0 %v3473
      %v3512 = vpop.f32.mrb[0].mxu0
      %v3513 = vadd.f32 0.0, %v3512
      %v3514 = vpop.f32.mrb[0].mxu0
      %v3515 = vpop.f32.mrb[0].mxu0
      %v3516 = vadd.f32 0.0, %v3515
      %v3517 = vpop.f32.mrb[0].mxu0
      %3518 = vmatprep.mubr.bf16.mxu0 0
      %3519 = vmatmul.mubr.bf16.gmra.mrb[0].mxu0 %v3476
      %v3520 = vpop.f32.mrb[0].mxu0
      %v3521 = vadd.f32 0.0, %v3520
      %v3522 = vpop.f32.mrb[0].mxu0
      %v3523 = vpop.f32.mrb[0].mxu0
      %v3524 = vadd.f32 0.0, %v3523
      %v3525 = vpop.f32.mrb[0].mxu0
      %3526 = vdwg.mxu0
      %v3527 = vmul.f32 %v3513, %v643
      %v3528 = vmul.f32 %v3516, %v643
      %v3529 = vmul.f32 %v3521, %v643
      %v3530 = vmul.f32 %v3524, %v643
      %v3531 = vadd.f32 %v3466, %v3527
      %v3532 = vadd.f32 %v3467, %v3528
      %v3533 = vadd.f32 %v3468, %v3529
      %v3534 = vadd.f32 %v3469, %v3530
      %v3535 = vmul.f32 %v3381, %v642
      %v3536 = vmul.f32 %v3384, %v642
      %v3537 = vmul.f32 %v3389, %v642
      %v3538 = vmul.f32 %v3392, %v642
      %v3539 = vpack.c.bf16 %v3384, %v3381
      %v3540 = vpack.c.bf16 %v3392, %v3389
      %v3542 = vsel %vm667, %v3539, 0
      %v3545 = vsel %vm667, %v3540, 0
      %3547 = vmatprep.subr.bf16.mxu0 0
      %3548 = vmatpush1.bf16.msra.mxu0 %v877
      %3549 = vmatprep.subr.bf16.mxu0 0
      %3550 = vmatpush1.bf16.msra.mxu0 %v878
      %3551 = vmatprep.subr.bf16.mxu0 0
      %3552 = vmatpush1.bf16.msra.mxu0 0
      %3553 = vmatprep.subr.bf16.mxu0 0
      %3554 = vmatpush1.bf16.msra.mxu0 0
      %3555 = vmatprep.subr.bf16.mxu0 0
      %3556 = vmatpush1.bf16.msra.mxu0 0
      %3557 = vmatprep.subr.bf16.mxu0 0
      %3558 = vmatpush1.bf16.msra.mxu0 0
      %3559 = vmatprep.subr.bf16.mxu0 0
      %3560 = vmatpush1.bf16.msra.mxu0 0
      %3561 = vmatprep.subr.bf16.mxu0 0
      %3562 = vmatpush1.bf16.msra.mxu0 0
      %3563 = vmatprep.subr.bf16.mxu0 0
      %3564 = vmatpush1.bf16.msra.mxu0 0
      %3565 = vmatprep.subr.bf16.mxu0 0
      %3566 = vmatpush1.bf16.msra.mxu0 0
      %3567 = vmatprep.subr.bf16.mxu0 0
      %3568 = vmatpush1.bf16.msra.mxu0 0
      %3569 = vmatprep.subr.bf16.mxu0 0
      %3570 = vmatpush1.bf16.msra.mxu0 0
      %3571 = vmatprep.subr.bf16.mxu0 0
      %3572 = vmatpush1.bf16.msra.mxu0 0
      %3573 = vmatprep.subr.bf16.mxu0 0
      %3574 = vmatpush1.bf16.msra.mxu0 0
      %3575 = vmatprep.subr.bf16.mxu0 0
      %3576 = vmatpush1.bf16.msra.mxu0 0
      %3577 = vmatprep.subr.bf16.mxu0 0
      %3578 = vmatpush1.bf16.msra.mxu0 0
      %3579 = vmatprep.mubr.bf16.mxu0 0
      %3580 = vmatmul.mubr.bf16.gmra.mrb[0].mxu0 %v3542
      %v3581 = vpop.f32.mrb[0].mxu0
      %v3582 = vadd.f32 0.0, %v3581
      %v3583 = vpop.f32.mrb[0].mxu0
      %v3584 = vpop.f32.mrb[0].mxu0
      %v3585 = vadd.f32 0.0, %v3584
      %v3586 = vpop.f32.mrb[0].mxu0
      %3587 = vmatprep.mubr.bf16.mxu0 0
      %3588 = vmatmul.mubr.bf16.gmra.mrb[0].mxu0 %v3545
      %v3589 = vpop.f32.mrb[0].mxu0
      %v3590 = vadd.f32 0.0, %v3589
      %v3591 = vpop.f32.mrb[0].mxu0
      %v3592 = vpop.f32.mrb[0].mxu0
      %v3593 = vadd.f32 0.0, %v3592
      %v3594 = vpop.f32.mrb[0].mxu0
      %3595 = vdwg.mxu0
      %v3596 = vmul.f32 %v3582, %v643
      %v3597 = vmul.f32 %v3585, %v643
      %v3598 = vmul.f32 %v3590, %v643
      %v3599 = vmul.f32 %v3593, %v643
      %v3600 = vadd.f32 %v3535, %v3596
      %v3601 = vadd.f32 %v3536, %v3597
      %v3602 = vadd.f32 %v3537, %v3598
      %v3603 = vadd.f32 %v3538, %v3599
      %v3604 = vmul.f32 %v3531, 0.35355338
      %v3605 = vmul.f32 %v3532, 0.35355338
      %v3606 = vmul.f32 %v3533, 0.35355338
      %v3607 = vmul.f32 %v3534, 0.35355338
      %v3608 = vpack.c.bf16 %v3604, %v3604
      %v3609 = vpack.c.bf16 %v3605, %v3605
      %v3610 = vpack.c.bf16 %v3606, %v3606
      %v3611 = vpack.c.bf16 %v3607, %v3607
      %v3612 = vpack.c.bf16 %v3600, %v3600
      %v3613 = vpack.c.bf16 %v3601, %v3601
      %v3614 = vpack.c.bf16 %v3602, %v3602
      %v3615 = vpack.c.bf16 %v3603, %v3603
      %v3616 = vpack.c.bf16 %v3452, %v3452
      %v3617 = vpack.c.bf16 %v3455, %v3455
      %v3618 = vpack.c.bf16 %v3460, %v3460
      %v3619 = vpack.c.bf16 %v3463, %v3463
      %v3621 = vsel %vm1029, %v3608, 0
      %v3624 = vsel %vm1029, %v3612, 0
      %3626 = vmatprep.subr.bf16.mxu0 0
      %3627 = vmatpush1.bf16.xpose.msra.mxu0 %v3624
      %3628 = vmatprep.subr.bf16.mxu0 0
      %3629 = vmatpush1.bf16.xpose.msra.mxu0 0
      %3630 = vmatprep.subr.bf16.mxu0 0
      %3631 = vmatpush1.bf16.xpose.msra.mxu0 0
      %3632 = vmatprep.subr.bf16.mxu0 0
      %3633 = vmatpush1.bf16.xpose.msra.mxu0 0
      %3634 = vmatprep.subr.bf16.mxu0 0
      %3635 = vmatpush1.bf16.xpose.msra.mxu0 0
      %3636 = vmatprep.subr.bf16.mxu0 0
      %3637 = vmatpush1.bf16.xpose.msra.mxu0 0
      %3638 = vmatprep.subr.bf16.mxu0 0
      %3639 = vmatpush1.bf16.xpose.msra.mxu0 0
      %3640 = vmatprep.subr.bf16.mxu0 0
      %3641 = vmatpush1.bf16.xpose.msra.mxu0 0
      %3642 = vmatprep.subr.bf16.mxu0 0
      %3643 = vmatpush1.bf16.xpose.msra.mxu0 0
      %3644 = vmatprep.subr.bf16.mxu0 0
      %3645 = vmatpush1.bf16.xpose.msra.mxu0 0
      %3646 = vmatprep.subr.bf16.mxu0 0
      %3647 = vmatpush1.bf16.xpose.msra.mxu0 0
      %3648 = vmatprep.subr.bf16.mxu0 0
      %3649 = vmatpush1.bf16.xpose.msra.mxu0 0
      %3650 = vmatprep.subr.bf16.mxu0 0
      %3651 = vmatpush1.bf16.xpose.msra.mxu0 0
      %3652 = vmatprep.subr.bf16.mxu0 0
      %3653 = vmatpush1.bf16.xpose.msra.mxu0 0
      %3654 = vmatprep.subr.bf16.mxu0 0
      %3655 = vmatpush1.bf16.xpose.msra.mxu0 0
      %3656 = vmatprep.subr.bf16.mxu0 0
      %3657 = vmatpush1.bf16.xpose.msra.mxu0 0
      %3658 = vmatprep.mubr.bf16.mxu0 0
      %3659 = vmatmul.mubr.bf16.gmra.mrb[0].mxu0 %v3621
      %v3660 = vpop.f32.mrb[0].mxu0
      %v3661 = vadd.f32 0.0, %v3660
      %v3662 = vpop.f32.mrb[0].mxu0
      %v3663 = vpop.f32.mrb[0].mxu0
      %v3664 = vpop.f32.mrb[0].mxu0
      %3665 = vdwg.mxu0
      %v3667 = vsel %vm1029, %v3609, 0
      %v3670 = vsel %vm1029, %v3613, 0
      %3672 = vmatprep.subr.bf16.mxu0 0
      %3673 = vmatpush1.bf16.xpose.msra.mxu0 %v3670
      %3674 = vmatprep.subr.bf16.mxu0 0
      %3675 = vmatpush1.bf16.xpose.msra.mxu0 0
      %3676 = vmatprep.subr.bf16.mxu0 0
      %3677 = vmatpush1.bf16.xpose.msra.mxu0 0
      %3678 = vmatprep.subr.bf16.mxu0 0
      %3679 = vmatpush1.bf16.xpose.msra.mxu0 0
      %3680 = vmatprep.subr.bf16.mxu0 0
      %3681 = vmatpush1.bf16.xpose.msra.mxu0 0
      %3682 = vmatprep.subr.bf16.mxu0 0
      %3683 = vmatpush1.bf16.xpose.msra.mxu0 0
      %3684 = vmatprep.subr.bf16.mxu0 0
      %3685 = vmatpush1.bf16.xpose.msra.mxu0 0
      %3686 = vmatprep.subr.bf16.mxu0 0
      %3687 = vmatpush1.bf16.xpose.msra.mxu0 0
      %3688 = vmatprep.subr.bf16.mxu0 0
      %3689 = vmatpush1.bf16.xpose.msra.mxu0 0
      %3690 = vmatprep.subr.bf16.mxu0 0
      %3691 = vmatpush1.bf16.xpose.msra.mxu0 0
      %3692 = vmatprep.subr.bf16.mxu0 0
      %3693 = vmatpush1.bf16.xpose.msra.mxu0 0
      %3694 = vmatprep.subr.bf16.mxu0 0
      %3695 = vmatpush1.bf16.xpose.msra.mxu0 0
      %3696 = vmatprep.subr.bf16.mxu0 0
      %3697 = vmatpush1.bf16.xpose.msra.mxu0 0
      %3698 = vmatprep.subr.bf16.mxu0 0
      %3699 = vmatpush1.bf16.xpose.msra.mxu0 0
      %3700 = vmatprep.subr.bf16.mxu0 0
      %3701 = vmatpush1.bf16.xpose.msra.mxu0 0
      %3702 = vmatprep.subr.bf16.mxu0 0
      %3703 = vmatpush1.bf16.xpose.msra.mxu0 0
      %3704 = vmatprep.mubr.bf16.mxu0 0
      %3705 = vmatmul.mubr.bf16.gmra.mrb[0].mxu0 %v3667
      %v3706 = vpop.f32.mrb[0].mxu0
      %v3707 = vadd.f32 0.0, %v3706
      %v3708 = vpop.f32.mrb[0].mxu0
      %v3709 = vpop.f32.mrb[0].mxu0
      %v3710 = vpop.f32.mrb[0].mxu0
      %3711 = vdwg.mxu0
      %v3713 = vsel %vm1029, %v3610, 0
      %v3716 = vsel %vm1029, %v3614, 0
      %3718 = vmatprep.subr.bf16.mxu0 0
      %3719 = vmatpush1.bf16.xpose.msra.mxu0 %v3716
      %3720 = vmatprep.subr.bf16.mxu0 0
      %3721 = vmatpush1.bf16.xpose.msra.mxu0 0
      %3722 = vmatprep.subr.bf16.mxu0 0
      %3723 = vmatpush1.bf16.xpose.msra.mxu0 0
      %3724 = vmatprep.subr.bf16.mxu0 0
      %3725 = vmatpush1.bf16.xpose.msra.mxu0 0
      %3726 = vmatprep.subr.bf16.mxu0 0
      %3727 = vmatpush1.bf16.xpose.msra.mxu0 0
      %3728 = vmatprep.subr.bf16.mxu0 0
      %3729 = vmatpush1.bf16.xpose.msra.mxu0 0
      %3730 = vmatprep.subr.bf16.mxu0 0
      %3731 = vmatpush1.bf16.xpose.msra.mxu0 0
      %3732 = vmatprep.subr.bf16.mxu0 0
      %3733 = vmatpush1.bf16.xpose.msra.mxu0 0
      %3734 = vmatprep.subr.bf16.mxu0 0
      %3735 = vmatpush1.bf16.xpose.msra.mxu0 0
      %3736 = vmatprep.subr.bf16.mxu0 0
      %3737 = vmatpush1.bf16.xpose.msra.mxu0 0
      %3738 = vmatprep.subr.bf16.mxu0 0
      %3739 = vmatpush1.bf16.xpose.msra.mxu0 0
      %3740 = vmatprep.subr.bf16.mxu0 0
      %3741 = vmatpush1.bf16.xpose.msra.mxu0 0
      %3742 = vmatprep.subr.bf16.mxu0 0
      %3743 = vmatpush1.bf16.xpose.msra.mxu0 0
      %3744 = vmatprep.subr.bf16.mxu0 0
      %3745 = vmatpush1.bf16.xpose.msra.mxu0 0
      %3746 = vmatprep.subr.bf16.mxu0 0
      %3747 = vmatpush1.bf16.xpose.msra.mxu0 0
      %3748 = vmatprep.subr.bf16.mxu0 0
      %3749 = vmatpush1.bf16.xpose.msra.mxu0 0
      %3750 = vmatprep.mubr.bf16.mxu0 0
      %3751 = vmatmul.mubr.bf16.gmra.mrb[0].mxu0 %v3713
      %v3752 = vpop.f32.mrb[0].mxu0
      %v3753 = vadd.f32 0.0, %v3752
      %v3754 = vpop.f32.mrb[0].mxu0
      %v3755 = vpop.f32.mrb[0].mxu0
      %v3756 = vpop.f32.mrb[0].mxu0
      %3757 = vdwg.mxu0
      %v3759 = vsel %vm1029, %v3611, 0
      %v3762 = vsel %vm1029, %v3615, 0
      %3764 = vmatprep.subr.bf16.mxu0 0
      %3765 = vmatpush1.bf16.xpose.msra.mxu0 %v3762
      %3766 = vmatprep.subr.bf16.mxu0 0
      %3767 = vmatpush1.bf16.xpose.msra.mxu0 0
      %3768 = vmatprep.subr.bf16.mxu0 0
      %3769 = vmatpush1.bf16.xpose.msra.mxu0 0
      %3770 = vmatprep.subr.bf16.mxu0 0
      %3771 = vmatpush1.bf16.xpose.msra.mxu0 0
      %3772 = vmatprep.subr.bf16.mxu0 0
      %3773 = vmatpush1.bf16.xpose.msra.mxu0 0
      %3774 = vmatprep.subr.bf16.mxu0 0
      %3775 = vmatpush1.bf16.xpose.msra.mxu0 0
      %3776 = vmatprep.subr.bf16.mxu0 0
      %3777 = vmatpush1.bf16.xpose.msra.mxu0 0
      %3778 = vmatprep.subr.bf16.mxu0 0
      %3779 = vmatpush1.bf16.xpose.msra.mxu0 0
      %3780 = vmatprep.subr.bf16.mxu0 0
      %3781 = vmatpush1.bf16.xpose.msra.mxu0 0
      %3782 = vmatprep.subr.bf16.mxu0 0
      %3783 = vmatpush1.bf16.xpose.msra.mxu0 0
      %3784 = vmatprep.subr.bf16.mxu0 0
      %3785 = vmatpush1.bf16.xpose.msra.mxu0 0
      %3786 = vmatprep.subr.bf16.mxu0 0
      %3787 = vmatpush1.bf16.xpose.msra.mxu0 0
      %3788 = vmatprep.subr.bf16.mxu0 0
      %3789 = vmatpush1.bf16.xpose.msra.mxu0 0
      %3790 = vmatprep.subr.bf16.mxu0 0
      %3791 = vmatpush1.bf16.xpose.msra.mxu0 0
      %3792 = vmatprep.subr.bf16.mxu0 0
      %3793 = vmatpush1.bf16.xpose.msra.mxu0 0
      %3794 = vmatprep.subr.bf16.mxu0 0
      %3795 = vmatpush1.bf16.xpose.msra.mxu0 0
      %3796 = vmatprep.mubr.bf16.mxu0 0
      %3797 = vmatmul.mubr.bf16.gmra.mrb[0].mxu0 %v3759
      %v3798 = vpop.f32.mrb[0].mxu0
      %v3799 = vadd.f32 0.0, %v3798
      %v3800 = vpop.f32.mrb[0].mxu0
      %v3801 = vpop.f32.mrb[0].mxu0
      %v3802 = vpop.f32.mrb[0].mxu0
      %3803 = vdwg.mxu0
      %v3804 = vsel %vm1029, %v3661, -inf
      %3805 = vmax.xlane.f32.xlu0 %v3804
      %v3806 = vpop.xlane.xlu0 %3805
      %v3807 = vsel %vm1029, %v3707, -inf
      %3808 = vmax.xlane.f32.xlu0 %v3807
      %v3809 = vpop.xlane.xlu0 %3808
      %v3810 = vsel %vm1029, %v3753, -inf
      %3811 = vmax.xlane.f32.xlu0 %v3810
      %v3812 = vpop.xlane.xlu0 %3811
      %v3813 = vsel %vm1029, %v3799, -inf
      %3814 = vmax.xlane.f32.xlu0 %v3813
      %v3815 = vpop.xlane.xlu0 %3814
      %v3816 = vsub.f32 %v3661, %v3806
      %v3817 = vsub.f32 %v3707, %v3809
      %v3818 = vsub.f32 %v3753, %v3812
      %v3819 = vsub.f32 %v3799, %v3815
      %v3820 = vmul.f32 %v3816, 1.442695
      %v3821 = vpow.pop %v3820
      %v3822 = vmul.f32 %v3817, 1.442695
      %v3823 = vpow.pop %v3822
      %v3824 = vmul.f32 %v3818, 1.442695
      %v3825 = vpow.pop %v3824
      %v3826 = vmul.f32 %v3819, 1.442695
      %v3827 = vpow.pop %v3826
      %v3828 = vsel %vm1029, %v3821, 0.0
      %3829 = vadd.xlane.f32.xlu0 %v3828
      %v3830 = vpop.xlane.xlu0 %3829
      %v3831 = vsel %vm1029, %v3823, 0.0
      %3832 = vadd.xlane.f32.xlu0 %v3831
      %v3833 = vpop.xlane.xlu0 %3832
      %v3834 = vsel %vm1029, %v3825, 0.0
      %3835 = vadd.xlane.f32.xlu0 %v3834
      %v3836 = vpop.xlane.xlu0 %3835
      %v3837 = vsel %vm1029, %v3827, 0.0
      %3838 = vadd.xlane.f32.xlu0 %v3837
      %v3839 = vpop.xlane.xlu0 %3838
      %v3840 = vrcp.pop %v3830
      %v3841 = vmul.f32 %v3821, %v3840
      %v3842 = vrcp.pop %v3833
      %v3843 = vmul.f32 %v3823, %v3842
      %v3844 = vrcp.pop %v3836
      %v3845 = vmul.f32 %v3825, %v3844
      %v3846 = vrcp.pop %v3839
      %v3847 = vmul.f32 %v3827, %v3846
      %v3848 = vpack.c.bf16 %v3841, %v3841
      %v3849 = vpack.c.bf16 %v3843, %v3843
      %v3850 = vpack.c.bf16 %v3845, %v3845
      %v3851 = vpack.c.bf16 %v3847, %v3847
      %v3853 = vsel %vm1029, %v3848, 0
      %v3856 = vsel %vm1265, %v3616, 0
      %3858 = vmatprep.subr.bf16.mxu0 0
      %3859 = vmatpush1.bf16.msra.mxu0 %v3856
      %3860 = vmatprep.subr.bf16.mxu0 0
      %3861 = vmatpush1.bf16.msra.mxu0 0
      %3862 = vmatprep.subr.bf16.mxu0 0
      %3863 = vmatpush1.bf16.msra.mxu0 0
      %3864 = vmatprep.subr.bf16.mxu0 0
      %3865 = vmatpush1.bf16.msra.mxu0 0
      %3866 = vmatprep.subr.bf16.mxu0 0
      %3867 = vmatpush1.bf16.msra.mxu0 0
      %3868 = vmatprep.subr.bf16.mxu0 0
      %3869 = vmatpush1.bf16.msra.mxu0 0
      %3870 = vmatprep.subr.bf16.mxu0 0
      %3871 = vmatpush1.bf16.msra.mxu0 0
      %3872 = vmatprep.subr.bf16.mxu0 0
      %3873 = vmatpush1.bf16.msra.mxu0 0
      %3874 = vmatprep.subr.bf16.mxu0 0
      %3875 = vmatpush1.bf16.msra.mxu0 0
      %3876 = vmatprep.subr.bf16.mxu0 0
      %3877 = vmatpush1.bf16.msra.mxu0 0
      %3878 = vmatprep.subr.bf16.mxu0 0
      %3879 = vmatpush1.bf16.msra.mxu0 0
      %3880 = vmatprep.subr.bf16.mxu0 0
      %3881 = vmatpush1.bf16.msra.mxu0 0
      %3882 = vmatprep.subr.bf16.mxu0 0
      %3883 = vmatpush1.bf16.msra.mxu0 0
      %3884 = vmatprep.subr.bf16.mxu0 0
      %3885 = vmatpush1.bf16.msra.mxu0 0
      %3886 = vmatprep.subr.bf16.mxu0 0
      %3887 = vmatpush1.bf16.msra.mxu0 0
      %3888 = vmatprep.subr.bf16.mxu0 0
      %3889 = vmatpush1.bf16.msra.mxu0 0
      %3890 = vmatprep.mubr.bf16.mxu0 0
      %3891 = vmatmul.mubr.bf16.gmra.mrb[0].mxu0 %v3853
      %v3892 = vpop.f32.mrb[0].mxu0
      %v3893 = vadd.f32 0.0, %v3892
      %v3894 = vpop.f32.mrb[0].mxu0
      %v3895 = vpop.f32.mrb[0].mxu0
      %v3896 = vpop.f32.mrb[0].mxu0
      %3897 = vdwg.mxu0
      %v3899 = vsel %vm1029, %v3849, 0
      %v3902 = vsel %vm1265, %v3617, 0
      %3904 = vmatprep.subr.bf16.mxu0 0
      %3905 = vmatpush1.bf16.msra.mxu0 %v3902
      %3906 = vmatprep.subr.bf16.mxu0 0
      %3907 = vmatpush1.bf16.msra.mxu0 0
      %3908 = vmatprep.subr.bf16.mxu0 0
      %3909 = vmatpush1.bf16.msra.mxu0 0
      %3910 = vmatprep.subr.bf16.mxu0 0
      %3911 = vmatpush1.bf16.msra.mxu0 0
      %3912 = vmatprep.subr.bf16.mxu0 0
      %3913 = vmatpush1.bf16.msra.mxu0 0
      %3914 = vmatprep.subr.bf16.mxu0 0
      %3915 = vmatpush1.bf16.msra.mxu0 0
      %3916 = vmatprep.subr.bf16.mxu0 0
      %3917 = vmatpush1.bf16.msra.mxu0 0
      %3918 = vmatprep.subr.bf16.mxu0 0
      %3919 = vmatpush1.bf16.msra.mxu0 0
      %3920 = vmatprep.subr.bf16.mxu0 0
      %3921 = vmatpush1.bf16.msra.mxu0 0
      %3922 = vmatprep.subr.bf16.mxu0 0
      %3923 = vmatpush1.bf16.msra.mxu0 0
      %3924 = vmatprep.subr.bf16.mxu0 0
      %3925 = vmatpush1.bf16.msra.mxu0 0
      %3926 = vmatprep.subr.bf16.mxu0 0
      %3927 = vmatpush1.bf16.msra.mxu0 0
      %3928 = vmatprep.subr.bf16.mxu0 0
      %3929 = vmatpush1.bf16.msra.mxu0 0
      %3930 = vmatprep.subr.bf16.mxu0 0
      %3931 = vmatpush1.bf16.msra.mxu0 0
      %3932 = vmatprep.subr.bf16.mxu0 0
      %3933 = vmatpush1.bf16.msra.mxu0 0
      %3934 = vmatprep.subr.bf16.mxu0 0
      %3935 = vmatpush1.bf16.msra.mxu0 0
      %3936 = vmatprep.mubr.bf16.mxu0 0
      %3937 = vmatmul.mubr.bf16.gmra.mrb[0].mxu0 %v3899
      %v3938 = vpop.f32.mrb[0].mxu0
      %v3939 = vadd.f32 0.0, %v3938
      %v3940 = vpop.f32.mrb[0].mxu0
      %v3941 = vpop.f32.mrb[0].mxu0
      %v3942 = vpop.f32.mrb[0].mxu0
      %3943 = vdwg.mxu0
      %v3945 = vsel %vm1029, %v3850, 0
      %v3948 = vsel %vm1265, %v3618, 0
      %3950 = vmatprep.subr.bf16.mxu0 0
      %3951 = vmatpush1.bf16.msra.mxu0 %v3948
      %3952 = vmatprep.subr.bf16.mxu0 0
      %3953 = vmatpush1.bf16.msra.mxu0 0
      %3954 = vmatprep.subr.bf16.mxu0 0
      %3955 = vmatpush1.bf16.msra.mxu0 0
      %3956 = vmatprep.subr.bf16.mxu0 0
      %3957 = vmatpush1.bf16.msra.mxu0 0
      %3958 = vmatprep.subr.bf16.mxu0 0
      %3959 = vmatpush1.bf16.msra.mxu0 0
      %3960 = vmatprep.subr.bf16.mxu0 0
      %3961 = vmatpush1.bf16.msra.mxu0 0
      %3962 = vmatprep.subr.bf16.mxu0 0
      %3963 = vmatpush1.bf16.msra.mxu0 0
      %3964 = vmatprep.subr.bf16.mxu0 0
      %3965 = vmatpush1.bf16.msra.mxu0 0
      %3966 = vmatprep.subr.bf16.mxu0 0
      %3967 = vmatpush1.bf16.msra.mxu0 0
      %3968 = vmatprep.subr.bf16.mxu0 0
      %3969 = vmatpush1.bf16.msra.mxu0 0
      %3970 = vmatprep.subr.bf16.mxu0 0
      %3971 = vmatpush1.bf16.msra.mxu0 0
      %3972 = vmatprep.subr.bf16.mxu0 0
      %3973 = vmatpush1.bf16.msra.mxu0 0
      %3974 = vmatprep.subr.bf16.mxu0 0
      %3975 = vmatpush1.bf16.msra.mxu0 0
      %3976 = vmatprep.subr.bf16.mxu0 0
      %3977 = vmatpush1.bf16.msra.mxu0 0
      %3978 = vmatprep.subr.bf16.mxu0 0
      %3979 = vmatpush1.bf16.msra.mxu0 0
      %3980 = vmatprep.subr.bf16.mxu0 0
      %3981 = vmatpush1.bf16.msra.mxu0 0
      %3982 = vmatprep.mubr.bf16.mxu0 0
      %3983 = vmatmul.mubr.bf16.gmra.mrb[0].mxu0 %v3945
      %v3984 = vpop.f32.mrb[0].mxu0
      %v3985 = vadd.f32 0.0, %v3984
      %v3986 = vpop.f32.mrb[0].mxu0
      %v3987 = vpop.f32.mrb[0].mxu0
      %v3988 = vpop.f32.mrb[0].mxu0
      %3989 = vdwg.mxu0
      %v3991 = vsel %vm1029, %v3851, 0
      %v3994 = vsel %vm1265, %v3619, 0
      %3996 = vmatprep.subr.bf16.mxu0 0
      %3997 = vmatpush1.bf16.msra.mxu0 %v3994
      %3998 = vmatprep.subr.bf16.mxu0 0
      %3999 = vmatpush1.bf16.msra.mxu0 0
      %4000 = vmatprep.subr.bf16.mxu0 0
      %4001 = vmatpush1.bf16.msra.mxu0 0
      %4002 = vmatprep.subr.bf16.mxu0 0
      %4003 = vmatpush1.bf16.msra.mxu0 0
      %4004 = vmatprep.subr.bf16.mxu0 0
      %4005 = vmatpush1.bf16.msra.mxu0 0
      %4006 = vmatprep.subr.bf16.mxu0 0
      %4007 = vmatpush1.bf16.msra.mxu0 0
      %4008 = vmatprep.subr.bf16.mxu0 0
      %4009 = vmatpush1.bf16.msra.mxu0 0
      %4010 = vmatprep.subr.bf16.mxu0 0
      %4011 = vmatpush1.bf16.msra.mxu0 0
      %4012 = vmatprep.subr.bf16.mxu0 0
      %4013 = vmatpush1.bf16.msra.mxu0 0
      %4014 = vmatprep.subr.bf16.mxu0 0
      %4015 = vmatpush1.bf16.msra.mxu0 0
      %4016 = vmatprep.subr.bf16.mxu0 0
      %4017 = vmatpush1.bf16.msra.mxu0 0
      %4018 = vmatprep.subr.bf16.mxu0 0
      %4019 = vmatpush1.bf16.msra.mxu0 0
      %4020 = vmatprep.subr.bf16.mxu0 0
      %4021 = vmatpush1.bf16.msra.mxu0 0
      %4022 = vmatprep.subr.bf16.mxu0 0
      %4023 = vmatpush1.bf16.msra.mxu0 0
      %4024 = vmatprep.subr.bf16.mxu0 0
      %4025 = vmatpush1.bf16.msra.mxu0 0
      %4026 = vmatprep.subr.bf16.mxu0 0
      %4027 = vmatpush1.bf16.msra.mxu0 0
      %4028 = vmatprep.mubr.bf16.mxu0 0
      %4029 = vmatmul.mubr.bf16.gmra.mrb[0].mxu0 %v3991
      %v4030 = vpop.f32.mrb[0].mxu0
      %v4031 = vadd.f32 0.0, %v4030
      %v4032 = vpop.f32.mrb[0].mxu0
      %v4033 = vpop.f32.mrb[0].mxu0
      %v4034 = vpop.f32.mrb[0].mxu0
      %4035 = vdwg.mxu0
      %4037 = vrot.lane.b32.xlu0 %v3608, 120
      %v4038 = vpop.permute.xlu0 %4037
      %4040 = vrot.lane.b32.xlu0 %v3612, 120
      %v4041 = vpop.permute.xlu0 %4040
      %v4043 = vsel %vm1029, %v4038, 0
      %v4046 = vsel %vm1029, %v4041, 0
      %4048 = vmatprep.subr.bf16.mxu0 0
      %4049 = vmatpush1.bf16.xpose.msra.mxu0 %v4046
      %4050 = vmatprep.subr.bf16.mxu0 0
      %4051 = vmatpush1.bf16.xpose.msra.mxu0 0
      %4052 = vmatprep.subr.bf16.mxu0 0
      %4053 = vmatpush1.bf16.xpose.msra.mxu0 0
      %4054 = vmatprep.subr.bf16.mxu0 0
      %4055 = vmatpush1.bf16.xpose.msra.mxu0 0
      %4056 = vmatprep.subr.bf16.mxu0 0
      %4057 = vmatpush1.bf16.xpose.msra.mxu0 0
      %4058 = vmatprep.subr.bf16.mxu0 0
      %4059 = vmatpush1.bf16.xpose.msra.mxu0 0
      %4060 = vmatprep.subr.bf16.mxu0 0
      %4061 = vmatpush1.bf16.xpose.msra.mxu0 0
      %4062 = vmatprep.subr.bf16.mxu0 0
      %4063 = vmatpush1.bf16.xpose.msra.mxu0 0
      %4064 = vmatprep.subr.bf16.mxu0 0
      %4065 = vmatpush1.bf16.xpose.msra.mxu0 0
      %4066 = vmatprep.subr.bf16.mxu0 0
      %4067 = vmatpush1.bf16.xpose.msra.mxu0 0
      %4068 = vmatprep.subr.bf16.mxu0 0
      %4069 = vmatpush1.bf16.xpose.msra.mxu0 0
      %4070 = vmatprep.subr.bf16.mxu0 0
      %4071 = vmatpush1.bf16.xpose.msra.mxu0 0
      %4072 = vmatprep.subr.bf16.mxu0 0
      %4073 = vmatpush1.bf16.xpose.msra.mxu0 0
      %4074 = vmatprep.subr.bf16.mxu0 0
      %4075 = vmatpush1.bf16.xpose.msra.mxu0 0
      %4076 = vmatprep.subr.bf16.mxu0 0
      %4077 = vmatpush1.bf16.xpose.msra.mxu0 0
      %4078 = vmatprep.subr.bf16.mxu0 0
      %4079 = vmatpush1.bf16.xpose.msra.mxu0 0
      %4080 = vmatprep.mubr.bf16.mxu0 0
      %4081 = vmatmul.mubr.bf16.gmra.mrb[0].mxu0 %v4043
      %v4082 = vpop.f32.mrb[0].mxu0
      %v4083 = vadd.f32 0.0, %v4082
      %v4084 = vpop.f32.mrb[0].mxu0
      %v4085 = vpop.f32.mrb[0].mxu0
      %v4086 = vpop.f32.mrb[0].mxu0
      %4087 = vdwg.mxu0
      %4089 = vrot.lane.b32.xlu0 %v3609, 120
      %v4090 = vpop.permute.xlu0 %4089
      %4092 = vrot.lane.b32.xlu0 %v3613, 120
      %v4093 = vpop.permute.xlu0 %4092
      %v4095 = vsel %vm1029, %v4090, 0
      %v4098 = vsel %vm1029, %v4093, 0
      %4100 = vmatprep.subr.bf16.mxu0 0
      %4101 = vmatpush1.bf16.xpose.msra.mxu0 %v4098
      %4102 = vmatprep.subr.bf16.mxu0 0
      %4103 = vmatpush1.bf16.xpose.msra.mxu0 0
      %4104 = vmatprep.subr.bf16.mxu0 0
      %4105 = vmatpush1.bf16.xpose.msra.mxu0 0
      %4106 = vmatprep.subr.bf16.mxu0 0
      %4107 = vmatpush1.bf16.xpose.msra.mxu0 0
      %4108 = vmatprep.subr.bf16.mxu0 0
      %4109 = vmatpush1.bf16.xpose.msra.mxu0 0
      %4110 = vmatprep.subr.bf16.mxu0 0
      %4111 = vmatpush1.bf16.xpose.msra.mxu0 0
      %4112 = vmatprep.subr.bf16.mxu0 0
      %4113 = vmatpush1.bf16.xpose.msra.mxu0 0
      %4114 = vmatprep.subr.bf16.mxu0 0
      %4115 = vmatpush1.bf16.xpose.msra.mxu0 0
      %4116 = vmatprep.subr.bf16.mxu0 0
      %4117 = vmatpush1.bf16.xpose.msra.mxu0 0
      %4118 = vmatprep.subr.bf16.mxu0 0
      %4119 = vmatpush1.bf16.xpose.msra.mxu0 0
      %4120 = vmatprep.subr.bf16.mxu0 0
      %4121 = vmatpush1.bf16.xpose.msra.mxu0 0
      %4122 = vmatprep.subr.bf16.mxu0 0
      %4123 = vmatpush1.bf16.xpose.msra.mxu0 0
      %4124 = vmatprep.subr.bf16.mxu0 0
      %4125 = vmatpush1.bf16.xpose.msra.mxu0 0
      %4126 = vmatprep.subr.bf16.mxu0 0
      %4127 = vmatpush1.bf16.xpose.msra.mxu0 0
      %4128 = vmatprep.subr.bf16.mxu0 0
      %4129 = vmatpush1.bf16.xpose.msra.mxu0 0
      %4130 = vmatprep.subr.bf16.mxu0 0
      %4131 = vmatpush1.bf16.xpose.msra.mxu0 0
      %4132 = vmatprep.mubr.bf16.mxu0 0
      %4133 = vmatmul.mubr.bf16.gmra.mrb[0].mxu0 %v4095
      %v4134 = vpop.f32.mrb[0].mxu0
      %v4135 = vadd.f32 0.0, %v4134
      %v4136 = vpop.f32.mrb[0].mxu0
      %v4137 = vpop.f32.mrb[0].mxu0
      %v4138 = vpop.f32.mrb[0].mxu0
      %4139 = vdwg.mxu0
      %4141 = vrot.lane.b32.xlu0 %v3610, 120
      %v4142 = vpop.permute.xlu0 %4141
      %4144 = vrot.lane.b32.xlu0 %v3614, 120
      %v4145 = vpop.permute.xlu0 %4144
      %v4147 = vsel %vm1029, %v4142, 0
      %v4150 = vsel %vm1029, %v4145, 0
      %4152 = vmatprep.subr.bf16.mxu0 0
      %4153 = vmatpush1.bf16.xpose.msra.mxu0 %v4150
      %4154 = vmatprep.subr.bf16.mxu0 0
      %4155 = vmatpush1.bf16.xpose.msra.mxu0 0
      %4156 = vmatprep.subr.bf16.mxu0 0
      %4157 = vmatpush1.bf16.xpose.msra.mxu0 0
      %4158 = vmatprep.subr.bf16.mxu0 0
      %4159 = vmatpush1.bf16.xpose.msra.mxu0 0
      %4160 = vmatprep.subr.bf16.mxu0 0
      %4161 = vmatpush1.bf16.xpose.msra.mxu0 0
      %4162 = vmatprep.subr.bf16.mxu0 0
      %4163 = vmatpush1.bf16.xpose.msra.mxu0 0
      %4164 = vmatprep.subr.bf16.mxu0 0
      %4165 = vmatpush1.bf16.xpose.msra.mxu0 0
      %4166 = vmatprep.subr.bf16.mxu0 0
      %4167 = vmatpush1.bf16.xpose.msra.mxu0 0
      %4168 = vmatprep.subr.bf16.mxu0 0
      %4169 = vmatpush1.bf16.xpose.msra.mxu0 0
      %4170 = vmatprep.subr.bf16.mxu0 0
      %4171 = vmatpush1.bf16.xpose.msra.mxu0 0
      %4172 = vmatprep.subr.bf16.mxu0 0
      %4173 = vmatpush1.bf16.xpose.msra.mxu0 0
      %4174 = vmatprep.subr.bf16.mxu0 0
      %4175 = vmatpush1.bf16.xpose.msra.mxu0 0
      %4176 = vmatprep.subr.bf16.mxu0 0
      %4177 = vmatpush1.bf16.xpose.msra.mxu0 0
      %4178 = vmatprep.subr.bf16.mxu0 0
      %4179 = vmatpush1.bf16.xpose.msra.mxu0 0
      %4180 = vmatprep.subr.bf16.mxu0 0
      %4181 = vmatpush1.bf16.xpose.msra.mxu0 0
      %4182 = vmatprep.subr.bf16.mxu0 0
      %4183 = vmatpush1.bf16.xpose.msra.mxu0 0
      %4184 = vmatprep.mubr.bf16.mxu0 0
      %4185 = vmatmul.mubr.bf16.gmra.mrb[0].mxu0 %v4147
      %v4186 = vpop.f32.mrb[0].mxu0
      %v4187 = vadd.f32 0.0, %v4186
      %v4188 = vpop.f32.mrb[0].mxu0
      %v4189 = vpop.f32.mrb[0].mxu0
      %v4190 = vpop.f32.mrb[0].mxu0
      %4191 = vdwg.mxu0
      %4193 = vrot.lane.b32.xlu0 %v3611, 120
      %v4194 = vpop.permute.xlu0 %4193
      %4196 = vrot.lane.b32.xlu0 %v3615, 120
      %v4197 = vpop.permute.xlu0 %4196
      %v4199 = vsel %vm1029, %v4194, 0
      %v4202 = vsel %vm1029, %v4197, 0
      %4204 = vmatprep.subr.bf16.mxu0 0
      %4205 = vmatpush1.bf16.xpose.msra.mxu0 %v4202
      %4206 = vmatprep.subr.bf16.mxu0 0
      %4207 = vmatpush1.bf16.xpose.msra.mxu0 0
      %4208 = vmatprep.subr.bf16.mxu0 0
      %4209 = vmatpush1.bf16.xpose.msra.mxu0 0
      %4210 = vmatprep.subr.bf16.mxu0 0
      %4211 = vmatpush1.bf16.xpose.msra.mxu0 0
      %4212 = vmatprep.subr.bf16.mxu0 0
      %4213 = vmatpush1.bf16.xpose.msra.mxu0 0
      %4214 = vmatprep.subr.bf16.mxu0 0
      %4215 = vmatpush1.bf16.xpose.msra.mxu0 0
      %4216 = vmatprep.subr.bf16.mxu0 0
      %4217 = vmatpush1.bf16.xpose.msra.mxu0 0
      %4218 = vmatprep.subr.bf16.mxu0 0
      %4219 = vmatpush1.bf16.xpose.msra.mxu0 0
      %4220 = vmatprep.subr.bf16.mxu0 0
      %4221 = vmatpush1.bf16.xpose.msra.mxu0 0
      %4222 = vmatprep.subr.bf16.mxu0 0
      %4223 = vmatpush1.bf16.xpose.msra.mxu0 0
      %4224 = vmatprep.subr.bf16.mxu0 0
      %4225 = vmatpush1.bf16.xpose.msra.mxu0 0
      %4226 = vmatprep.subr.bf16.mxu0 0
      %4227 = vmatpush1.bf16.xpose.msra.mxu0 0
      %4228 = vmatprep.subr.bf16.mxu0 0
      %4229 = vmatpush1.bf16.xpose.msra.mxu0 0
      %4230 = vmatprep.subr.bf16.mxu0 0
      %4231 = vmatpush1.bf16.xpose.msra.mxu0 0
      %4232 = vmatprep.subr.bf16.mxu0 0
      %4233 = vmatpush1.bf16.xpose.msra.mxu0 0
      %4234 = vmatprep.subr.bf16.mxu0 0
      %4235 = vmatpush1.bf16.xpose.msra.mxu0 0
      %4236 = vmatprep.mubr.bf16.mxu0 0
      %4237 = vmatmul.mubr.bf16.gmra.mrb[0].mxu0 %v4199
      %v4238 = vpop.f32.mrb[0].mxu0
      %v4239 = vadd.f32 0.0, %v4238
      %v4240 = vpop.f32.mrb[0].mxu0
      %v4241 = vpop.f32.mrb[0].mxu0
      %v4242 = vpop.f32.mrb[0].mxu0
      %4243 = vdwg.mxu0
      %v4244 = vsel %vm1029, %v4083, -inf
      %4245 = vmax.xlane.f32.xlu0 %v4244
      %v4246 = vpop.xlane.xlu0 %4245
      %v4247 = vsel %vm1029, %v4135, -inf
      %4248 = vmax.xlane.f32.xlu0 %v4247
      %v4249 = vpop.xlane.xlu0 %4248
      %v4250 = vsel %vm1029, %v4187, -inf
      %4251 = vmax.xlane.f32.xlu0 %v4250
      %v4252 = vpop.xlane.xlu0 %4251
      %v4253 = vsel %vm1029, %v4239, -inf
      %4254 = vmax.xlane.f32.xlu0 %v4253
      %v4255 = vpop.xlane.xlu0 %4254
      %v4256 = vsub.f32 %v4083, %v4246
      %v4257 = vsub.f32 %v4135, %v4249
      %v4258 = vsub.f32 %v4187, %v4252
      %v4259 = vsub.f32 %v4239, %v4255
      %v4260 = vmul.f32 %v4256, 1.442695
      %v4261 = vpow.pop %v4260
      %v4262 = vmul.f32 %v4257, 1.442695
      %v4263 = vpow.pop %v4262
      %v4264 = vmul.f32 %v4258, 1.442695
      %v4265 = vpow.pop %v4264
      %v4266 = vmul.f32 %v4259, 1.442695
      %v4267 = vpow.pop %v4266
      %v4268 = vsel %vm1029, %v4261, 0.0
      %4269 = vadd.xlane.f32.xlu0 %v4268
      %v4270 = vpop.xlane.xlu0 %4269
      %v4271 = vsel %vm1029, %v4263, 0.0
      %4272 = vadd.xlane.f32.xlu0 %v4271
      %v4273 = vpop.xlane.xlu0 %4272
      %v4274 = vsel %vm1029, %v4265, 0.0
      %4275 = vadd.xlane.f32.xlu0 %v4274
      %v4276 = vpop.xlane.xlu0 %4275
      %v4277 = vsel %vm1029, %v4267, 0.0
      %4278 = vadd.xlane.f32.xlu0 %v4277
      %v4279 = vpop.xlane.xlu0 %4278
      %v4280 = vrcp.pop %v4270
      %v4281 = vmul.f32 %v4261, %v4280
      %v4282 = vrcp.pop %v4273
      %v4283 = vmul.f32 %v4263, %v4282
      %v4284 = vrcp.pop %v4276
      %v4285 = vmul.f32 %v4265, %v4284
      %v4286 = vrcp.pop %v4279
      %v4287 = vmul.f32 %v4267, %v4286
      %v4288 = vpack.c.bf16 %v4281, %v4281
      %v4289 = vpack.c.bf16 %v4283, %v4283
      %v4290 = vpack.c.bf16 %v4285, %v4285
      %v4291 = vpack.c.bf16 %v4287, %v4287
      %4293 = vrot.lane.b32.xlu0 %v3616, 120
      %v4294 = vpop.permute.xlu0 %4293
      %v4296 = vsel %vm1029, %v4288, 0
      %v4299 = vsel %vm1265, %v4294, 0
      %4301 = vmatprep.subr.bf16.mxu0 0
      %4302 = vmatpush1.bf16.msra.mxu0 %v4299
      %4303 = vmatprep.subr.bf16.mxu0 0
      %4304 = vmatpush1.bf16.msra.mxu0 0
      %4305 = vmatprep.subr.bf16.mxu0 0
      %4306 = vmatpush1.bf16.msra.mxu0 0
      %4307 = vmatprep.subr.bf16.mxu0 0
      %4308 = vmatpush1.bf16.msra.mxu0 0
      %4309 = vmatprep.subr.bf16.mxu0 0
      %4310 = vmatpush1.bf16.msra.mxu0 0
      %4311 = vmatprep.subr.bf16.mxu0 0
      %4312 = vmatpush1.bf16.msra.mxu0 0
      %4313 = vmatprep.subr.bf16.mxu0 0
      %4314 = vmatpush1.bf16.msra.mxu0 0
      %4315 = vmatprep.subr.bf16.mxu0 0
      %4316 = vmatpush1.bf16.msra.mxu0 0
      %4317 = vmatprep.subr.bf16.mxu0 0
      %4318 = vmatpush1.bf16.msra.mxu0 0
      %4319 = vmatprep.subr.bf16.mxu0 0
      %4320 = vmatpush1.bf16.msra.mxu0 0
      %4321 = vmatprep.subr.bf16.mxu0 0
      %4322 = vmatpush1.bf16.msra.mxu0 0
      %4323 = vmatprep.subr.bf16.mxu0 0
      %4324 = vmatpush1.bf16.msra.mxu0 0
      %4325 = vmatprep.subr.bf16.mxu0 0
      %4326 = vmatpush1.bf16.msra.mxu0 0
      %4327 = vmatprep.subr.bf16.mxu0 0
      %4328 = vmatpush1.bf16.msra.mxu0 0
      %4329 = vmatprep.subr.bf16.mxu0 0
      %4330 = vmatpush1.bf16.msra.mxu0 0
      %4331 = vmatprep.subr.bf16.mxu0 0
      %4332 = vmatpush1.bf16.msra.mxu0 0
      %4333 = vmatprep.mubr.bf16.mxu0 0
      %4334 = vmatmul.mubr.bf16.gmra.mrb[0].mxu0 %v4296
      %v4335 = vpop.f32.mrb[0].mxu0
      %v4336 = vadd.f32 0.0, %v4335
      %v4337 = vpop.f32.mrb[0].mxu0
      %v4338 = vpop.f32.mrb[0].mxu0
      %v4339 = vpop.f32.mrb[0].mxu0
      %4340 = vdwg.mxu0
      %4342 = vrot.lane.b32.xlu0 %v3617, 120
      %v4343 = vpop.permute.xlu0 %4342
      %v4345 = vsel %vm1029, %v4289, 0
      %v4348 = vsel %vm1265, %v4343, 0
      %4350 = vmatprep.subr.bf16.mxu0 0
      %4351 = vmatpush1.bf16.msra.mxu0 %v4348
      %4352 = vmatprep.subr.bf16.mxu0 0
      %4353 = vmatpush1.bf16.msra.mxu0 0
      %4354 = vmatprep.subr.bf16.mxu0 0
      %4355 = vmatpush1.bf16.msra.mxu0 0
      %4356 = vmatprep.subr.bf16.mxu0 0
      %4357 = vmatpush1.bf16.msra.mxu0 0
      %4358 = vmatprep.subr.bf16.mxu0 0
      %4359 = vmatpush1.bf16.msra.mxu0 0
      %4360 = vmatprep.subr.bf16.mxu0 0
      %4361 = vmatpush1.bf16.msra.mxu0 0
      %4362 = vmatprep.subr.bf16.mxu0 0
      %4363 = vmatpush1.bf16.msra.mxu0 0
      %4364 = vmatprep.subr.bf16.mxu0 0
      %4365 = vmatpush1.bf16.msra.mxu0 0
      %4366 = vmatprep.subr.bf16.mxu0 0
      %4367 = vmatpush1.bf16.msra.mxu0 0
      %4368 = vmatprep.subr.bf16.mxu0 0
      %4369 = vmatpush1.bf16.msra.mxu0 0
      %4370 = vmatprep.subr.bf16.mxu0 0
      %4371 = vmatpush1.bf16.msra.mxu0 0
      %4372 = vmatprep.subr.bf16.mxu0 0
      %4373 = vmatpush1.bf16.msra.mxu0 0
      %4374 = vmatprep.subr.bf16.mxu0 0
      %4375 = vmatpush1.bf16.msra.mxu0 0
      %4376 = vmatprep.subr.bf16.mxu0 0
      %4377 = vmatpush1.bf16.msra.mxu0 0
      %4378 = vmatprep.subr.bf16.mxu0 0
      %4379 = vmatpush1.bf16.msra.mxu0 0
      %4380 = vmatprep.subr.bf16.mxu0 0
      %4381 = vmatpush1.bf16.msra.mxu0 0
      %4382 = vmatprep.mubr.bf16.mxu0 0
      %4383 = vmatmul.mubr.bf16.gmra.mrb[0].mxu0 %v4345
      %v4384 = vpop.f32.mrb[0].mxu0
      %v4385 = vadd.f32 0.0, %v4384
      %v4386 = vpop.f32.mrb[0].mxu0
      %v4387 = vpop.f32.mrb[0].mxu0
      %v4388 = vpop.f32.mrb[0].mxu0
      %4389 = vdwg.mxu0
      %4391 = vrot.lane.b32.xlu0 %v3618, 120
      %v4392 = vpop.permute.xlu0 %4391
      %v4394 = vsel %vm1029, %v4290, 0
      %v4397 = vsel %vm1265, %v4392, 0
      %4399 = vmatprep.subr.bf16.mxu0 0
      %4400 = vmatpush1.bf16.msra.mxu0 %v4397
      %4401 = vmatprep.subr.bf16.mxu0 0
      %4402 = vmatpush1.bf16.msra.mxu0 0
      %4403 = vmatprep.subr.bf16.mxu0 0
      %4404 = vmatpush1.bf16.msra.mxu0 0
      %4405 = vmatprep.subr.bf16.mxu0 0
      %4406 = vmatpush1.bf16.msra.mxu0 0
      %4407 = vmatprep.subr.bf16.mxu0 0
      %4408 = vmatpush1.bf16.msra.mxu0 0
      %4409 = vmatprep.subr.bf16.mxu0 0
      %4410 = vmatpush1.bf16.msra.mxu0 0
      %4411 = vmatprep.subr.bf16.mxu0 0
      %4412 = vmatpush1.bf16.msra.mxu0 0
      %4413 = vmatprep.subr.bf16.mxu0 0
      %4414 = vmatpush1.bf16.msra.mxu0 0
      %4415 = vmatprep.subr.bf16.mxu0 0
      %4416 = vmatpush1.bf16.msra.mxu0 0
      %4417 = vmatprep.subr.bf16.mxu0 0
      %4418 = vmatpush1.bf16.msra.mxu0 0
      %4419 = vmatprep.subr.bf16.mxu0 0
      %4420 = vmatpush1.bf16.msra.mxu0 0
      %4421 = vmatprep.subr.bf16.mxu0 0
      %4422 = vmatpush1.bf16.msra.mxu0 0
      %4423 = vmatprep.subr.bf16.mxu0 0
      %4424 = vmatpush1.bf16.msra.mxu0 0
      %4425 = vmatprep.subr.bf16.mxu0 0
      %4426 = vmatpush1.bf16.msra.mxu0 0
      %4427 = vmatprep.subr.bf16.mxu0 0
      %4428 = vmatpush1.bf16.msra.mxu0 0
      %4429 = vmatprep.subr.bf16.mxu0 0
      %4430 = vmatpush1.bf16.msra.mxu0 0
      %4431 = vmatprep.mubr.bf16.mxu0 0
      %4432 = vmatmul.mubr.bf16.gmra.mrb[0].mxu0 %v4394
      %v4433 = vpop.f32.mrb[0].mxu0
      %v4434 = vadd.f32 0.0, %v4433
      %v4435 = vpop.f32.mrb[0].mxu0
      %v4436 = vpop.f32.mrb[0].mxu0
      %v4437 = vpop.f32.mrb[0].mxu0
      %4438 = vdwg.mxu0
      %4440 = vrot.lane.b32.xlu0 %v3619, 120
      %v4441 = vpop.permute.xlu0 %4440
      %v4443 = vsel %vm1029, %v4291, 0
      %v4446 = vsel %vm1265, %v4441, 0
      %4448 = vmatprep.subr.bf16.mxu0 0
      %4449 = vmatpush1.bf16.msra.mxu0 %v4446
      %4450 = vmatprep.subr.bf16.mxu0 0
      %4451 = vmatpush1.bf16.msra.mxu0 0
      %4452 = vmatprep.subr.bf16.mxu0 0
      %4453 = vmatpush1.bf16.msra.mxu0 0
      %4454 = vmatprep.subr.bf16.mxu0 0
      %4455 = vmatpush1.bf16.msra.mxu0 0
      %4456 = vmatprep.subr.bf16.mxu0 0
      %4457 = vmatpush1.bf16.msra.mxu0 0
      %4458 = vmatprep.subr.bf16.mxu0 0
      %4459 = vmatpush1.bf16.msra.mxu0 0
      %4460 = vmatprep.subr.bf16.mxu0 0
      %4461 = vmatpush1.bf16.msra.mxu0 0
      %4462 = vmatprep.subr.bf16.mxu0 0
      %4463 = vmatpush1.bf16.msra.mxu0 0
      %4464 = vmatprep.subr.bf16.mxu0 0
      %4465 = vmatpush1.bf16.msra.mxu0 0
      %4466 = vmatprep.subr.bf16.mxu0 0
      %4467 = vmatpush1.bf16.msra.mxu0 0
      %4468 = vmatprep.subr.bf16.mxu0 0
      %4469 = vmatpush1.bf16.msra.mxu0 0
      %4470 = vmatprep.subr.bf16.mxu0 0
      %4471 = vmatpush1.bf16.msra.mxu0 0
      %4472 = vmatprep.subr.bf16.mxu0 0
      %4473 = vmatpush1.bf16.msra.mxu0 0
      %4474 = vmatprep.subr.bf16.mxu0 0
      %4475 = vmatpush1.bf16.msra.mxu0 0
      %4476 = vmatprep.subr.bf16.mxu0 0
      %4477 = vmatpush1.bf16.msra.mxu0 0
      %4478 = vmatprep.subr.bf16.mxu0 0
      %4479 = vmatpush1.bf16.msra.mxu0 0
      %4480 = vmatprep.mubr.bf16.mxu0 0
      %4481 = vmatmul.mubr.bf16.gmra.mrb[0].mxu0 %v4443
      %v4482 = vpop.f32.mrb[0].mxu0
      %v4483 = vadd.f32 0.0, %v4482
      %v4484 = vpop.f32.mrb[0].mxu0
      %v4485 = vpop.f32.mrb[0].mxu0
      %v4486 = vpop.f32.mrb[0].mxu0
      %4487 = vdwg.mxu0
      %4488 = vrot.lane.b32.xlu0 %v3608, 112
      %v4489 = vpop.permute.xlu0 %4488
      %4490 = vrot.lane.b32.xlu0 %v3612, 112
      %v4491 = vpop.permute.xlu0 %4490
      %v4493 = vsel %vm1029, %v4489, 0
      %v4496 = vsel %vm1029, %v4491, 0
      %4498 = vmatprep.subr.bf16.mxu0 0
      %4499 = vmatpush1.bf16.xpose.msra.mxu0 %v4496
      %4500 = vmatprep.subr.bf16.mxu0 0
      %4501 = vmatpush1.bf16.xpose.msra.mxu0 0
      %4502 = vmatprep.subr.bf16.mxu0 0
      %4503 = vmatpush1.bf16.xpose.msra.mxu0 0
      %4504 = vmatprep.subr.bf16.mxu0 0
      %4505 = vmatpush1.bf16.xpose.msra.mxu0 0
      %4506 = vmatprep.subr.bf16.mxu0 0
      %4507 = vmatpush1.bf16.xpose.msra.mxu0 0
      %4508 = vmatprep.subr.bf16.mxu0 0
      %4509 = vmatpush1.bf16.xpose.msra.mxu0 0
      %4510 = vmatprep.subr.bf16.mxu0 0
      %4511 = vmatpush1.bf16.xpose.msra.mxu0 0
      %4512 = vmatprep.subr.bf16.mxu0 0
      %4513 = vmatpush1.bf16.xpose.msra.mxu0 0
      %4514 = vmatprep.subr.bf16.mxu0 0
      %4515 = vmatpush1.bf16.xpose.msra.mxu0 0
      %4516 = vmatprep.subr.bf16.mxu0 0
      %4517 = vmatpush1.bf16.xpose.msra.mxu0 0
      %4518 = vmatprep.subr.bf16.mxu0 0
      %4519 = vmatpush1.bf16.xpose.msra.mxu0 0
      %4520 = vmatprep.subr.bf16.mxu0 0
      %4521 = vmatpush1.bf16.xpose.msra.mxu0 0
      %4522 = vmatprep.subr.bf16.mxu0 0
      %4523 = vmatpush1.bf16.xpose.msra.mxu0 0
      %4524 = vmatprep.subr.bf16.mxu0 0
      %4525 = vmatpush1.bf16.xpose.msra.mxu0 0
      %4526 = vmatprep.subr.bf16.mxu0 0
      %4527 = vmatpush1.bf16.xpose.msra.mxu0 0
      %4528 = vmatprep.subr.bf16.mxu0 0
      %4529 = vmatpush1.bf16.xpose.msra.mxu0 0
      %4530 = vmatprep.mubr.bf16.mxu0 0
      %4531 = vmatmul.mubr.bf16.gmra.mrb[0].mxu0 %v4493
      %v4532 = vpop.f32.mrb[0].mxu0
      %v4533 = vadd.f32 0.0, %v4532
      %v4534 = vpop.f32.mrb[0].mxu0
      %v4535 = vpop.f32.mrb[0].mxu0
      %v4536 = vpop.f32.mrb[0].mxu0
      %4537 = vdwg.mxu0
      %4538 = vrot.lane.b32.xlu0 %v3609, 112
      %v4539 = vpop.permute.xlu0 %4538
      %4540 = vrot.lane.b32.xlu0 %v3613, 112
      %v4541 = vpop.permute.xlu0 %4540
      %v4543 = vsel %vm1029, %v4539, 0
      %v4546 = vsel %vm1029, %v4541, 0
      %4548 = vmatprep.subr.bf16.mxu0 0
      %4549 = vmatpush1.bf16.xpose.msra.mxu0 %v4546
      %4550 = vmatprep.subr.bf16.mxu0 0
      %4551 = vmatpush1.bf16.xpose.msra.mxu0 0
      %4552 = vmatprep.subr.bf16.mxu0 0
      %4553 = vmatpush1.bf16.xpose.msra.mxu0 0
      %4554 = vmatprep.subr.bf16.mxu0 0
      %4555 = vmatpush1.bf16.xpose.msra.mxu0 0
      %4556 = vmatprep.subr.bf16.mxu0 0
      %4557 = vmatpush1.bf16.xpose.msra.mxu0 0
      %4558 = vmatprep.subr.bf16.mxu0 0
      %4559 = vmatpush1.bf16.xpose.msra.mxu0 0
      %4560 = vmatprep.subr.bf16.mxu0 0
      %4561 = vmatpush1.bf16.xpose.msra.mxu0 0
      %4562 = vmatprep.subr.bf16.mxu0 0
      %4563 = vmatpush1.bf16.xpose.msra.mxu0 0
      %4564 = vmatprep.subr.bf16.mxu0 0
      %4565 = vmatpush1.bf16.xpose.msra.mxu0 0
      %4566 = vmatprep.subr.bf16.mxu0 0
      %4567 = vmatpush1.bf16.xpose.msra.mxu0 0
      %4568 = vmatprep.subr.bf16.mxu0 0
      %4569 = vmatpush1.bf16.xpose.msra.mxu0 0
      %4570 = vmatprep.subr.bf16.mxu0 0
      %4571 = vmatpush1.bf16.xpose.msra.mxu0 0
      %4572 = vmatprep.subr.bf16.mxu0 0
      %4573 = vmatpush1.bf16.xpose.msra.mxu0 0
      %4574 = vmatprep.subr.bf16.mxu0 0
      %4575 = vmatpush1.bf16.xpose.msra.mxu0 0
      %4576 = vmatprep.subr.bf16.mxu0 0
      %4577 = vmatpush1.bf16.xpose.msra.mxu0 0
      %4578 = vmatprep.subr.bf16.mxu0 0
      %4579 = vmatpush1.bf16.xpose.msra.mxu0 0
      %4580 = vmatprep.mubr.bf16.mxu0 0
      %4581 = vmatmul.mubr.bf16.gmra.mrb[0].mxu0 %v4543
      %v4582 = vpop.f32.mrb[0].mxu0
      %v4583 = vadd.f32 0.0, %v4582
      %v4584 = vpop.f32.mrb[0].mxu0
      %v4585 = vpop.f32.mrb[0].mxu0
      %v4586 = vpop.f32.mrb[0].mxu0
      %4587 = vdwg.mxu0
      %4588 = vrot.lane.b32.xlu0 %v3610, 112
      %v4589 = vpop.permute.xlu0 %4588
      %4590 = vrot.lane.b32.xlu0 %v3614, 112
      %v4591 = vpop.permute.xlu0 %4590
      %v4593 = vsel %vm1029, %v4589, 0
      %v4596 = vsel %vm1029, %v4591, 0
      %4598 = vmatprep.subr.bf16.mxu0 0
      %4599 = vmatpush1.bf16.xpose.msra.mxu0 %v4596
      %4600 = vmatprep.subr.bf16.mxu0 0
      %4601 = vmatpush1.bf16.xpose.msra.mxu0 0
      %4602 = vmatprep.subr.bf16.mxu0 0
      %4603 = vmatpush1.bf16.xpose.msra.mxu0 0
      %4604 = vmatprep.subr.bf16.mxu0 0
      %4605 = vmatpush1.bf16.xpose.msra.mxu0 0
      %4606 = vmatprep.subr.bf16.mxu0 0
      %4607 = vmatpush1.bf16.xpose.msra.mxu0 0
      %4608 = vmatprep.subr.bf16.mxu0 0
      %4609 = vmatpush1.bf16.xpose.msra.mxu0 0
      %4610 = vmatprep.subr.bf16.mxu0 0
      %4611 = vmatpush1.bf16.xpose.msra.mxu0 0
      %4612 = vmatprep.subr.bf16.mxu0 0
      %4613 = vmatpush1.bf16.xpose.msra.mxu0 0
      %4614 = vmatprep.subr.bf16.mxu0 0
      %4615 = vmatpush1.bf16.xpose.msra.mxu0 0
      %4616 = vmatprep.subr.bf16.mxu0 0
      %4617 = vmatpush1.bf16.xpose.msra.mxu0 0
      %4618 = vmatprep.subr.bf16.mxu0 0
      %4619 = vmatpush1.bf16.xpose.msra.mxu0 0
      %4620 = vmatprep.subr.bf16.mxu0 0
      %4621 = vmatpush1.bf16.xpose.msra.mxu0 0
      %4622 = vmatprep.subr.bf16.mxu0 0
      %4623 = vmatpush1.bf16.xpose.msra.mxu0 0
      %4624 = vmatprep.subr.bf16.mxu0 0
      %4625 = vmatpush1.bf16.xpose.msra.mxu0 0
      %4626 = vmatprep.subr.bf16.mxu0 0
      %4627 = vmatpush1.bf16.xpose.msra.mxu0 0
      %4628 = vmatprep.subr.bf16.mxu0 0
      %4629 = vmatpush1.bf16.xpose.msra.mxu0 0
      %4630 = vmatprep.mubr.bf16.mxu0 0
      %4631 = vmatmul.mubr.bf16.gmra.mrb[0].mxu0 %v4593
      %v4632 = vpop.f32.mrb[0].mxu0
      %v4633 = vadd.f32 0.0, %v4632
      %v4634 = vpop.f32.mrb[0].mxu0
      %v4635 = vpop.f32.mrb[0].mxu0
      %v4636 = vpop.f32.mrb[0].mxu0
      %4637 = vdwg.mxu0
      %4638 = vrot.lane.b32.xlu0 %v3611, 112
      %v4639 = vpop.permute.xlu0 %4638
      %4640 = vrot.lane.b32.xlu0 %v3615, 112
      %v4641 = vpop.permute.xlu0 %4640
      %v4643 = vsel %vm1029, %v4639, 0
      %v4646 = vsel %vm1029, %v4641, 0
      %4648 = vmatprep.subr.bf16.mxu0 0
      %4649 = vmatpush1.bf16.xpose.msra.mxu0 %v4646
      %4650 = vmatprep.subr.bf16.mxu0 0
      %4651 = vmatpush1.bf16.xpose.msra.mxu0 0
      %4652 = vmatprep.subr.bf16.mxu0 0
      %4653 = vmatpush1.bf16.xpose.msra.mxu0 0
      %4654 = vmatprep.subr.bf16.mxu0 0
      %4655 = vmatpush1.bf16.xpose.msra.mxu0 0
      %4656 = vmatprep.subr.bf16.mxu0 0
      %4657 = vmatpush1.bf16.xpose.msra.mxu0 0
      %4658 = vmatprep.subr.bf16.mxu0 0
      %4659 = vmatpush1.bf16.xpose.msra.mxu0 0
      %4660 = vmatprep.subr.bf16.mxu0 0
      %4661 = vmatpush1.bf16.xpose.msra.mxu0 0
      %4662 = vmatprep.subr.bf16.mxu0 0
      %4663 = vmatpush1.bf16.xpose.msra.mxu0 0
      %4664 = vmatprep.subr.bf16.mxu0 0
      %4665 = vmatpush1.bf16.xpose.msra.mxu0 0
      %4666 = vmatprep.subr.bf16.mxu0 0
      %4667 = vmatpush1.bf16.xpose.msra.mxu0 0
      %4668 = vmatprep.subr.bf16.mxu0 0
      %4669 = vmatpush1.bf16.xpose.msra.mxu0 0
      %4670 = vmatprep.subr.bf16.mxu0 0
      %4671 = vmatpush1.bf16.xpose.msra.mxu0 0
      %4672 = vmatprep.subr.bf16.mxu0 0
      %4673 = vmatpush1.bf16.xpose.msra.mxu0 0
      %4674 = vmatprep.subr.bf16.mxu0 0
      %4675 = vmatpush1.bf16.xpose.msra.mxu0 0
      %4676 = vmatprep.subr.bf16.mxu0 0
      %4677 = vmatpush1.bf16.xpose.msra.mxu0 0
      %4678 = vmatprep.subr.bf16.mxu0 0
      %4679 = vmatpush1.bf16.xpose.msra.mxu0 0
      %4680 = vmatprep.mubr.bf16.mxu0 0
      %4681 = vmatmul.mubr.bf16.gmra.mrb[0].mxu0 %v4643
      %v4682 = vpop.f32.mrb[0].mxu0
      %v4683 = vadd.f32 0.0, %v4682
      %v4684 = vpop.f32.mrb[0].mxu0
      %v4685 = vpop.f32.mrb[0].mxu0
      %v4686 = vpop.f32.mrb[0].mxu0
      %4687 = vdwg.mxu0
      %v4688 = vsel %vm1029, %v4533, -inf
      %4689 = vmax.xlane.f32.xlu0 %v4688
      %v4690 = vpop.xlane.xlu0 %4689
      %v4691 = vsel %vm1029, %v4583, -inf
      %4692 = vmax.xlane.f32.xlu0 %v4691
      %v4693 = vpop.xlane.xlu0 %4692
      %v4694 = vsel %vm1029, %v4633, -inf
      %4695 = vmax.xlane.f32.xlu0 %v4694
      %v4696 = vpop.xlane.xlu0 %4695
      %v4697 = vsel %vm1029, %v4683, -inf
      %4698 = vmax.xlane.f32.xlu0 %v4697
      %v4699 = vpop.xlane.xlu0 %4698
      %v4700 = vsub.f32 %v4533, %v4690
      %v4701 = vsub.f32 %v4583, %v4693
      %v4702 = vsub.f32 %v4633, %v4696
      %v4703 = vsub.f32 %v4683, %v4699
      %v4704 = vmul.f32 %v4700, 1.442695
      %v4705 = vpow.pop %v4704
      %v4706 = vmul.f32 %v4701, 1.442695
      %v4707 = vpow.pop %v4706
      %v4708 = vmul.f32 %v4702, 1.442695
      %v4709 = vpow.pop %v4708
      %v4710 = vmul.f32 %v4703, 1.442695
      %v4711 = vpow.pop %v4710
      %v4712 = vsel %vm1029, %v4705, 0.0
      %4713 = vadd.xlane.f32.xlu0 %v4712
      %v4714 = vpop.xlane.xlu0 %4713
      %v4715 = vsel %vm1029, %v4707, 0.0
      %4716 = vadd.xlane.f32.xlu0 %v4715
      %v4717 = vpop.xlane.xlu0 %4716
      %v4718 = vsel %vm1029, %v4709, 0.0
      %4719 = vadd.xlane.f32.xlu0 %v4718
      %v4720 = vpop.xlane.xlu0 %4719
      %v4721 = vsel %vm1029, %v4711, 0.0
      %4722 = vadd.xlane.f32.xlu0 %v4721
      %v4723 = vpop.xlane.xlu0 %4722
      %v4724 = vrcp.pop %v4714
      %v4725 = vmul.f32 %v4705, %v4724
      %v4726 = vrcp.pop %v4717
      %v4727 = vmul.f32 %v4707, %v4726
      %v4728 = vrcp.pop %v4720
      %v4729 = vmul.f32 %v4709, %v4728
      %v4730 = vrcp.pop %v4723
      %v4731 = vmul.f32 %v4711, %v4730
      %v4732 = vpack.c.bf16 %v4725, %v4725
      %v4733 = vpack.c.bf16 %v4727, %v4727
      %v4734 = vpack.c.bf16 %v4729, %v4729
      %v4735 = vpack.c.bf16 %v4731, %v4731
      %4736 = vrot.lane.b32.xlu0 %v3616, 112
      %v4737 = vpop.permute.xlu0 %4736
      %v4739 = vsel %vm1029, %v4732, 0
      %v4742 = vsel %vm1265, %v4737, 0
      %4744 = vmatprep.subr.bf16.mxu0 0
      %4745 = vmatpush1.bf16.msra.mxu0 %v4742
      %4746 = vmatprep.subr.bf16.mxu0 0
      %4747 = vmatpush1.bf16.msra.mxu0 0
      %4748 = vmatprep.subr.bf16.mxu0 0
      %4749 = vmatpush1.bf16.msra.mxu0 0
      %4750 = vmatprep.subr.bf16.mxu0 0
      %4751 = vmatpush1.bf16.msra.mxu0 0
      %4752 = vmatprep.subr.bf16.mxu0 0
      %4753 = vmatpush1.bf16.msra.mxu0 0
      %4754 = vmatprep.subr.bf16.mxu0 0
      %4755 = vmatpush1.bf16.msra.mxu0 0
      %4756 = vmatprep.subr.bf16.mxu0 0
      %4757 = vmatpush1.bf16.msra.mxu0 0
      %4758 = vmatprep.subr.bf16.mxu0 0
      %4759 = vmatpush1.bf16.msra.mxu0 0
      %4760 = vmatprep.subr.bf16.mxu0 0
      %4761 = vmatpush1.bf16.msra.mxu0 0
      %4762 = vmatprep.subr.bf16.mxu0 0
      %4763 = vmatpush1.bf16.msra.mxu0 0
      %4764 = vmatprep.subr.bf16.mxu0 0
      %4765 = vmatpush1.bf16.msra.mxu0 0
      %4766 = vmatprep.subr.bf16.mxu0 0
      %4767 = vmatpush1.bf16.msra.mxu0 0
      %4768 = vmatprep.subr.bf16.mxu0 0
      %4769 = vmatpush1.bf16.msra.mxu0 0
      %4770 = vmatprep.subr.bf16.mxu0 0
      %4771 = vmatpush1.bf16.msra.mxu0 0
      %4772 = vmatprep.subr.bf16.mxu0 0
      %4773 = vmatpush1.bf16.msra.mxu0 0
      %4774 = vmatprep.subr.bf16.mxu0 0
      %4775 = vmatpush1.bf16.msra.mxu0 0
      %4776 = vmatprep.mubr.bf16.mxu0 0
      %4777 = vmatmul.mubr.bf16.gmra.mrb[0].mxu0 %v4739
      %v4778 = vpop.f32.mrb[0].mxu0
      %v4779 = vadd.f32 0.0, %v4778
      %v4780 = vpop.f32.mrb[0].mxu0
      %v4781 = vpop.f32.mrb[0].mxu0
      %v4782 = vpop.f32.mrb[0].mxu0
      %4783 = vdwg.mxu0
      %4784 = vrot.lane.b32.xlu0 %v3617, 112
      %v4785 = vpop.permute.xlu0 %4784
      %v4787 = vsel %vm1029, %v4733, 0
      %v4790 = vsel %vm1265, %v4785, 0
      %4792 = vmatprep.subr.bf16.mxu0 0
      %4793 = vmatpush1.bf16.msra.mxu0 %v4790
      %4794 = vmatprep.subr.bf16.mxu0 0
      %4795 = vmatpush1.bf16.msra.mxu0 0
      %4796 = vmatprep.subr.bf16.mxu0 0
      %4797 = vmatpush1.bf16.msra.mxu0 0
      %4798 = vmatprep.subr.bf16.mxu0 0
      %4799 = vmatpush1.bf16.msra.mxu0 0
      %4800 = vmatprep.subr.bf16.mxu0 0
      %4801 = vmatpush1.bf16.msra.mxu0 0
      %4802 = vmatprep.subr.bf16.mxu0 0
      %4803 = vmatpush1.bf16.msra.mxu0 0
      %4804 = vmatprep.subr.bf16.mxu0 0
      %4805 = vmatpush1.bf16.msra.mxu0 0
      %4806 = vmatprep.subr.bf16.mxu0 0
      %4807 = vmatpush1.bf16.msra.mxu0 0
      %4808 = vmatprep.subr.bf16.mxu0 0
      %4809 = vmatpush1.bf16.msra.mxu0 0
      %4810 = vmatprep.subr.bf16.mxu0 0
      %4811 = vmatpush1.bf16.msra.mxu0 0
      %4812 = vmatprep.subr.bf16.mxu0 0
      %4813 = vmatpush1.bf16.msra.mxu0 0
      %4814 = vmatprep.subr.bf16.mxu0 0
      %4815 = vmatpush1.bf16.msra.mxu0 0
      %4816 = vmatprep.subr.bf16.mxu0 0
      %4817 = vmatpush1.bf16.msra.mxu0 0
      %4818 = vmatprep.subr.bf16.mxu0 0
      %4819 = vmatpush1.bf16.msra.mxu0 0
      %4820 = vmatprep.subr.bf16.mxu0 0
      %4821 = vmatpush1.bf16.msra.mxu0 0
      %4822 = vmatprep.subr.bf16.mxu0 0
      %4823 = vmatpush1.bf16.msra.mxu0 0
      %4824 = vmatprep.mubr.bf16.mxu0 0
      %4825 = vmatmul.mubr.bf16.gmra.mrb[0].mxu0 %v4787
      %v4826 = vpop.f32.mrb[0].mxu0
      %v4827 = vadd.f32 0.0, %v4826
      %v4828 = vpop.f32.mrb[0].mxu0
      %v4829 = vpop.f32.mrb[0].mxu0
      %v4830 = vpop.f32.mrb[0].mxu0
      %4831 = vdwg.mxu0
      %4832 = vrot.lane.b32.xlu0 %v3618, 112
      %v4833 = vpop.permute.xlu0 %4832
      %v4835 = vsel %vm1029, %v4734, 0
      %v4838 = vsel %vm1265, %v4833, 0
      %4840 = vmatprep.subr.bf16.mxu0 0
      %4841 = vmatpush1.bf16.msra.mxu0 %v4838
      %4842 = vmatprep.subr.bf16.mxu0 0
      %4843 = vmatpush1.bf16.msra.mxu0 0
      %4844 = vmatprep.subr.bf16.mxu0 0
      %4845 = vmatpush1.bf16.msra.mxu0 0
      %4846 = vmatprep.subr.bf16.mxu0 0
      %4847 = vmatpush1.bf16.msra.mxu0 0
      %4848 = vmatprep.subr.bf16.mxu0 0
      %4849 = vmatpush1.bf16.msra.mxu0 0
      %4850 = vmatprep.subr.bf16.mxu0 0
      %4851 = vmatpush1.bf16.msra.mxu0 0
      %4852 = vmatprep.subr.bf16.mxu0 0
      %4853 = vmatpush1.bf16.msra.mxu0 0
      %4854 = vmatprep.subr.bf16.mxu0 0
      %4855 = vmatpush1.bf16.msra.mxu0 0
      %4856 = vmatprep.subr.bf16.mxu0 0
      %4857 = vmatpush1.bf16.msra.mxu0 0
      %4858 = vmatprep.subr.bf16.mxu0 0
      %4859 = vmatpush1.bf16.msra.mxu0 0
      %4860 = vmatprep.subr.bf16.mxu0 0
      %4861 = vmatpush1.bf16.msra.mxu0 0
      %4862 = vmatprep.subr.bf16.mxu0 0
      %4863 = vmatpush1.bf16.msra.mxu0 0
      %4864 = vmatprep.subr.bf16.mxu0 0
      %4865 = vmatpush1.bf16.msra.mxu0 0
      %4866 = vmatprep.subr.bf16.mxu0 0
      %4867 = vmatpush1.bf16.msra.mxu0 0
      %4868 = vmatprep.subr.bf16.mxu0 0
      %4869 = vmatpush1.bf16.msra.mxu0 0
      %4870 = vmatprep.subr.bf16.mxu0 0
      %4871 = vmatpush1.bf16.msra.mxu0 0
      %4872 = vmatprep.mubr.bf16.mxu0 0
      %4873 = vmatmul.mubr.bf16.gmra.mrb[0].mxu0 %v4835
      %v4874 = vpop.f32.mrb[0].mxu0
      %v4875 = vadd.f32 0.0, %v4874
      %v4876 = vpop.f32.mrb[0].mxu0
      %v4877 = vpop.f32.mrb[0].mxu0
      %v4878 = vpop.f32.mrb[0].mxu0
      %4879 = vdwg.mxu0
      %4880 = vrot.lane.b32.xlu0 %v3619, 112
      %v4881 = vpop.permute.xlu0 %4880
      %v4883 = vsel %vm1029, %v4735, 0
      %v4886 = vsel %vm1265, %v4881, 0
      %4888 = vmatprep.subr.bf16.mxu0 0
      %4889 = vmatpush1.bf16.msra.mxu0 %v4886
      %4890 = vmatprep.subr.bf16.mxu0 0
      %4891 = vmatpush1.bf16.msra.mxu0 0
      %4892 = vmatprep.subr.bf16.mxu0 0
      %4893 = vmatpush1.bf16.msra.mxu0 0
      %4894 = vmatprep.subr.bf16.mxu0 0
      %4895 = vmatpush1.bf16.msra.mxu0 0
      %4896 = vmatprep.subr.bf16.mxu0 0
      %4897 = vmatpush1.bf16.msra.mxu0 0
      %4898 = vmatprep.subr.bf16.mxu0 0
      %4899 = vmatpush1.bf16.msra.mxu0 0
      %4900 = vmatprep.subr.bf16.mxu0 0
      %4901 = vmatpush1.bf16.msra.mxu0 0
      %4902 = vmatprep.subr.bf16.mxu0 0
      %4903 = vmatpush1.bf16.msra.mxu0 0
      %4904 = vmatprep.subr.bf16.mxu0 0
      %4905 = vmatpush1.bf16.msra.mxu0 0
      %4906 = vmatprep.subr.bf16.mxu0 0
      %4907 = vmatpush1.bf16.msra.mxu0 0
      %4908 = vmatprep.subr.bf16.mxu0 0
      %4909 = vmatpush1.bf16.msra.mxu0 0
      %4910 = vmatprep.subr.bf16.mxu0 0
      %4911 = vmatpush1.bf16.msra.mxu0 0
      %4912 = vmatprep.subr.bf16.mxu0 0
      %4913 = vmatpush1.bf16.msra.mxu0 0
      %4914 = vmatprep.subr.bf16.mxu0 0
      %4915 = vmatpush1.bf16.msra.mxu0 0
      %4916 = vmatprep.subr.bf16.mxu0 0
      %4917 = vmatpush1.bf16.msra.mxu0 0
      %4918 = vmatprep.subr.bf16.mxu0 0
      %4919 = vmatpush1.bf16.msra.mxu0 0
      %4920 = vmatprep.mubr.bf16.mxu0 0
      %4921 = vmatmul.mubr.bf16.gmra.mrb[0].mxu0 %v4883
      %v4922 = vpop.f32.mrb[0].mxu0
      %v4923 = vadd.f32 0.0, %v4922
      %v4924 = vpop.f32.mrb[0].mxu0
      %v4925 = vpop.f32.mrb[0].mxu0
      %v4926 = vpop.f32.mrb[0].mxu0
      %4927 = vdwg.mxu0
      %4928 = vrot.lane.b32.xlu0 %v3608, 104
      %v4929 = vpop.permute.xlu0 %4928
      %4930 = vrot.lane.b32.xlu0 %v3612, 104
      %v4931 = vpop.permute.xlu0 %4930
      %v4933 = vsel %vm1029, %v4929, 0
      %v4936 = vsel %vm1029, %v4931, 0
      %4938 = vmatprep.subr.bf16.mxu0 0
      %4939 = vmatpush1.bf16.xpose.msra.mxu0 %v4936
      %4940 = vmatprep.subr.bf16.mxu0 0
      %4941 = vmatpush1.bf16.xpose.msra.mxu0 0
      %4942 = vmatprep.subr.bf16.mxu0 0
      %4943 = vmatpush1.bf16.xpose.msra.mxu0 0
      %4944 = vmatprep.subr.bf16.mxu0 0
      %4945 = vmatpush1.bf16.xpose.msra.mxu0 0
      %4946 = vmatprep.subr.bf16.mxu0 0
      %4947 = vmatpush1.bf16.xpose.msra.mxu0 0
      %4948 = vmatprep.subr.bf16.mxu0 0
      %4949 = vmatpush1.bf16.xpose.msra.mxu0 0
      %4950 = vmatprep.subr.bf16.mxu0 0
      %4951 = vmatpush1.bf16.xpose.msra.mxu0 0
      %4952 = vmatprep.subr.bf16.mxu0 0
      %4953 = vmatpush1.bf16.xpose.msra.mxu0 0
      %4954 = vmatprep.subr.bf16.mxu0 0
      %4955 = vmatpush1.bf16.xpose.msra.mxu0 0
      %4956 = vmatprep.subr.bf16.mxu0 0
      %4957 = vmatpush1.bf16.xpose.msra.mxu0 0
      %4958 = vmatprep.subr.bf16.mxu0 0
      %4959 = vmatpush1.bf16.xpose.msra.mxu0 0
      %4960 = vmatprep.subr.bf16.mxu0 0
      %4961 = vmatpush1.bf16.xpose.msra.mxu0 0
      %4962 = vmatprep.subr.bf16.mxu0 0
      %4963 = vmatpush1.bf16.xpose.msra.mxu0 0
      %4964 = vmatprep.subr.bf16.mxu0 0
      %4965 = vmatpush1.bf16.xpose.msra.mxu0 0
      %4966 = vmatprep.subr.bf16.mxu0 0
      %4967 = vmatpush1.bf16.xpose.msra.mxu0 0
      %4968 = vmatprep.subr.bf16.mxu0 0
      %4969 = vmatpush1.bf16.xpose.msra.mxu0 0
      %4970 = vmatprep.mubr.bf16.mxu0 0
      %4971 = vmatmul.mubr.bf16.gmra.mrb[0].mxu0 %v4933
      %v4972 = vpop.f32.mrb[0].mxu0
      %v4973 = vadd.f32 0.0, %v4972
      %v4974 = vpop.f32.mrb[0].mxu0
      %v4975 = vpop.f32.mrb[0].mxu0
      %v4976 = vpop.f32.mrb[0].mxu0
      %4977 = vdwg.mxu0
      %4978 = vrot.lane.b32.xlu0 %v3609, 104
      %v4979 = vpop.permute.xlu0 %4978
      %4980 = vrot.lane.b32.xlu0 %v3613, 104
      %v4981 = vpop.permute.xlu0 %4980
      %v4983 = vsel %vm1029, %v4979, 0
      %v4986 = vsel %vm1029, %v4981, 0
      %4988 = vmatprep.subr.bf16.mxu0 0
      %4989 = vmatpush1.bf16.xpose.msra.mxu0 %v4986
      %4990 = vmatprep.subr.bf16.mxu0 0
      %4991 = vmatpush1.bf16.xpose.msra.mxu0 0
      %4992 = vmatprep.subr.bf16.mxu0 0
      %4993 = vmatpush1.bf16.xpose.msra.mxu0 0
      %4994 = vmatprep.subr.bf16.mxu0 0
      %4995 = vmatpush1.bf16.xpose.msra.mxu0 0
      %4996 = vmatprep.subr.bf16.mxu0 0
      %4997 = vmatpush1.bf16.xpose.msra.mxu0 0
      %4998 = vmatprep.subr.bf16.mxu0 0
      %4999 = vmatpush1.bf16.xpose.msra.mxu0 0
      %5000 = vmatprep.subr.bf16.mxu0 0
      %5001 = vmatpush1.bf16.xpose.msra.mxu0 0
      %5002 = vmatprep.subr.bf16.mxu0 0
      %5003 = vmatpush1.bf16.xpose.msra.mxu0 0
      %5004 = vmatprep.subr.bf16.mxu0 0
      %5005 = vmatpush1.bf16.xpose.msra.mxu0 0
      %5006 = vmatprep.subr.bf16.mxu0 0
      %5007 = vmatpush1.bf16.xpose.msra.mxu0 0
      %5008 = vmatprep.subr.bf16.mxu0 0
      %5009 = vmatpush1.bf16.xpose.msra.mxu0 0
      %5010 = vmatprep.subr.bf16.mxu0 0
      %5011 = vmatpush1.bf16.xpose.msra.mxu0 0
      %5012 = vmatprep.subr.bf16.mxu0 0
      %5013 = vmatpush1.bf16.xpose.msra.mxu0 0
      %5014 = vmatprep.subr.bf16.mxu0 0
      %5015 = vmatpush1.bf16.xpose.msra.mxu0 0
      %5016 = vmatprep.subr.bf16.mxu0 0
      %5017 = vmatpush1.bf16.xpose.msra.mxu0 0
      %5018 = vmatprep.subr.bf16.mxu0 0
      %5019 = vmatpush1.bf16.xpose.msra.mxu0 0
      %5020 = vmatprep.mubr.bf16.mxu0 0
      %5021 = vmatmul.mubr.bf16.gmra.mrb[0].mxu0 %v4983
      %v5022 = vpop.f32.mrb[0].mxu0
      %v5023 = vadd.f32 0.0, %v5022
      %v5024 = vpop.f32.mrb[0].mxu0
      %v5025 = vpop.f32.mrb[0].mxu0
      %v5026 = vpop.f32.mrb[0].mxu0
      %5027 = vdwg.mxu0
      %5028 = vrot.lane.b32.xlu0 %v3610, 104
      %v5029 = vpop.permute.xlu0 %5028
      %5030 = vrot.lane.b32.xlu0 %v3614, 104
      %v5031 = vpop.permute.xlu0 %5030
      %v5033 = vsel %vm1029, %v5029, 0
      %v5036 = vsel %vm1029, %v5031, 0
      %5038 = vmatprep.subr.bf16.mxu0 0
      %5039 = vmatpush1.bf16.xpose.msra.mxu0 %v5036
      %5040 = vmatprep.subr.bf16.mxu0 0
      %5041 = vmatpush1.bf16.xpose.msra.mxu0 0
      %5042 = vmatprep.subr.bf16.mxu0 0
      %5043 = vmatpush1.bf16.xpose.msra.mxu0 0
      %5044 = vmatprep.subr.bf16.mxu0 0
      %5045 = vmatpush1.bf16.xpose.msra.mxu0 0
      %5046 = vmatprep.subr.bf16.mxu0 0
      %5047 = vmatpush1.bf16.xpose.msra.mxu0 0
      %5048 = vmatprep.subr.bf16.mxu0 0
      %5049 = vmatpush1.bf16.xpose.msra.mxu0 0
      %5050 = vmatprep.subr.bf16.mxu0 0
      %5051 = vmatpush1.bf16.xpose.msra.mxu0 0
      %5052 = vmatprep.subr.bf16.mxu0 0
      %5053 = vmatpush1.bf16.xpose.msra.mxu0 0
      %5054 = vmatprep.subr.bf16.mxu0 0
      %5055 = vmatpush1.bf16.xpose.msra.mxu0 0
      %5056 = vmatprep.subr.bf16.mxu0 0
      %5057 = vmatpush1.bf16.xpose.msra.mxu0 0
      %5058 = vmatprep.subr.bf16.mxu0 0
      %5059 = vmatpush1.bf16.xpose.msra.mxu0 0
      %5060 = vmatprep.subr.bf16.mxu0 0
      %5061 = vmatpush1.bf16.xpose.msra.mxu0 0
      %5062 = vmatprep.subr.bf16.mxu0 0
      %5063 = vmatpush1.bf16.xpose.msra.mxu0 0
      %5064 = vmatprep.subr.bf16.mxu0 0
      %5065 = vmatpush1.bf16.xpose.msra.mxu0 0
      %5066 = vmatprep.subr.bf16.mxu0 0
      %5067 = vmatpush1.bf16.xpose.msra.mxu0 0
      %5068 = vmatprep.subr.bf16.mxu0 0
      %5069 = vmatpush1.bf16.xpose.msra.mxu0 0
      %5070 = vmatprep.mubr.bf16.mxu0 0
      %5071 = vmatmul.mubr.bf16.gmra.mrb[0].mxu0 %v5033
      %v5072 = vpop.f32.mrb[0].mxu0
      %v5073 = vadd.f32 0.0, %v5072
      %v5074 = vpop.f32.mrb[0].mxu0
      %v5075 = vpop.f32.mrb[0].mxu0
      %v5076 = vpop.f32.mrb[0].mxu0
      %5077 = vdwg.mxu0
      %5078 = vrot.lane.b32.xlu0 %v3611, 104
      %v5079 = vpop.permute.xlu0 %5078
      %5080 = vrot.lane.b32.xlu0 %v3615, 104
      %v5081 = vpop.permute.xlu0 %5080
      %v5083 = vsel %vm1029, %v5079, 0
      %v5086 = vsel %vm1029, %v5081, 0
      %5088 = vmatprep.subr.bf16.mxu0 0
      %5089 = vmatpush1.bf16.xpose.msra.mxu0 %v5086
      %5090 = vmatprep.subr.bf16.mxu0 0
      %5091 = vmatpush1.bf16.xpose.msra.mxu0 0
      %5092 = vmatprep.subr.bf16.mxu0 0
      %5093 = vmatpush1.bf16.xpose.msra.mxu0 0
      %5094 = vmatprep.subr.bf16.mxu0 0
      %5095 = vmatpush1.bf16.xpose.msra.mxu0 0
      %5096 = vmatprep.subr.bf16.mxu0 0
      %5097 = vmatpush1.bf16.xpose.msra.mxu0 0
      %5098 = vmatprep.subr.bf16.mxu0 0
      %5099 = vmatpush1.bf16.xpose.msra.mxu0 0
      %5100 = vmatprep.subr.bf16.mxu0 0
      %5101 = vmatpush1.bf16.xpose.msra.mxu0 0
      %5102 = vmatprep.subr.bf16.mxu0 0
      %5103 = vmatpush1.bf16.xpose.msra.mxu0 0
      %5104 = vmatprep.subr.bf16.mxu0 0
      %5105 = vmatpush1.bf16.xpose.msra.mxu0 0
      %5106 = vmatprep.subr.bf16.mxu0 0
      %5107 = vmatpush1.bf16.xpose.msra.mxu0 0
      %5108 = vmatprep.subr.bf16.mxu0 0
      %5109 = vmatpush1.bf16.xpose.msra.mxu0 0
      %5110 = vmatprep.subr.bf16.mxu0 0
      %5111 = vmatpush1.bf16.xpose.msra.mxu0 0
      %5112 = vmatprep.subr.bf16.mxu0 0
      %5113 = vmatpush1.bf16.xpose.msra.mxu0 0
      %5114 = vmatprep.subr.bf16.mxu0 0
      %5115 = vmatpush1.bf16.xpose.msra.mxu0 0
      %5116 = vmatprep.subr.bf16.mxu0 0
      %5117 = vmatpush1.bf16.xpose.msra.mxu0 0
      %5118 = vmatprep.subr.bf16.mxu0 0
      %5119 = vmatpush1.bf16.xpose.msra.mxu0 0
      %5120 = vmatprep.mubr.bf16.mxu0 0
      %5121 = vmatmul.mubr.bf16.gmra.mrb[0].mxu0 %v5083
      %v5122 = vpop.f32.mrb[0].mxu0
      %v5123 = vadd.f32 0.0, %v5122
      %v5124 = vpop.f32.mrb[0].mxu0
      %v5125 = vpop.f32.mrb[0].mxu0
      %v5126 = vpop.f32.mrb[0].mxu0
      %5127 = vdwg.mxu0
      %v5128 = vsel %vm1029, %v4973, -inf
      %5129 = vmax.xlane.f32.xlu0 %v5128
      %v5130 = vpop.xlane.xlu0 %5129
      %v5131 = vsel %vm1029, %v5023, -inf
      %5132 = vmax.xlane.f32.xlu0 %v5131
      %v5133 = vpop.xlane.xlu0 %5132
      %v5134 = vsel %vm1029, %v5073, -inf
      %5135 = vmax.xlane.f32.xlu0 %v5134
      %v5136 = vpop.xlane.xlu0 %5135
      %v5137 = vsel %vm1029, %v5123, -inf
      %5138 = vmax.xlane.f32.xlu0 %v5137
      %v5139 = vpop.xlane.xlu0 %5138
      %v5140 = vsub.f32 %v4973, %v5130
      %v5141 = vsub.f32 %v5023, %v5133
      %v5142 = vsub.f32 %v5073, %v5136
      %v5143 = vsub.f32 %v5123, %v5139
      %v5144 = vmul.f32 %v5140, 1.442695
      %v5145 = vpow.pop %v5144
      %v5146 = vmul.f32 %v5141, 1.442695
      %v5147 = vpow.pop %v5146
      %v5148 = vmul.f32 %v5142, 1.442695
      %v5149 = vpow.pop %v5148
      %v5150 = vmul.f32 %v5143, 1.442695
      %v5151 = vpow.pop %v5150
      %v5152 = vsel %vm1029, %v5145, 0.0
      %5153 = vadd.xlane.f32.xlu0 %v5152
      %v5154 = vpop.xlane.xlu0 %5153
      %v5155 = vsel %vm1029, %v5147, 0.0
      %5156 = vadd.xlane.f32.xlu0 %v5155
      %v5157 = vpop.xlane.xlu0 %5156
      %v5158 = vsel %vm1029, %v5149, 0.0
      %5159 = vadd.xlane.f32.xlu0 %v5158
      %v5160 = vpop.xlane.xlu0 %5159
      %v5161 = vsel %vm1029, %v5151, 0.0
      %5162 = vadd.xlane.f32.xlu0 %v5161
      %v5163 = vpop.xlane.xlu0 %5162
      %v5164 = vrcp.pop %v5154
      %v5165 = vmul.f32 %v5145, %v5164
      %v5166 = vrcp.pop %v5157
      %v5167 = vmul.f32 %v5147, %v5166
      %v5168 = vrcp.pop %v5160
      %v5169 = vmul.f32 %v5149, %v5168
      %v5170 = vrcp.pop %v5163
      %v5171 = vmul.f32 %v5151, %v5170
      %v5172 = vpack.c.bf16 %v5165, %v5165
      %v5173 = vpack.c.bf16 %v5167, %v5167
      %v5174 = vpack.c.bf16 %v5169, %v5169
      %v5175 = vpack.c.bf16 %v5171, %v5171
      %5176 = vrot.lane.b32.xlu0 %v3616, 104
      %v5177 = vpop.permute.xlu0 %5176
      %v5179 = vsel %vm1029, %v5172, 0
      %v5182 = vsel %vm1265, %v5177, 0
      %5184 = vmatprep.subr.bf16.mxu0 0
      %5185 = vmatpush1.bf16.msra.mxu0 %v5182
      %5186 = vmatprep.subr.bf16.mxu0 0
      %5187 = vmatpush1.bf16.msra.mxu0 0
      %5188 = vmatprep.subr.bf16.mxu0 0
      %5189 = vmatpush1.bf16.msra.mxu0 0
      %5190 = vmatprep.subr.bf16.mxu0 0
      %5191 = vmatpush1.bf16.msra.mxu0 0
      %5192 = vmatprep.subr.bf16.mxu0 0
      %5193 = vmatpush1.bf16.msra.mxu0 0
      %5194 = vmatprep.subr.bf16.mxu0 0
      %5195 = vmatpush1.bf16.msra.mxu0 0
      %5196 = vmatprep.subr.bf16.mxu0 0
      %5197 = vmatpush1.bf16.msra.mxu0 0
      %5198 = vmatprep.subr.bf16.mxu0 0
      %5199 = vmatpush1.bf16.msra.mxu0 0
      %5200 = vmatprep.subr.bf16.mxu0 0
      %5201 = vmatpush1.bf16.msra.mxu0 0
      %5202 = vmatprep.subr.bf16.mxu0 0
      %5203 = vmatpush1.bf16.msra.mxu0 0
      %5204 = vmatprep.subr.bf16.mxu0 0
      %5205 = vmatpush1.bf16.msra.mxu0 0
      %5206 = vmatprep.subr.bf16.mxu0 0
      %5207 = vmatpush1.bf16.msra.mxu0 0
      %5208 = vmatprep.subr.bf16.mxu0 0
      %5209 = vmatpush1.bf16.msra.mxu0 0
      %5210 = vmatprep.subr.bf16.mxu0 0
      %5211 = vmatpush1.bf16.msra.mxu0 0
      %5212 = vmatprep.subr.bf16.mxu0 0
      %5213 = vmatpush1.bf16.msra.mxu0 0
      %5214 = vmatprep.subr.bf16.mxu0 0
      %5215 = vmatpush1.bf16.msra.mxu0 0
      %5216 = vmatprep.mubr.bf16.mxu0 0
      %5217 = vmatmul.mubr.bf16.gmra.mrb[0].mxu0 %v5179
      %v5218 = vpop.f32.mrb[0].mxu0
      %v5219 = vadd.f32 0.0, %v5218
      %v5220 = vpop.f32.mrb[0].mxu0
      %v5221 = vpop.f32.mrb[0].mxu0
      %v5222 = vpop.f32.mrb[0].mxu0
      %5223 = vdwg.mxu0
      %5224 = vrot.lane.b32.xlu0 %v3617, 104
      %v5225 = vpop.permute.xlu0 %5224
      %v5227 = vsel %vm1029, %v5173, 0
      %v5230 = vsel %vm1265, %v5225, 0
      %5232 = vmatprep.subr.bf16.mxu0 0
      %5233 = vmatpush1.bf16.msra.mxu0 %v5230
      %5234 = vmatprep.subr.bf16.mxu0 0
      %5235 = vmatpush1.bf16.msra.mxu0 0
      %5236 = vmatprep.subr.bf16.mxu0 0
      %5237 = vmatpush1.bf16.msra.mxu0 0
      %5238 = vmatprep.subr.bf16.mxu0 0
      %5239 = vmatpush1.bf16.msra.mxu0 0
      %5240 = vmatprep.subr.bf16.mxu0 0
      %5241 = vmatpush1.bf16.msra.mxu0 0
      %5242 = vmatprep.subr.bf16.mxu0 0
      %5243 = vmatpush1.bf16.msra.mxu0 0
      %5244 = vmatprep.subr.bf16.mxu0 0
      %5245 = vmatpush1.bf16.msra.mxu0 0
      %5246 = vmatprep.subr.bf16.mxu0 0
      %5247 = vmatpush1.bf16.msra.mxu0 0
      %5248 = vmatprep.subr.bf16.mxu0 0
      %5249 = vmatpush1.bf16.msra.mxu0 0
      %5250 = vmatprep.subr.bf16.mxu0 0
      %5251 = vmatpush1.bf16.msra.mxu0 0
      %5252 = vmatprep.subr.bf16.mxu0 0
      %5253 = vmatpush1.bf16.msra.mxu0 0
      %5254 = vmatprep.subr.bf16.mxu0 0
      %5255 = vmatpush1.bf16.msra.mxu0 0
      %5256 = vmatprep.subr.bf16.mxu0 0
      %5257 = vmatpush1.bf16.msra.mxu0 0
      %5258 = vmatprep.subr.bf16.mxu0 0
      %5259 = vmatpush1.bf16.msra.mxu0 0
      %5260 = vmatprep.subr.bf16.mxu0 0
      %5261 = vmatpush1.bf16.msra.mxu0 0
      %5262 = vmatprep.subr.bf16.mxu0 0
      %5263 = vmatpush1.bf16.msra.mxu0 0
      %5264 = vmatprep.mubr.bf16.mxu0 0
      %5265 = vmatmul.mubr.bf16.gmra.mrb[0].mxu0 %v5227
      %v5266 = vpop.f32.mrb[0].mxu0
      %v5267 = vadd.f32 0.0, %v5266
      %v5268 = vpop.f32.mrb[0].mxu0
      %v5269 = vpop.f32.mrb[0].mxu0
      %v5270 = vpop.f32.mrb[0].mxu0
      %5271 = vdwg.mxu0
      %5272 = vrot.lane.b32.xlu0 %v3618, 104
      %v5273 = vpop.permute.xlu0 %5272
      %v5275 = vsel %vm1029, %v5174, 0
      %v5278 = vsel %vm1265, %v5273, 0
      %5280 = vmatprep.subr.bf16.mxu0 0
      %5281 = vmatpush1.bf16.msra.mxu0 %v5278
      %5282 = vmatprep.subr.bf16.mxu0 0
      %5283 = vmatpush1.bf16.msra.mxu0 0
      %5284 = vmatprep.subr.bf16.mxu0 0
      %5285 = vmatpush1.bf16.msra.mxu0 0
      %5286 = vmatprep.subr.bf16.mxu0 0
      %5287 = vmatpush1.bf16.msra.mxu0 0
      %5288 = vmatprep.subr.bf16.mxu0 0
      %5289 = vmatpush1.bf16.msra.mxu0 0
      %5290 = vmatprep.subr.bf16.mxu0 0
      %5291 = vmatpush1.bf16.msra.mxu0 0
      %5292 = vmatprep.subr.bf16.mxu0 0
      %5293 = vmatpush1.bf16.msra.mxu0 0
      %5294 = vmatprep.subr.bf16.mxu0 0
      %5295 = vmatpush1.bf16.msra.mxu0 0
      %5296 = vmatprep.subr.bf16.mxu0 0
      %5297 = vmatpush1.bf16.msra.mxu0 0
      %5298 = vmatprep.subr.bf16.mxu0 0
      %5299 = vmatpush1.bf16.msra.mxu0 0
      %5300 = vmatprep.subr.bf16.mxu0 0
      %5301 = vmatpush1.bf16.msra.mxu0 0
      %5302 = vmatprep.subr.bf16.mxu0 0
      %5303 = vmatpush1.bf16.msra.mxu0 0
      %5304 = vmatprep.subr.bf16.mxu0 0
      %5305 = vmatpush1.bf16.msra.mxu0 0
      %5306 = vmatprep.subr.bf16.mxu0 0
      %5307 = vmatpush1.bf16.msra.mxu0 0
      %5308 = vmatprep.subr.bf16.mxu0 0
      %5309 = vmatpush1.bf16.msra.mxu0 0
      %5310 = vmatprep.subr.bf16.mxu0 0
      %5311 = vmatpush1.bf16.msra.mxu0 0
      %5312 = vmatprep.mubr.bf16.mxu0 0
      %5313 = vmatmul.mubr.bf16.gmra.mrb[0].mxu0 %v5275
      %v5314 = vpop.f32.mrb[0].mxu0
      %v5315 = vadd.f32 0.0, %v5314
      %v5316 = vpop.f32.mrb[0].mxu0
      %v5317 = vpop.f32.mrb[0].mxu0
      %v5318 = vpop.f32.mrb[0].mxu0
      %5319 = vdwg.mxu0
      %5320 = vrot.lane.b32.xlu0 %v3619, 104
      %v5321 = vpop.permute.xlu0 %5320
      %v5323 = vsel %vm1029, %v5175, 0
      %v5326 = vsel %vm1265, %v5321, 0
      %5328 = vmatprep.subr.bf16.mxu0 0
      %5329 = vmatpush1.bf16.msra.mxu0 %v5326
      %5330 = vmatprep.subr.bf16.mxu0 0
      %5331 = vmatpush1.bf16.msra.mxu0 0
      %5332 = vmatprep.subr.bf16.mxu0 0
      %5333 = vmatpush1.bf16.msra.mxu0 0
      %5334 = vmatprep.subr.bf16.mxu0 0
      %5335 = vmatpush1.bf16.msra.mxu0 0
      %5336 = vmatprep.subr.bf16.mxu0 0
      %5337 = vmatpush1.bf16.msra.mxu0 0
      %5338 = vmatprep.subr.bf16.mxu0 0
      %5339 = vmatpush1.bf16.msra.mxu0 0
      %5340 = vmatprep.subr.bf16.mxu0 0
      %5341 = vmatpush1.bf16.msra.mxu0 0
      %5342 = vmatprep.subr.bf16.mxu0 0
      %5343 = vmatpush1.bf16.msra.mxu0 0
      %5344 = vmatprep.subr.bf16.mxu0 0
      %5345 = vmatpush1.bf16.msra.mxu0 0
      %5346 = vmatprep.subr.bf16.mxu0 0
      %5347 = vmatpush1.bf16.msra.mxu0 0
      %5348 = vmatprep.subr.bf16.mxu0 0
      %5349 = vmatpush1.bf16.msra.mxu0 0
      %5350 = vmatprep.subr.bf16.mxu0 0
      %5351 = vmatpush1.bf16.msra.mxu0 0
      %5352 = vmatprep.subr.bf16.mxu0 0
      %5353 = vmatpush1.bf16.msra.mxu0 0
      %5354 = vmatprep.subr.bf16.mxu0 0
      %5355 = vmatpush1.bf16.msra.mxu0 0
      %5356 = vmatprep.subr.bf16.mxu0 0
      %5357 = vmatpush1.bf16.msra.mxu0 0
      %5358 = vmatprep.subr.bf16.mxu0 0
      %5359 = vmatpush1.bf16.msra.mxu0 0
      %5360 = vmatprep.mubr.bf16.mxu0 0
      %5361 = vmatmul.mubr.bf16.gmra.mrb[0].mxu0 %v5323
      %v5362 = vpop.f32.mrb[0].mxu0
      %v5363 = vadd.f32 0.0, %v5362
      %v5364 = vpop.f32.mrb[0].mxu0
      %v5365 = vpop.f32.mrb[0].mxu0
      %v5366 = vpop.f32.mrb[0].mxu0
      %5367 = vdwg.mxu0
      %5372 = vrot.lane.b32.xlu0 %v4336, 8
      %v5373 = vpop.permute.xlu0 %5372
      %5374 = vrot.lane.b32.xlu0 %v4385, 8
      %v5375 = vpop.permute.xlu0 %5374
      %5376 = vrot.lane.b32.xlu0 %v4434, 8
      %v5377 = vpop.permute.xlu0 %5376
      %5378 = vrot.lane.b32.xlu0 %v4483, 8
      %v5379 = vpop.permute.xlu0 %5378
      %5388 = vrot.lane.b32.xlu0 %v4779, 16
      %v5389 = vpop.permute.xlu0 %5388
      %5390 = vrot.lane.b32.xlu0 %v4827, 16
      %v5391 = vpop.permute.xlu0 %5390
      %5392 = vrot.lane.b32.xlu0 %v4875, 16
      %v5393 = vpop.permute.xlu0 %5392
      %5394 = vrot.lane.b32.xlu0 %v4923, 16
      %v5395 = vpop.permute.xlu0 %5394
      %5404 = vrot.lane.b32.xlu0 %v5219, 24
      %v5405 = vpop.permute.xlu0 %5404
      %5406 = vrot.lane.b32.xlu0 %v5267, 24
      %v5407 = vpop.permute.xlu0 %5406
      %5408 = vrot.lane.b32.xlu0 %v5315, 24
      %v5409 = vpop.permute.xlu0 %5408
      %5410 = vrot.lane.b32.xlu0 %v5363, 24
      %v5411 = vpop.permute.xlu0 %5410
      %v5416 = vsel %vm1029, %v3893, %v5373
      %v5417 = vsel %vm1029, %v3939, %v5375
      %v5418 = vsel %vm1029, %v3985, %v5377
      %v5419 = vsel %vm1029, %v4031, %v5379
      %v5420 = vsel %vm2831, %v5416, %v5389
      %v5421 = vsel %vm2831, %v5417, %v5391
      %v5422 = vsel %vm2831, %v5418, %v5393
      %v5423 = vsel %vm2831, %v5419, %v5395
      %v5424 = vsel %vm2836, %v5420, %v5405
      %v5425 = vsel %vm2836, %v5421, %v5407
      %v5426 = vsel %vm2836, %v5422, %v5409
      %v5427 = vsel %vm2836, %v5423, %v5411
      %v5428 = vpack.c.bf16 %v5425, %v5424
      %v5429 = vpack.c.bf16 %v5427, %v5426
      %s5430 = scalar_lea.vmem %s10, 16
      %v5431 = vld [vmem:[%s5430] sm:$0xf]
      %v5432 = vld [vmem:[%s5430 + $0x4] sm:$0xf]
      %v5433 = vld [vmem:[%s5430 + $0x8] sm:$0xf]
      %v5434 = vld [vmem:[%s5430 + $0xc] sm:$0xf]
      %v5435 = vld [vmem:[%s11 + $0x1] sm:$0x1]
      %v5436 = vlaneseq
      %v5437 = vshrl.u32 %v5436, 7
      %v5438 = vsub.s32 0, %v5437
      %v5439 = vrot.slane %v5435, %v5438
      %v5444 = vunpack.c.l.b16 %v5431
      %v5445 = vunpack.c.l.b16 %v5432
      %v5446 = vunpack.c.l.b16 %v5433
      %v5447 = vunpack.c.l.b16 %v5434
      %v5448 = vpack.c.b16 %v5445, %v5444
      %v5449 = vpack.c.b16 %v5447, %v5446
      %v5453 = vsel %vm667, %v5428, 0
      %v5456 = vsel %vm667, %v5429, 0
      %5458 = vmatprep.subr.bf16.mxu0 0
      %5459 = vmatpush1.bf16.msra.mxu0 %v5448
      %5460 = vmatprep.subr.bf16.mxu0 0
      %5461 = vmatpush1.bf16.msra.mxu0 %v5449
      %5462 = vmatprep.subr.bf16.mxu0 0
      %5463 = vmatpush1.bf16.msra.mxu0 0
      %5464 = vmatprep.subr.bf16.mxu0 0
      %5465 = vmatpush1.bf16.msra.mxu0 0
      %5466 = vmatprep.subr.bf16.mxu0 0
      %5467 = vmatpush1.bf16.msra.mxu0 0
      %5468 = vmatprep.subr.bf16.mxu0 0
      %5469 = vmatpush1.bf16.msra.mxu0 0
      %5470 = vmatprep.subr.bf16.mxu0 0
      %5471 = vmatpush1.bf16.msra.mxu0 0
      %5472 = vmatprep.subr.bf16.mxu0 0
      %5473 = vmatpush1.bf16.msra.mxu0 0
      %5474 = vmatprep.subr.bf16.mxu0 0
      %5475 = vmatpush1.bf16.msra.mxu0 0
      %5476 = vmatprep.subr.bf16.mxu0 0
      %5477 = vmatpush1.bf16.msra.mxu0 0
      %5478 = vmatprep.subr.bf16.mxu0 0
      %5479 = vmatpush1.bf16.msra.mxu0 0
      %5480 = vmatprep.subr.bf16.mxu0 0
      %5481 = vmatpush1.bf16.msra.mxu0 0
      %5482 = vmatprep.subr.bf16.mxu0 0
      %5483 = vmatpush1.bf16.msra.mxu0 0
      %5484 = vmatprep.subr.bf16.mxu0 0
      %5485 = vmatpush1.bf16.msra.mxu0 0
      %5486 = vmatprep.subr.bf16.mxu0 0
      %5487 = vmatpush1.bf16.msra.mxu0 0
      %5488 = vmatprep.subr.bf16.mxu0 0
      %5489 = vmatpush1.bf16.msra.mxu0 0
      %5490 = vmatprep.mubr.bf16.mxu0 0
      %5491 = vmatmul.mubr.bf16.gmra.mrb[0].mxu0 %v5453
      %v5492 = vpop.f32.mrb[0].mxu0
      %v5493 = vadd.f32 %v5439, %v5492
      %v5494 = vpop.f32.mrb[0].mxu0
      %v5495 = vpop.f32.mrb[0].mxu0
      %v5496 = vadd.f32 %v5439, %v5495
      %v5497 = vpop.f32.mrb[0].mxu0
      %5498 = vmatprep.mubr.bf16.mxu0 0
      %5499 = vmatmul.mubr.bf16.gmra.mrb[0].mxu0 %v5456
      %v5500 = vpop.f32.mrb[0].mxu0
      %v5501 = vadd.f32 %v5439, %v5500
      %v5502 = vpop.f32.mrb[0].mxu0
      %v5503 = vpop.f32.mrb[0].mxu0
      %v5504 = vadd.f32 %v5439, %v5503
      %v5505 = vpop.f32.mrb[0].mxu0
      %5506 = vdwg.mxu0
      %v5507 = vadd.f32 %v3241, %v5493
      %v5508 = vadd.f32 %v3242, %v5496
      %v5509 = vadd.f32 %v3243, %v5501
      %v5510 = vadd.f32 %v3244, %v5504
      %v5511 = vld [vmem:[%s16 + $0x1] sm:$0x1]
      %v5512 = vld [vmem:[%s17 + $0x1] sm:$0x1]
      %v5513 = vsel %vm667, %v5507, 0.0
      %5514 = vadd.xlane.f32.xlu0 %v5513
      %v5515 = vpop.xlane.xlu0 %5514
      %v5516 = vsel %vm667, %v5508, 0.0
      %5517 = vadd.xlane.f32.xlu0 %v5516
      %v5518 = vpop.xlane.xlu0 %5517
      %v5519 = vsel %vm667, %v5509, 0.0
      %5520 = vadd.xlane.f32.xlu0 %v5519
      %v5521 = vpop.xlane.xlu0 %5520
      %v5522 = vsel %vm667, %v5510, 0.0
      %5523 = vadd.xlane.f32.xlu0 %v5522
      %v5524 = vpop.xlane.xlu0 %5523
      %v5525 = vmul.f32 %v5515, %v2937
      %v5526 = vmul.f32 %v5518, %v2937
      %v5527 = vmul.f32 %v5521, %v2937
      %v5528 = vmul.f32 %v5524, %v2937
      %v5529 = vsub.f32 %v5507, %v5525
      %v5530 = vsub.f32 %v5508, %v5526
      %v5531 = vsub.f32 %v5509, %v5527
      %v5532 = vsub.f32 %v5510, %v5528
      %v5533 = vmul.f32 %v5529, %v5529
      %v5534 = vmul.f32 %v5530, %v5530
      %v5535 = vmul.f32 %v5531, %v5531
      %v5536 = vmul.f32 %v5532, %v5532
      %v5537 = vsel %vm667, %v5533, 0.0
      %5538 = vadd.xlane.f32.xlu0 %v5537
      %v5539 = vpop.xlane.xlu0 %5538
      %v5540 = vsel %vm667, %v5534, 0.0
      %5541 = vadd.xlane.f32.xlu0 %v5540
      %v5542 = vpop.xlane.xlu0 %5541
      %v5543 = vsel %vm667, %v5535, 0.0
      %5544 = vadd.xlane.f32.xlu0 %v5543
      %v5545 = vpop.xlane.xlu0 %5544
      %v5546 = vsel %vm667, %v5536, 0.0
      %5547 = vadd.xlane.f32.xlu0 %v5546
      %v5548 = vpop.xlane.xlu0 %5547
      %v5549 = vmul.f32 %v5539, %v2937
      %v5550 = vmul.f32 %v5542, %v2937
      %v5551 = vmul.f32 %v5545, %v2937
      %v5552 = vmul.f32 %v5548, %v2937
      %v5553 = vadd.f32 %v5549, 1e-05
      %v5554 = vadd.f32 %v5550, 1e-05
      %v5555 = vadd.f32 %v5551, 1e-05
      %v5556 = vadd.f32 %v5552, 1e-05
      %v5557 = vrsqrt.pop %v5553
      %v5558 = vrsqrt.pop %v5554
      %v5559 = vrsqrt.pop %v5555
      %v5560 = vrsqrt.pop %v5556
      %v5561 = vmul.f32 %v5529, %v5557
      %v5562 = vmul.f32 %v5530, %v5558
      %v5563 = vmul.f32 %v5531, %v5559
      %v5564 = vmul.f32 %v5532, %v5560
      %v5565 = vlaneseq
      %v5566 = vshrl.u32 %v5565, 7
      %v5567 = vsub.s32 0, %v5566
      %v5568 = vrot.slane %v5511, %v5567
      %v5569 = vmul.f32 %v5561, %v5568
      %v5570 = vmul.f32 %v5562, %v5568
      %v5571 = vmul.f32 %v5563, %v5568
      %v5572 = vmul.f32 %v5564, %v5568
      %v5573 = vlaneseq
      %v5574 = vshrl.u32 %v5573, 7
      %v5575 = vsub.s32 0, %v5574
      %v5576 = vrot.slane %v5512, %v5575
      %v5577 = vadd.f32 %v5569, %v5576
      %v5578 = vadd.f32 %v5570, %v5576
      %v5579 = vadd.f32 %v5571, %v5576
      %v5580 = vadd.f32 %v5572, %v5576
      %v5581 = vpack.c.bf16 %v5578, %v5577
      %v5582 = vpack.c.bf16 %v5580, %v5579
      %s5583 = scalar_lea.vmem %s12, 16
      %v5584 = vld [vmem:[%s5583] sm:$0xf]
      %v5585 = vld [vmem:[%s5583 + $0x4] sm:$0xf]
      %v5586 = vld [vmem:[%s5583 + $0x8] sm:$0xf]
      %v5587 = vld [vmem:[%s5583 + $0xc] sm:$0xf]
      %v5588 = vld [vmem:[%s13 + $0x1] sm:$0x1]
      %v5589 = vlaneseq
      %v5590 = vshrl.u32 %v5589, 7
      %v5591 = vsub.s32 0, %v5590
      %v5592 = vrot.slane %v5588, %v5591
      %v5597 = vunpack.c.l.b16 %v5584
      %v5598 = vunpack.c.l.b16 %v5585
      %v5599 = vunpack.c.l.b16 %v5586
      %v5600 = vunpack.c.l.b16 %v5587
      %v5601 = vpack.c.b16 %v5598, %v5597
      %v5602 = vpack.c.b16 %v5600, %v5599
      %v5606 = vsel %vm667, %v5581, 0
      %v5609 = vsel %vm667, %v5582, 0
      %5611 = vmatprep.subr.bf16.mxu0 0
      %5612 = vmatpush1.bf16.msra.mxu0 %v5601
      %5613 = vmatprep.subr.bf16.mxu0 0
      %5614 = vmatpush1.bf16.msra.mxu0 %v5602
      %5615 = vmatprep.subr.bf16.mxu0 0
      %5616 = vmatpush1.bf16.msra.mxu0 0
      %5617 = vmatprep.subr.bf16.mxu0 0
      %5618 = vmatpush1.bf16.msra.mxu0 0
      %5619 = vmatprep.subr.bf16.mxu0 0
      %5620 = vmatpush1.bf16.msra.mxu0 0
      %5621 = vmatprep.subr.bf16.mxu0 0
      %5622 = vmatpush1.bf16.msra.mxu0 0
      %5623 = vmatprep.subr.bf16.mxu0 0
      %5624 = vmatpush1.bf16.msra.mxu0 0
      %5625 = vmatprep.subr.bf16.mxu0 0
      %5626 = vmatpush1.bf16.msra.mxu0 0
      %5627 = vmatprep.subr.bf16.mxu0 0
      %5628 = vmatpush1.bf16.msra.mxu0 0
      %5629 = vmatprep.subr.bf16.mxu0 0
      %5630 = vmatpush1.bf16.msra.mxu0 0
      %5631 = vmatprep.subr.bf16.mxu0 0
      %5632 = vmatpush1.bf16.msra.mxu0 0
      %5633 = vmatprep.subr.bf16.mxu0 0
      %5634 = vmatpush1.bf16.msra.mxu0 0
      %5635 = vmatprep.subr.bf16.mxu0 0
      %5636 = vmatpush1.bf16.msra.mxu0 0
      %5637 = vmatprep.subr.bf16.mxu0 0
      %5638 = vmatpush1.bf16.msra.mxu0 0
      %5639 = vmatprep.subr.bf16.mxu0 0
      %5640 = vmatpush1.bf16.msra.mxu0 0
      %5641 = vmatprep.subr.bf16.mxu0 0
      %5642 = vmatpush1.bf16.msra.mxu0 0
      %5643 = vmatprep.mubr.bf16.mxu0 0
      %5644 = vmatmul.mubr.bf16.gmra.mrb[0].mxu0 %v5606
      %v5645 = vpop.f32.mrb[0].mxu0
      %v5646 = vadd.f32 %v5592, %v5645
      %v5647 = vpop.f32.mrb[0].mxu0
      %v5648 = vpop.f32.mrb[0].mxu0
      %v5649 = vadd.f32 %v5592, %v5648
      %v5650 = vpop.f32.mrb[0].mxu0
      %5651 = vmatprep.mubr.bf16.mxu0 0
      %5652 = vmatmul.mubr.bf16.gmra.mrb[0].mxu0 %v5609
      %v5653 = vpop.f32.mrb[0].mxu0
      %v5654 = vadd.f32 %v5592, %v5653
      %v5655 = vpop.f32.mrb[0].mxu0
      %v5656 = vpop.f32.mrb[0].mxu0
      %v5657 = vadd.f32 %v5592, %v5656
      %v5658 = vpop.f32.mrb[0].mxu0
      %5659 = vdwg.mxu0
      %v5660 = vmax.f32 %v5646, 0.0
      %v5661 = vmax.f32 %v5649, 0.0
      %v5662 = vmax.f32 %v5654, 0.0
      %v5663 = vmax.f32 %v5657, 0.0
      %v5664 = vpack.c.bf16 %v5661, %v5660
      %v5665 = vpack.c.bf16 %v5663, %v5662
      %s5666 = scalar_lea.vmem %s14, 32
      %v5667 = vld [vmem:[%s5666] sm:$0xf]
      %v5668 = vld [vmem:[%s5666 + $0x4] sm:$0xf]
      %v5669 = vld [vmem:[%s5666 + $0x8] sm:$0xf]
      %v5670 = vld [vmem:[%s5666 + $0xc] sm:$0xf]
      %v5671 = vld [vmem:[%s5666 + $0x10] sm:$0xf]
      %v5672 = vld [vmem:[%s5666 + $0x14] sm:$0xf]
      %v5673 = vld [vmem:[%s5666 + $0x18] sm:$0xf]
      %v5674 = vld [vmem:[%s5666 + $0x1c] sm:$0xf]
      %v5675 = vld [vmem:[%s15 + $0x1] sm:$0x1]
      %v5676 = vlaneseq
      %v5677 = vshrl.u32 %v5676, 7
      %v5678 = vsub.s32 0, %v5677
      %v5679 = vrot.slane %v5675, %v5678
      %v5688 = vunpack.c.l.b16 %v5667
      %v5689 = vunpack.c.l.b16 %v5668
      %v5690 = vunpack.c.l.b16 %v5669
      %v5691 = vunpack.c.l.b16 %v5670
      %v5692 = vunpack.c.l.b16 %v5671
      %v5693 = vunpack.c.l.b16 %v5672
      %v5694 = vunpack.c.l.b16 %v5673
      %v5695 = vunpack.c.l.b16 %v5674
      %v5696 = vpack.c.b16 %v5689, %v5688
      %v5697 = vpack.c.b16 %v5691, %v5690
      %v5698 = vpack.c.b16 %v5693, %v5692
      %v5699 = vpack.c.b16 %v5695, %v5694
      %v5705 = vsel %vm3115, %v5664, 0
      %v5708 = vsel %vm3115, %v5665, 0
      %5710 = vmatprep.subr.bf16.mxu0 0
      %5711 = vmatpush1.bf16.msra.mxu0 %v5696
      %5712 = vmatprep.subr.bf16.mxu0 0
      %5713 = vmatpush1.bf16.msra.mxu0 %v5697
      %5714 = vmatprep.subr.bf16.mxu0 0
      %5715 = vmatpush1.bf16.msra.mxu0 %v5698
      %5716 = vmatprep.subr.bf16.mxu0 0
      %5717 = vmatpush1.bf16.msra.mxu0 %v5699
      %5718 = vmatprep.subr.bf16.mxu0 0
      %5719 = vmatpush1.bf16.msra.mxu0 0
      %5720 = vmatprep.subr.bf16.mxu0 0
      %5721 = vmatpush1.bf16.msra.mxu0 0
      %5722 = vmatprep.subr.bf16.mxu0 0
      %5723 = vmatpush1.bf16.msra.mxu0 0
      %5724 = vmatprep.subr.bf16.mxu0 0
      %5725 = vmatpush1.bf16.msra.mxu0 0
      %5726 = vmatprep.subr.bf16.mxu0 0
      %5727 = vmatpush1.bf16.msra.mxu0 0
      %5728 = vmatprep.subr.bf16.mxu0 0
      %5729 = vmatpush1.bf16.msra.mxu0 0
      %5730 = vmatprep.subr.bf16.mxu0 0
      %5731 = vmatpush1.bf16.msra.mxu0 0
      %5732 = vmatprep.subr.bf16.mxu0 0
      %5733 = vmatpush1.bf16.msra.mxu0 0
      %5734 = vmatprep.subr.bf16.mxu0 0
      %5735 = vmatpush1.bf16.msra.mxu0 0
      %5736 = vmatprep.subr.bf16.mxu0 0
      %5737 = vmatpush1.bf16.msra.mxu0 0
      %5738 = vmatprep.subr.bf16.mxu0 0
      %5739 = vmatpush1.bf16.msra.mxu0 0
      %5740 = vmatprep.subr.bf16.mxu0 0
      %5741 = vmatpush1.bf16.msra.mxu0 0
      %5742 = vmatprep.mubr.bf16.mxu0 0
      %5743 = vmatmul.mubr.bf16.gmra.mrb[0].mxu0 %v5705
      %v5744 = vpop.f32.mrb[0].mxu0
      %v5745 = vadd.f32 %v5679, %v5744
      %v5746 = vpop.f32.mrb[0].mxu0
      %v5747 = vpop.f32.mrb[0].mxu0
      %v5748 = vadd.f32 %v5679, %v5747
      %v5749 = vpop.f32.mrb[0].mxu0
      %5750 = vmatprep.mubr.bf16.mxu0 0
      %5751 = vmatmul.mubr.bf16.gmra.mrb[0].mxu0 %v5708
      %v5752 = vpop.f32.mrb[0].mxu0
      %v5753 = vadd.f32 %v5679, %v5752
      %v5754 = vpop.f32.mrb[0].mxu0
      %v5755 = vpop.f32.mrb[0].mxu0
      %v5756 = vadd.f32 %v5679, %v5755
      %v5757 = vpop.f32.mrb[0].mxu0
      %5758 = vdwg.mxu0
      %v5759 = vadd.f32 %v5577, %v5745
      %v5760 = vadd.f32 %v5578, %v5748
      %v5761 = vadd.f32 %v5579, %v5753
      %v5762 = vadd.f32 %v5580, %v5756
      %v5763 = vld [vmem:[%s18 + $0x1] sm:$0x1]
      %v5764 = vld [vmem:[%s19 + $0x1] sm:$0x1]
      %v5765 = vsel %vm667, %v5759, 0.0
      %5766 = vadd.xlane.f32.xlu0 %v5765
      %v5767 = vpop.xlane.xlu0 %5766
      %v5768 = vsel %vm667, %v5760, 0.0
      %5769 = vadd.xlane.f32.xlu0 %v5768
      %v5770 = vpop.xlane.xlu0 %5769
      %v5771 = vsel %vm667, %v5761, 0.0
      %5772 = vadd.xlane.f32.xlu0 %v5771
      %v5773 = vpop.xlane.xlu0 %5772
      %v5774 = vsel %vm667, %v5762, 0.0
      %5775 = vadd.xlane.f32.xlu0 %v5774
      %v5776 = vpop.xlane.xlu0 %5775
      %v5777 = vmul.f32 %v5767, %v2937
      %v5778 = vmul.f32 %v5770, %v2937
      %v5779 = vmul.f32 %v5773, %v2937
      %v5780 = vmul.f32 %v5776, %v2937
      %v5781 = vsub.f32 %v5759, %v5777
      %v5782 = vsub.f32 %v5760, %v5778
      %v5783 = vsub.f32 %v5761, %v5779
      %v5784 = vsub.f32 %v5762, %v5780
      %v5785 = vmul.f32 %v5781, %v5781
      %v5786 = vmul.f32 %v5782, %v5782
      %v5787 = vmul.f32 %v5783, %v5783
      %v5788 = vmul.f32 %v5784, %v5784
      %v5789 = vsel %vm667, %v5785, 0.0
      %5790 = vadd.xlane.f32.xlu0 %v5789
      %v5791 = vpop.xlane.xlu0 %5790
      %v5792 = vsel %vm667, %v5786, 0.0
      %5793 = vadd.xlane.f32.xlu0 %v5792
      %v5794 = vpop.xlane.xlu0 %5793
      %v5795 = vsel %vm667, %v5787, 0.0
      %5796 = vadd.xlane.f32.xlu0 %v5795
      %v5797 = vpop.xlane.xlu0 %5796
      %v5798 = vsel %vm667, %v5788, 0.0
      %5799 = vadd.xlane.f32.xlu0 %v5798
      %v5800 = vpop.xlane.xlu0 %5799
      %v5801 = vmul.f32 %v5791, %v2937
      %v5802 = vmul.f32 %v5794, %v2937
      %v5803 = vmul.f32 %v5797, %v2937
      %v5804 = vmul.f32 %v5800, %v2937
      %v5805 = vadd.f32 %v5801, 1e-05
      %v5806 = vadd.f32 %v5802, 1e-05
      %v5807 = vadd.f32 %v5803, 1e-05
      %v5808 = vadd.f32 %v5804, 1e-05
      %v5809 = vrsqrt.pop %v5805
      %v5810 = vrsqrt.pop %v5806
      %v5811 = vrsqrt.pop %v5807
      %v5812 = vrsqrt.pop %v5808
      %v5813 = vmul.f32 %v5781, %v5809
      %v5814 = vmul.f32 %v5782, %v5810
      %v5815 = vmul.f32 %v5783, %v5811
      %v5816 = vmul.f32 %v5784, %v5812
      %v5817 = vlaneseq
      %v5818 = vshrl.u32 %v5817, 7
      %v5819 = vsub.s32 0, %v5818
      %v5820 = vrot.slane %v5763, %v5819
      %v5821 = vmul.f32 %v5813, %v5820
      %v5822 = vmul.f32 %v5814, %v5820
      %v5823 = vmul.f32 %v5815, %v5820
      %v5824 = vmul.f32 %v5816, %v5820
      %v5825 = vlaneseq
      %v5826 = vshrl.u32 %v5825, 7
      %v5827 = vsub.s32 0, %v5826
      %v5828 = vrot.slane %v5764, %v5827
      %v5829 = vadd.f32 %v5821, %v5828
      %v5830 = vadd.f32 %v5822, %v5828
      %v5831 = vadd.f32 %v5823, %v5828
      %v5832 = vadd.f32 %v5824, %v5828
      %5833 = vst.msk [vmem:[%s631] sm:$0xff] %vm667, %v5829
      %5834 = vst.msk [vmem:[%s631 + $0x8] sm:$0xff] %vm667, %v5830
      %5835 = vst.msk [vmem:[%s631 + $0x10] sm:$0xff] %vm667, %v5831
      %5836 = vst.msk [vmem:[%s631 + $0x18] sm:$0xff] %vm667, %v5832
      %s5837 = smul.u32 4, %s31
      %p5838 = scmp.lt.s32.totalorder %s5837, 7
      %s5839 = scalar_select %p5838, %s5837, 7
      %s5840 = smul.addr %s5839, 8
      %s5841 = scalar_lea.vmem %s20, %s5840
      // Predicated region
      $region101: #{hierarchical_encoder_forward.4} parent=99 // pred_check
        %p5842 = pneg %p474
      $region102: #{hierarchical_encoder_forward.4} parent=99 // pred_check_branch
        %5844 = sbr.rel (%p5842) target = $region104
      $region103: #{hierarchical_encoder_forward.4} parent=99 // pred_region
        %s5845 = smul.u32 4, %s31
      $region104: #{hierarchical_encoder_forward.4} parent=99 // pred_fallthru
        _
    $region100: #{hierarchical_encoder_forward.4} parent=5 // pred_fallthru
      _
    %p5846 = scmp.le.s32.totalorder 2, %s26
    // Predicated region
    $region105: #{hierarchical_encoder_forward.4} parent=5 // pred_check
      %p5847 = pneg %p5846
    $region106: #{hierarchical_encoder_forward.4} parent=5 // pred_check_branch
      %5849 = sbr.rel (%p5847) target = $region108
    $region107: #{hierarchical_encoder_forward.4} parent=5 // pred_region
      %s5850 = ssub.s32 %s26, 2
      // Predicated region
      $region109: #{hierarchical_encoder_forward.4} parent=107 // pred_check
        %p5851 = pneg %p480
      $region110: #{hierarchical_encoder_forward.4} parent=107 // pred_check_branch
        %5853 = sbr.rel (%p5851) target = $region112
      $region111: #{hierarchical_encoder_forward.4} parent=107 // pred_region
        %s5854 = smul.u32 4, %s32
        %p5855 = scmp.lt.s32.totalorder %s5854, 7
        %s5856 = scalar_select %p5855, %s5854, 7
        %s5857 = smul.addr %s5856, 8
        %s5858 = scalar_lea.vmem %s20, %s5857
      $region112: #{hierarchical_encoder_forward.4} parent=107 // pred_fallthru
        _
    $region108: #{hierarchical_encoder_forward.4} parent=5 // pred_fallthru
      _
  $region6: #{hierarchical_encoder_forward.4} parent=0 // loop_footer
    %s30 = sadd.s32 1, %s26
  $region7: #{hierarchical_encoder_forward.4} parent=0 // loop_footer_branch
    %25 = sbr.rel target = $region3
  $region8: #{hierarchical_encoder_forward.4} parent=0 // loop_exit
    _

</llo_original>
